<compile_context>
chip_gen: v7x
topology: tpu7x:2x2x1
jax: 0.10.0
libtpu: 0.0.40
codegen_flags: <defaults>
</compile_context>

<pallas_src>
import functools

import jax
import jax.numpy as jnp
from jax.experimental import pallas as pl
from jax.experimental.pallas import tpu as pltpu


def _zero_border(pad_ref):
    """Zero only the 1-pixel border of an (H+2, W+2, C) VMEM scratch buffer."""
    Hp, Wp, C = pad_ref.shape
    dt = pad_ref.dtype
    pad_ref[0:1, :, :] = jnp.zeros((1, Wp, C), dt)
    pad_ref[Hp - 1:Hp, :, :] = jnp.zeros((1, Wp, C), dt)
    pad_ref[:, 0:1, :] = jnp.zeros((Hp, 1, C), dt)
    pad_ref[:, Wp - 1:Wp, :] = jnp.zeros((Hp, 1, C), dt)


def _build_slab(slab_ref, pad_ref, H, W, C):
    """im2col: slab[h, w, (dh*3+dw)*C : +C] = pad[h+dh, w+dw, :]."""
    for dh in range(3):
        for dw in range(3):
            c0 = (dh * 3 + dw) * C
            slab_ref[:, :, c0:c0 + C] = pad_ref[dh:dh + H, dw:dw + W, :]


def _decoder_fused_kernel(x_ref, w1_ref, b1_ref, w2_ref, b2_ref, o_ref,
                          xpad1, slab1, xpad2, slab2, *, H, W, C_in, C_mid):
    """Fused Decoder for one image.

    x_ref:  (1, H, W, C_in)     bf16 input tile
    w1_ref: (9*C_in, C_mid)     bf16 layer-1 weights (BN1 scale folded in)
    b1_ref: (1, C_mid)          f32  layer-1 folded BN bias
    w2_ref: (9*C_mid, C_mid)    bf16 layer-2 weights (BN2 scale folded in)
    b2_ref: (1, C_mid)          f32  layer-2 folded BN bias
    o_ref:  (1, H*W, C_mid)     f32  output
    xpad*/slab*: VMEM scratch (padded inputs / im2col slabs)
    """
    # ---------------- layer 1: pad -> im2col -> single MXU matmul ----------
    _zero_border(xpad1)
    xpad1[1:H + 1, 1:W + 1, :] = x_ref[0]
    _build_slab(slab1, xpad1, H, W, C_in)

    patches1 = slab1[...].reshape(H * W, 9 * C_in)
    acc1 = jnp.dot(patches1, w1_ref[...], preferred_element_type=jnp.float32)
    y1 = jnp.maximum(acc1 + b1_ref[...], 0.0)          # folded BN bias + ReLU

    # ---------------- layer 2 (input stays resident in VMEM) ---------------
    _zero_border(xpad2)
    xpad2[1:H + 1, 1:W + 1, :] = y1.astype(jnp.bfloat16).reshape(H, W, C_mid)
    _build_slab(slab2, xpad2, H, W, C_mid)

    patches2 = slab2[...].reshape(H * W, 9 * C_mid)
    acc2 = jnp.dot(patches2, w2_ref[...], preferred_element_type=jnp.float32)
    o_ref[0] = jnp.maximum(acc2 + b2_ref[...], 0.0)


def decoder_forward(x_nchw, params):
    """Full Decoder forward. Input/output are NCHW to match the PyTorch module."""
    N, C_in, H, W = x_nchw.shape
    C_mid = params["w1_hwio"].shape[-1]

    # NCHW -> NHWC, bf16 MXU operands (f32 accumulation inside the kernel).
    x = jnp.transpose(x_nchw, (0, 2, 3, 1)).astype(jnp.bfloat16)

    # Fold BN scale into the conv weights; reshape to im2col weight matrices.
    w1 = (params["w1_hwio"] * params["scale1"][None, None, None, :]
          ).reshape(9 * C_in, C_mid).astype(jnp.bfloat16)
    w2 = (params["w2_hwio"] * params["scale2"][None, None, None, :]
          ).reshape(9 * C_mid, C_mid).astype(jnp.bfloat16)
    b1 = params["bias1"].reshape(1, C_mid).astype(jnp.float32)
    b2 = params["bias2"].reshape(1, C_mid).astype(jnp.float32)

    kernel = functools.partial(_decoder_fused_kernel,
                               H=H, W=W, C_in=C_in, C_mid=C_mid)
    out = pl.pallas_call(
        kernel,
        out_shape=jax.ShapeDtypeStruct((N, H * W, C_mid), jnp.float32),
        grid=(N,),
        in_specs=[
            pl.BlockSpec((1, H, W, C_in), lambda b: (b, 0, 0, 0)),
            pl.BlockSpec((9 * C_in, C_mid), lambda b: (0, 0)),
            pl.BlockSpec((1, C_mid), lambda b: (0, 0)),
            pl.BlockSpec((9 * C_mid, C_mid), lambda b: (0, 0)),
            pl.BlockSpec((1, C_mid), lambda b: (0, 0)),
        ],
        out_specs=pl.BlockSpec((1, H * W, C_mid), lambda b: (b, 0, 0)),
        scratch_shapes=[
            pltpu.VMEM((H + 2, W + 2, C_in), jnp.bfloat16),   # padded layer-1 input
            pltpu.VMEM((H, W, 9 * C_in), jnp.bfloat16),       # layer-1 im2col slab
            pltpu.VMEM((H + 2, W + 2, C_mid), jnp.bfloat16),  # padded layer-2 input
            pltpu.VMEM((H, W, 9 * C_mid), jnp.bfloat16),      # layer-2 im2col slab
        ],
        compiler_params=pltpu.CompilerParams(
            dimension_semantics=("parallel",),
            vmem_limit_bytes=32 * 1024 * 1024,
        ),
    )(x, w1, b1, w2, b2)

    # (N, H*W, C) -> NHWC -> NCHW
    return jnp.transpose(out.reshape(N, H, W, C_mid), (0, 3, 1, 2))


def _reference_forward(x_nchw, params):
    """Pure-JAX f32 reference (lax.conv) mirroring the PyTorch module in eval mode."""
    x = jnp.transpose(x_nchw, (0, 2, 3, 1))
    dn1 = jax.lax.conv_dimension_numbers(x.shape, params["w1_hwio"].shape,
                                         ("NHWC", "HWIO", "NHWC"))
    y = jax.lax.conv_general_dilated(x, params["w1_hwio"], (1, 1), "SAME",
                                     dimension_numbers=dn1)
    y = jnp.maximum(y * params["scale1"] + params["bias1"], 0.0)
    dn2 = jax.lax.conv_dimension_numbers(y.shape, params["w2_hwio"].shape,
                                         ("NHWC", "HWIO", "NHWC"))
    y = jax.lax.conv_general_dilated(y, params["w2_hwio"], (1, 1), "SAME",
                                     dimension_numbers=dn2)
    y = jnp.maximum(y * params["scale2"] + params["bias2"], 0.0)
    return jnp.transpose(y, (0, 3, 1, 2))


def make_params(key, in_channels, out_channels):
    ks = jax.random.split(key, 10)
    # PyTorch Conv2d weights are (Cout, Cin, KH, KW); store as HWIO.
    w1_oihw = jax.random.normal(ks[0], (out_channels, in_channels, 3, 3), jnp.float32) * 0.05
    w2_oihw = jax.random.normal(ks[1], (out_channels, out_channels, 3, 3), jnp.float32) * 0.05
    gamma1 = 1.0 + 0.1 * jax.random.normal(ks[2], (out_channels,), jnp.float32)
    beta1 = 0.1 * jax.random.normal(ks[3], (out_channels,), jnp.float32)
    mean1 = 0.1 * jax.random.normal(ks[4], (out_channels,), jnp.float32)
    var1 = jnp.abs(jax.random.normal(ks[5], (out_channels,), jnp.float32)) + 0.5
    gamma2 = 1.0 + 0.1 * jax.random.normal(ks[6], (out_channels,), jnp.float32)
    beta2 = 0.1 * jax.random.normal(ks[7], (out_channels,), jnp.float32)
    mean2 = 0.1 * jax.random.normal(ks[8], (out_channels,), jnp.float32)
    var2 = jnp.abs(jax.random.normal(ks[9], (out_channels,), jnp.float32)) + 0.5

    eps = 1e-5
    scale1 = gamma1 / jnp.sqrt(var1 + eps)
    bias1 = beta1 - mean1 * scale1
    scale2 = gamma2 / jnp.sqrt(var2 + eps)
    bias2 = beta2 - mean2 * scale2
    return {
        "w1_hwio": jnp.transpose(w1_oihw, (2, 3, 1, 0)),   # (3, 3, Cin, Cout)
        "w2_hwio": jnp.transpose(w2_oihw, (2, 3, 1, 0)),   # (3, 3, Cout, Cout)
        "scale1": scale1, "bias1": bias1,
        "scale2": scale2, "bias2": bias2,
    }


if __name__ == "__main__":
    # Small shapes consistent with the module (channels scaled down from 512/256).
    N, Cin, Cout, H, W = 2, 16, 32, 16, 16
    key = jax.random.PRNGKey(0)
    kx, kp = jax.random.split(key)
    x = jax.random.normal(kx, (N, Cin, H, W), jnp.float32)  # NCHW, like PyTorch
    params = make_params(kp, Cin, Cout)

    fwd = jax.jit(decoder_forward)
    out = jax.block_until_ready(fwd(x, params))

    ref = jax.block_until_ready(_reference_forward(x, params))
    assert out.shape == (N, Cout, H, W)
    # bf16 MXU operands with f32 accumulation -> loose-but-tight-enough tolerance.
    assert jnp.allclose(out, ref, rtol=2e-2, atol=2e-2)

    print("KERNEL_OK")
</pallas_src>

<mosaic_0001>
module attributes {stable_mosaic.version = 11 : i64} {
  func.func @_decoder_fused_kernel(%arg0: i32, %arg1: memref<1x16x16x16xbf16, #tpu.memory_space<vmem>>, %arg2: memref<144x32xbf16, #tpu.memory_space<vmem>>, %arg3: memref<1x32xf32, #tpu.memory_space<vmem>>, %arg4: memref<288x32xbf16, #tpu.memory_space<vmem>>, %arg5: memref<1x32xf32, #tpu.memory_space<vmem>>, %arg6: memref<1x256x32xf32, #tpu.memory_space<vmem>>, %arg7: memref<18x18x16xbf16, #tpu.memory_space<vmem>>, %arg8: memref<16x16x144xbf16, #tpu.memory_space<vmem>>, %arg9: memref<18x18x32xbf16, #tpu.memory_space<vmem>>, %arg10: memref<16x16x288xbf16, #tpu.memory_space<vmem>>) attributes {dimension_semantics = [#tpu.dimension_semantics<parallel>], iteration_bounds = array<i64: 2>, scalar_prefetch = 0 : i64, scratch_operands = 4 : i64, tpu.core_type = #tpu.core_type<tc>, window_params = [{transform_indices = @transform_0, window_bounds = array<i64: 1, 16, 16, 16>}, {pipeline_mode = #tpu.pipeline_mode<synchronous>, transform_indices = @transform_1, window_bounds = array<i64: 144, 32>}, {pipeline_mode = #tpu.pipeline_mode<synchronous>, transform_indices = @transform_2, window_bounds = array<i64: 1, 32>}, {pipeline_mode = #tpu.pipeline_mode<synchronous>, transform_indices = @transform_3, window_bounds = array<i64: 288, 32>}, {pipeline_mode = #tpu.pipeline_mode<synchronous>, transform_indices = @transform_4, window_bounds = array<i64: 1, 32>}, {transform_indices = @transform_5, window_bounds = array<i64: 1, 256, 32>}]} {
    %cst = arith.constant 0.000000e+00 : bf16
    %0 = vector.broadcast %cst : bf16 to vector<1x18x16xbf16>
    %c0 = arith.constant 0 : index
    %c0_0 = arith.constant 0 : index
    %c0_1 = arith.constant 0 : index
    %1 = vector.load %arg7[%c0, %c0_0, %c0_1] : memref<18x18x16xbf16, #tpu.memory_space<vmem>>, vector<1x18x16xbf16>
    tpu.vector_store %arg7[%c0, %c0_0, %c0_1], %0 {strides = array<i32>} : memref<18x18x16xbf16, #tpu.memory_space<vmem>>, vector<1x18x16xbf16>,
    %cst_2 = arith.constant 0.000000e+00 : bf16
    %2 = vector.broadcast %cst_2 : bf16 to vector<1x18x16xbf16>
    %c17 = arith.constant 17 : index
    %c0_3 = arith.constant 0 : index
    %c0_4 = arith.constant 0 : index
    %3 = vector.load %arg7[%c17, %c0_3, %c0_4] : memref<18x18x16xbf16, #tpu.memory_space<vmem>>, vector<1x18x16xbf16>
    tpu.vector_store %arg7[%c17, %c0_3, %c0_4], %2 {strides = array<i32>} : memref<18x18x16xbf16, #tpu.memory_space<vmem>>, vector<1x18x16xbf16>,
    %cst_5 = arith.constant 0.000000e+00 : bf16
    %4 = vector.broadcast %cst_5 : bf16 to vector<18x1x16xbf16>
    %c0_6 = arith.constant 0 : index
    %c0_7 = arith.constant 0 : index
    %c0_8 = arith.constant 0 : index
    %5 = vector.load %arg7[%c0_6, %c0_7, %c0_8] : memref<18x18x16xbf16, #tpu.memory_space<vmem>>, vector<18x1x16xbf16>
    tpu.vector_store %arg7[%c0_6, %c0_7, %c0_8], %4 {strides = array<i32>} : memref<18x18x16xbf16, #tpu.memory_space<vmem>>, vector<18x1x16xbf16>,
    %cst_9 = arith.constant 0.000000e+00 : bf16
    %6 = vector.broadcast %cst_9 : bf16 to vector<18x1x16xbf16>
    %c0_10 = arith.constant 0 : index
    %c17_11 = arith.constant 17 : index
    %c0_12 = arith.constant 0 : index
    %7 = vector.load %arg7[%c0_10, %c17_11, %c0_12] : memref<18x18x16xbf16, #tpu.memory_space<vmem>>, vector<18x1x16xbf16>
    tpu.vector_store %arg7[%c0_10, %c17_11, %c0_12], %6 {strides = array<i32>} : memref<18x18x16xbf16, #tpu.memory_space<vmem>>, vector<18x1x16xbf16>,
    %c0_13 = arith.constant 0 : index
    %c0_14 = arith.constant 0 : index
    %c0_15 = arith.constant 0 : index
    %c0_16 = arith.constant 0 : index
    %8 = vector.load %arg1[%c0_13, %c0_14, %c0_15, %c0_16] : memref<1x16x16x16xbf16, #tpu.memory_space<vmem>>, vector<1x16x16x16xbf16>
    %9 = vector.shape_cast %8 : vector<1x16x16x16xbf16> to vector<16x16x16xbf16>
    %c1 = arith.constant 1 : index
    %c1_17 = arith.constant 1 : index
    %c0_18 = arith.constant 0 : index
    %10 = vector.load %arg7[%c1, %c1_17, %c0_18] : memref<18x18x16xbf16, #tpu.memory_space<vmem>>, vector<16x16x16xbf16>
    tpu.vector_store %arg7[%c1, %c1_17, %c0_18], %9 {strides = array<i32>} : memref<18x18x16xbf16, #tpu.memory_space<vmem>>, vector<16x16x16xbf16>,
    %c0_19 = arith.constant 0 : index
    %c0_20 = arith.constant 0 : index
    %c0_21 = arith.constant 0 : index
    %11 = vector.load %arg7[%c0_19, %c0_20, %c0_21] : memref<18x18x16xbf16, #tpu.memory_space<vmem>>, vector<16x16x16xbf16>
    %c0_22 = arith.constant 0 : index
    %c0_23 = arith.constant 0 : index
    %c0_24 = arith.constant 0 : index
    %12 = vector.load %arg8[%c0_22, %c0_23, %c0_24] : memref<16x16x144xbf16, #tpu.memory_space<vmem>>, vector<16x16x16xbf16>
    tpu.vector_store %arg8[%c0_22, %c0_23, %c0_24], %11 {strides = array<i32>} : memref<16x16x144xbf16, #tpu.memory_space<vmem>>, vector<16x16x16xbf16>,
    %c0_25 = arith.constant 0 : index
    %c1_26 = arith.constant 1 : index
    %c0_27 = arith.constant 0 : index
    %13 = vector.load %arg7[%c0_25, %c1_26, %c0_27] : memref<18x18x16xbf16, #tpu.memory_space<vmem>>, vector<16x16x16xbf16>
    %c0_28 = arith.constant 0 : index
    %c0_29 = arith.constant 0 : index
    %c16 = arith.constant 16 : index
    %14 = vector.load %arg8[%c0_28, %c0_29, %c16] : memref<16x16x144xbf16, #tpu.memory_space<vmem>>, vector<16x16x16xbf16>
    tpu.vector_store %arg8[%c0_28, %c0_29, %c16], %13 {strides = array<i32>} : memref<16x16x144xbf16, #tpu.memory_space<vmem>>, vector<16x16x16xbf16>,
    %c0_30 = arith.constant 0 : index
    %c2 = arith.constant 2 : index
    %c0_31 = arith.constant 0 : index
    %15 = vector.load %arg7[%c0_30, %c2, %c0_31] : memref<18x18x16xbf16, #tpu.memory_space<vmem>>, vector<16x16x16xbf16>
    %c0_32 = arith.constant 0 : index
    %c0_33 = arith.constant 0 : index
    %c32 = arith.constant 32 : index
    %16 = vector.load %arg8[%c0_32, %c0_33, %c32] : memref<16x16x144xbf16, #tpu.memory_space<vmem>>, vector<16x16x16xbf16>
    tpu.vector_store %arg8[%c0_32, %c0_33, %c32], %15 {strides = array<i32>} : memref<16x16x144xbf16, #tpu.memory_space<vmem>>, vector<16x16x16xbf16>,
    %c1_34 = arith.constant 1 : index
    %c0_35 = arith.constant 0 : index
    %c0_36 = arith.constant 0 : index
    %17 = vector.load %arg7[%c1_34, %c0_35, %c0_36] : memref<18x18x16xbf16, #tpu.memory_space<vmem>>, vector<16x16x16xbf16>
    %c0_37 = arith.constant 0 : index
    %c0_38 = arith.constant 0 : index
    %c48 = arith.constant 48 : index
    %18 = vector.load %arg8[%c0_37, %c0_38, %c48] : memref<16x16x144xbf16, #tpu.memory_space<vmem>>, vector<16x16x16xbf16>
    tpu.vector_store %arg8[%c0_37, %c0_38, %c48], %17 {strides = array<i32>} : memref<16x16x144xbf16, #tpu.memory_space<vmem>>, vector<16x16x16xbf16>,
    %c1_39 = arith.constant 1 : index
    %c1_40 = arith.constant 1 : index
    %c0_41 = arith.constant 0 : index
    %19 = vector.load %arg7[%c1_39, %c1_40, %c0_41] : memref<18x18x16xbf16, #tpu.memory_space<vmem>>, vector<16x16x16xbf16>
    %c0_42 = arith.constant 0 : index
    %c0_43 = arith.constant 0 : index
    %c64 = arith.constant 64 : index
    %20 = vector.load %arg8[%c0_42, %c0_43, %c64] : memref<16x16x144xbf16, #tpu.memory_space<vmem>>, vector<16x16x16xbf16>
    tpu.vector_store %arg8[%c0_42, %c0_43, %c64], %19 {strides = array<i32>} : memref<16x16x144xbf16, #tpu.memory_space<vmem>>, vector<16x16x16xbf16>,
    %c1_44 = arith.constant 1 : index
    %c2_45 = arith.constant 2 : index
    %c0_46 = arith.constant 0 : index
    %21 = vector.load %arg7[%c1_44, %c2_45, %c0_46] : memref<18x18x16xbf16, #tpu.memory_space<vmem>>, vector<16x16x16xbf16>
    %c0_47 = arith.constant 0 : index
    %c0_48 = arith.constant 0 : index
    %c80 = arith.constant 80 : index
    %22 = vector.load %arg8[%c0_47, %c0_48, %c80] : memref<16x16x144xbf16, #tpu.memory_space<vmem>>, vector<16x16x16xbf16>
    tpu.vector_store %arg8[%c0_47, %c0_48, %c80], %21 {strides = array<i32>} : memref<16x16x144xbf16, #tpu.memory_space<vmem>>, vector<16x16x16xbf16>,
    %c2_49 = arith.constant 2 : index
    %c0_50 = arith.constant 0 : index
    %c0_51 = arith.constant 0 : index
    %23 = vector.load %arg7[%c2_49, %c0_50, %c0_51] : memref<18x18x16xbf16, #tpu.memory_space<vmem>>, vector<16x16x16xbf16>
    %c0_52 = arith.constant 0 : index
    %c0_53 = arith.constant 0 : index
    %c96 = arith.constant 96 : index
    %24 = vector.load %arg8[%c0_52, %c0_53, %c96] : memref<16x16x144xbf16, #tpu.memory_space<vmem>>, vector<16x16x16xbf16>
    tpu.vector_store %arg8[%c0_52, %c0_53, %c96], %23 {strides = array<i32>} : memref<16x16x144xbf16, #tpu.memory_space<vmem>>, vector<16x16x16xbf16>,
    %c2_54 = arith.constant 2 : index
    %c1_55 = arith.constant 1 : index
    %c0_56 = arith.constant 0 : index
    %25 = vector.load %arg7[%c2_54, %c1_55, %c0_56] : memref<18x18x16xbf16, #tpu.memory_space<vmem>>, vector<16x16x16xbf16>
    %c0_57 = arith.constant 0 : index
    %c0_58 = arith.constant 0 : index
    %c112 = arith.constant 112 : index
    %26 = vector.load %arg8[%c0_57, %c0_58, %c112] : memref<16x16x144xbf16, #tpu.memory_space<vmem>>, vector<16x16x16xbf16>
    tpu.vector_store %arg8[%c0_57, %c0_58, %c112], %25 {strides = array<i32>} : memref<16x16x144xbf16, #tpu.memory_space<vmem>>, vector<16x16x16xbf16>,
    %c2_59 = arith.constant 2 : index
    %c2_60 = arith.constant 2 : index
    %c0_61 = arith.constant 0 : index
    %27 = vector.load %arg7[%c2_59, %c2_60, %c0_61] : memref<18x18x16xbf16, #tpu.memory_space<vmem>>, vector<16x16x16xbf16>
    %c0_62 = arith.constant 0 : index
    %c0_63 = arith.constant 0 : index
    %c128 = arith.constant 128 : index
    %28 = vector.load %arg8[%c0_62, %c0_63, %c128] : memref<16x16x144xbf16, #tpu.memory_space<vmem>>, vector<16x16x16xbf16>
    tpu.vector_store %arg8[%c0_62, %c0_63, %c128], %27 {strides = array<i32>} : memref<16x16x144xbf16, #tpu.memory_space<vmem>>, vector<16x16x16xbf16>,
    %c0_64 = arith.constant 0 : index
    %c0_65 = arith.constant 0 : index
    %c0_66 = arith.constant 0 : index
    %29 = vector.load %arg8[%c0_64, %c0_65, %c0_66] : memref<16x16x144xbf16, #tpu.memory_space<vmem>>, vector<16x16x144xbf16>
    %30 = vector.shape_cast %29 : vector<16x16x144xbf16> to vector<256x144xbf16>
    %c0_67 = arith.constant 0 : index
    %c0_68 = arith.constant 0 : index
    %31 = vector.load %arg2[%c0_67, %c0_68] : memref<144x32xbf16, #tpu.memory_space<vmem>>, vector<144x32xbf16>
    %cst_69 = arith.constant dense<0.000000e+00> : vector<256x32xf32>
    %32 = tpu.matmul %30, %31, %cst_69 {dimension_numbers = #tpu.dot_dimension_numbers<[1], [0], [0], [1], [0, 0, 1, 1], [], []>} : vector<256x144xbf16>, vector<144x32xbf16>, vector<256x32xf32> -> vector<256x32xf32>
    %c0_70 = arith.constant 0 : index
    %c0_71 = arith.constant 0 : index
    %33 = vector.load %arg3[%c0_70, %c0_71] : memref<1x32xf32, #tpu.memory_space<vmem>>, vector<1x32xf32>
    %34 = vector.broadcast %33 : vector<1x32xf32> to vector<256x32xf32>
    %35 = arith.addf %32, %34 : vector<256x32xf32>
    %cst_72 = arith.constant 0.000000e+00 : f32
    %36 = vector.broadcast %cst_72 : f32 to vector<256x32xf32>
    %37 = arith.maximumf %35, %36 : vector<256x32xf32>
    %cst_73 = arith.constant 0.000000e+00 : bf16
    %38 = vector.broadcast %cst_73 : bf16 to vector<1x18x32xbf16>
    %c0_74 = arith.constant 0 : index
    %c0_75 = arith.constant 0 : index
    %c0_76 = arith.constant 0 : index
    %39 = vector.load %arg9[%c0_74, %c0_75, %c0_76] : memref<18x18x32xbf16, #tpu.memory_space<vmem>>, vector<1x18x32xbf16>
    tpu.vector_store %arg9[%c0_74, %c0_75, %c0_76], %38 {strides = array<i32>} : memref<18x18x32xbf16, #tpu.memory_space<vmem>>, vector<1x18x32xbf16>,
    %cst_77 = arith.constant 0.000000e+00 : bf16
    %40 = vector.broadcast %cst_77 : bf16 to vector<1x18x32xbf16>
    %c17_78 = arith.constant 17 : index
    %c0_79 = arith.constant 0 : index
    %c0_80 = arith.constant 0 : index
    %41 = vector.load %arg9[%c17_78, %c0_79, %c0_80] : memref<18x18x32xbf16, #tpu.memory_space<vmem>>, vector<1x18x32xbf16>
    tpu.vector_store %arg9[%c17_78, %c0_79, %c0_80], %40 {strides = array<i32>} : memref<18x18x32xbf16, #tpu.memory_space<vmem>>, vector<1x18x32xbf16>,
    %cst_81 = arith.constant 0.000000e+00 : bf16
    %42 = vector.broadcast %cst_81 : bf16 to vector<18x1x32xbf16>
    %c0_82 = arith.constant 0 : index
    %c0_83 = arith.constant 0 : index
    %c0_84 = arith.constant 0 : index
    %43 = vector.load %arg9[%c0_82, %c0_83, %c0_84] : memref<18x18x32xbf16, #tpu.memory_space<vmem>>, vector<18x1x32xbf16>
    tpu.vector_store %arg9[%c0_82, %c0_83, %c0_84], %42 {strides = array<i32>} : memref<18x18x32xbf16, #tpu.memory_space<vmem>>, vector<18x1x32xbf16>,
    %cst_85 = arith.constant 0.000000e+00 : bf16
    %44 = vector.broadcast %cst_85 : bf16 to vector<18x1x32xbf16>
    %c0_86 = arith.constant 0 : index
    %c17_87 = arith.constant 17 : index
    %c0_88 = arith.constant 0 : index
    %45 = vector.load %arg9[%c0_86, %c17_87, %c0_88] : memref<18x18x32xbf16, #tpu.memory_space<vmem>>, vector<18x1x32xbf16>
    tpu.vector_store %arg9[%c0_86, %c17_87, %c0_88], %44 {strides = array<i32>} : memref<18x18x32xbf16, #tpu.memory_space<vmem>>, vector<18x1x32xbf16>,
    %46 = arith.truncf %37 : vector<256x32xf32> to vector<256x32xbf16>
    %47 = vector.shape_cast %46 : vector<256x32xbf16> to vector<16x16x32xbf16>
    %c1_89 = arith.constant 1 : index
    %c1_90 = arith.constant 1 : index
    %c0_91 = arith.constant 0 : index
    %48 = vector.load %arg9[%c1_89, %c1_90, %c0_91] : memref<18x18x32xbf16, #tpu.memory_space<vmem>>, vector<16x16x32xbf16>
    tpu.vector_store %arg9[%c1_89, %c1_90, %c0_91], %47 {strides = array<i32>} : memref<18x18x32xbf16, #tpu.memory_space<vmem>>, vector<16x16x32xbf16>,
    %c0_92 = arith.constant 0 : index
    %c0_93 = arith.constant 0 : index
    %c0_94 = arith.constant 0 : index
    %49 = vector.load %arg9[%c0_92, %c0_93, %c0_94] : memref<18x18x32xbf16, #tpu.memory_space<vmem>>, vector<16x16x32xbf16>
    %c0_95 = arith.constant 0 : index
    %c0_96 = arith.constant 0 : index
    %c0_97 = arith.constant 0 : index
    %50 = vector.load %arg10[%c0_95, %c0_96, %c0_97] : memref<16x16x288xbf16, #tpu.memory_space<vmem>>, vector<16x16x32xbf16>
    tpu.vector_store %arg10[%c0_95, %c0_96, %c0_97], %49 {strides = array<i32>} : memref<16x16x288xbf16, #tpu.memory_space<vmem>>, vector<16x16x32xbf16>,
    %c0_98 = arith.constant 0 : index
    %c1_99 = arith.constant 1 : index
    %c0_100 = arith.constant 0 : index
    %51 = vector.load %arg9[%c0_98, %c1_99, %c0_100] : memref<18x18x32xbf16, #tpu.memory_space<vmem>>, vector<16x16x32xbf16>
    %c0_101 = arith.constant 0 : index
    %c0_102 = arith.constant 0 : index
    %c32_103 = arith.constant 32 : index
    %52 = vector.load %arg10[%c0_101, %c0_102, %c32_103] : memref<16x16x288xbf16, #tpu.memory_space<vmem>>, vector<16x16x32xbf16>
    tpu.vector_store %arg10[%c0_101, %c0_102, %c32_103], %51 {strides = array<i32>} : memref<16x16x288xbf16, #tpu.memory_space<vmem>>, vector<16x16x32xbf16>,
    %c0_104 = arith.constant 0 : index
    %c2_105 = arith.constant 2 : index
    %c0_106 = arith.constant 0 : index
    %53 = vector.load %arg9[%c0_104, %c2_105, %c0_106] : memref<18x18x32xbf16, #tpu.memory_space<vmem>>, vector<16x16x32xbf16>
    %c0_107 = arith.constant 0 : index
    %c0_108 = arith.constant 0 : index
    %c64_109 = arith.constant 64 : index
    %54 = vector.load %arg10[%c0_107, %c0_108, %c64_109] : memref<16x16x288xbf16, #tpu.memory_space<vmem>>, vector<16x16x32xbf16>
    tpu.vector_store %arg10[%c0_107, %c0_108, %c64_109], %53 {strides = array<i32>} : memref<16x16x288xbf16, #tpu.memory_space<vmem>>, vector<16x16x32xbf16>,
    %c1_110 = arith.constant 1 : index
    %c0_111 = arith.constant 0 : index
    %c0_112 = arith.constant 0 : index
    %55 = vector.load %arg9[%c1_110, %c0_111, %c0_112] : memref<18x18x32xbf16, #tpu.memory_space<vmem>>, vector<16x16x32xbf16>
    %c0_113 = arith.constant 0 : index
    %c0_114 = arith.constant 0 : index
    %c96_115 = arith.constant 96 : index
    %56 = vector.load %arg10[%c0_113, %c0_114, %c96_115] : memref<16x16x288xbf16, #tpu.memory_space<vmem>>, vector<16x16x32xbf16>
    tpu.vector_store %arg10[%c0_113, %c0_114, %c96_115], %55 {strides = array<i32>} : memref<16x16x288xbf16, #tpu.memory_space<vmem>>, vector<16x16x32xbf16>,
    %c1_116 = arith.constant 1 : index
    %c1_117 = arith.constant 1 : index
    %c0_118 = arith.constant 0 : index
    %57 = vector.load %arg9[%c1_116, %c1_117, %c0_118] : memref<18x18x32xbf16, #tpu.memory_space<vmem>>, vector<16x16x32xbf16>
    %c0_119 = arith.constant 0 : index
    %c0_120 = arith.constant 0 : index
    %c128_121 = arith.constant 128 : index
    %58 = vector.load %arg10[%c0_119, %c0_120, %c128_121] : memref<16x16x288xbf16, #tpu.memory_space<vmem>>, vector<16x16x32xbf16>
    tpu.vector_store %arg10[%c0_119, %c0_120, %c128_121], %57 {strides = array<i32>} : memref<16x16x288xbf16, #tpu.memory_space<vmem>>, vector<16x16x32xbf16>,
    %c1_122 = arith.constant 1 : index
    %c2_123 = arith.constant 2 : index
    %c0_124 = arith.constant 0 : index
    %59 = vector.load %arg9[%c1_122, %c2_123, %c0_124] : memref<18x18x32xbf16, #tpu.memory_space<vmem>>, vector<16x16x32xbf16>
    %c0_125 = arith.constant 0 : index
    %c0_126 = arith.constant 0 : index
    %c160 = arith.constant 160 : index
    %60 = vector.load %arg10[%c0_125, %c0_126, %c160] : memref<16x16x288xbf16, #tpu.memory_space<vmem>>, vector<16x16x32xbf16>
    tpu.vector_store %arg10[%c0_125, %c0_126, %c160], %59 {strides = array<i32>} : memref<16x16x288xbf16, #tpu.memory_space<vmem>>, vector<16x16x32xbf16>,
    %c2_127 = arith.constant 2 : index
    %c0_128 = arith.constant 0 : index
    %c0_129 = arith.constant 0 : index
    %61 = vector.load %arg9[%c2_127, %c0_128, %c0_129] : memref<18x18x32xbf16, #tpu.memory_space<vmem>>, vector<16x16x32xbf16>
    %c0_130 = arith.constant 0 : index
    %c0_131 = arith.constant 0 : index
    %c192 = arith.constant 192 : index
    %62 = vector.load %arg10[%c0_130, %c0_131, %c192] : memref<16x16x288xbf16, #tpu.memory_space<vmem>>, vector<16x16x32xbf16>
    tpu.vector_store %arg10[%c0_130, %c0_131, %c192], %61 {strides = array<i32>} : memref<16x16x288xbf16, #tpu.memory_space<vmem>>, vector<16x16x32xbf16>,
    %c2_132 = arith.constant 2 : index
    %c1_133 = arith.constant 1 : index
    %c0_134 = arith.constant 0 : index
    %63 = vector.load %arg9[%c2_132, %c1_133, %c0_134] : memref<18x18x32xbf16, #tpu.memory_space<vmem>>, vector<16x16x32xbf16>
    %c0_135 = arith.constant 0 : index
    %c0_136 = arith.constant 0 : index
    %c224 = arith.constant 224 : index
    %64 = vector.load %arg10[%c0_135, %c0_136, %c224] : memref<16x16x288xbf16, #tpu.memory_space<vmem>>, vector<16x16x32xbf16>
    tpu.vector_store %arg10[%c0_135, %c0_136, %c224], %63 {strides = array<i32>} : memref<16x16x288xbf16, #tpu.memory_space<vmem>>, vector<16x16x32xbf16>,
    %c2_137 = arith.constant 2 : index
    %c2_138 = arith.constant 2 : index
    %c0_139 = arith.constant 0 : index
    %65 = vector.load %arg9[%c2_137, %c2_138, %c0_139] : memref<18x18x32xbf16, #tpu.memory_space<vmem>>, vector<16x16x32xbf16>
    %c0_140 = arith.constant 0 : index
    %c0_141 = arith.constant 0 : index
    %c256 = arith.constant 256 : index
    %66 = vector.load %arg10[%c0_140, %c0_141, %c256] : memref<16x16x288xbf16, #tpu.memory_space<vmem>>, vector<16x16x32xbf16>
    tpu.vector_store %arg10[%c0_140, %c0_141, %c256], %65 {strides = array<i32>} : memref<16x16x288xbf16, #tpu.memory_space<vmem>>, vector<16x16x32xbf16>,
    %c0_142 = arith.constant 0 : index
    %c0_143 = arith.constant 0 : index
    %c0_144 = arith.constant 0 : index
    %67 = vector.load %arg10[%c0_142, %c0_143, %c0_144] : memref<16x16x288xbf16, #tpu.memory_space<vmem>>, vector<16x16x288xbf16>
    %68 = vector.shape_cast %67 : vector<16x16x288xbf16> to vector<256x288xbf16>
    %c0_145 = arith.constant 0 : index
    %c0_146 = arith.constant 0 : index
    %69 = vector.load %arg4[%c0_145, %c0_146] : memref<288x32xbf16, #tpu.memory_space<vmem>>, vector<288x32xbf16>
    %cst_147 = arith.constant dense<0.000000e+00> : vector<256x32xf32>
    %70 = tpu.matmul %68, %69, %cst_147 {dimension_numbers = #tpu.dot_dimension_numbers<[1], [0], [0], [1], [0, 0, 1, 1], [], []>} : vector<256x288xbf16>, vector<288x32xbf16>, vector<256x32xf32> -> vector<256x32xf32>
    %c0_148 = arith.constant 0 : index
    %c0_149 = arith.constant 0 : index
    %71 = vector.load %arg5[%c0_148, %c0_149] : memref<1x32xf32, #tpu.memory_space<vmem>>, vector<1x32xf32>
    %72 = vector.broadcast %71 : vector<1x32xf32> to vector<256x32xf32>
    %73 = arith.addf %70, %72 : vector<256x32xf32>
    %cst_150 = arith.constant 0.000000e+00 : f32
    %74 = vector.broadcast %cst_150 : f32 to vector<256x32xf32>
    %75 = arith.maximumf %73, %74 : vector<256x32xf32>
    %c0_151 = arith.constant 0 : index
    %c0_152 = arith.constant 0 : index
    %c0_153 = arith.constant 0 : index
    %76 = vector.load %arg6[%c0_151, %c0_152, %c0_153] : memref<1x256x32xf32, #tpu.memory_space<vmem>>, vector<1x256x32xf32>
    %77 = vector.shape_cast %76 : vector<1x256x32xf32> to vector<256x32xf32>
    %78 = vector.shape_cast %75 : vector<256x32xf32> to vector<1x256x32xf32>
    tpu.vector_store %arg6[%c0_151, %c0_152, %c0_153], %78 {strides = array<i32>} : memref<1x256x32xf32, #tpu.memory_space<vmem>>, vector<1x256x32xf32>,
    return
  }
  func.func @transform_0(%arg0: i32) -> (i32, i32, i32, i32) {
    %c0_i32 = arith.constant 0 : i32
    %c0_i32_0 = arith.constant 0 : i32
    %c0_i32_1 = arith.constant 0 : i32
    %c0_i32_2 = arith.constant 0 : i32
    return %arg0, %c0_i32, %c0_i32_0, %c0_i32_1 : i32, i32, i32, i32
  }
  func.func @transform_1(%arg0: i32) -> (i32, i32) {
    %c0_i32 = arith.constant 0 : i32
    %c0_i32_0 = arith.constant 0 : i32
    %c0_i32_1 = arith.constant 0 : i32
    return %c0_i32, %c0_i32_0 : i32, i32
  }
  func.func @transform_2(%arg0: i32) -> (i32, i32) {
    %c0_i32 = arith.constant 0 : i32
    %c0_i32_0 = arith.constant 0 : i32
    %c0_i32_1 = arith.constant 0 : i32
    return %c0_i32, %c0_i32_0 : i32, i32
  }
  func.func @transform_3(%arg0: i32) -> (i32, i32) {
    %c0_i32 = arith.constant 0 : i32
    %c0_i32_0 = arith.constant 0 : i32
    %c0_i32_1 = arith.constant 0 : i32
    return %c0_i32, %c0_i32_0 : i32, i32
  }
  func.func @transform_4(%arg0: i32) -> (i32, i32) {
    %c0_i32 = arith.constant 0 : i32
    %c0_i32_0 = arith.constant 0 : i32
    %c0_i32_1 = arith.constant 0 : i32
    return %c0_i32, %c0_i32_0 : i32, i32
  }
  func.func @transform_5(%arg0: i32) -> (i32, i32, i32) {
    %c0_i32 = arith.constant 0 : i32
    %c0_i32_0 = arith.constant 0 : i32
    %c0_i32_1 = arith.constant 0 : i32
    return %arg0, %c0_i32, %c0_i32_0 : i32, i32, i32
  }
}

</mosaic_0001>

<llo_original>
// kernel: decoder_forward.1
$region0: #{decoder_forward.1}
  #allocation0 [shape = 'u32[]', space=smem, size = 0x4, offset = 0x4, fixed_abs, tag = 'smem constant byte address 0x4 - core index']
  #allocation1 [shape = 'u32[144,128]{1,0:T(1,128)}', space=vmem, size = 0x12000, scoped, tag = 'internal scratch']
  #allocation2 [shape = 'bf16[18,18,16]{2,1,0:T(8,128)(2,1)}', space=vmem, size = 0x1b000, scoped, tag = 'scratch operand']
  #allocation3 [shape = 'bf16[16,16,144]{2,1,0:T(16,128)(2,1)}', space=vmem, size = 0x20000, scoped, tag = 'scratch operand']
  #allocation4 [shape = 'bf16[18,18,32]{2,1,0:T(8,128)(2,1)}', space=vmem, size = 0x1b000, scoped, tag = 'scratch operand']
  #allocation5 [shape = 'bf16[16,16,288]{2,1,0:T(16,128)(2,1)}', space=vmem, size = 0x30000, scoped, tag = 'scratch operand']
  %s0 = inlined_call_operand.vmem [shape: bf16[2,16,16,16], index: 0, kind: input, shape index: {}]
  %s1 = inlined_call_operand.vmem [shape: bf16[144,32], index: 1, kind: input, shape index: {}]
  %s2 = inlined_call_operand.vmem [shape: f32[1,32], index: 2, kind: input, shape index: {}]
  %s3 = inlined_call_operand.vmem [shape: bf16[288,32], index: 3, kind: input, shape index: {}]
  %s4 = inlined_call_operand.vmem [shape: f32[1,32], index: 4, kind: input, shape index: {}]
  %s5 = inlined_call_operand.hbm [shape: f32[2,256,32], index: 5, kind: output, shape index: {}]
  %s6 = sld [smem:[#allocation0]]
  $region53: #{decoder_forward.1} parent=0
    _
  %s8 = ssub.s32 1, %s6
  %s9 = scalar_select 0, %s8, %s6
  $region1: #{decoder_forward.1} parent=0
    #allocation6 [shape = 'u8[262144]{0}', space=vmem, size = 0x40000, scoped, tag = 'output window, operand 0']
    #allocation7 [shape = 's32[2]{0}', space=sflag, size = 0x8, scoped, tag = 'scoped memory for decoder_forward.1']
    %10 = vsyncpa [#allocation7], 0
    %s11 = scalar_lea.sflag [#allocation7], 1
    %12 = vsyncpa %s11, 0
    loop: start=0, step=1, limit=4
    $region2: #{decoder_forward.1} parent=1 // loop_pre_header
      _
    $region3: #{decoder_forward.1} parent=1 // loop_header
      %s14 = sphi 0, %s18
      %p15 = scmp.ge.s32.totalorder %s14, 4
      %s24 = sphi 0, %s26
      %s27 = sphi 0, %s24
      %s28 = sphi 0, %s27
      %s44 = sphi 0, %s28
      %s48 = sphi 0, %s48
      %s50 = sphi 0, %s48
      %s51 = sphi 0, %s50
      %s65 = sphi 0, %s51
      %s69 = sphi 0, %s69
      %s71 = sphi 0, %s69
      %s72 = sphi 0, %s71
      %s86 = sphi 0, %s72
      %s90 = sphi 0, %s90
      %s92 = sphi 0, %s90
      %s93 = sphi 0, %s92
      %s107 = sphi 0, %s93
      %s111 = sphi 0, %s111
      %s113 = sphi 0, %s111
      %s114 = sphi 0, %s113
      %s128 = sphi 0, %s114
      %s134 = sphi 0, %s136
      %s137 = sphi 0, %s134
      %s138 = sphi 0, %s137
      %s154 = sphi 0, %s138
    $region4: #{decoder_forward.1} parent=1 // loop_header_branch
      %17 = sbr.rel (%p15) target = $region8
    $region5: #{decoder_forward.1} parent=1 // loop_body
      %s19 = ssub.s32 %s14, 1
      %s20 = ssub.s32 %s14, 2
      %s21 = sadd.s32 %s14, 1
      %s22 = ssub.s32 %s14, %s21
      %p23 = scmp.eq.s32.totalorder %s22, 0
      %s25 = sadd.s32 %s24, 1
      %s26 = scalar_select %p23, %s24, %s25
      %p29 = pneg %p23
      %p30 = scmp.eq.s32.totalorder %s14, 1
      %p31 = por %p29, %p30
      %p32 = scmp.ne.s32.totalorder %s24, %s27
      %p33 = scmp.eq.s32.totalorder %s14, 0
      %p34 = por %p32, %p33
      %p35 = scmp.ne.s32.totalorder %s24, %s27
      %p36 = scmp.eq.s32.totalorder %s19, 1
      %p37 = por %p35, %p36
      %p38 = scmp.ne.s32.totalorder %s27, %s28
      %p39 = scmp.eq.s32.totalorder %s19, 0
      %p40 = por %p38, %p39
      %p41 = scmp.ne.s32.totalorder %s27, %s28
      %p42 = scmp.eq.s32.totalorder %s20, 1
      %p43 = por %p41, %p42
      %p45 = scmp.ne.s32.totalorder %s28, %s44
      %p46 = scmp.eq.s32.totalorder %s20, 0
      %p47 = por %p45, %p46
      %s49 = sadd.s32 %s48, 1
      %p52 = scmp.eq.s32.totalorder %s14, 1
      %p53 = scmp.ne.s32.totalorder %s48, %s50
      %p54 = scmp.eq.s32.totalorder %s14, 0
      %p55 = por %p53, %p54
      %p56 = scmp.ne.s32.totalorder %s48, %s50
      %p57 = scmp.eq.s32.totalorder %s19, 1
      %p58 = por %p56, %p57
      %p59 = scmp.ne.s32.totalorder %s50, %s51
      %p60 = scmp.eq.s32.totalorder %s19, 0
      %p61 = por %p59, %p60
      %p62 = scmp.ne.s32.totalorder %s50, %s51
      %p63 = scmp.eq.s32.totalorder %s20, 1
      %p64 = por %p62, %p63
      %p66 = scmp.ne.s32.totalorder %s51, %s65
      %p67 = scmp.eq.s32.totalorder %s20, 0
      %p68 = por %p66, %p67
      %s70 = sadd.s32 %s69, 1
      %p73 = scmp.eq.s32.totalorder %s14, 1
      %p74 = scmp.ne.s32.totalorder %s69, %s71
      %p75 = scmp.eq.s32.totalorder %s14, 0
      %p76 = por %p74, %p75
      %p77 = scmp.ne.s32.totalorder %s69, %s71
      %p78 = scmp.eq.s32.totalorder %s19, 1
      %p79 = por %p77, %p78
      %p80 = scmp.ne.s32.totalorder %s71, %s72
      %p81 = scmp.eq.s32.totalorder %s19, 0
      %p82 = por %p80, %p81
      %p83 = scmp.ne.s32.totalorder %s71, %s72
      %p84 = scmp.eq.s32.totalorder %s20, 1
      %p85 = por %p83, %p84
      %p87 = scmp.ne.s32.totalorder %s72, %s86
      %p88 = scmp.eq.s32.totalorder %s20, 0
      %p89 = por %p87, %p88
      %s91 = sadd.s32 %s90, 1
      %p94 = scmp.eq.s32.totalorder %s14, 1
      %p95 = scmp.ne.s32.totalorder %s90, %s92
      %p96 = scmp.eq.s32.totalorder %s14, 0
      %p97 = por %p95, %p96
      %p98 = scmp.ne.s32.totalorder %s90, %s92
      %p99 = scmp.eq.s32.totalorder %s19, 1
      %p100 = por %p98, %p99
      %p101 = scmp.ne.s32.totalorder %s92, %s93
      %p102 = scmp.eq.s32.totalorder %s19, 0
      %p103 = por %p101, %p102
      %p104 = scmp.ne.s32.totalorder %s92, %s93
      %p105 = scmp.eq.s32.totalorder %s20, 1
      %p106 = por %p104, %p105
      %p108 = scmp.ne.s32.totalorder %s93, %s107
      %p109 = scmp.eq.s32.totalorder %s20, 0
      %p110 = por %p108, %p109
      %s112 = sadd.s32 %s111, 1
      %p115 = scmp.eq.s32.totalorder %s14, 1
      %p116 = scmp.ne.s32.totalorder %s111, %s113
      %p117 = scmp.eq.s32.totalorder %s14, 0
      %p118 = por %p116, %p117
      %p119 = scmp.ne.s32.totalorder %s111, %s113
      %p120 = scmp.eq.s32.totalorder %s19, 1
      %p121 = por %p119, %p120
      %p122 = scmp.ne.s32.totalorder %s113, %s114
      %p123 = scmp.eq.s32.totalorder %s19, 0
      %p124 = por %p122, %p123
      %p125 = scmp.ne.s32.totalorder %s113, %s114
      %p126 = scmp.eq.s32.totalorder %s20, 1
      %p127 = por %p125, %p126
      %p129 = scmp.ne.s32.totalorder %s114, %s128
      %p130 = scmp.eq.s32.totalorder %s20, 0
      %p131 = por %p129, %p130
      %s132 = ssub.s32 %s14, %s21
      %p133 = scmp.eq.s32.totalorder %s132, 0
      %s135 = sadd.s32 %s134, 1
      %s136 = scalar_select %p133, %s134, %s135
      %p139 = pneg %p133
      %p140 = scmp.eq.s32.totalorder %s14, 1
      %p141 = por %p139, %p140
      %p142 = scmp.ne.s32.totalorder %s134, %s137
      %p143 = scmp.eq.s32.totalorder %s14, 0
      %p144 = por %p142, %p143
      %p145 = scmp.ne.s32.totalorder %s134, %s137
      %p146 = scmp.eq.s32.totalorder %s19, 1
      %p147 = por %p145, %p146
      %p148 = scmp.ne.s32.totalorder %s137, %s138
      %p149 = scmp.eq.s32.totalorder %s19, 0
      %p150 = por %p148, %p149
      %p151 = scmp.ne.s32.totalorder %s137, %s138
      %p152 = scmp.eq.s32.totalorder %s20, 1
      %p153 = por %p151, %p152
      %p155 = scmp.ne.s32.totalorder %s138, %s154
      %p156 = scmp.eq.s32.totalorder %s20, 0
      %p157 = por %p155, %p156
      %p158 = scmp.le.s32.totalorder 1, %s14
      %p159 = scmp.lt.s32.totalorder %s14, 3
      %p160 = pnand %p158, %p159
      %p161 = pneg %p160
      // Predicated region
      $region9: #{decoder_forward.1} parent=5 // pred_check
        _
      $region10: #{decoder_forward.1} parent=5 // pred_check_branch
        %163 = sbr.rel (%p160) target = $region12
      $region11: #{decoder_forward.1} parent=5 // pred_region
        %s164 = ssub.s32 %s14, 1
        // Predicated region
        $region13: #{decoder_forward.1} parent=11 // pred_check
          %p165 = pneg %p61
        $region14: #{decoder_forward.1} parent=11 // pred_check_branch
          %167 = sbr.rel (%p165) target = $region16
        $region15: #{decoder_forward.1} parent=11 // pred_region
          _
        $region16: #{decoder_forward.1} parent=11 // pred_fallthru
          _
        // Predicated region
        $region17: #{decoder_forward.1} parent=11 // pred_check
          %p168 = pneg %p82
        $region18: #{decoder_forward.1} parent=11 // pred_check_branch
          %170 = sbr.rel (%p168) target = $region20
        $region19: #{decoder_forward.1} parent=11 // pred_region
          _
        $region20: #{decoder_forward.1} parent=11 // pred_fallthru
          _
        // Predicated region
        $region21: #{decoder_forward.1} parent=11 // pred_check
          %p171 = pneg %p103
        $region22: #{decoder_forward.1} parent=11 // pred_check_branch
          %173 = sbr.rel (%p171) target = $region24
        $region23: #{decoder_forward.1} parent=11 // pred_region
          _
        $region24: #{decoder_forward.1} parent=11 // pred_fallthru
          _
        // Predicated region
        $region25: #{decoder_forward.1} parent=11 // pred_check
          %p174 = pneg %p124
        $region26: #{decoder_forward.1} parent=11 // pred_check_branch
          %176 = sbr.rel (%p174) target = $region28
        $region27: #{decoder_forward.1} parent=11 // pred_region
          _
        $region28: #{decoder_forward.1} parent=11 // pred_fallthru
          _
      $region12: #{decoder_forward.1} parent=5 // pred_fallthru
        _
      %p177 = scmp.lt.s32.totalorder %s14, 2
      // Predicated region
      $region29: #{decoder_forward.1} parent=5 // pred_check
        %p178 = pneg %p177
      $region30: #{decoder_forward.1} parent=5 // pred_check_branch
        %180 = sbr.rel (%p178) target = $region32
      $region31: #{decoder_forward.1} parent=5 // pred_region
        // Predicated region
        $region33: #{decoder_forward.1} parent=31 // pred_check
          %p181 = pneg %p34
        $region34: #{decoder_forward.1} parent=31 // pred_check_branch
          %183 = sbr.rel (%p181) target = $region36
        $region35: #{decoder_forward.1} parent=31 // pred_region
          %p184 = scmp.lt.s32.totalorder %s14, 1
          %s185 = scalar_select %p184, %s14, 1
          %s186 = smul.addr %s185, 32
          %s187 = smul.addr %s186, 4
          %s188 = scalar_lea.vmem %s0, %s187
        $region36: #{decoder_forward.1} parent=31 // pred_fallthru
          _
      $region32: #{decoder_forward.1} parent=5 // pred_fallthru
        _
      %p189 = scmp.le.s32.totalorder 1, %s14
      %p190 = scmp.lt.s32.totalorder %s14, 3
      %p191 = pnand %p189, %p190
      %p192 = pneg %p191
      // Predicated region
      $region37: #{decoder_forward.1} parent=5 // pred_check
        _
      $region38: #{decoder_forward.1} parent=5 // pred_check_branch
        %194 = sbr.rel (%p191) target = $region40
      $region39: #{decoder_forward.1} parent=5 // pred_region
        %s195 = ssub.s32 %s14, 1
        %p196 = scmp.lt.s32.totalorder %s19, 1
        %s197 = scalar_select %p196, %s19, 1
        %s198 = smul.addr %s197, 32
        %s199 = smul.addr %s198, 4
        %s200 = scalar_lea.vmem %s0, %s199
        %p201 = pneg %p40
        %p202 = pneg %p37
        %p203 = pneg %p61
        %p204 = pneg %p58
        %p205 = pneg %p82
        %p206 = pneg %p79
        %p207 = pneg %p103
        %p208 = pneg %p100
        %p209 = pneg %p124
        %p210 = pneg %p121
        %p211 = pneg %p150
        %p212 = pneg %p147
        %s213 = sand.u32 %s137, 1
        %s214 = scalar_lea.sflag [#allocation7], %s213
        %s215 = sand.u32 %s137, 1
        %s216 = smul.addr %s215, 256
        %s217 = scalar_lea.vmem [#allocation6], %s216
        %p218 = scmp.lt.s32.totalorder %s19, 1
        %s219 = scalar_select %p218, %s19, 1
        %s220 = smul.addr %s219, 32
        %s221 = smul.addr %s220, 4
        %s222 = scalar_lea.vmem %s0, %s221
        %vm224 = vcmask 125952
        %225 = vst.msk [vmem:[#allocation2] sm:$0xf] %vm224, 0
        %226 = vst.msk [vmem:[#allocation2 + $0x4] sm:$0xf] %vm224, 0
        %vm227 = vcmask 122880
        %228 = vst.msk [vmem:[#allocation2 + $0x8] sm:$0x1] %vm227, 0
        %s229 = scalar_lea.vmem [#allocation2], 204
        %230 = vst.msk [vmem:[%s229] sm:$0xf] %vm224, 0
        %231 = vst.msk [vmem:[%s229 + $0x4] sm:$0xf] %vm224, 0
        %232 = vst.msk [vmem:[%s229 + $0x8] sm:$0x1] %vm227, 0
        %vm233 = vcmask 122880
        %vm234 = vsmask.f32 256
        %vm235 = vmand %vm233, %vm234
        %v236 = vld [vmem:[#allocation2] sm:$0x1]
        %v237 = vsel %vm235, 0, %v236
        %238 = vst [vmem:[#allocation2] sm:$0x1] %v237
        %v239 = vld [vmem:[#allocation2 + $0xc] sm:$0x1]
        %v240 = vsel %vm235, 0, %v239
        %241 = vst [vmem:[#allocation2 + $0xc] sm:$0x1] %v240
        %v242 = vld [vmem:[#allocation2 + $0x18] sm:$0x1]
        %v243 = vsel %vm235, 0, %v242
        %244 = vst [vmem:[#allocation2 + $0x18] sm:$0x1] %v243
        %v245 = vld [vmem:[#allocation2 + $0x24] sm:$0x1]
        %v246 = vsel %vm235, 0, %v245
        %247 = vst [vmem:[#allocation2 + $0x24] sm:$0x1] %v246
        %v248 = vld [vmem:[#allocation2 + $0x30] sm:$0x1]
        %v249 = vsel %vm235, 0, %v248
        %250 = vst [vmem:[#allocation2 + $0x30] sm:$0x1] %v249
        %v251 = vld [vmem:[#allocation2 + $0x3c] sm:$0x1]
        %v252 = vsel %vm235, 0, %v251
        %253 = vst [vmem:[#allocation2 + $0x3c] sm:$0x1] %v252
        %v254 = vld [vmem:[#allocation2 + $0x48] sm:$0x1]
        %v255 = vsel %vm235, 0, %v254
        %256 = vst [vmem:[#allocation2 + $0x48] sm:$0x1] %v255
        %v257 = vld [vmem:[#allocation2 + $0x54] sm:$0x1]
        %v258 = vsel %vm235, 0, %v257
        %259 = vst [vmem:[#allocation2 + $0x54] sm:$0x1] %v258
        %v260 = vld [vmem:[#allocation2 + $0x60] sm:$0x1]
        %v261 = vsel %vm235, 0, %v260
        %262 = vst [vmem:[#allocation2 + $0x60] sm:$0x1] %v261
        %v263 = vld [vmem:[#allocation2 + $0x6c] sm:$0x1]
        %v264 = vsel %vm235, 0, %v263
        %265 = vst [vmem:[#allocation2 + $0x6c] sm:$0x1] %v264
        %v266 = vld [vmem:[#allocation2 + $0x78] sm:$0x1]
        %v267 = vsel %vm235, 0, %v266
        %268 = vst [vmem:[#allocation2 + $0x78] sm:$0x1] %v267
        %v269 = vld [vmem:[#allocation2 + $0x84] sm:$0x1]
        %v270 = vsel %vm235, 0, %v269
        %271 = vst [vmem:[#allocation2 + $0x84] sm:$0x1] %v270
        %v272 = vld [vmem:[#allocation2 + $0x90] sm:$0x1]
        %v273 = vsel %vm235, 0, %v272
        %274 = vst [vmem:[#allocation2 + $0x90] sm:$0x1] %v273
        %v275 = vld [vmem:[#allocation2 + $0x9c] sm:$0x1]
        %v276 = vsel %vm235, 0, %v275
        %277 = vst [vmem:[#allocation2 + $0x9c] sm:$0x1] %v276
        %v278 = vld [vmem:[#allocation2 + $0xa8] sm:$0x1]
        %v279 = vsel %vm235, 0, %v278
        %280 = vst [vmem:[#allocation2 + $0xa8] sm:$0x1] %v279
        %v281 = vld [vmem:[#allocation2 + $0xb4] sm:$0x1]
        %v282 = vsel %vm235, 0, %v281
        %283 = vst [vmem:[#allocation2 + $0xb4] sm:$0x1] %v282
        %v284 = vld [vmem:[#allocation2 + $0xc0] sm:$0x1]
        %v285 = vsel %vm235, 0, %v284
        %286 = vst [vmem:[#allocation2 + $0xc0] sm:$0x1] %v285
        %v287 = vld [vmem:[#allocation2 + $0xcc] sm:$0x1]
        %v288 = vsel %vm235, 0, %v287
        %289 = vst [vmem:[#allocation2 + $0xcc] sm:$0x1] %v288
        %vm290 = vsmask.f32 7938
        %vm291 = vmand %vm233, %vm290
        %v292 = vld [vmem:[#allocation2 + $0x8] sm:$0x1]
        %v293 = vsel %vm291, 0, %v292
        %294 = vst [vmem:[#allocation2 + $0x8] sm:$0x1] %v293
        %v295 = vld [vmem:[#allocation2 + $0x14] sm:$0x1]
        %v296 = vsel %vm291, 0, %v295
        %297 = vst [vmem:[#allocation2 + $0x14] sm:$0x1] %v296
        %v298 = vld [vmem:[#allocation2 + $0x20] sm:$0x1]
        %v299 = vsel %vm291, 0, %v298
        %300 = vst [vmem:[#allocation2 + $0x20] sm:$0x1] %v299
        %v301 = vld [vmem:[#allocation2 + $0x2c] sm:$0x1]
        %v302 = vsel %vm291, 0, %v301
        %303 = vst [vmem:[#allocation2 + $0x2c] sm:$0x1] %v302
        %v304 = vld [vmem:[#allocation2 + $0x38] sm:$0x1]
        %v305 = vsel %vm291, 0, %v304
        %306 = vst [vmem:[#allocation2 + $0x38] sm:$0x1] %v305
        %v307 = vld [vmem:[#allocation2 + $0x44] sm:$0x1]
        %v308 = vsel %vm291, 0, %v307
        %309 = vst [vmem:[#allocation2 + $0x44] sm:$0x1] %v308
        %v310 = vld [vmem:[#allocation2 + $0x50] sm:$0x1]
        %v311 = vsel %vm291, 0, %v310
        %312 = vst [vmem:[#allocation2 + $0x50] sm:$0x1] %v311
        %v313 = vld [vmem:[#allocation2 + $0x5c] sm:$0x1]
        %v314 = vsel %vm291, 0, %v313
        %315 = vst [vmem:[#allocation2 + $0x5c] sm:$0x1] %v314
        %v316 = vld [vmem:[#allocation2 + $0x68] sm:$0x1]
        %v317 = vsel %vm291, 0, %v316
        %318 = vst [vmem:[#allocation2 + $0x68] sm:$0x1] %v317
        %v319 = vld [vmem:[#allocation2 + $0x74] sm:$0x1]
        %v320 = vsel %vm291, 0, %v319
        %321 = vst [vmem:[#allocation2 + $0x74] sm:$0x1] %v320
        %v322 = vld [vmem:[#allocation2 + $0x80] sm:$0x1]
        %v323 = vsel %vm291, 0, %v322
        %324 = vst [vmem:[#allocation2 + $0x80] sm:$0x1] %v323
        %v325 = vld [vmem:[#allocation2 + $0x8c] sm:$0x1]
        %v326 = vsel %vm291, 0, %v325
        %327 = vst [vmem:[#allocation2 + $0x8c] sm:$0x1] %v326
        %v328 = vld [vmem:[#allocation2 + $0x98] sm:$0x1]
        %v329 = vsel %vm291, 0, %v328
        %330 = vst [vmem:[#allocation2 + $0x98] sm:$0x1] %v329
        %v331 = vld [vmem:[#allocation2 + $0xa4] sm:$0x1]
        %v332 = vsel %vm291, 0, %v331
        %333 = vst [vmem:[#allocation2 + $0xa4] sm:$0x1] %v332
        %v334 = vld [vmem:[#allocation2 + $0xb0] sm:$0x1]
        %v335 = vsel %vm291, 0, %v334
        %336 = vst [vmem:[#allocation2 + $0xb0] sm:$0x1] %v335
        %v337 = vld [vmem:[#allocation2 + $0xbc] sm:$0x1]
        %v338 = vsel %vm291, 0, %v337
        %339 = vst [vmem:[#allocation2 + $0xbc] sm:$0x1] %v338
        %v340 = vld [vmem:[#allocation2 + $0xc8] sm:$0x1]
        %v341 = vsel %vm291, 0, %v340
        %342 = vst [vmem:[#allocation2 + $0xc8] sm:$0x1] %v341
        %v343 = vld [vmem:[#allocation2 + $0xd4] sm:$0x1]
        %v344 = vsel %vm291, 0, %v343
        %345 = vst [vmem:[#allocation2 + $0xd4] sm:$0x1] %v344
        %v346 = vld [vmem:[%s222] sm:$0xf]
        %v347 = vld [vmem:[%s222 + $0x4] sm:$0xf]
        %v348 = vld [vmem:[%s222 + $0x8] sm:$0xf]
        %v349 = vld [vmem:[%s222 + $0xc] sm:$0xf]
        %v350 = vld [vmem:[%s222 + $0x10] sm:$0xf]
        %v351 = vld [vmem:[%s222 + $0x14] sm:$0xf]
        %v352 = vld [vmem:[%s222 + $0x18] sm:$0xf]
        %v353 = vld [vmem:[%s222 + $0x1c] sm:$0xf]
        %v354 = vld [vmem:[%s222 + $0x20] sm:$0xf]
        %v355 = vld [vmem:[%s222 + $0x24] sm:$0xf]
        %v356 = vld [vmem:[%s222 + $0x28] sm:$0xf]
        %v357 = vld [vmem:[%s222 + $0x2c] sm:$0xf]
        %v358 = vld [vmem:[%s222 + $0x30] sm:$0xf]
        %v359 = vld [vmem:[%s222 + $0x34] sm:$0xf]
        %v360 = vld [vmem:[%s222 + $0x38] sm:$0xf]
        %v361 = vld [vmem:[%s222 + $0x3c] sm:$0xf]
        %v362 = vld [vmem:[%s222 + $0x40] sm:$0xf]
        %v363 = vld [vmem:[%s222 + $0x44] sm:$0xf]
        %v364 = vld [vmem:[%s222 + $0x48] sm:$0xf]
        %v365 = vld [vmem:[%s222 + $0x4c] sm:$0xf]
        %v366 = vld [vmem:[%s222 + $0x50] sm:$0xf]
        %v367 = vld [vmem:[%s222 + $0x54] sm:$0xf]
        %v368 = vld [vmem:[%s222 + $0x58] sm:$0xf]
        %v369 = vld [vmem:[%s222 + $0x5c] sm:$0xf]
        %v370 = vld [vmem:[%s222 + $0x60] sm:$0xf]
        %v371 = vld [vmem:[%s222 + $0x64] sm:$0xf]
        %v372 = vld [vmem:[%s222 + $0x68] sm:$0xf]
        %v373 = vld [vmem:[%s222 + $0x6c] sm:$0xf]
        %v374 = vld [vmem:[%s222 + $0x70] sm:$0xf]
        %v375 = vld [vmem:[%s222 + $0x74] sm:$0xf]
        %v376 = vld [vmem:[%s222 + $0x78] sm:$0xf]
        %v377 = vld [vmem:[%s222 + $0x7c] sm:$0xf]
        %vm378 = vsmask.f32 4368
        %vm379 = vmor %vm234, %vm378
        %v381 = vshrl.u32 %v346, 16
        %v383 = vrot.slane %v381, 7
        %v384 = vshll.u32 %v346, 16
        %v386 = vor.u32 %v383, %v384
        %v387 = vrot.slane %v383, 4
        %v389 = vshrl.u32 %v347, 16
        %v391 = vrot.slane %v389, 7
        %v392 = vshll.u32 %v347, 16
        %v394 = vor.u32 %v391, %v392
        %v395 = vsel %vm379, %v387, %v394
        %v396 = vrot.slane %v391, 4
        %v398 = vshrl.u32 %v348, 16
        %v400 = vrot.slane %v398, 7
        %v401 = vshll.u32 %v348, 16
        %v403 = vor.u32 %v400, %v401
        %v404 = vrot.slane %v400, 4
        %v406 = vshrl.u32 %v349, 16
        %v408 = vrot.slane %v406, 7
        %v409 = vshll.u32 %v349, 16
        %v411 = vor.u32 %v408, %v409
        %v412 = vsel %vm379, %v404, %v411
        %v413 = vrot.slane %v408, 4
        %v415 = vshrl.u32 %v350, 16
        %v417 = vrot.slane %v415, 7
        %v418 = vshll.u32 %v350, 16
        %v420 = vor.u32 %v417, %v418
        %v421 = vrot.slane %v417, 4
        %v423 = vshrl.u32 %v351, 16
        %v425 = vrot.slane %v423, 7
        %v426 = vshll.u32 %v351, 16
        %v428 = vor.u32 %v425, %v426
        %v429 = vsel %vm379, %v421, %v428
        %v430 = vrot.slane %v425, 4
        %v432 = vshrl.u32 %v352, 16
        %v434 = vrot.slane %v432, 7
        %v435 = vshll.u32 %v352, 16
        %v437 = vor.u32 %v434, %v435
        %v438 = vrot.slane %v434, 4
        %v440 = vshrl.u32 %v353, 16
        %v442 = vrot.slane %v440, 7
        %v443 = vshll.u32 %v353, 16
        %v445 = vor.u32 %v442, %v443
        %v446 = vsel %vm379, %v438, %v445
        %v447 = vrot.slane %v442, 4
        %v449 = vshrl.u32 %v354, 16
        %v451 = vrot.slane %v449, 7
        %v452 = vshll.u32 %v354, 16
        %v454 = vor.u32 %v451, %v452
        %v455 = vrot.slane %v451, 4
        %v457 = vshrl.u32 %v355, 16
        %v459 = vrot.slane %v457, 7
        %v460 = vshll.u32 %v355, 16
        %v462 = vor.u32 %v459, %v460
        %v463 = vsel %vm379, %v455, %v462
        %v464 = vrot.slane %v459, 4
        %v466 = vshrl.u32 %v356, 16
        %v468 = vrot.slane %v466, 7
        %v469 = vshll.u32 %v356, 16
        %v471 = vor.u32 %v468, %v469
        %v472 = vrot.slane %v468, 4
        %v474 = vshrl.u32 %v357, 16
        %v476 = vrot.slane %v474, 7
        %v477 = vshll.u32 %v357, 16
        %v479 = vor.u32 %v476, %v477
        %v480 = vsel %vm379, %v472, %v479
        %v481 = vrot.slane %v476, 4
        %v483 = vshrl.u32 %v358, 16
        %v485 = vrot.slane %v483, 7
        %v486 = vshll.u32 %v358, 16
        %v488 = vor.u32 %v485, %v486
        %v489 = vrot.slane %v485, 4
        %v491 = vshrl.u32 %v359, 16
        %v493 = vrot.slane %v491, 7
        %v494 = vshll.u32 %v359, 16
        %v496 = vor.u32 %v493, %v494
        %v497 = vsel %vm379, %v489, %v496
        %v498 = vrot.slane %v493, 4
        %v500 = vshrl.u32 %v360, 16
        %v502 = vrot.slane %v500, 7
        %v503 = vshll.u32 %v360, 16
        %v505 = vor.u32 %v502, %v503
        %v506 = vrot.slane %v502, 4
        %v508 = vshrl.u32 %v361, 16
        %v510 = vrot.slane %v508, 7
        %v511 = vshll.u32 %v361, 16
        %v513 = vor.u32 %v510, %v511
        %v514 = vsel %vm379, %v506, %v513
        %v515 = vrot.slane %v510, 4
        %v517 = vshrl.u32 %v362, 16
        %v519 = vrot.slane %v517, 7
        %v520 = vshll.u32 %v362, 16
        %v522 = vor.u32 %v519, %v520
        %v523 = vrot.slane %v519, 4
        %v525 = vshrl.u32 %v363, 16
        %v527 = vrot.slane %v525, 7
        %v528 = vshll.u32 %v363, 16
        %v530 = vor.u32 %v527, %v528
        %v531 = vsel %vm379, %v523, %v530
        %v532 = vrot.slane %v527, 4
        %v534 = vshrl.u32 %v364, 16
        %v536 = vrot.slane %v534, 7
        %v537 = vshll.u32 %v364, 16
        %v539 = vor.u32 %v536, %v537
        %v540 = vrot.slane %v536, 4
        %v542 = vshrl.u32 %v365, 16
        %v544 = vrot.slane %v542, 7
        %v545 = vshll.u32 %v365, 16
        %v547 = vor.u32 %v544, %v545
        %v548 = vsel %vm379, %v540, %v547
        %v549 = vrot.slane %v544, 4
        %v551 = vshrl.u32 %v366, 16
        %v553 = vrot.slane %v551, 7
        %v554 = vshll.u32 %v366, 16
        %v556 = vor.u32 %v553, %v554
        %v557 = vrot.slane %v553, 4
        %v559 = vshrl.u32 %v367, 16
        %v561 = vrot.slane %v559, 7
        %v562 = vshll.u32 %v367, 16
        %v564 = vor.u32 %v561, %v562
        %v565 = vsel %vm379, %v557, %v564
        %v566 = vrot.slane %v561, 4
        %v568 = vshrl.u32 %v368, 16
        %v570 = vrot.slane %v568, 7
        %v571 = vshll.u32 %v368, 16
        %v573 = vor.u32 %v570, %v571
        %v574 = vrot.slane %v570, 4
        %v576 = vshrl.u32 %v369, 16
        %v578 = vrot.slane %v576, 7
        %v579 = vshll.u32 %v369, 16
        %v581 = vor.u32 %v578, %v579
        %v582 = vsel %vm379, %v574, %v581
        %v583 = vrot.slane %v578, 4
        %v585 = vshrl.u32 %v370, 16
        %v587 = vrot.slane %v585, 7
        %v588 = vshll.u32 %v370, 16
        %v590 = vor.u32 %v587, %v588
        %v591 = vrot.slane %v587, 4
        %v593 = vshrl.u32 %v371, 16
        %v595 = vrot.slane %v593, 7
        %v596 = vshll.u32 %v371, 16
        %v598 = vor.u32 %v595, %v596
        %v599 = vsel %vm379, %v591, %v598
        %v600 = vrot.slane %v595, 4
        %v602 = vshrl.u32 %v372, 16
        %v604 = vrot.slane %v602, 7
        %v605 = vshll.u32 %v372, 16
        %v607 = vor.u32 %v604, %v605
        %v608 = vrot.slane %v604, 4
        %v610 = vshrl.u32 %v373, 16
        %v612 = vrot.slane %v610, 7
        %v613 = vshll.u32 %v373, 16
        %v615 = vor.u32 %v612, %v613
        %v616 = vsel %vm379, %v608, %v615
        %v617 = vrot.slane %v612, 4
        %v619 = vshrl.u32 %v374, 16
        %v621 = vrot.slane %v619, 7
        %v622 = vshll.u32 %v374, 16
        %v624 = vor.u32 %v621, %v622
        %v625 = vrot.slane %v621, 4
        %v627 = vshrl.u32 %v375, 16
        %v629 = vrot.slane %v627, 7
        %v630 = vshll.u32 %v375, 16
        %v632 = vor.u32 %v629, %v630
        %v633 = vsel %vm379, %v625, %v632
        %v634 = vrot.slane %v629, 4
        %v636 = vshrl.u32 %v376, 16
        %v638 = vrot.slane %v636, 7
        %v639 = vshll.u32 %v376, 16
        %v641 = vor.u32 %v638, %v639
        %v642 = vrot.slane %v638, 4
        %v644 = vshrl.u32 %v377, 16
        %v646 = vrot.slane %v644, 7
        %v647 = vshll.u32 %v377, 16
        %v649 = vor.u32 %v646, %v647
        %v650 = vsel %vm379, %v642, %v649
        %v651 = vrot.slane %v646, 4
        %s700 = scalar_lea.vmem [#allocation2], 12
        %vm701 = vcmask 125952
        %vm702 = vmand %vm701, %vm290
        %v703 = vld [vmem:[%s700] sm:$0xf]
        %v704 = vsel %vm702, %v386, %v703
        %705 = vst [vmem:[%s700] sm:$0xf] %v704
        %706 = vst.msk [vmem:[%s700 + $0x4] sm:$0xf] %vm224, %v395
        %v707 = vld [vmem:[%s700 + $0x8] sm:$0x1]
        %v708 = vsel %vm235, %v396, %v707
        %709 = vst [vmem:[%s700 + $0x8] sm:$0x1] %v708
        %v710 = vld [vmem:[%s700 + $0xc] sm:$0xf]
        %v711 = vsel %vm702, %v403, %v710
        %712 = vst [vmem:[%s700 + $0xc] sm:$0xf] %v711
        %713 = vst.msk [vmem:[%s700 + $0x10] sm:$0xf] %vm224, %v412
        %v714 = vld [vmem:[%s700 + $0x14] sm:$0x1]
        %v715 = vsel %vm235, %v413, %v714
        %716 = vst [vmem:[%s700 + $0x14] sm:$0x1] %v715
        %v717 = vld [vmem:[%s700 + $0x18] sm:$0xf]
        %v718 = vsel %vm702, %v420, %v717
        %719 = vst [vmem:[%s700 + $0x18] sm:$0xf] %v718
        %720 = vst.msk [vmem:[%s700 + $0x1c] sm:$0xf] %vm224, %v429
        %v721 = vld [vmem:[%s700 + $0x20] sm:$0x1]
        %v722 = vsel %vm235, %v430, %v721
        %723 = vst [vmem:[%s700 + $0x20] sm:$0x1] %v722
        %v724 = vld [vmem:[%s700 + $0x24] sm:$0xf]
        %v725 = vsel %vm702, %v437, %v724
        %726 = vst [vmem:[%s700 + $0x24] sm:$0xf] %v725
        %727 = vst.msk [vmem:[%s700 + $0x28] sm:$0xf] %vm224, %v446
        %v728 = vld [vmem:[%s700 + $0x2c] sm:$0x1]
        %v729 = vsel %vm235, %v447, %v728
        %730 = vst [vmem:[%s700 + $0x2c] sm:$0x1] %v729
        %v731 = vld [vmem:[%s700 + $0x30] sm:$0xf]
        %v732 = vsel %vm702, %v454, %v731
        %733 = vst [vmem:[%s700 + $0x30] sm:$0xf] %v732
        %734 = vst.msk [vmem:[%s700 + $0x34] sm:$0xf] %vm224, %v463
        %v735 = vld [vmem:[%s700 + $0x38] sm:$0x1]
        %v736 = vsel %vm235, %v464, %v735
        %737 = vst [vmem:[%s700 + $0x38] sm:$0x1] %v736
        %v738 = vld [vmem:[%s700 + $0x3c] sm:$0xf]
        %v739 = vsel %vm702, %v471, %v738
        %740 = vst [vmem:[%s700 + $0x3c] sm:$0xf] %v739
        %741 = vst.msk [vmem:[%s700 + $0x40] sm:$0xf] %vm224, %v480
        %v742 = vld [vmem:[%s700 + $0x44] sm:$0x1]
        %v743 = vsel %vm235, %v481, %v742
        %744 = vst [vmem:[%s700 + $0x44] sm:$0x1] %v743
        %v745 = vld [vmem:[%s700 + $0x48] sm:$0xf]
        %v746 = vsel %vm702, %v488, %v745
        %747 = vst [vmem:[%s700 + $0x48] sm:$0xf] %v746
        %748 = vst.msk [vmem:[%s700 + $0x4c] sm:$0xf] %vm224, %v497
        %v749 = vld [vmem:[%s700 + $0x50] sm:$0x1]
        %v750 = vsel %vm235, %v498, %v749
        %751 = vst [vmem:[%s700 + $0x50] sm:$0x1] %v750
        %v752 = vld [vmem:[%s700 + $0x54] sm:$0xf]
        %v753 = vsel %vm702, %v505, %v752
        %754 = vst [vmem:[%s700 + $0x54] sm:$0xf] %v753
        %755 = vst.msk [vmem:[%s700 + $0x58] sm:$0xf] %vm224, %v514
        %v756 = vld [vmem:[%s700 + $0x5c] sm:$0x1]
        %v757 = vsel %vm235, %v515, %v756
        %758 = vst [vmem:[%s700 + $0x5c] sm:$0x1] %v757
        %v759 = vld [vmem:[%s700 + $0x60] sm:$0xf]
        %v760 = vsel %vm702, %v522, %v759
        %761 = vst [vmem:[%s700 + $0x60] sm:$0xf] %v760
        %762 = vst.msk [vmem:[%s700 + $0x64] sm:$0xf] %vm224, %v531
        %v763 = vld [vmem:[%s700 + $0x68] sm:$0x1]
        %v764 = vsel %vm235, %v532, %v763
        %765 = vst [vmem:[%s700 + $0x68] sm:$0x1] %v764
        %v766 = vld [vmem:[%s700 + $0x6c] sm:$0xf]
        %v767 = vsel %vm702, %v539, %v766
        %768 = vst [vmem:[%s700 + $0x6c] sm:$0xf] %v767
        %769 = vst.msk [vmem:[%s700 + $0x70] sm:$0xf] %vm224, %v548
        %v770 = vld [vmem:[%s700 + $0x74] sm:$0x1]
        %v771 = vsel %vm235, %v549, %v770
        %772 = vst [vmem:[%s700 + $0x74] sm:$0x1] %v771
        %v773 = vld [vmem:[%s700 + $0x78] sm:$0xf]
        %v774 = vsel %vm702, %v556, %v773
        %775 = vst [vmem:[%s700 + $0x78] sm:$0xf] %v774
        %776 = vst.msk [vmem:[%s700 + $0x7c] sm:$0xf] %vm224, %v565
        %v777 = vld [vmem:[%s700 + $0x80] sm:$0x1]
        %v778 = vsel %vm235, %v566, %v777
        %779 = vst [vmem:[%s700 + $0x80] sm:$0x1] %v778
        %v780 = vld [vmem:[%s700 + $0x84] sm:$0xf]
        %v781 = vsel %vm702, %v573, %v780
        %782 = vst [vmem:[%s700 + $0x84] sm:$0xf] %v781
        %783 = vst.msk [vmem:[%s700 + $0x88] sm:$0xf] %vm224, %v582
        %v784 = vld [vmem:[%s700 + $0x8c] sm:$0x1]
        %v785 = vsel %vm235, %v583, %v784
        %786 = vst [vmem:[%s700 + $0x8c] sm:$0x1] %v785
        %v787 = vld [vmem:[%s700 + $0x90] sm:$0xf]
        %v788 = vsel %vm702, %v590, %v787
        %789 = vst [vmem:[%s700 + $0x90] sm:$0xf] %v788
        %790 = vst.msk [vmem:[%s700 + $0x94] sm:$0xf] %vm224, %v599
        %v791 = vld [vmem:[%s700 + $0x98] sm:$0x1]
        %v792 = vsel %vm235, %v600, %v791
        %793 = vst [vmem:[%s700 + $0x98] sm:$0x1] %v792
        %v794 = vld [vmem:[%s700 + $0x9c] sm:$0xf]
        %v795 = vsel %vm702, %v607, %v794
        %796 = vst [vmem:[%s700 + $0x9c] sm:$0xf] %v795
        %797 = vst.msk [vmem:[%s700 + $0xa0] sm:$0xf] %vm224, %v616
        %v798 = vld [vmem:[%s700 + $0xa4] sm:$0x1]
        %v799 = vsel %vm235, %v617, %v798
        %800 = vst [vmem:[%s700 + $0xa4] sm:$0x1] %v799
        %v801 = vld [vmem:[%s700 + $0xa8] sm:$0xf]
        %v802 = vsel %vm702, %v624, %v801
        %803 = vst [vmem:[%s700 + $0xa8] sm:$0xf] %v802
        %804 = vst.msk [vmem:[%s700 + $0xac] sm:$0xf] %vm224, %v633
        %v805 = vld [vmem:[%s700 + $0xb0] sm:$0x1]
        %v806 = vsel %vm235, %v634, %v805
        %807 = vst [vmem:[%s700 + $0xb0] sm:$0x1] %v806
        %v808 = vld [vmem:[%s700 + $0xb4] sm:$0xf]
        %v809 = vsel %vm702, %v641, %v808
        %810 = vst [vmem:[%s700 + $0xb4] sm:$0xf] %v809
        %811 = vst.msk [vmem:[%s700 + $0xb8] sm:$0xf] %vm224, %v650
        %v812 = vld [vmem:[%s700 + $0xbc] sm:$0x1]
        %v813 = vsel %vm235, %v651, %v812
        %814 = vst [vmem:[%s700 + $0xbc] sm:$0x1] %v813
        %v815 = vld [vmem:[#allocation2] sm:$0xf]
        %v816 = vld [vmem:[#allocation2 + $0x4] sm:$0xf]
        %v817 = vld [vmem:[#allocation2 + $0xc] sm:$0xf]
        %v818 = vld [vmem:[#allocation2 + $0x10] sm:$0xf]
        %v819 = vld [vmem:[#allocation2 + $0x18] sm:$0xf]
        %v820 = vld [vmem:[#allocation2 + $0x1c] sm:$0xf]
        %v821 = vld [vmem:[#allocation2 + $0x24] sm:$0xf]
        %v822 = vld [vmem:[#allocation2 + $0x28] sm:$0xf]
        %v823 = vld [vmem:[#allocation2 + $0x30] sm:$0xf]
        %v824 = vld [vmem:[#allocation2 + $0x34] sm:$0xf]
        %v825 = vld [vmem:[#allocation2 + $0x3c] sm:$0xf]
        %v826 = vld [vmem:[#allocation2 + $0x40] sm:$0xf]
        %v827 = vld [vmem:[#allocation2 + $0x48] sm:$0xf]
        %v828 = vld [vmem:[#allocation2 + $0x4c] sm:$0xf]
        %v829 = vld [vmem:[#allocation2 + $0x54] sm:$0xf]
        %v830 = vld [vmem:[#allocation2 + $0x58] sm:$0xf]
        %v831 = vld [vmem:[#allocation2 + $0x60] sm:$0xf]
        %v832 = vld [vmem:[#allocation2 + $0x64] sm:$0xf]
        %v833 = vld [vmem:[#allocation2 + $0x6c] sm:$0xf]
        %v834 = vld [vmem:[#allocation2 + $0x70] sm:$0xf]
        %v835 = vld [vmem:[#allocation2 + $0x78] sm:$0xf]
        %v836 = vld [vmem:[#allocation2 + $0x7c] sm:$0xf]
        %v837 = vld [vmem:[#allocation2 + $0x84] sm:$0xf]
        %v838 = vld [vmem:[#allocation2 + $0x88] sm:$0xf]
        %v839 = vld [vmem:[#allocation2 + $0x90] sm:$0xf]
        %v840 = vld [vmem:[#allocation2 + $0x94] sm:$0xf]
        %v841 = vld [vmem:[#allocation2 + $0x9c] sm:$0xf]
        %v842 = vld [vmem:[#allocation2 + $0xa0] sm:$0xf]
        %v843 = vld [vmem:[#allocation2 + $0xa8] sm:$0xf]
        %v844 = vld [vmem:[#allocation2 + $0xac] sm:$0xf]
        %v845 = vld [vmem:[#allocation2 + $0xb4] sm:$0xf]
        %v846 = vld [vmem:[#allocation2 + $0xb8] sm:$0xf]
        %v879 = vunpack.c.l.b16 %v815
        %v880 = vunpack.c.l.b16 %v816
        %v881 = vunpack.c.l.b16 %v817
        %v882 = vunpack.c.l.b16 %v818
        %v883 = vunpack.c.l.b16 %v819
        %v884 = vunpack.c.l.b16 %v820
        %v885 = vunpack.c.l.b16 %v821
        %v886 = vunpack.c.l.b16 %v822
        %v887 = vunpack.c.l.b16 %v823
        %v888 = vunpack.c.l.b16 %v824
        %v889 = vunpack.c.l.b16 %v825
        %v890 = vunpack.c.l.b16 %v826
        %v891 = vunpack.c.l.b16 %v827
        %v892 = vunpack.c.l.b16 %v828
        %v893 = vunpack.c.l.b16 %v829
        %v894 = vunpack.c.l.b16 %v830
        %v895 = vunpack.c.l.b16 %v831
        %v896 = vunpack.c.l.b16 %v832
        %v897 = vunpack.c.l.b16 %v833
        %v898 = vunpack.c.l.b16 %v834
        %v899 = vunpack.c.l.b16 %v835
        %v900 = vunpack.c.l.b16 %v836
        %v901 = vunpack.c.l.b16 %v837
        %v902 = vunpack.c.l.b16 %v838
        %v903 = vunpack.c.l.b16 %v839
        %v904 = vunpack.c.l.b16 %v840
        %v905 = vunpack.c.l.b16 %v841
        %v906 = vunpack.c.l.b16 %v842
        %v907 = vunpack.c.l.b16 %v843
        %v908 = vunpack.c.l.b16 %v844
        %v909 = vunpack.c.l.b16 %v845
        %v910 = vunpack.c.l.b16 %v846
        %v911 = vpack.c.b16 %v880, %v879
        %v912 = vpack.c.b16 %v882, %v881
        %v913 = vpack.c.b16 %v884, %v883
        %v914 = vpack.c.b16 %v886, %v885
        %v915 = vpack.c.b16 %v888, %v887
        %v916 = vpack.c.b16 %v890, %v889
        %v917 = vpack.c.b16 %v892, %v891
        %v918 = vpack.c.b16 %v894, %v893
        %v919 = vpack.c.b16 %v896, %v895
        %v920 = vpack.c.b16 %v898, %v897
        %v921 = vpack.c.b16 %v900, %v899
        %v922 = vpack.c.b16 %v902, %v901
        %v923 = vpack.c.b16 %v904, %v903
        %v924 = vpack.c.b16 %v906, %v905
        %v925 = vpack.c.b16 %v908, %v907
        %v926 = vpack.c.b16 %v910, %v909
        %vm943 = vcmask 130048
        %944 = vst.msk [vmem:[#allocation3] sm:$0xff] %vm943, %v911
        %945 = vst.msk [vmem:[#allocation3 + $0x10] sm:$0xff] %vm943, %v912
        %946 = vst.msk [vmem:[#allocation3 + $0x20] sm:$0xff] %vm943, %v913
        %947 = vst.msk [vmem:[#allocation3 + $0x30] sm:$0xff] %vm943, %v914
        %948 = vst.msk [vmem:[#allocation3 + $0x40] sm:$0xff] %vm943, %v915
        %949 = vst.msk [vmem:[#allocation3 + $0x50] sm:$0xff] %vm943, %v916
        %950 = vst.msk [vmem:[#allocation3 + $0x60] sm:$0xff] %vm943, %v917
        %951 = vst.msk [vmem:[#allocation3 + $0x70] sm:$0xff] %vm943, %v918
        %952 = vst.msk [vmem:[#allocation3 + $0x80] sm:$0xff] %vm943, %v919
        %953 = vst.msk [vmem:[#allocation3 + $0x90] sm:$0xff] %vm943, %v920
        %954 = vst.msk [vmem:[#allocation3 + $0xa0] sm:$0xff] %vm943, %v921
        %955 = vst.msk [vmem:[#allocation3 + $0xb0] sm:$0xff] %vm943, %v922
        %956 = vst.msk [vmem:[#allocation3 + $0xc0] sm:$0xff] %vm943, %v923
        %957 = vst.msk [vmem:[#allocation3 + $0xd0] sm:$0xff] %vm943, %v924
        %958 = vst.msk [vmem:[#allocation3 + $0xe0] sm:$0xff] %vm943, %v925
        %959 = vst.msk [vmem:[#allocation3 + $0xf0] sm:$0xff] %vm943, %v926
        %v960 = vld [vmem:[#allocation2] sm:$0xf]
        %v961 = vld [vmem:[#allocation2 + $0x4] sm:$0xf]
        %v962 = vld [vmem:[#allocation2 + $0x8] sm:$0x1]
        %v963 = vld [vmem:[#allocation2 + $0xc] sm:$0xf]
        %v964 = vld [vmem:[#allocation2 + $0x10] sm:$0xf]
        %v965 = vld [vmem:[#allocation2 + $0x14] sm:$0x1]
        %v966 = vld [vmem:[#allocation2 + $0x18] sm:$0xf]
        %v967 = vld [vmem:[#allocation2 + $0x1c] sm:$0xf]
        %v968 = vld [vmem:[#allocation2 + $0x20] sm:$0x1]
        %v969 = vld [vmem:[#allocation2 + $0x24] sm:$0xf]
        %v970 = vld [vmem:[#allocation2 + $0x28] sm:$0xf]
        %v971 = vld [vmem:[#allocation2 + $0x2c] sm:$0x1]
        %v972 = vld [vmem:[#allocation2 + $0x30] sm:$0xf]
        %v973 = vld [vmem:[#allocation2 + $0x34] sm:$0xf]
        %v974 = vld [vmem:[#allocation2 + $0x38] sm:$0x1]
        %v975 = vld [vmem:[#allocation2 + $0x3c] sm:$0xf]
        %v976 = vld [vmem:[#allocation2 + $0x40] sm:$0xf]
        %v977 = vld [vmem:[#allocation2 + $0x44] sm:$0x1]
        %v978 = vld [vmem:[#allocation2 + $0x48] sm:$0xf]
        %v979 = vld [vmem:[#allocation2 + $0x4c] sm:$0xf]
        %v980 = vld [vmem:[#allocation2 + $0x50] sm:$0x1]
        %v981 = vld [vmem:[#allocation2 + $0x54] sm:$0xf]
        %v982 = vld [vmem:[#allocation2 + $0x58] sm:$0xf]
        %v983 = vld [vmem:[#allocation2 + $0x5c] sm:$0x1]
        %v984 = vld [vmem:[#allocation2 + $0x60] sm:$0xf]
        %v985 = vld [vmem:[#allocation2 + $0x64] sm:$0xf]
        %v986 = vld [vmem:[#allocation2 + $0x68] sm:$0x1]
        %v987 = vld [vmem:[#allocation2 + $0x6c] sm:$0xf]
        %v988 = vld [vmem:[#allocation2 + $0x70] sm:$0xf]
        %v989 = vld [vmem:[#allocation2 + $0x74] sm:$0x1]
        %v990 = vld [vmem:[#allocation2 + $0x78] sm:$0xf]
        %v991 = vld [vmem:[#allocation2 + $0x7c] sm:$0xf]
        %v992 = vld [vmem:[#allocation2 + $0x80] sm:$0x1]
        %v993 = vld [vmem:[#allocation2 + $0x84] sm:$0xf]
        %v994 = vld [vmem:[#allocation2 + $0x88] sm:$0xf]
        %v995 = vld [vmem:[#allocation2 + $0x8c] sm:$0x1]
        %v996 = vld [vmem:[#allocation2 + $0x90] sm:$0xf]
        %v997 = vld [vmem:[#allocation2 + $0x94] sm:$0xf]
        %v998 = vld [vmem:[#allocation2 + $0x98] sm:$0x1]
        %v999 = vld [vmem:[#allocation2 + $0x9c] sm:$0xf]
        %v1000 = vld [vmem:[#allocation2 + $0xa0] sm:$0xf]
        %v1001 = vld [vmem:[#allocation2 + $0xa4] sm:$0x1]
        %v1002 = vld [vmem:[#allocation2 + $0xa8] sm:$0xf]
        %v1003 = vld [vmem:[#allocation2 + $0xac] sm:$0xf]
        %v1004 = vld [vmem:[#allocation2 + $0xb0] sm:$0x1]
        %v1005 = vld [vmem:[#allocation2 + $0xb4] sm:$0xf]
        %v1006 = vld [vmem:[#allocation2 + $0xb8] sm:$0xf]
        %v1007 = vld [vmem:[#allocation2 + $0xbc] sm:$0x1]
        %v1056 = vunpack.c.l.b16 %v960
        %v1057 = vunpack.c.l.b16 %v961
        %v1058 = vunpack.c.l.b16 %v962
        %v1059 = vunpack.c.l.b16 %v963
        %v1060 = vunpack.c.l.b16 %v964
        %v1061 = vunpack.c.l.b16 %v965
        %v1062 = vunpack.c.l.b16 %v966
        %v1063 = vunpack.c.l.b16 %v967
        %v1064 = vunpack.c.l.b16 %v968
        %v1065 = vunpack.c.l.b16 %v969
        %v1066 = vunpack.c.l.b16 %v970
        %v1067 = vunpack.c.l.b16 %v971
        %v1068 = vunpack.c.l.b16 %v972
        %v1069 = vunpack.c.l.b16 %v973
        %v1070 = vunpack.c.l.b16 %v974
        %v1071 = vunpack.c.l.b16 %v975
        %v1072 = vunpack.c.l.b16 %v976
        %v1073 = vunpack.c.l.b16 %v977
        %v1074 = vunpack.c.l.b16 %v978
        %v1075 = vunpack.c.l.b16 %v979
        %v1076 = vunpack.c.l.b16 %v980
        %v1077 = vunpack.c.l.b16 %v981
        %v1078 = vunpack.c.l.b16 %v982
        %v1079 = vunpack.c.l.b16 %v983
        %v1080 = vunpack.c.l.b16 %v984
        %v1081 = vunpack.c.l.b16 %v985
        %v1082 = vunpack.c.l.b16 %v986
        %v1083 = vunpack.c.l.b16 %v987
        %v1084 = vunpack.c.l.b16 %v988
        %v1085 = vunpack.c.l.b16 %v989
        %v1086 = vunpack.c.l.b16 %v990
        %v1087 = vunpack.c.l.b16 %v991
        %v1088 = vunpack.c.l.b16 %v992
        %v1089 = vunpack.c.l.b16 %v993
        %v1090 = vunpack.c.l.b16 %v994
        %v1091 = vunpack.c.l.b16 %v995
        %v1092 = vunpack.c.l.b16 %v996
        %v1093 = vunpack.c.l.b16 %v997
        %v1094 = vunpack.c.l.b16 %v998
        %v1095 = vunpack.c.l.b16 %v999
        %v1096 = vunpack.c.l.b16 %v1000
        %v1097 = vunpack.c.l.b16 %v1001
        %v1098 = vunpack.c.l.b16 %v1002
        %v1099 = vunpack.c.l.b16 %v1003
        %v1100 = vunpack.c.l.b16 %v1004
        %v1101 = vunpack.c.l.b16 %v1005
        %v1102 = vunpack.c.l.b16 %v1006
        %v1103 = vunpack.c.l.b16 %v1007
        %v1104 = vpack.c.b16 %v1057, %v1056
        %v1105 = vpack.c.b16 %v1058, %v1058
        %v1106 = vpack.c.b16 %v1060, %v1059
        %v1107 = vpack.c.b16 %v1061, %v1061
        %v1108 = vpack.c.b16 %v1063, %v1062
        %v1109 = vpack.c.b16 %v1064, %v1064
        %v1110 = vpack.c.b16 %v1066, %v1065
        %v1111 = vpack.c.b16 %v1067, %v1067
        %v1112 = vpack.c.b16 %v1069, %v1068
        %v1113 = vpack.c.b16 %v1070, %v1070
        %v1114 = vpack.c.b16 %v1072, %v1071
        %v1115 = vpack.c.b16 %v1073, %v1073
        %v1116 = vpack.c.b16 %v1075, %v1074
        %v1117 = vpack.c.b16 %v1076, %v1076
        %v1118 = vpack.c.b16 %v1078, %v1077
        %v1119 = vpack.c.b16 %v1079, %v1079
        %v1120 = vpack.c.b16 %v1081, %v1080
        %v1121 = vpack.c.b16 %v1082, %v1082
        %v1122 = vpack.c.b16 %v1084, %v1083
        %v1123 = vpack.c.b16 %v1085, %v1085
        %v1124 = vpack.c.b16 %v1087, %v1086
        %v1125 = vpack.c.b16 %v1088, %v1088
        %v1126 = vpack.c.b16 %v1090, %v1089
        %v1127 = vpack.c.b16 %v1091, %v1091
        %v1128 = vpack.c.b16 %v1093, %v1092
        %v1129 = vpack.c.b16 %v1094, %v1094
        %v1130 = vpack.c.b16 %v1096, %v1095
        %v1131 = vpack.c.b16 %v1097, %v1097
        %v1132 = vpack.c.b16 %v1099, %v1098
        %v1133 = vpack.c.b16 %v1100, %v1100
        %v1134 = vpack.c.b16 %v1102, %v1101
        %v1135 = vpack.c.b16 %v1103, %v1103
        %vm1136 = vsmask.f32 7424
        %v1138 = vshrl.u32 %v1104, 16
        %v1140 = vshll.u32 %v1104, 16
        %v1142 = vrot.slane %v1140, 1
        %v1143 = vor.u32 %v1138, %v1142
        %v1145 = vshll.u32 %v1105, 16
        %v1147 = vrot.slane %v1145, 1
        %v1148 = vsel %vm1136, %v1143, %v1147
        %v1150 = vshrl.u32 %v1106, 16
        %v1152 = vshll.u32 %v1106, 16
        %v1154 = vrot.slane %v1152, 1
        %v1155 = vor.u32 %v1150, %v1154
        %v1157 = vshll.u32 %v1107, 16
        %v1159 = vrot.slane %v1157, 1
        %v1160 = vsel %vm1136, %v1155, %v1159
        %v1162 = vshrl.u32 %v1108, 16
        %v1164 = vshll.u32 %v1108, 16
        %v1166 = vrot.slane %v1164, 1
        %v1167 = vor.u32 %v1162, %v1166
        %v1169 = vshll.u32 %v1109, 16
        %v1171 = vrot.slane %v1169, 1
        %v1172 = vsel %vm1136, %v1167, %v1171
        %v1174 = vshrl.u32 %v1110, 16
        %v1176 = vshll.u32 %v1110, 16
        %v1178 = vrot.slane %v1176, 1
        %v1179 = vor.u32 %v1174, %v1178
        %v1181 = vshll.u32 %v1111, 16
        %v1183 = vrot.slane %v1181, 1
        %v1184 = vsel %vm1136, %v1179, %v1183
        %v1186 = vshrl.u32 %v1112, 16
        %v1188 = vshll.u32 %v1112, 16
        %v1190 = vrot.slane %v1188, 1
        %v1191 = vor.u32 %v1186, %v1190
        %v1193 = vshll.u32 %v1113, 16
        %v1195 = vrot.slane %v1193, 1
        %v1196 = vsel %vm1136, %v1191, %v1195
        %v1198 = vshrl.u32 %v1114, 16
        %v1200 = vshll.u32 %v1114, 16
        %v1202 = vrot.slane %v1200, 1
        %v1203 = vor.u32 %v1198, %v1202
        %v1205 = vshll.u32 %v1115, 16
        %v1207 = vrot.slane %v1205, 1
        %v1208 = vsel %vm1136, %v1203, %v1207
        %v1210 = vshrl.u32 %v1116, 16
        %v1212 = vshll.u32 %v1116, 16
        %v1214 = vrot.slane %v1212, 1
        %v1215 = vor.u32 %v1210, %v1214
        %v1217 = vshll.u32 %v1117, 16
        %v1219 = vrot.slane %v1217, 1
        %v1220 = vsel %vm1136, %v1215, %v1219
        %v1222 = vshrl.u32 %v1118, 16
        %v1224 = vshll.u32 %v1118, 16
        %v1226 = vrot.slane %v1224, 1
        %v1227 = vor.u32 %v1222, %v1226
        %v1229 = vshll.u32 %v1119, 16
        %v1231 = vrot.slane %v1229, 1
        %v1232 = vsel %vm1136, %v1227, %v1231
        %v1234 = vshrl.u32 %v1120, 16
        %v1236 = vshll.u32 %v1120, 16
        %v1238 = vrot.slane %v1236, 1
        %v1239 = vor.u32 %v1234, %v1238
        %v1241 = vshll.u32 %v1121, 16
        %v1243 = vrot.slane %v1241, 1
        %v1244 = vsel %vm1136, %v1239, %v1243
        %v1246 = vshrl.u32 %v1122, 16
        %v1248 = vshll.u32 %v1122, 16
        %v1250 = vrot.slane %v1248, 1
        %v1251 = vor.u32 %v1246, %v1250
        %v1253 = vshll.u32 %v1123, 16
        %v1255 = vrot.slane %v1253, 1
        %v1256 = vsel %vm1136, %v1251, %v1255
        %v1258 = vshrl.u32 %v1124, 16
        %v1260 = vshll.u32 %v1124, 16
        %v1262 = vrot.slane %v1260, 1
        %v1263 = vor.u32 %v1258, %v1262
        %v1265 = vshll.u32 %v1125, 16
        %v1267 = vrot.slane %v1265, 1
        %v1268 = vsel %vm1136, %v1263, %v1267
        %v1270 = vshrl.u32 %v1126, 16
        %v1272 = vshll.u32 %v1126, 16
        %v1274 = vrot.slane %v1272, 1
        %v1275 = vor.u32 %v1270, %v1274
        %v1277 = vshll.u32 %v1127, 16
        %v1279 = vrot.slane %v1277, 1
        %v1280 = vsel %vm1136, %v1275, %v1279
        %v1282 = vshrl.u32 %v1128, 16
        %v1284 = vshll.u32 %v1128, 16
        %v1286 = vrot.slane %v1284, 1
        %v1287 = vor.u32 %v1282, %v1286
        %v1289 = vshll.u32 %v1129, 16
        %v1291 = vrot.slane %v1289, 1
        %v1292 = vsel %vm1136, %v1287, %v1291
        %v1294 = vshrl.u32 %v1130, 16
        %v1296 = vshll.u32 %v1130, 16
        %v1298 = vrot.slane %v1296, 1
        %v1299 = vor.u32 %v1294, %v1298
        %v1301 = vshll.u32 %v1131, 16
        %v1303 = vrot.slane %v1301, 1
        %v1304 = vsel %vm1136, %v1299, %v1303
        %v1306 = vshrl.u32 %v1132, 16
        %v1308 = vshll.u32 %v1132, 16
        %v1310 = vrot.slane %v1308, 1
        %v1311 = vor.u32 %v1306, %v1310
        %v1313 = vshll.u32 %v1133, 16
        %v1315 = vrot.slane %v1313, 1
        %v1316 = vsel %vm1136, %v1311, %v1315
        %v1318 = vshrl.u32 %v1134, 16
        %v1320 = vshll.u32 %v1134, 16
        %v1322 = vrot.slane %v1320, 1
        %v1323 = vor.u32 %v1318, %v1322
        %v1325 = vshll.u32 %v1135, 16
        %v1327 = vrot.slane %v1325, 1
        %v1328 = vsel %vm1136, %v1323, %v1327
        %1329 = vrot.lane.b32.xlu0 %v1148, 16
        %v1330 = vpop.permute.xlu0 %1329
        %1331 = vrot.lane.b32.xlu0 %v1160, 16
        %v1332 = vpop.permute.xlu0 %1331
        %1333 = vrot.lane.b32.xlu0 %v1172, 16
        %v1334 = vpop.permute.xlu0 %1333
        %1335 = vrot.lane.b32.xlu0 %v1184, 16
        %v1336 = vpop.permute.xlu0 %1335
        %1337 = vrot.lane.b32.xlu0 %v1196, 16
        %v1338 = vpop.permute.xlu0 %1337
        %1339 = vrot.lane.b32.xlu0 %v1208, 16
        %v1340 = vpop.permute.xlu0 %1339
        %1341 = vrot.lane.b32.xlu0 %v1220, 16
        %v1342 = vpop.permute.xlu0 %1341
        %1343 = vrot.lane.b32.xlu0 %v1232, 16
        %v1344 = vpop.permute.xlu0 %1343
        %1345 = vrot.lane.b32.xlu0 %v1244, 16
        %v1346 = vpop.permute.xlu0 %1345
        %1347 = vrot.lane.b32.xlu0 %v1256, 16
        %v1348 = vpop.permute.xlu0 %1347
        %1349 = vrot.lane.b32.xlu0 %v1268, 16
        %v1350 = vpop.permute.xlu0 %1349
        %1351 = vrot.lane.b32.xlu0 %v1280, 16
        %v1352 = vpop.permute.xlu0 %1351
        %1353 = vrot.lane.b32.xlu0 %v1292, 16
        %v1354 = vpop.permute.xlu0 %1353
        %1355 = vrot.lane.b32.xlu0 %v1304, 16
        %v1356 = vpop.permute.xlu0 %1355
        %1357 = vrot.lane.b32.xlu0 %v1316, 16
        %v1358 = vpop.permute.xlu0 %1357
        %1359 = vrot.lane.b32.xlu0 %v1328, 16
        %v1360 = vpop.permute.xlu0 %1359
        %vm1377 = vcmask 261248
        %1378 = vst.msk [vmem:[#allocation3] sm:$0xff] %vm1377, %v1330
        %1379 = vst.msk [vmem:[#allocation3 + $0x10] sm:$0xff] %vm1377, %v1332
        %1380 = vst.msk [vmem:[#allocation3 + $0x20] sm:$0xff] %vm1377, %v1334
        %1381 = vst.msk [vmem:[#allocation3 + $0x30] sm:$0xff] %vm1377, %v1336
        %1382 = vst.msk [vmem:[#allocation3 + $0x40] sm:$0xff] %vm1377, %v1338
        %1383 = vst.msk [vmem:[#allocation3 + $0x50] sm:$0xff] %vm1377, %v1340
        %1384 = vst.msk [vmem:[#allocation3 + $0x60] sm:$0xff] %vm1377, %v1342
        %1385 = vst.msk [vmem:[#allocation3 + $0x70] sm:$0xff] %vm1377, %v1344
        %1386 = vst.msk [vmem:[#allocation3 + $0x80] sm:$0xff] %vm1377, %v1346
        %1387 = vst.msk [vmem:[#allocation3 + $0x90] sm:$0xff] %vm1377, %v1348
        %1388 = vst.msk [vmem:[#allocation3 + $0xa0] sm:$0xff] %vm1377, %v1350
        %1389 = vst.msk [vmem:[#allocation3 + $0xb0] sm:$0xff] %vm1377, %v1352
        %1390 = vst.msk [vmem:[#allocation3 + $0xc0] sm:$0xff] %vm1377, %v1354
        %1391 = vst.msk [vmem:[#allocation3 + $0xd0] sm:$0xff] %vm1377, %v1356
        %1392 = vst.msk [vmem:[#allocation3 + $0xe0] sm:$0xff] %vm1377, %v1358
        %1393 = vst.msk [vmem:[#allocation3 + $0xf0] sm:$0xff] %vm1377, %v1360
        %v1394 = vld [vmem:[#allocation2] sm:$0xe]
        %v1395 = vld [vmem:[#allocation2 + $0x4] sm:$0xf]
        %v1396 = vld [vmem:[#allocation2 + $0x8] sm:$0x1]
        %v1397 = vld [vmem:[#allocation2 + $0xc] sm:$0xe]
        %v1398 = vld [vmem:[#allocation2 + $0x10] sm:$0xf]
        %v1399 = vld [vmem:[#allocation2 + $0x14] sm:$0x1]
        %v1400 = vld [vmem:[#allocation2 + $0x18] sm:$0xe]
        %v1401 = vld [vmem:[#allocation2 + $0x1c] sm:$0xf]
        %v1402 = vld [vmem:[#allocation2 + $0x20] sm:$0x1]
        %v1403 = vld [vmem:[#allocation2 + $0x24] sm:$0xe]
        %v1404 = vld [vmem:[#allocation2 + $0x28] sm:$0xf]
        %v1405 = vld [vmem:[#allocation2 + $0x2c] sm:$0x1]
        %v1406 = vld [vmem:[#allocation2 + $0x30] sm:$0xe]
        %v1407 = vld [vmem:[#allocation2 + $0x34] sm:$0xf]
        %v1408 = vld [vmem:[#allocation2 + $0x38] sm:$0x1]
        %v1409 = vld [vmem:[#allocation2 + $0x3c] sm:$0xe]
        %v1410 = vld [vmem:[#allocation2 + $0x40] sm:$0xf]
        %v1411 = vld [vmem:[#allocation2 + $0x44] sm:$0x1]
        %v1412 = vld [vmem:[#allocation2 + $0x48] sm:$0xe]
        %v1413 = vld [vmem:[#allocation2 + $0x4c] sm:$0xf]
        %v1414 = vld [vmem:[#allocation2 + $0x50] sm:$0x1]
        %v1415 = vld [vmem:[#allocation2 + $0x54] sm:$0xe]
        %v1416 = vld [vmem:[#allocation2 + $0x58] sm:$0xf]
        %v1417 = vld [vmem:[#allocation2 + $0x5c] sm:$0x1]
        %v1418 = vld [vmem:[#allocation2 + $0x60] sm:$0xe]
        %v1419 = vld [vmem:[#allocation2 + $0x64] sm:$0xf]
        %v1420 = vld [vmem:[#allocation2 + $0x68] sm:$0x1]
        %v1421 = vld [vmem:[#allocation2 + $0x6c] sm:$0xe]
        %v1422 = vld [vmem:[#allocation2 + $0x70] sm:$0xf]
        %v1423 = vld [vmem:[#allocation2 + $0x74] sm:$0x1]
        %v1424 = vld [vmem:[#allocation2 + $0x78] sm:$0xe]
        %v1425 = vld [vmem:[#allocation2 + $0x7c] sm:$0xf]
        %v1426 = vld [vmem:[#allocation2 + $0x80] sm:$0x1]
        %v1427 = vld [vmem:[#allocation2 + $0x84] sm:$0xe]
        %v1428 = vld [vmem:[#allocation2 + $0x88] sm:$0xf]
        %v1429 = vld [vmem:[#allocation2 + $0x8c] sm:$0x1]
        %v1430 = vld [vmem:[#allocation2 + $0x90] sm:$0xe]
        %v1431 = vld [vmem:[#allocation2 + $0x94] sm:$0xf]
        %v1432 = vld [vmem:[#allocation2 + $0x98] sm:$0x1]
        %v1433 = vld [vmem:[#allocation2 + $0x9c] sm:$0xe]
        %v1434 = vld [vmem:[#allocation2 + $0xa0] sm:$0xf]
        %v1435 = vld [vmem:[#allocation2 + $0xa4] sm:$0x1]
        %v1436 = vld [vmem:[#allocation2 + $0xa8] sm:$0xe]
        %v1437 = vld [vmem:[#allocation2 + $0xac] sm:$0xf]
        %v1438 = vld [vmem:[#allocation2 + $0xb0] sm:$0x1]
        %v1439 = vld [vmem:[#allocation2 + $0xb4] sm:$0xe]
        %v1440 = vld [vmem:[#allocation2 + $0xb8] sm:$0xf]
        %v1441 = vld [vmem:[#allocation2 + $0xbc] sm:$0x1]
        %v1490 = vunpack.c.l.b16 %v1394
        %v1491 = vunpack.c.l.b16 %v1395
        %v1492 = vunpack.c.l.b16 %v1396
        %v1493 = vunpack.c.l.b16 %v1397
        %v1494 = vunpack.c.l.b16 %v1398
        %v1495 = vunpack.c.l.b16 %v1399
        %v1496 = vunpack.c.l.b16 %v1400
        %v1497 = vunpack.c.l.b16 %v1401
        %v1498 = vunpack.c.l.b16 %v1402
        %v1499 = vunpack.c.l.b16 %v1403
        %v1500 = vunpack.c.l.b16 %v1404
        %v1501 = vunpack.c.l.b16 %v1405
        %v1502 = vunpack.c.l.b16 %v1406
        %v1503 = vunpack.c.l.b16 %v1407
        %v1504 = vunpack.c.l.b16 %v1408
        %v1505 = vunpack.c.l.b16 %v1409
        %v1506 = vunpack.c.l.b16 %v1410
        %v1507 = vunpack.c.l.b16 %v1411
        %v1508 = vunpack.c.l.b16 %v1412
        %v1509 = vunpack.c.l.b16 %v1413
        %v1510 = vunpack.c.l.b16 %v1414
        %v1511 = vunpack.c.l.b16 %v1415
        %v1512 = vunpack.c.l.b16 %v1416
        %v1513 = vunpack.c.l.b16 %v1417
        %v1514 = vunpack.c.l.b16 %v1418
        %v1515 = vunpack.c.l.b16 %v1419
        %v1516 = vunpack.c.l.b16 %v1420
        %v1517 = vunpack.c.l.b16 %v1421
        %v1518 = vunpack.c.l.b16 %v1422
        %v1519 = vunpack.c.l.b16 %v1423
        %v1520 = vunpack.c.l.b16 %v1424
        %v1521 = vunpack.c.l.b16 %v1425
        %v1522 = vunpack.c.l.b16 %v1426
        %v1523 = vunpack.c.l.b16 %v1427
        %v1524 = vunpack.c.l.b16 %v1428
        %v1525 = vunpack.c.l.b16 %v1429
        %v1526 = vunpack.c.l.b16 %v1430
        %v1527 = vunpack.c.l.b16 %v1431
        %v1528 = vunpack.c.l.b16 %v1432
        %v1529 = vunpack.c.l.b16 %v1433
        %v1530 = vunpack.c.l.b16 %v1434
        %v1531 = vunpack.c.l.b16 %v1435
        %v1532 = vunpack.c.l.b16 %v1436
        %v1533 = vunpack.c.l.b16 %v1437
        %v1534 = vunpack.c.l.b16 %v1438
        %v1535 = vunpack.c.l.b16 %v1439
        %v1536 = vunpack.c.l.b16 %v1440
        %v1537 = vunpack.c.l.b16 %v1441
        %v1538 = vpack.c.b16 %v1491, %v1490
        %v1539 = vpack.c.b16 %v1492, %v1492
        %v1540 = vpack.c.b16 %v1494, %v1493
        %v1541 = vpack.c.b16 %v1495, %v1495
        %v1542 = vpack.c.b16 %v1497, %v1496
        %v1543 = vpack.c.b16 %v1498, %v1498
        %v1544 = vpack.c.b16 %v1500, %v1499
        %v1545 = vpack.c.b16 %v1501, %v1501
        %v1546 = vpack.c.b16 %v1503, %v1502
        %v1547 = vpack.c.b16 %v1504, %v1504
        %v1548 = vpack.c.b16 %v1506, %v1505
        %v1549 = vpack.c.b16 %v1507, %v1507
        %v1550 = vpack.c.b16 %v1509, %v1508
        %v1551 = vpack.c.b16 %v1510, %v1510
        %v1552 = vpack.c.b16 %v1512, %v1511
        %v1553 = vpack.c.b16 %v1513, %v1513
        %v1554 = vpack.c.b16 %v1515, %v1514
        %v1555 = vpack.c.b16 %v1516, %v1516
        %v1556 = vpack.c.b16 %v1518, %v1517
        %v1557 = vpack.c.b16 %v1519, %v1519
        %v1558 = vpack.c.b16 %v1521, %v1520
        %v1559 = vpack.c.b16 %v1522, %v1522
        %v1560 = vpack.c.b16 %v1524, %v1523
        %v1561 = vpack.c.b16 %v1525, %v1525
        %v1562 = vpack.c.b16 %v1527, %v1526
        %v1563 = vpack.c.b16 %v1528, %v1528
        %v1564 = vpack.c.b16 %v1530, %v1529
        %v1565 = vpack.c.b16 %v1531, %v1531
        %v1566 = vpack.c.b16 %v1533, %v1532
        %v1567 = vpack.c.b16 %v1534, %v1534
        %v1568 = vpack.c.b16 %v1536, %v1535
        %v1569 = vpack.c.b16 %v1537, %v1537
        %vm1570 = vcmask 1046528
        %v1571 = vrot.slane %v1538, 1
        %v1572 = vrot.slane %v1539, 1
        %v1573 = vsel %vm1570, %v1571, %v1572
        %v1574 = vrot.slane %v1540, 1
        %v1575 = vrot.slane %v1541, 1
        %v1576 = vsel %vm1570, %v1574, %v1575
        %v1577 = vrot.slane %v1542, 1
        %v1578 = vrot.slane %v1543, 1
        %v1579 = vsel %vm1570, %v1577, %v1578
        %v1580 = vrot.slane %v1544, 1
        %v1581 = vrot.slane %v1545, 1
        %v1582 = vsel %vm1570, %v1580, %v1581
        %v1583 = vrot.slane %v1546, 1
        %v1584 = vrot.slane %v1547, 1
        %v1585 = vsel %vm1570, %v1583, %v1584
        %v1586 = vrot.slane %v1548, 1
        %v1587 = vrot.slane %v1549, 1
        %v1588 = vsel %vm1570, %v1586, %v1587
        %v1589 = vrot.slane %v1550, 1
        %v1590 = vrot.slane %v1551, 1
        %v1591 = vsel %vm1570, %v1589, %v1590
        %v1592 = vrot.slane %v1552, 1
        %v1593 = vrot.slane %v1553, 1
        %v1594 = vsel %vm1570, %v1592, %v1593
        %v1595 = vrot.slane %v1554, 1
        %v1596 = vrot.slane %v1555, 1
        %v1597 = vsel %vm1570, %v1595, %v1596
        %v1598 = vrot.slane %v1556, 1
        %v1599 = vrot.slane %v1557, 1
        %v1600 = vsel %vm1570, %v1598, %v1599
        %v1601 = vrot.slane %v1558, 1
        %v1602 = vrot.slane %v1559, 1
        %v1603 = vsel %vm1570, %v1601, %v1602
        %v1604 = vrot.slane %v1560, 1
        %v1605 = vrot.slane %v1561, 1
        %v1606 = vsel %vm1570, %v1604, %v1605
        %v1607 = vrot.slane %v1562, 1
        %v1608 = vrot.slane %v1563, 1
        %v1609 = vsel %vm1570, %v1607, %v1608
        %v1610 = vrot.slane %v1564, 1
        %v1611 = vrot.slane %v1565, 1
        %v1612 = vsel %vm1570, %v1610, %v1611
        %v1613 = vrot.slane %v1566, 1
        %v1614 = vrot.slane %v1567, 1
        %v1615 = vsel %vm1570, %v1613, %v1614
        %v1616 = vrot.slane %v1568, 1
        %v1617 = vrot.slane %v1569, 1
        %v1618 = vsel %vm1570, %v1616, %v1617
        %1619 = vrot.lane.b32.xlu0 %v1573, 32
        %v1620 = vpop.permute.xlu0 %1619
        %1621 = vrot.lane.b32.xlu0 %v1576, 32
        %v1622 = vpop.permute.xlu0 %1621
        %1623 = vrot.lane.b32.xlu0 %v1579, 32
        %v1624 = vpop.permute.xlu0 %1623
        %1625 = vrot.lane.b32.xlu0 %v1582, 32
        %v1626 = vpop.permute.xlu0 %1625
        %1627 = vrot.lane.b32.xlu0 %v1585, 32
        %v1628 = vpop.permute.xlu0 %1627
        %1629 = vrot.lane.b32.xlu0 %v1588, 32
        %v1630 = vpop.permute.xlu0 %1629
        %1631 = vrot.lane.b32.xlu0 %v1591, 32
        %v1632 = vpop.permute.xlu0 %1631
        %1633 = vrot.lane.b32.xlu0 %v1594, 32
        %v1634 = vpop.permute.xlu0 %1633
        %1635 = vrot.lane.b32.xlu0 %v1597, 32
        %v1636 = vpop.permute.xlu0 %1635
        %1637 = vrot.lane.b32.xlu0 %v1600, 32
        %v1638 = vpop.permute.xlu0 %1637
        %1639 = vrot.lane.b32.xlu0 %v1603, 32
        %v1640 = vpop.permute.xlu0 %1639
        %1641 = vrot.lane.b32.xlu0 %v1606, 32
        %v1642 = vpop.permute.xlu0 %1641
        %1643 = vrot.lane.b32.xlu0 %v1609, 32
        %v1644 = vpop.permute.xlu0 %1643
        %1645 = vrot.lane.b32.xlu0 %v1612, 32
        %v1646 = vpop.permute.xlu0 %1645
        %1647 = vrot.lane.b32.xlu0 %v1615, 32
        %v1648 = vpop.permute.xlu0 %1647
        %1649 = vrot.lane.b32.xlu0 %v1618, 32
        %v1650 = vpop.permute.xlu0 %1649
        %vm1667 = vcmask 392448
        %1668 = vst.msk [vmem:[#allocation3] sm:$0xff] %vm1667, %v1620
        %1669 = vst.msk [vmem:[#allocation3 + $0x10] sm:$0xff] %vm1667, %v1622
        %1670 = vst.msk [vmem:[#allocation3 + $0x20] sm:$0xff] %vm1667, %v1624
        %1671 = vst.msk [vmem:[#allocation3 + $0x30] sm:$0xff] %vm1667, %v1626
        %1672 = vst.msk [vmem:[#allocation3 + $0x40] sm:$0xff] %vm1667, %v1628
        %1673 = vst.msk [vmem:[#allocation3 + $0x50] sm:$0xff] %vm1667, %v1630
        %1674 = vst.msk [vmem:[#allocation3 + $0x60] sm:$0xff] %vm1667, %v1632
        %1675 = vst.msk [vmem:[#allocation3 + $0x70] sm:$0xff] %vm1667, %v1634
        %1676 = vst.msk [vmem:[#allocation3 + $0x80] sm:$0xff] %vm1667, %v1636
        %1677 = vst.msk [vmem:[#allocation3 + $0x90] sm:$0xff] %vm1667, %v1638
        %1678 = vst.msk [vmem:[#allocation3 + $0xa0] sm:$0xff] %vm1667, %v1640
        %1679 = vst.msk [vmem:[#allocation3 + $0xb0] sm:$0xff] %vm1667, %v1642
        %1680 = vst.msk [vmem:[#allocation3 + $0xc0] sm:$0xff] %vm1667, %v1644
        %1681 = vst.msk [vmem:[#allocation3 + $0xd0] sm:$0xff] %vm1667, %v1646
        %1682 = vst.msk [vmem:[#allocation3 + $0xe0] sm:$0xff] %vm1667, %v1648
        %1683 = vst.msk [vmem:[#allocation3 + $0xf0] sm:$0xff] %vm1667, %v1650
        %v1684 = vld [vmem:[%s700] sm:$0xf]
        %v1685 = vld [vmem:[%s700 + $0x4] sm:$0xf]
        %v1686 = vld [vmem:[%s700 + $0xc] sm:$0xf]
        %v1687 = vld [vmem:[%s700 + $0x10] sm:$0xf]
        %v1688 = vld [vmem:[%s700 + $0x18] sm:$0xf]
        %v1689 = vld [vmem:[%s700 + $0x1c] sm:$0xf]
        %v1690 = vld [vmem:[%s700 + $0x24] sm:$0xf]
        %v1691 = vld [vmem:[%s700 + $0x28] sm:$0xf]
        %v1692 = vld [vmem:[%s700 + $0x30] sm:$0xf]
        %v1693 = vld [vmem:[%s700 + $0x34] sm:$0xf]
        %v1694 = vld [vmem:[%s700 + $0x3c] sm:$0xf]
        %v1695 = vld [vmem:[%s700 + $0x40] sm:$0xf]
        %v1696 = vld [vmem:[%s700 + $0x48] sm:$0xf]
        %v1697 = vld [vmem:[%s700 + $0x4c] sm:$0xf]
        %v1698 = vld [vmem:[%s700 + $0x54] sm:$0xf]
        %v1699 = vld [vmem:[%s700 + $0x58] sm:$0xf]
        %v1700 = vld [vmem:[%s700 + $0x60] sm:$0xf]
        %v1701 = vld [vmem:[%s700 + $0x64] sm:$0xf]
        %v1702 = vld [vmem:[%s700 + $0x6c] sm:$0xf]
        %v1703 = vld [vmem:[%s700 + $0x70] sm:$0xf]
        %v1704 = vld [vmem:[%s700 + $0x78] sm:$0xf]
        %v1705 = vld [vmem:[%s700 + $0x7c] sm:$0xf]
        %v1706 = vld [vmem:[%s700 + $0x84] sm:$0xf]
        %v1707 = vld [vmem:[%s700 + $0x88] sm:$0xf]
        %v1708 = vld [vmem:[%s700 + $0x90] sm:$0xf]
        %v1709 = vld [vmem:[%s700 + $0x94] sm:$0xf]
        %v1710 = vld [vmem:[%s700 + $0x9c] sm:$0xf]
        %v1711 = vld [vmem:[%s700 + $0xa0] sm:$0xf]
        %v1712 = vld [vmem:[%s700 + $0xa8] sm:$0xf]
        %v1713 = vld [vmem:[%s700 + $0xac] sm:$0xf]
        %v1714 = vld [vmem:[%s700 + $0xb4] sm:$0xf]
        %v1715 = vld [vmem:[%s700 + $0xb8] sm:$0xf]
        %v1748 = vunpack.c.l.b16 %v1684
        %v1749 = vunpack.c.l.b16 %v1685
        %v1750 = vunpack.c.l.b16 %v1686
        %v1751 = vunpack.c.l.b16 %v1687
        %v1752 = vunpack.c.l.b16 %v1688
        %v1753 = vunpack.c.l.b16 %v1689
        %v1754 = vunpack.c.l.b16 %v1690
        %v1755 = vunpack.c.l.b16 %v1691
        %v1756 = vunpack.c.l.b16 %v1692
        %v1757 = vunpack.c.l.b16 %v1693
        %v1758 = vunpack.c.l.b16 %v1694
        %v1759 = vunpack.c.l.b16 %v1695
        %v1760 = vunpack.c.l.b16 %v1696
        %v1761 = vunpack.c.l.b16 %v1697
        %v1762 = vunpack.c.l.b16 %v1698
        %v1763 = vunpack.c.l.b16 %v1699
        %v1764 = vunpack.c.l.b16 %v1700
        %v1765 = vunpack.c.l.b16 %v1701
        %v1766 = vunpack.c.l.b16 %v1702
        %v1767 = vunpack.c.l.b16 %v1703
        %v1768 = vunpack.c.l.b16 %v1704
        %v1769 = vunpack.c.l.b16 %v1705
        %v1770 = vunpack.c.l.b16 %v1706
        %v1771 = vunpack.c.l.b16 %v1707
        %v1772 = vunpack.c.l.b16 %v1708
        %v1773 = vunpack.c.l.b16 %v1709
        %v1774 = vunpack.c.l.b16 %v1710
        %v1775 = vunpack.c.l.b16 %v1711
        %v1776 = vunpack.c.l.b16 %v1712
        %v1777 = vunpack.c.l.b16 %v1713
        %v1778 = vunpack.c.l.b16 %v1714
        %v1779 = vunpack.c.l.b16 %v1715
        %v1780 = vpack.c.b16 %v1749, %v1748
        %v1781 = vpack.c.b16 %v1751, %v1750
        %v1782 = vpack.c.b16 %v1753, %v1752
        %v1783 = vpack.c.b16 %v1755, %v1754
        %v1784 = vpack.c.b16 %v1757, %v1756
        %v1785 = vpack.c.b16 %v1759, %v1758
        %v1786 = vpack.c.b16 %v1761, %v1760
        %v1787 = vpack.c.b16 %v1763, %v1762
        %v1788 = vpack.c.b16 %v1765, %v1764
        %v1789 = vpack.c.b16 %v1767, %v1766
        %v1790 = vpack.c.b16 %v1769, %v1768
        %v1791 = vpack.c.b16 %v1771, %v1770
        %v1792 = vpack.c.b16 %v1773, %v1772
        %v1793 = vpack.c.b16 %v1775, %v1774
        %v1794 = vpack.c.b16 %v1777, %v1776
        %v1795 = vpack.c.b16 %v1779, %v1778
        %1796 = vrot.lane.b32.xlu0 %v1780, 48
        %v1797 = vpop.permute.xlu0 %1796
        %1798 = vrot.lane.b32.xlu0 %v1781, 48
        %v1799 = vpop.permute.xlu0 %1798
        %1800 = vrot.lane.b32.xlu0 %v1782, 48
        %v1801 = vpop.permute.xlu0 %1800
        %1802 = vrot.lane.b32.xlu0 %v1783, 48
        %v1803 = vpop.permute.xlu0 %1802
        %1804 = vrot.lane.b32.xlu0 %v1784, 48
        %v1805 = vpop.permute.xlu0 %1804
        %1806 = vrot.lane.b32.xlu0 %v1785, 48
        %v1807 = vpop.permute.xlu0 %1806
        %1808 = vrot.lane.b32.xlu0 %v1786, 48
        %v1809 = vpop.permute.xlu0 %1808
        %1810 = vrot.lane.b32.xlu0 %v1787, 48
        %v1811 = vpop.permute.xlu0 %1810
        %1812 = vrot.lane.b32.xlu0 %v1788, 48
        %v1813 = vpop.permute.xlu0 %1812
        %1814 = vrot.lane.b32.xlu0 %v1789, 48
        %v1815 = vpop.permute.xlu0 %1814
        %1816 = vrot.lane.b32.xlu0 %v1790, 48
        %v1817 = vpop.permute.xlu0 %1816
        %1818 = vrot.lane.b32.xlu0 %v1791, 48
        %v1819 = vpop.permute.xlu0 %1818
        %1820 = vrot.lane.b32.xlu0 %v1792, 48
        %v1821 = vpop.permute.xlu0 %1820
        %1822 = vrot.lane.b32.xlu0 %v1793, 48
        %v1823 = vpop.permute.xlu0 %1822
        %1824 = vrot.lane.b32.xlu0 %v1794, 48
        %v1825 = vpop.permute.xlu0 %1824
        %1826 = vrot.lane.b32.xlu0 %v1795, 48
        %v1827 = vpop.permute.xlu0 %1826
        %vm1844 = vcmask 523648
        %1845 = vst.msk [vmem:[#allocation3] sm:$0xff] %vm1844, %v1797
        %1846 = vst.msk [vmem:[#allocation3 + $0x10] sm:$0xff] %vm1844, %v1799
        %1847 = vst.msk [vmem:[#allocation3 + $0x20] sm:$0xff] %vm1844, %v1801
        %1848 = vst.msk [vmem:[#allocation3 + $0x30] sm:$0xff] %vm1844, %v1803
        %1849 = vst.msk [vmem:[#allocation3 + $0x40] sm:$0xff] %vm1844, %v1805
        %1850 = vst.msk [vmem:[#allocation3 + $0x50] sm:$0xff] %vm1844, %v1807
        %1851 = vst.msk [vmem:[#allocation3 + $0x60] sm:$0xff] %vm1844, %v1809
        %1852 = vst.msk [vmem:[#allocation3 + $0x70] sm:$0xff] %vm1844, %v1811
        %1853 = vst.msk [vmem:[#allocation3 + $0x80] sm:$0xff] %vm1844, %v1813
        %1854 = vst.msk [vmem:[#allocation3 + $0x90] sm:$0xff] %vm1844, %v1815
        %1855 = vst.msk [vmem:[#allocation3 + $0xa0] sm:$0xff] %vm1844, %v1817
        %1856 = vst.msk [vmem:[#allocation3 + $0xb0] sm:$0xff] %vm1844, %v1819
        %1857 = vst.msk [vmem:[#allocation3 + $0xc0] sm:$0xff] %vm1844, %v1821
        %1858 = vst.msk [vmem:[#allocation3 + $0xd0] sm:$0xff] %vm1844, %v1823
        %1859 = vst.msk [vmem:[#allocation3 + $0xe0] sm:$0xff] %vm1844, %v1825
        %1860 = vst.msk [vmem:[#allocation3 + $0xf0] sm:$0xff] %vm1844, %v1827
        %v1861 = vld [vmem:[%s700] sm:$0xf]
        %v1862 = vld [vmem:[%s700 + $0x4] sm:$0xf]
        %v1863 = vld [vmem:[%s700 + $0x8] sm:$0x1]
        %v1864 = vld [vmem:[%s700 + $0xc] sm:$0xf]
        %v1865 = vld [vmem:[%s700 + $0x10] sm:$0xf]
        %v1866 = vld [vmem:[%s700 + $0x14] sm:$0x1]
        %v1867 = vld [vmem:[%s700 + $0x18] sm:$0xf]
        %v1868 = vld [vmem:[%s700 + $0x1c] sm:$0xf]
        %v1869 = vld [vmem:[%s700 + $0x20] sm:$0x1]
        %v1870 = vld [vmem:[%s700 + $0x24] sm:$0xf]
        %v1871 = vld [vmem:[%s700 + $0x28] sm:$0xf]
        %v1872 = vld [vmem:[%s700 + $0x2c] sm:$0x1]
        %v1873 = vld [vmem:[%s700 + $0x30] sm:$0xf]
        %v1874 = vld [vmem:[%s700 + $0x34] sm:$0xf]
        %v1875 = vld [vmem:[%s700 + $0x38] sm:$0x1]
        %v1876 = vld [vmem:[%s700 + $0x3c] sm:$0xf]
        %v1877 = vld [vmem:[%s700 + $0x40] sm:$0xf]
        %v1878 = vld [vmem:[%s700 + $0x44] sm:$0x1]
        %v1879 = vld [vmem:[%s700 + $0x48] sm:$0xf]
        %v1880 = vld [vmem:[%s700 + $0x4c] sm:$0xf]
        %v1881 = vld [vmem:[%s700 + $0x50] sm:$0x1]
        %v1882 = vld [vmem:[%s700 + $0x54] sm:$0xf]
        %v1883 = vld [vmem:[%s700 + $0x58] sm:$0xf]
        %v1884 = vld [vmem:[%s700 + $0x5c] sm:$0x1]
        %v1885 = vld [vmem:[%s700 + $0x60] sm:$0xf]
        %v1886 = vld [vmem:[%s700 + $0x64] sm:$0xf]
        %v1887 = vld [vmem:[%s700 + $0x68] sm:$0x1]
        %v1888 = vld [vmem:[%s700 + $0x6c] sm:$0xf]
        %v1889 = vld [vmem:[%s700 + $0x70] sm:$0xf]
        %v1890 = vld [vmem:[%s700 + $0x74] sm:$0x1]
        %v1891 = vld [vmem:[%s700 + $0x78] sm:$0xf]
        %v1892 = vld [vmem:[%s700 + $0x7c] sm:$0xf]
        %v1893 = vld [vmem:[%s700 + $0x80] sm:$0x1]
        %v1894 = vld [vmem:[%s700 + $0x84] sm:$0xf]
        %v1895 = vld [vmem:[%s700 + $0x88] sm:$0xf]
        %v1896 = vld [vmem:[%s700 + $0x8c] sm:$0x1]
        %v1897 = vld [vmem:[%s700 + $0x90] sm:$0xf]
        %v1898 = vld [vmem:[%s700 + $0x94] sm:$0xf]
        %v1899 = vld [vmem:[%s700 + $0x98] sm:$0x1]
        %v1900 = vld [vmem:[%s700 + $0x9c] sm:$0xf]
        %v1901 = vld [vmem:[%s700 + $0xa0] sm:$0xf]
        %v1902 = vld [vmem:[%s700 + $0xa4] sm:$0x1]
        %v1903 = vld [vmem:[%s700 + $0xa8] sm:$0xf]
        %v1904 = vld [vmem:[%s700 + $0xac] sm:$0xf]
        %v1905 = vld [vmem:[%s700 + $0xb0] sm:$0x1]
        %v1906 = vld [vmem:[%s700 + $0xb4] sm:$0xf]
        %v1907 = vld [vmem:[%s700 + $0xb8] sm:$0xf]
        %v1908 = vld [vmem:[%s700 + $0xbc] sm:$0x1]
        %v1957 = vunpack.c.l.b16 %v1861
        %v1958 = vunpack.c.l.b16 %v1862
        %v1959 = vunpack.c.l.b16 %v1863
        %v1960 = vunpack.c.l.b16 %v1864
        %v1961 = vunpack.c.l.b16 %v1865
        %v1962 = vunpack.c.l.b16 %v1866
        %v1963 = vunpack.c.l.b16 %v1867
        %v1964 = vunpack.c.l.b16 %v1868
        %v1965 = vunpack.c.l.b16 %v1869
        %v1966 = vunpack.c.l.b16 %v1870
        %v1967 = vunpack.c.l.b16 %v1871
        %v1968 = vunpack.c.l.b16 %v1872
        %v1969 = vunpack.c.l.b16 %v1873
        %v1970 = vunpack.c.l.b16 %v1874
        %v1971 = vunpack.c.l.b16 %v1875
        %v1972 = vunpack.c.l.b16 %v1876
        %v1973 = vunpack.c.l.b16 %v1877
        %v1974 = vunpack.c.l.b16 %v1878
        %v1975 = vunpack.c.l.b16 %v1879
        %v1976 = vunpack.c.l.b16 %v1880
        %v1977 = vunpack.c.l.b16 %v1881
        %v1978 = vunpack.c.l.b16 %v1882
        %v1979 = vunpack.c.l.b16 %v1883
        %v1980 = vunpack.c.l.b16 %v1884
        %v1981 = vunpack.c.l.b16 %v1885
        %v1982 = vunpack.c.l.b16 %v1886
        %v1983 = vunpack.c.l.b16 %v1887
        %v1984 = vunpack.c.l.b16 %v1888
        %v1985 = vunpack.c.l.b16 %v1889
        %v1986 = vunpack.c.l.b16 %v1890
        %v1987 = vunpack.c.l.b16 %v1891
        %v1988 = vunpack.c.l.b16 %v1892
        %v1989 = vunpack.c.l.b16 %v1893
        %v1990 = vunpack.c.l.b16 %v1894
        %v1991 = vunpack.c.l.b16 %v1895
        %v1992 = vunpack.c.l.b16 %v1896
        %v1993 = vunpack.c.l.b16 %v1897
        %v1994 = vunpack.c.l.b16 %v1898
        %v1995 = vunpack.c.l.b16 %v1899
        %v1996 = vunpack.c.l.b16 %v1900
        %v1997 = vunpack.c.l.b16 %v1901
        %v1998 = vunpack.c.l.b16 %v1902
        %v1999 = vunpack.c.l.b16 %v1903
        %v2000 = vunpack.c.l.b16 %v1904
        %v2001 = vunpack.c.l.b16 %v1905
        %v2002 = vunpack.c.l.b16 %v1906
        %v2003 = vunpack.c.l.b16 %v1907
        %v2004 = vunpack.c.l.b16 %v1908
        %v2005 = vpack.c.b16 %v1958, %v1957
        %v2006 = vpack.c.b16 %v1959, %v1959
        %v2007 = vpack.c.b16 %v1961, %v1960
        %v2008 = vpack.c.b16 %v1962, %v1962
        %v2009 = vpack.c.b16 %v1964, %v1963
        %v2010 = vpack.c.b16 %v1965, %v1965
        %v2011 = vpack.c.b16 %v1967, %v1966
        %v2012 = vpack.c.b16 %v1968, %v1968
        %v2013 = vpack.c.b16 %v1970, %v1969
        %v2014 = vpack.c.b16 %v1971, %v1971
        %v2015 = vpack.c.b16 %v1973, %v1972
        %v2016 = vpack.c.b16 %v1974, %v1974
        %v2017 = vpack.c.b16 %v1976, %v1975
        %v2018 = vpack.c.b16 %v1977, %v1977
        %v2019 = vpack.c.b16 %v1979, %v1978
        %v2020 = vpack.c.b16 %v1980, %v1980
        %v2021 = vpack.c.b16 %v1982, %v1981
        %v2022 = vpack.c.b16 %v1983, %v1983
        %v2023 = vpack.c.b16 %v1985, %v1984
        %v2024 = vpack.c.b16 %v1986, %v1986
        %v2025 = vpack.c.b16 %v1988, %v1987
        %v2026 = vpack.c.b16 %v1989, %v1989
        %v2027 = vpack.c.b16 %v1991, %v1990
        %v2028 = vpack.c.b16 %v1992, %v1992
        %v2029 = vpack.c.b16 %v1994, %v1993
        %v2030 = vpack.c.b16 %v1995, %v1995
        %v2031 = vpack.c.b16 %v1997, %v1996
        %v2032 = vpack.c.b16 %v1998, %v1998
        %v2033 = vpack.c.b16 %v2000, %v1999
        %v2034 = vpack.c.b16 %v2001, %v2001
        %v2035 = vpack.c.b16 %v2003, %v2002
        %v2036 = vpack.c.b16 %v2004, %v2004
        %v2038 = vshrl.u32 %v2005, 16
        %v2040 = vshll.u32 %v2005, 16
        %v2042 = vrot.slane %v2040, 1
        %v2043 = vor.u32 %v2038, %v2042
        %v2045 = vshll.u32 %v2006, 16
        %v2047 = vrot.slane %v2045, 1
        %v2048 = vsel %vm1136, %v2043, %v2047
        %v2050 = vshrl.u32 %v2007, 16
        %v2052 = vshll.u32 %v2007, 16
        %v2054 = vrot.slane %v2052, 1
        %v2055 = vor.u32 %v2050, %v2054
        %v2057 = vshll.u32 %v2008, 16
        %v2059 = vrot.slane %v2057, 1
        %v2060 = vsel %vm1136, %v2055, %v2059
        %v2062 = vshrl.u32 %v2009, 16
        %v2064 = vshll.u32 %v2009, 16
        %v2066 = vrot.slane %v2064, 1
        %v2067 = vor.u32 %v2062, %v2066
        %v2069 = vshll.u32 %v2010, 16
        %v2071 = vrot.slane %v2069, 1
        %v2072 = vsel %vm1136, %v2067, %v2071
        %v2074 = vshrl.u32 %v2011, 16
        %v2076 = vshll.u32 %v2011, 16
        %v2078 = vrot.slane %v2076, 1
        %v2079 = vor.u32 %v2074, %v2078
        %v2081 = vshll.u32 %v2012, 16
        %v2083 = vrot.slane %v2081, 1
        %v2084 = vsel %vm1136, %v2079, %v2083
        %v2086 = vshrl.u32 %v2013, 16
        %v2088 = vshll.u32 %v2013, 16
        %v2090 = vrot.slane %v2088, 1
        %v2091 = vor.u32 %v2086, %v2090
        %v2093 = vshll.u32 %v2014, 16
        %v2095 = vrot.slane %v2093, 1
        %v2096 = vsel %vm1136, %v2091, %v2095
        %v2098 = vshrl.u32 %v2015, 16
        %v2100 = vshll.u32 %v2015, 16
        %v2102 = vrot.slane %v2100, 1
        %v2103 = vor.u32 %v2098, %v2102
        %v2105 = vshll.u32 %v2016, 16
        %v2107 = vrot.slane %v2105, 1
        %v2108 = vsel %vm1136, %v2103, %v2107
        %v2110 = vshrl.u32 %v2017, 16
        %v2112 = vshll.u32 %v2017, 16
        %v2114 = vrot.slane %v2112, 1
        %v2115 = vor.u32 %v2110, %v2114
        %v2117 = vshll.u32 %v2018, 16
        %v2119 = vrot.slane %v2117, 1
        %v2120 = vsel %vm1136, %v2115, %v2119
        %v2122 = vshrl.u32 %v2019, 16
        %v2124 = vshll.u32 %v2019, 16
        %v2126 = vrot.slane %v2124, 1
        %v2127 = vor.u32 %v2122, %v2126
        %v2129 = vshll.u32 %v2020, 16
        %v2131 = vrot.slane %v2129, 1
        %v2132 = vsel %vm1136, %v2127, %v2131
        %v2134 = vshrl.u32 %v2021, 16
        %v2136 = vshll.u32 %v2021, 16
        %v2138 = vrot.slane %v2136, 1
        %v2139 = vor.u32 %v2134, %v2138
        %v2141 = vshll.u32 %v2022, 16
        %v2143 = vrot.slane %v2141, 1
        %v2144 = vsel %vm1136, %v2139, %v2143
        %v2146 = vshrl.u32 %v2023, 16
        %v2148 = vshll.u32 %v2023, 16
        %v2150 = vrot.slane %v2148, 1
        %v2151 = vor.u32 %v2146, %v2150
        %v2153 = vshll.u32 %v2024, 16
        %v2155 = vrot.slane %v2153, 1
        %v2156 = vsel %vm1136, %v2151, %v2155
        %v2158 = vshrl.u32 %v2025, 16
        %v2160 = vshll.u32 %v2025, 16
        %v2162 = vrot.slane %v2160, 1
        %v2163 = vor.u32 %v2158, %v2162
        %v2165 = vshll.u32 %v2026, 16
        %v2167 = vrot.slane %v2165, 1
        %v2168 = vsel %vm1136, %v2163, %v2167
        %v2170 = vshrl.u32 %v2027, 16
        %v2172 = vshll.u32 %v2027, 16
        %v2174 = vrot.slane %v2172, 1
        %v2175 = vor.u32 %v2170, %v2174
        %v2177 = vshll.u32 %v2028, 16
        %v2179 = vrot.slane %v2177, 1
        %v2180 = vsel %vm1136, %v2175, %v2179
        %v2182 = vshrl.u32 %v2029, 16
        %v2184 = vshll.u32 %v2029, 16
        %v2186 = vrot.slane %v2184, 1
        %v2187 = vor.u32 %v2182, %v2186
        %v2189 = vshll.u32 %v2030, 16
        %v2191 = vrot.slane %v2189, 1
        %v2192 = vsel %vm1136, %v2187, %v2191
        %v2194 = vshrl.u32 %v2031, 16
        %v2196 = vshll.u32 %v2031, 16
        %v2198 = vrot.slane %v2196, 1
        %v2199 = vor.u32 %v2194, %v2198
        %v2201 = vshll.u32 %v2032, 16
        %v2203 = vrot.slane %v2201, 1
        %v2204 = vsel %vm1136, %v2199, %v2203
        %v2206 = vshrl.u32 %v2033, 16
        %v2208 = vshll.u32 %v2033, 16
        %v2210 = vrot.slane %v2208, 1
        %v2211 = vor.u32 %v2206, %v2210
        %v2213 = vshll.u32 %v2034, 16
        %v2215 = vrot.slane %v2213, 1
        %v2216 = vsel %vm1136, %v2211, %v2215
        %v2218 = vshrl.u32 %v2035, 16
        %v2220 = vshll.u32 %v2035, 16
        %v2222 = vrot.slane %v2220, 1
        %v2223 = vor.u32 %v2218, %v2222
        %v2225 = vshll.u32 %v2036, 16
        %v2227 = vrot.slane %v2225, 1
        %v2228 = vsel %vm1136, %v2223, %v2227
        %2229 = vrot.lane.b32.xlu0 %v2048, 64
        %v2230 = vpop.permute.xlu0 %2229
        %2231 = vrot.lane.b32.xlu0 %v2060, 64
        %v2232 = vpop.permute.xlu0 %2231
        %2233 = vrot.lane.b32.xlu0 %v2072, 64
        %v2234 = vpop.permute.xlu0 %2233
        %2235 = vrot.lane.b32.xlu0 %v2084, 64
        %v2236 = vpop.permute.xlu0 %2235
        %2237 = vrot.lane.b32.xlu0 %v2096, 64
        %v2238 = vpop.permute.xlu0 %2237
        %2239 = vrot.lane.b32.xlu0 %v2108, 64
        %v2240 = vpop.permute.xlu0 %2239
        %2241 = vrot.lane.b32.xlu0 %v2120, 64
        %v2242 = vpop.permute.xlu0 %2241
        %2243 = vrot.lane.b32.xlu0 %v2132, 64
        %v2244 = vpop.permute.xlu0 %2243
        %2245 = vrot.lane.b32.xlu0 %v2144, 64
        %v2246 = vpop.permute.xlu0 %2245
        %2247 = vrot.lane.b32.xlu0 %v2156, 64
        %v2248 = vpop.permute.xlu0 %2247
        %2249 = vrot.lane.b32.xlu0 %v2168, 64
        %v2250 = vpop.permute.xlu0 %2249
        %2251 = vrot.lane.b32.xlu0 %v2180, 64
        %v2252 = vpop.permute.xlu0 %2251
        %2253 = vrot.lane.b32.xlu0 %v2192, 64
        %v2254 = vpop.permute.xlu0 %2253
        %2255 = vrot.lane.b32.xlu0 %v2204, 64
        %v2256 = vpop.permute.xlu0 %2255
        %2257 = vrot.lane.b32.xlu0 %v2216, 64
        %v2258 = vpop.permute.xlu0 %2257
        %2259 = vrot.lane.b32.xlu0 %v2228, 64
        %v2260 = vpop.permute.xlu0 %2259
        %vm2277 = vcmask 654848
        %2278 = vst.msk [vmem:[#allocation3] sm:$0xff] %vm2277, %v2230
        %2279 = vst.msk [vmem:[#allocation3 + $0x10] sm:$0xff] %vm2277, %v2232
        %2280 = vst.msk [vmem:[#allocation3 + $0x20] sm:$0xff] %vm2277, %v2234
        %2281 = vst.msk [vmem:[#allocation3 + $0x30] sm:$0xff] %vm2277, %v2236
        %2282 = vst.msk [vmem:[#allocation3 + $0x40] sm:$0xff] %vm2277, %v2238
        %2283 = vst.msk [vmem:[#allocation3 + $0x50] sm:$0xff] %vm2277, %v2240
        %2284 = vst.msk [vmem:[#allocation3 + $0x60] sm:$0xff] %vm2277, %v2242
        %2285 = vst.msk [vmem:[#allocation3 + $0x70] sm:$0xff] %vm2277, %v2244
        %2286 = vst.msk [vmem:[#allocation3 + $0x80] sm:$0xff] %vm2277, %v2246
        %2287 = vst.msk [vmem:[#allocation3 + $0x90] sm:$0xff] %vm2277, %v2248
        %2288 = vst.msk [vmem:[#allocation3 + $0xa0] sm:$0xff] %vm2277, %v2250
        %2289 = vst.msk [vmem:[#allocation3 + $0xb0] sm:$0xff] %vm2277, %v2252
        %2290 = vst.msk [vmem:[#allocation3 + $0xc0] sm:$0xff] %vm2277, %v2254
        %2291 = vst.msk [vmem:[#allocation3 + $0xd0] sm:$0xff] %vm2277, %v2256
        %2292 = vst.msk [vmem:[#allocation3 + $0xe0] sm:$0xff] %vm2277, %v2258
        %2293 = vst.msk [vmem:[#allocation3 + $0xf0] sm:$0xff] %vm2277, %v2260
        %v2294 = vld [vmem:[%s700] sm:$0xe]
        %v2295 = vld [vmem:[%s700 + $0x4] sm:$0xf]
        %v2296 = vld [vmem:[%s700 + $0x8] sm:$0x1]
        %v2297 = vld [vmem:[%s700 + $0xc] sm:$0xe]
        %v2298 = vld [vmem:[%s700 + $0x10] sm:$0xf]
        %v2299 = vld [vmem:[%s700 + $0x14] sm:$0x1]
        %v2300 = vld [vmem:[%s700 + $0x18] sm:$0xe]
        %v2301 = vld [vmem:[%s700 + $0x1c] sm:$0xf]
        %v2302 = vld [vmem:[%s700 + $0x20] sm:$0x1]
        %v2303 = vld [vmem:[%s700 + $0x24] sm:$0xe]
        %v2304 = vld [vmem:[%s700 + $0x28] sm:$0xf]
        %v2305 = vld [vmem:[%s700 + $0x2c] sm:$0x1]
        %v2306 = vld [vmem:[%s700 + $0x30] sm:$0xe]
        %v2307 = vld [vmem:[%s700 + $0x34] sm:$0xf]
        %v2308 = vld [vmem:[%s700 + $0x38] sm:$0x1]
        %v2309 = vld [vmem:[%s700 + $0x3c] sm:$0xe]
        %v2310 = vld [vmem:[%s700 + $0x40] sm:$0xf]
        %v2311 = vld [vmem:[%s700 + $0x44] sm:$0x1]
        %v2312 = vld [vmem:[%s700 + $0x48] sm:$0xe]
        %v2313 = vld [vmem:[%s700 + $0x4c] sm:$0xf]
        %v2314 = vld [vmem:[%s700 + $0x50] sm:$0x1]
        %v2315 = vld [vmem:[%s700 + $0x54] sm:$0xe]
        %v2316 = vld [vmem:[%s700 + $0x58] sm:$0xf]
        %v2317 = vld [vmem:[%s700 + $0x5c] sm:$0x1]
        %v2318 = vld [vmem:[%s700 + $0x60] sm:$0xe]
        %v2319 = vld [vmem:[%s700 + $0x64] sm:$0xf]
        %v2320 = vld [vmem:[%s700 + $0x68] sm:$0x1]
        %v2321 = vld [vmem:[%s700 + $0x6c] sm:$0xe]
        %v2322 = vld [vmem:[%s700 + $0x70] sm:$0xf]
        %v2323 = vld [vmem:[%s700 + $0x74] sm:$0x1]
        %v2324 = vld [vmem:[%s700 + $0x78] sm:$0xe]
        %v2325 = vld [vmem:[%s700 + $0x7c] sm:$0xf]
        %v2326 = vld [vmem:[%s700 + $0x80] sm:$0x1]
        %v2327 = vld [vmem:[%s700 + $0x84] sm:$0xe]
        %v2328 = vld [vmem:[%s700 + $0x88] sm:$0xf]
        %v2329 = vld [vmem:[%s700 + $0x8c] sm:$0x1]
        %v2330 = vld [vmem:[%s700 + $0x90] sm:$0xe]
        %v2331 = vld [vmem:[%s700 + $0x94] sm:$0xf]
        %v2332 = vld [vmem:[%s700 + $0x98] sm:$0x1]
        %v2333 = vld [vmem:[%s700 + $0x9c] sm:$0xe]
        %v2334 = vld [vmem:[%s700 + $0xa0] sm:$0xf]
        %v2335 = vld [vmem:[%s700 + $0xa4] sm:$0x1]
        %v2336 = vld [vmem:[%s700 + $0xa8] sm:$0xe]
        %v2337 = vld [vmem:[%s700 + $0xac] sm:$0xf]
        %v2338 = vld [vmem:[%s700 + $0xb0] sm:$0x1]
        %v2339 = vld [vmem:[%s700 + $0xb4] sm:$0xe]
        %v2340 = vld [vmem:[%s700 + $0xb8] sm:$0xf]
        %v2341 = vld [vmem:[%s700 + $0xbc] sm:$0x1]
        %v2390 = vunpack.c.l.b16 %v2294
        %v2391 = vunpack.c.l.b16 %v2295
        %v2392 = vunpack.c.l.b16 %v2296
        %v2393 = vunpack.c.l.b16 %v2297
        %v2394 = vunpack.c.l.b16 %v2298
        %v2395 = vunpack.c.l.b16 %v2299
        %v2396 = vunpack.c.l.b16 %v2300
        %v2397 = vunpack.c.l.b16 %v2301
        %v2398 = vunpack.c.l.b16 %v2302
        %v2399 = vunpack.c.l.b16 %v2303
        %v2400 = vunpack.c.l.b16 %v2304
        %v2401 = vunpack.c.l.b16 %v2305
        %v2402 = vunpack.c.l.b16 %v2306
        %v2403 = vunpack.c.l.b16 %v2307
        %v2404 = vunpack.c.l.b16 %v2308
        %v2405 = vunpack.c.l.b16 %v2309
        %v2406 = vunpack.c.l.b16 %v2310
        %v2407 = vunpack.c.l.b16 %v2311
        %v2408 = vunpack.c.l.b16 %v2312
        %v2409 = vunpack.c.l.b16 %v2313
        %v2410 = vunpack.c.l.b16 %v2314
        %v2411 = vunpack.c.l.b16 %v2315
        %v2412 = vunpack.c.l.b16 %v2316
        %v2413 = vunpack.c.l.b16 %v2317
        %v2414 = vunpack.c.l.b16 %v2318
        %v2415 = vunpack.c.l.b16 %v2319
        %v2416 = vunpack.c.l.b16 %v2320
        %v2417 = vunpack.c.l.b16 %v2321
        %v2418 = vunpack.c.l.b16 %v2322
        %v2419 = vunpack.c.l.b16 %v2323
        %v2420 = vunpack.c.l.b16 %v2324
        %v2421 = vunpack.c.l.b16 %v2325
        %v2422 = vunpack.c.l.b16 %v2326
        %v2423 = vunpack.c.l.b16 %v2327
        %v2424 = vunpack.c.l.b16 %v2328
        %v2425 = vunpack.c.l.b16 %v2329
        %v2426 = vunpack.c.l.b16 %v2330
        %v2427 = vunpack.c.l.b16 %v2331
        %v2428 = vunpack.c.l.b16 %v2332
        %v2429 = vunpack.c.l.b16 %v2333
        %v2430 = vunpack.c.l.b16 %v2334
        %v2431 = vunpack.c.l.b16 %v2335
        %v2432 = vunpack.c.l.b16 %v2336
        %v2433 = vunpack.c.l.b16 %v2337
        %v2434 = vunpack.c.l.b16 %v2338
        %v2435 = vunpack.c.l.b16 %v2339
        %v2436 = vunpack.c.l.b16 %v2340
        %v2437 = vunpack.c.l.b16 %v2341
        %v2438 = vpack.c.b16 %v2391, %v2390
        %v2439 = vpack.c.b16 %v2392, %v2392
        %v2440 = vpack.c.b16 %v2394, %v2393
        %v2441 = vpack.c.b16 %v2395, %v2395
        %v2442 = vpack.c.b16 %v2397, %v2396
        %v2443 = vpack.c.b16 %v2398, %v2398
        %v2444 = vpack.c.b16 %v2400, %v2399
        %v2445 = vpack.c.b16 %v2401, %v2401
        %v2446 = vpack.c.b16 %v2403, %v2402
        %v2447 = vpack.c.b16 %v2404, %v2404
        %v2448 = vpack.c.b16 %v2406, %v2405
        %v2449 = vpack.c.b16 %v2407, %v2407
        %v2450 = vpack.c.b16 %v2409, %v2408
        %v2451 = vpack.c.b16 %v2410, %v2410
        %v2452 = vpack.c.b16 %v2412, %v2411
        %v2453 = vpack.c.b16 %v2413, %v2413
        %v2454 = vpack.c.b16 %v2415, %v2414
        %v2455 = vpack.c.b16 %v2416, %v2416
        %v2456 = vpack.c.b16 %v2418, %v2417
        %v2457 = vpack.c.b16 %v2419, %v2419
        %v2458 = vpack.c.b16 %v2421, %v2420
        %v2459 = vpack.c.b16 %v2422, %v2422
        %v2460 = vpack.c.b16 %v2424, %v2423
        %v2461 = vpack.c.b16 %v2425, %v2425
        %v2462 = vpack.c.b16 %v2427, %v2426
        %v2463 = vpack.c.b16 %v2428, %v2428
        %v2464 = vpack.c.b16 %v2430, %v2429
        %v2465 = vpack.c.b16 %v2431, %v2431
        %v2466 = vpack.c.b16 %v2433, %v2432
        %v2467 = vpack.c.b16 %v2434, %v2434
        %v2468 = vpack.c.b16 %v2436, %v2435
        %v2469 = vpack.c.b16 %v2437, %v2437
        %v2470 = vrot.slane %v2438, 1
        %v2471 = vrot.slane %v2439, 1
        %v2472 = vsel %vm1570, %v2470, %v2471
        %v2473 = vrot.slane %v2440, 1
        %v2474 = vrot.slane %v2441, 1
        %v2475 = vsel %vm1570, %v2473, %v2474
        %v2476 = vrot.slane %v2442, 1
        %v2477 = vrot.slane %v2443, 1
        %v2478 = vsel %vm1570, %v2476, %v2477
        %v2479 = vrot.slane %v2444, 1
        %v2480 = vrot.slane %v2445, 1
        %v2481 = vsel %vm1570, %v2479, %v2480
        %v2482 = vrot.slane %v2446, 1
        %v2483 = vrot.slane %v2447, 1
        %v2484 = vsel %vm1570, %v2482, %v2483
        %v2485 = vrot.slane %v2448, 1
        %v2486 = vrot.slane %v2449, 1
        %v2487 = vsel %vm1570, %v2485, %v2486
        %v2488 = vrot.slane %v2450, 1
        %v2489 = vrot.slane %v2451, 1
        %v2490 = vsel %vm1570, %v2488, %v2489
        %v2491 = vrot.slane %v2452, 1
        %v2492 = vrot.slane %v2453, 1
        %v2493 = vsel %vm1570, %v2491, %v2492
        %v2494 = vrot.slane %v2454, 1
        %v2495 = vrot.slane %v2455, 1
        %v2496 = vsel %vm1570, %v2494, %v2495
        %v2497 = vrot.slane %v2456, 1
        %v2498 = vrot.slane %v2457, 1
        %v2499 = vsel %vm1570, %v2497, %v2498
        %v2500 = vrot.slane %v2458, 1
        %v2501 = vrot.slane %v2459, 1
        %v2502 = vsel %vm1570, %v2500, %v2501
        %v2503 = vrot.slane %v2460, 1
        %v2504 = vrot.slane %v2461, 1
        %v2505 = vsel %vm1570, %v2503, %v2504
        %v2506 = vrot.slane %v2462, 1
        %v2507 = vrot.slane %v2463, 1
        %v2508 = vsel %vm1570, %v2506, %v2507
        %v2509 = vrot.slane %v2464, 1
        %v2510 = vrot.slane %v2465, 1
        %v2511 = vsel %vm1570, %v2509, %v2510
        %v2512 = vrot.slane %v2466, 1
        %v2513 = vrot.slane %v2467, 1
        %v2514 = vsel %vm1570, %v2512, %v2513
        %v2515 = vrot.slane %v2468, 1
        %v2516 = vrot.slane %v2469, 1
        %v2517 = vsel %vm1570, %v2515, %v2516
        %2518 = vrot.lane.b32.xlu0 %v2472, 80
        %v2519 = vpop.permute.xlu0 %2518
        %2520 = vrot.lane.b32.xlu0 %v2475, 80
        %v2521 = vpop.permute.xlu0 %2520
        %2522 = vrot.lane.b32.xlu0 %v2478, 80
        %v2523 = vpop.permute.xlu0 %2522
        %2524 = vrot.lane.b32.xlu0 %v2481, 80
        %v2525 = vpop.permute.xlu0 %2524
        %2526 = vrot.lane.b32.xlu0 %v2484, 80
        %v2527 = vpop.permute.xlu0 %2526
        %2528 = vrot.lane.b32.xlu0 %v2487, 80
        %v2529 = vpop.permute.xlu0 %2528
        %2530 = vrot.lane.b32.xlu0 %v2490, 80
        %v2531 = vpop.permute.xlu0 %2530
        %2532 = vrot.lane.b32.xlu0 %v2493, 80
        %v2533 = vpop.permute.xlu0 %2532
        %2534 = vrot.lane.b32.xlu0 %v2496, 80
        %v2535 = vpop.permute.xlu0 %2534
        %2536 = vrot.lane.b32.xlu0 %v2499, 80
        %v2537 = vpop.permute.xlu0 %2536
        %2538 = vrot.lane.b32.xlu0 %v2502, 80
        %v2539 = vpop.permute.xlu0 %2538
        %2540 = vrot.lane.b32.xlu0 %v2505, 80
        %v2541 = vpop.permute.xlu0 %2540
        %2542 = vrot.lane.b32.xlu0 %v2508, 80
        %v2543 = vpop.permute.xlu0 %2542
        %2544 = vrot.lane.b32.xlu0 %v2511, 80
        %v2545 = vpop.permute.xlu0 %2544
        %2546 = vrot.lane.b32.xlu0 %v2514, 80
        %v2547 = vpop.permute.xlu0 %2546
        %2548 = vrot.lane.b32.xlu0 %v2517, 80
        %v2549 = vpop.permute.xlu0 %2548
        %vm2566 = vcmask 786048
        %2567 = vst.msk [vmem:[#allocation3] sm:$0xff] %vm2566, %v2519
        %2568 = vst.msk [vmem:[#allocation3 + $0x10] sm:$0xff] %vm2566, %v2521
        %2569 = vst.msk [vmem:[#allocation3 + $0x20] sm:$0xff] %vm2566, %v2523
        %2570 = vst.msk [vmem:[#allocation3 + $0x30] sm:$0xff] %vm2566, %v2525
        %2571 = vst.msk [vmem:[#allocation3 + $0x40] sm:$0xff] %vm2566, %v2527
        %2572 = vst.msk [vmem:[#allocation3 + $0x50] sm:$0xff] %vm2566, %v2529
        %2573 = vst.msk [vmem:[#allocation3 + $0x60] sm:$0xff] %vm2566, %v2531
        %2574 = vst.msk [vmem:[#allocation3 + $0x70] sm:$0xff] %vm2566, %v2533
        %2575 = vst.msk [vmem:[#allocation3 + $0x80] sm:$0xff] %vm2566, %v2535
        %2576 = vst.msk [vmem:[#allocation3 + $0x90] sm:$0xff] %vm2566, %v2537
        %2577 = vst.msk [vmem:[#allocation3 + $0xa0] sm:$0xff] %vm2566, %v2539
        %2578 = vst.msk [vmem:[#allocation3 + $0xb0] sm:$0xff] %vm2566, %v2541
        %2579 = vst.msk [vmem:[#allocation3 + $0xc0] sm:$0xff] %vm2566, %v2543
        %2580 = vst.msk [vmem:[#allocation3 + $0xd0] sm:$0xff] %vm2566, %v2545
        %2581 = vst.msk [vmem:[#allocation3 + $0xe0] sm:$0xff] %vm2566, %v2547
        %2582 = vst.msk [vmem:[#allocation3 + $0xf0] sm:$0xff] %vm2566, %v2549
        %s2583 = scalar_lea.vmem [#allocation2], 24
        %v2584 = vld [vmem:[%s2583] sm:$0xf]
        %v2585 = vld [vmem:[%s2583 + $0x4] sm:$0xf]
        %v2586 = vld [vmem:[%s2583 + $0xc] sm:$0xf]
        %v2587 = vld [vmem:[%s2583 + $0x10] sm:$0xf]
        %v2588 = vld [vmem:[%s2583 + $0x18] sm:$0xf]
        %v2589 = vld [vmem:[%s2583 + $0x1c] sm:$0xf]
        %v2590 = vld [vmem:[%s2583 + $0x24] sm:$0xf]
        %v2591 = vld [vmem:[%s2583 + $0x28] sm:$0xf]
        %v2592 = vld [vmem:[%s2583 + $0x30] sm:$0xf]
        %v2593 = vld [vmem:[%s2583 + $0x34] sm:$0xf]
        %v2594 = vld [vmem:[%s2583 + $0x3c] sm:$0xf]
        %v2595 = vld [vmem:[%s2583 + $0x40] sm:$0xf]
        %v2596 = vld [vmem:[%s2583 + $0x48] sm:$0xf]
        %v2597 = vld [vmem:[%s2583 + $0x4c] sm:$0xf]
        %v2598 = vld [vmem:[%s2583 + $0x54] sm:$0xf]
        %v2599 = vld [vmem:[%s2583 + $0x58] sm:$0xf]
        %v2600 = vld [vmem:[%s2583 + $0x60] sm:$0xf]
        %v2601 = vld [vmem:[%s2583 + $0x64] sm:$0xf]
        %v2602 = vld [vmem:[%s2583 + $0x6c] sm:$0xf]
        %v2603 = vld [vmem:[%s2583 + $0x70] sm:$0xf]
        %v2604 = vld [vmem:[%s2583 + $0x78] sm:$0xf]
        %v2605 = vld [vmem:[%s2583 + $0x7c] sm:$0xf]
        %v2606 = vld [vmem:[%s2583 + $0x84] sm:$0xf]
        %v2607 = vld [vmem:[%s2583 + $0x88] sm:$0xf]
        %v2608 = vld [vmem:[%s2583 + $0x90] sm:$0xf]
        %v2609 = vld [vmem:[%s2583 + $0x94] sm:$0xf]
        %v2610 = vld [vmem:[%s2583 + $0x9c] sm:$0xf]
        %v2611 = vld [vmem:[%s2583 + $0xa0] sm:$0xf]
        %v2612 = vld [vmem:[%s2583 + $0xa8] sm:$0xf]
        %v2613 = vld [vmem:[%s2583 + $0xac] sm:$0xf]
        %v2614 = vld [vmem:[%s2583 + $0xb4] sm:$0xf]
        %v2615 = vld [vmem:[%s2583 + $0xb8] sm:$0xf]
        %v2648 = vunpack.c.l.b16 %v2584
        %v2649 = vunpack.c.l.b16 %v2585
        %v2650 = vunpack.c.l.b16 %v2586
        %v2651 = vunpack.c.l.b16 %v2587
        %v2652 = vunpack.c.l.b16 %v2588
        %v2653 = vunpack.c.l.b16 %v2589
        %v2654 = vunpack.c.l.b16 %v2590
        %v2655 = vunpack.c.l.b16 %v2591
        %v2656 = vunpack.c.l.b16 %v2592
        %v2657 = vunpack.c.l.b16 %v2593
        %v2658 = vunpack.c.l.b16 %v2594
        %v2659 = vunpack.c.l.b16 %v2595
        %v2660 = vunpack.c.l.b16 %v2596
        %v2661 = vunpack.c.l.b16 %v2597
        %v2662 = vunpack.c.l.b16 %v2598
        %v2663 = vunpack.c.l.b16 %v2599
        %v2664 = vunpack.c.l.b16 %v2600
        %v2665 = vunpack.c.l.b16 %v2601
        %v2666 = vunpack.c.l.b16 %v2602
        %v2667 = vunpack.c.l.b16 %v2603
        %v2668 = vunpack.c.l.b16 %v2604
        %v2669 = vunpack.c.l.b16 %v2605
        %v2670 = vunpack.c.l.b16 %v2606
        %v2671 = vunpack.c.l.b16 %v2607
        %v2672 = vunpack.c.l.b16 %v2608
        %v2673 = vunpack.c.l.b16 %v2609
        %v2674 = vunpack.c.l.b16 %v2610
        %v2675 = vunpack.c.l.b16 %v2611
        %v2676 = vunpack.c.l.b16 %v2612
        %v2677 = vunpack.c.l.b16 %v2613
        %v2678 = vunpack.c.l.b16 %v2614
        %v2679 = vunpack.c.l.b16 %v2615
        %v2680 = vpack.c.b16 %v2649, %v2648
        %v2681 = vpack.c.b16 %v2651, %v2650
        %v2682 = vpack.c.b16 %v2653, %v2652
        %v2683 = vpack.c.b16 %v2655, %v2654
        %v2684 = vpack.c.b16 %v2657, %v2656
        %v2685 = vpack.c.b16 %v2659, %v2658
        %v2686 = vpack.c.b16 %v2661, %v2660
        %v2687 = vpack.c.b16 %v2663, %v2662
        %v2688 = vpack.c.b16 %v2665, %v2664
        %v2689 = vpack.c.b16 %v2667, %v2666
        %v2690 = vpack.c.b16 %v2669, %v2668
        %v2691 = vpack.c.b16 %v2671, %v2670
        %v2692 = vpack.c.b16 %v2673, %v2672
        %v2693 = vpack.c.b16 %v2675, %v2674
        %v2694 = vpack.c.b16 %v2677, %v2676
        %v2695 = vpack.c.b16 %v2679, %v2678
        %2696 = vrot.lane.b32.xlu0 %v2680, 96
        %v2697 = vpop.permute.xlu0 %2696
        %2698 = vrot.lane.b32.xlu0 %v2681, 96
        %v2699 = vpop.permute.xlu0 %2698
        %2700 = vrot.lane.b32.xlu0 %v2682, 96
        %v2701 = vpop.permute.xlu0 %2700
        %2702 = vrot.lane.b32.xlu0 %v2683, 96
        %v2703 = vpop.permute.xlu0 %2702
        %2704 = vrot.lane.b32.xlu0 %v2684, 96
        %v2705 = vpop.permute.xlu0 %2704
        %2706 = vrot.lane.b32.xlu0 %v2685, 96
        %v2707 = vpop.permute.xlu0 %2706
        %2708 = vrot.lane.b32.xlu0 %v2686, 96
        %v2709 = vpop.permute.xlu0 %2708
        %2710 = vrot.lane.b32.xlu0 %v2687, 96
        %v2711 = vpop.permute.xlu0 %2710
        %2712 = vrot.lane.b32.xlu0 %v2688, 96
        %v2713 = vpop.permute.xlu0 %2712
        %2714 = vrot.lane.b32.xlu0 %v2689, 96
        %v2715 = vpop.permute.xlu0 %2714
        %2716 = vrot.lane.b32.xlu0 %v2690, 96
        %v2717 = vpop.permute.xlu0 %2716
        %2718 = vrot.lane.b32.xlu0 %v2691, 96
        %v2719 = vpop.permute.xlu0 %2718
        %2720 = vrot.lane.b32.xlu0 %v2692, 96
        %v2721 = vpop.permute.xlu0 %2720
        %2722 = vrot.lane.b32.xlu0 %v2693, 96
        %v2723 = vpop.permute.xlu0 %2722
        %2724 = vrot.lane.b32.xlu0 %v2694, 96
        %v2725 = vpop.permute.xlu0 %2724
        %2726 = vrot.lane.b32.xlu0 %v2695, 96
        %v2727 = vpop.permute.xlu0 %2726
        %vm2744 = vcmask 917248
        %2745 = vst.msk [vmem:[#allocation3] sm:$0xff] %vm2744, %v2697
        %2746 = vst.msk [vmem:[#allocation3 + $0x10] sm:$0xff] %vm2744, %v2699
        %2747 = vst.msk [vmem:[#allocation3 + $0x20] sm:$0xff] %vm2744, %v2701
        %2748 = vst.msk [vmem:[#allocation3 + $0x30] sm:$0xff] %vm2744, %v2703
        %2749 = vst.msk [vmem:[#allocation3 + $0x40] sm:$0xff] %vm2744, %v2705
        %2750 = vst.msk [vmem:[#allocation3 + $0x50] sm:$0xff] %vm2744, %v2707
        %2751 = vst.msk [vmem:[#allocation3 + $0x60] sm:$0xff] %vm2744, %v2709
        %2752 = vst.msk [vmem:[#allocation3 + $0x70] sm:$0xff] %vm2744, %v2711
        %2753 = vst.msk [vmem:[#allocation3 + $0x80] sm:$0xff] %vm2744, %v2713
        %2754 = vst.msk [vmem:[#allocation3 + $0x90] sm:$0xff] %vm2744, %v2715
        %2755 = vst.msk [vmem:[#allocation3 + $0xa0] sm:$0xff] %vm2744, %v2717
        %2756 = vst.msk [vmem:[#allocation3 + $0xb0] sm:$0xff] %vm2744, %v2719
        %2757 = vst.msk [vmem:[#allocation3 + $0xc0] sm:$0xff] %vm2744, %v2721
        %2758 = vst.msk [vmem:[#allocation3 + $0xd0] sm:$0xff] %vm2744, %v2723
        %2759 = vst.msk [vmem:[#allocation3 + $0xe0] sm:$0xff] %vm2744, %v2725
        %2760 = vst.msk [vmem:[#allocation3 + $0xf0] sm:$0xff] %vm2744, %v2727
        %v2761 = vld [vmem:[%s2583] sm:$0xf]
        %v2762 = vld [vmem:[%s2583 + $0x4] sm:$0xf]
        %v2763 = vld [vmem:[%s2583 + $0x8] sm:$0x1]
        %v2764 = vld [vmem:[%s2583 + $0xc] sm:$0xf]
        %v2765 = vld [vmem:[%s2583 + $0x10] sm:$0xf]
        %v2766 = vld [vmem:[%s2583 + $0x14] sm:$0x1]
        %v2767 = vld [vmem:[%s2583 + $0x18] sm:$0xf]
        %v2768 = vld [vmem:[%s2583 + $0x1c] sm:$0xf]
        %v2769 = vld [vmem:[%s2583 + $0x20] sm:$0x1]
        %v2770 = vld [vmem:[%s2583 + $0x24] sm:$0xf]
        %v2771 = vld [vmem:[%s2583 + $0x28] sm:$0xf]
        %v2772 = vld [vmem:[%s2583 + $0x2c] sm:$0x1]
        %v2773 = vld [vmem:[%s2583 + $0x30] sm:$0xf]
        %v2774 = vld [vmem:[%s2583 + $0x34] sm:$0xf]
        %v2775 = vld [vmem:[%s2583 + $0x38] sm:$0x1]
        %v2776 = vld [vmem:[%s2583 + $0x3c] sm:$0xf]
        %v2777 = vld [vmem:[%s2583 + $0x40] sm:$0xf]
        %v2778 = vld [vmem:[%s2583 + $0x44] sm:$0x1]
        %v2779 = vld [vmem:[%s2583 + $0x48] sm:$0xf]
        %v2780 = vld [vmem:[%s2583 + $0x4c] sm:$0xf]
        %v2781 = vld [vmem:[%s2583 + $0x50] sm:$0x1]
        %v2782 = vld [vmem:[%s2583 + $0x54] sm:$0xf]
        %v2783 = vld [vmem:[%s2583 + $0x58] sm:$0xf]
        %v2784 = vld [vmem:[%s2583 + $0x5c] sm:$0x1]
        %v2785 = vld [vmem:[%s2583 + $0x60] sm:$0xf]
        %v2786 = vld [vmem:[%s2583 + $0x64] sm:$0xf]
        %v2787 = vld [vmem:[%s2583 + $0x68] sm:$0x1]
        %v2788 = vld [vmem:[%s2583 + $0x6c] sm:$0xf]
        %v2789 = vld [vmem:[%s2583 + $0x70] sm:$0xf]
        %v2790 = vld [vmem:[%s2583 + $0x74] sm:$0x1]
        %v2791 = vld [vmem:[%s2583 + $0x78] sm:$0xf]
        %v2792 = vld [vmem:[%s2583 + $0x7c] sm:$0xf]
        %v2793 = vld [vmem:[%s2583 + $0x80] sm:$0x1]
        %v2794 = vld [vmem:[%s2583 + $0x84] sm:$0xf]
        %v2795 = vld [vmem:[%s2583 + $0x88] sm:$0xf]
        %v2796 = vld [vmem:[%s2583 + $0x8c] sm:$0x1]
        %v2797 = vld [vmem:[%s2583 + $0x90] sm:$0xf]
        %v2798 = vld [vmem:[%s2583 + $0x94] sm:$0xf]
        %v2799 = vld [vmem:[%s2583 + $0x98] sm:$0x1]
        %v2800 = vld [vmem:[%s2583 + $0x9c] sm:$0xf]
        %v2801 = vld [vmem:[%s2583 + $0xa0] sm:$0xf]
        %v2802 = vld [vmem:[%s2583 + $0xa4] sm:$0x1]
        %v2803 = vld [vmem:[%s2583 + $0xa8] sm:$0xf]
        %v2804 = vld [vmem:[%s2583 + $0xac] sm:$0xf]
        %v2805 = vld [vmem:[%s2583 + $0xb0] sm:$0x1]
        %v2806 = vld [vmem:[%s2583 + $0xb4] sm:$0xf]
        %v2807 = vld [vmem:[%s2583 + $0xb8] sm:$0xf]
        %v2808 = vld [vmem:[%s2583 + $0xbc] sm:$0x1]
        %v2857 = vunpack.c.l.b16 %v2761
        %v2858 = vunpack.c.l.b16 %v2762
        %v2859 = vunpack.c.l.b16 %v2763
        %v2860 = vunpack.c.l.b16 %v2764
        %v2861 = vunpack.c.l.b16 %v2765
        %v2862 = vunpack.c.l.b16 %v2766
        %v2863 = vunpack.c.l.b16 %v2767
        %v2864 = vunpack.c.l.b16 %v2768
        %v2865 = vunpack.c.l.b16 %v2769
        %v2866 = vunpack.c.l.b16 %v2770
        %v2867 = vunpack.c.l.b16 %v2771
        %v2868 = vunpack.c.l.b16 %v2772
        %v2869 = vunpack.c.l.b16 %v2773
        %v2870 = vunpack.c.l.b16 %v2774
        %v2871 = vunpack.c.l.b16 %v2775
        %v2872 = vunpack.c.l.b16 %v2776
        %v2873 = vunpack.c.l.b16 %v2777
        %v2874 = vunpack.c.l.b16 %v2778
        %v2875 = vunpack.c.l.b16 %v2779
        %v2876 = vunpack.c.l.b16 %v2780
        %v2877 = vunpack.c.l.b16 %v2781
        %v2878 = vunpack.c.l.b16 %v2782
        %v2879 = vunpack.c.l.b16 %v2783
        %v2880 = vunpack.c.l.b16 %v2784
        %v2881 = vunpack.c.l.b16 %v2785
        %v2882 = vunpack.c.l.b16 %v2786
        %v2883 = vunpack.c.l.b16 %v2787
        %v2884 = vunpack.c.l.b16 %v2788
        %v2885 = vunpack.c.l.b16 %v2789
        %v2886 = vunpack.c.l.b16 %v2790
        %v2887 = vunpack.c.l.b16 %v2791
        %v2888 = vunpack.c.l.b16 %v2792
        %v2889 = vunpack.c.l.b16 %v2793
        %v2890 = vunpack.c.l.b16 %v2794
        %v2891 = vunpack.c.l.b16 %v2795
        %v2892 = vunpack.c.l.b16 %v2796
        %v2893 = vunpack.c.l.b16 %v2797
        %v2894 = vunpack.c.l.b16 %v2798
        %v2895 = vunpack.c.l.b16 %v2799
        %v2896 = vunpack.c.l.b16 %v2800
        %v2897 = vunpack.c.l.b16 %v2801
        %v2898 = vunpack.c.l.b16 %v2802
        %v2899 = vunpack.c.l.b16 %v2803
        %v2900 = vunpack.c.l.b16 %v2804
        %v2901 = vunpack.c.l.b16 %v2805
        %v2902 = vunpack.c.l.b16 %v2806
        %v2903 = vunpack.c.l.b16 %v2807
        %v2904 = vunpack.c.l.b16 %v2808
        %v2905 = vpack.c.b16 %v2858, %v2857
        %v2906 = vpack.c.b16 %v2859, %v2859
        %v2907 = vpack.c.b16 %v2861, %v2860
        %v2908 = vpack.c.b16 %v2862, %v2862
        %v2909 = vpack.c.b16 %v2864, %v2863
        %v2910 = vpack.c.b16 %v2865, %v2865
        %v2911 = vpack.c.b16 %v2867, %v2866
        %v2912 = vpack.c.b16 %v2868, %v2868
        %v2913 = vpack.c.b16 %v2870, %v2869
        %v2914 = vpack.c.b16 %v2871, %v2871
        %v2915 = vpack.c.b16 %v2873, %v2872
        %v2916 = vpack.c.b16 %v2874, %v2874
        %v2917 = vpack.c.b16 %v2876, %v2875
        %v2918 = vpack.c.b16 %v2877, %v2877
        %v2919 = vpack.c.b16 %v2879, %v2878
        %v2920 = vpack.c.b16 %v2880, %v2880
        %v2921 = vpack.c.b16 %v2882, %v2881
        %v2922 = vpack.c.b16 %v2883, %v2883
        %v2923 = vpack.c.b16 %v2885, %v2884
        %v2924 = vpack.c.b16 %v2886, %v2886
        %v2925 = vpack.c.b16 %v2888, %v2887
        %v2926 = vpack.c.b16 %v2889, %v2889
        %v2927 = vpack.c.b16 %v2891, %v2890
        %v2928 = vpack.c.b16 %v2892, %v2892
        %v2929 = vpack.c.b16 %v2894, %v2893
        %v2930 = vpack.c.b16 %v2895, %v2895
        %v2931 = vpack.c.b16 %v2897, %v2896
        %v2932 = vpack.c.b16 %v2898, %v2898
        %v2933 = vpack.c.b16 %v2900, %v2899
        %v2934 = vpack.c.b16 %v2901, %v2901
        %v2935 = vpack.c.b16 %v2903, %v2902
        %v2936 = vpack.c.b16 %v2904, %v2904
        %v2938 = vshrl.u32 %v2905, 16
        %v2940 = vshll.u32 %v2905, 16
        %v2942 = vrot.slane %v2940, 1
        %v2943 = vor.u32 %v2938, %v2942
        %v2945 = vshll.u32 %v2906, 16
        %v2947 = vrot.slane %v2945, 1
        %v2948 = vsel %vm1136, %v2943, %v2947
        %v2950 = vshrl.u32 %v2907, 16
        %v2952 = vshll.u32 %v2907, 16
        %v2954 = vrot.slane %v2952, 1
        %v2955 = vor.u32 %v2950, %v2954
        %v2957 = vshll.u32 %v2908, 16
        %v2959 = vrot.slane %v2957, 1
        %v2960 = vsel %vm1136, %v2955, %v2959
        %v2962 = vshrl.u32 %v2909, 16
        %v2964 = vshll.u32 %v2909, 16
        %v2966 = vrot.slane %v2964, 1
        %v2967 = vor.u32 %v2962, %v2966
        %v2969 = vshll.u32 %v2910, 16
        %v2971 = vrot.slane %v2969, 1
        %v2972 = vsel %vm1136, %v2967, %v2971
        %v2974 = vshrl.u32 %v2911, 16
        %v2976 = vshll.u32 %v2911, 16
        %v2978 = vrot.slane %v2976, 1
        %v2979 = vor.u32 %v2974, %v2978
        %v2981 = vshll.u32 %v2912, 16
        %v2983 = vrot.slane %v2981, 1
        %v2984 = vsel %vm1136, %v2979, %v2983
        %v2986 = vshrl.u32 %v2913, 16
        %v2988 = vshll.u32 %v2913, 16
        %v2990 = vrot.slane %v2988, 1
        %v2991 = vor.u32 %v2986, %v2990
        %v2993 = vshll.u32 %v2914, 16
        %v2995 = vrot.slane %v2993, 1
        %v2996 = vsel %vm1136, %v2991, %v2995
        %v2998 = vshrl.u32 %v2915, 16
        %v3000 = vshll.u32 %v2915, 16
        %v3002 = vrot.slane %v3000, 1
        %v3003 = vor.u32 %v2998, %v3002
        %v3005 = vshll.u32 %v2916, 16
        %v3007 = vrot.slane %v3005, 1
        %v3008 = vsel %vm1136, %v3003, %v3007
        %v3010 = vshrl.u32 %v2917, 16
        %v3012 = vshll.u32 %v2917, 16
        %v3014 = vrot.slane %v3012, 1
        %v3015 = vor.u32 %v3010, %v3014
        %v3017 = vshll.u32 %v2918, 16
        %v3019 = vrot.slane %v3017, 1
        %v3020 = vsel %vm1136, %v3015, %v3019
        %v3022 = vshrl.u32 %v2919, 16
        %v3024 = vshll.u32 %v2919, 16
        %v3026 = vrot.slane %v3024, 1
        %v3027 = vor.u32 %v3022, %v3026
        %v3029 = vshll.u32 %v2920, 16
        %v3031 = vrot.slane %v3029, 1
        %v3032 = vsel %vm1136, %v3027, %v3031
        %v3034 = vshrl.u32 %v2921, 16
        %v3036 = vshll.u32 %v2921, 16
        %v3038 = vrot.slane %v3036, 1
        %v3039 = vor.u32 %v3034, %v3038
        %v3041 = vshll.u32 %v2922, 16
        %v3043 = vrot.slane %v3041, 1
        %v3044 = vsel %vm1136, %v3039, %v3043
        %v3046 = vshrl.u32 %v2923, 16
        %v3048 = vshll.u32 %v2923, 16
        %v3050 = vrot.slane %v3048, 1
        %v3051 = vor.u32 %v3046, %v3050
        %v3053 = vshll.u32 %v2924, 16
        %v3055 = vrot.slane %v3053, 1
        %v3056 = vsel %vm1136, %v3051, %v3055
        %v3058 = vshrl.u32 %v2925, 16
        %v3060 = vshll.u32 %v2925, 16
        %v3062 = vrot.slane %v3060, 1
        %v3063 = vor.u32 %v3058, %v3062
        %v3065 = vshll.u32 %v2926, 16
        %v3067 = vrot.slane %v3065, 1
        %v3068 = vsel %vm1136, %v3063, %v3067
        %v3070 = vshrl.u32 %v2927, 16
        %v3072 = vshll.u32 %v2927, 16
        %v3074 = vrot.slane %v3072, 1
        %v3075 = vor.u32 %v3070, %v3074
        %v3077 = vshll.u32 %v2928, 16
        %v3079 = vrot.slane %v3077, 1
        %v3080 = vsel %vm1136, %v3075, %v3079
        %v3082 = vshrl.u32 %v2929, 16
        %v3084 = vshll.u32 %v2929, 16
        %v3086 = vrot.slane %v3084, 1
        %v3087 = vor.u32 %v3082, %v3086
        %v3089 = vshll.u32 %v2930, 16
        %v3091 = vrot.slane %v3089, 1
        %v3092 = vsel %vm1136, %v3087, %v3091
        %v3094 = vshrl.u32 %v2931, 16
        %v3096 = vshll.u32 %v2931, 16
        %v3098 = vrot.slane %v3096, 1
        %v3099 = vor.u32 %v3094, %v3098
        %v3101 = vshll.u32 %v2932, 16
        %v3103 = vrot.slane %v3101, 1
        %v3104 = vsel %vm1136, %v3099, %v3103
        %v3106 = vshrl.u32 %v2933, 16
        %v3108 = vshll.u32 %v2933, 16
        %v3110 = vrot.slane %v3108, 1
        %v3111 = vor.u32 %v3106, %v3110
        %v3113 = vshll.u32 %v2934, 16
        %v3115 = vrot.slane %v3113, 1
        %v3116 = vsel %vm1136, %v3111, %v3115
        %v3118 = vshrl.u32 %v2935, 16
        %v3120 = vshll.u32 %v2935, 16
        %v3122 = vrot.slane %v3120, 1
        %v3123 = vor.u32 %v3118, %v3122
        %v3125 = vshll.u32 %v2936, 16
        %v3127 = vrot.slane %v3125, 1
        %v3128 = vsel %vm1136, %v3123, %v3127
        %3129 = vrot.lane.b32.xlu0 %v2948, 112
        %v3130 = vpop.permute.xlu0 %3129
        %3131 = vrot.lane.b32.xlu0 %v2960, 112
        %v3132 = vpop.permute.xlu0 %3131
        %3133 = vrot.lane.b32.xlu0 %v2972, 112
        %v3134 = vpop.permute.xlu0 %3133
        %3135 = vrot.lane.b32.xlu0 %v2984, 112
        %v3136 = vpop.permute.xlu0 %3135
        %3137 = vrot.lane.b32.xlu0 %v2996, 112
        %v3138 = vpop.permute.xlu0 %3137
        %3139 = vrot.lane.b32.xlu0 %v3008, 112
        %v3140 = vpop.permute.xlu0 %3139
        %3141 = vrot.lane.b32.xlu0 %v3020, 112
        %v3142 = vpop.permute.xlu0 %3141
        %3143 = vrot.lane.b32.xlu0 %v3032, 112
        %v3144 = vpop.permute.xlu0 %3143
        %3145 = vrot.lane.b32.xlu0 %v3044, 112
        %v3146 = vpop.permute.xlu0 %3145
        %3147 = vrot.lane.b32.xlu0 %v3056, 112
        %v3148 = vpop.permute.xlu0 %3147
        %3149 = vrot.lane.b32.xlu0 %v3068, 112
        %v3150 = vpop.permute.xlu0 %3149
        %3151 = vrot.lane.b32.xlu0 %v3080, 112
        %v3152 = vpop.permute.xlu0 %3151
        %3153 = vrot.lane.b32.xlu0 %v3092, 112
        %v3154 = vpop.permute.xlu0 %3153
        %3155 = vrot.lane.b32.xlu0 %v3104, 112
        %v3156 = vpop.permute.xlu0 %3155
        %3157 = vrot.lane.b32.xlu0 %v3116, 112
        %v3158 = vpop.permute.xlu0 %3157
        %3159 = vrot.lane.b32.xlu0 %v3128, 112
        %v3160 = vpop.permute.xlu0 %3159
        %vm3177 = vcmask 1048448
        %3178 = vst.msk [vmem:[#allocation3] sm:$0xff] %vm3177, %v3130
        %3179 = vst.msk [vmem:[#allocation3 + $0x10] sm:$0xff] %vm3177, %v3132
        %3180 = vst.msk [vmem:[#allocation3 + $0x20] sm:$0xff] %vm3177, %v3134
        %3181 = vst.msk [vmem:[#allocation3 + $0x30] sm:$0xff] %vm3177, %v3136
        %3182 = vst.msk [vmem:[#allocation3 + $0x40] sm:$0xff] %vm3177, %v3138
        %3183 = vst.msk [vmem:[#allocation3 + $0x50] sm:$0xff] %vm3177, %v3140
        %3184 = vst.msk [vmem:[#allocation3 + $0x60] sm:$0xff] %vm3177, %v3142
        %3185 = vst.msk [vmem:[#allocation3 + $0x70] sm:$0xff] %vm3177, %v3144
        %3186 = vst.msk [vmem:[#allocation3 + $0x80] sm:$0xff] %vm3177, %v3146
        %3187 = vst.msk [vmem:[#allocation3 + $0x90] sm:$0xff] %vm3177, %v3148
        %3188 = vst.msk [vmem:[#allocation3 + $0xa0] sm:$0xff] %vm3177, %v3150
        %3189 = vst.msk [vmem:[#allocation3 + $0xb0] sm:$0xff] %vm3177, %v3152
        %3190 = vst.msk [vmem:[#allocation3 + $0xc0] sm:$0xff] %vm3177, %v3154
        %3191 = vst.msk [vmem:[#allocation3 + $0xd0] sm:$0xff] %vm3177, %v3156
        %3192 = vst.msk [vmem:[#allocation3 + $0xe0] sm:$0xff] %vm3177, %v3158
        %3193 = vst.msk [vmem:[#allocation3 + $0xf0] sm:$0xff] %vm3177, %v3160
        %v3194 = vld [vmem:[%s2583] sm:$0xe]
        %v3195 = vld [vmem:[%s2583 + $0x4] sm:$0xf]
        %v3196 = vld [vmem:[%s2583 + $0x8] sm:$0x1]
        %v3197 = vld [vmem:[%s2583 + $0xc] sm:$0xe]
        %v3198 = vld [vmem:[%s2583 + $0x10] sm:$0xf]
        %v3199 = vld [vmem:[%s2583 + $0x14] sm:$0x1]
        %v3200 = vld [vmem:[%s2583 + $0x18] sm:$0xe]
        %v3201 = vld [vmem:[%s2583 + $0x1c] sm:$0xf]
        %v3202 = vld [vmem:[%s2583 + $0x20] sm:$0x1]
        %v3203 = vld [vmem:[%s2583 + $0x24] sm:$0xe]
        %v3204 = vld [vmem:[%s2583 + $0x28] sm:$0xf]
        %v3205 = vld [vmem:[%s2583 + $0x2c] sm:$0x1]
        %v3206 = vld [vmem:[%s2583 + $0x30] sm:$0xe]
        %v3207 = vld [vmem:[%s2583 + $0x34] sm:$0xf]
        %v3208 = vld [vmem:[%s2583 + $0x38] sm:$0x1]
        %v3209 = vld [vmem:[%s2583 + $0x3c] sm:$0xe]
        %v3210 = vld [vmem:[%s2583 + $0x40] sm:$0xf]
        %v3211 = vld [vmem:[%s2583 + $0x44] sm:$0x1]
        %v3212 = vld [vmem:[%s2583 + $0x48] sm:$0xe]
        %v3213 = vld [vmem:[%s2583 + $0x4c] sm:$0xf]
        %v3214 = vld [vmem:[%s2583 + $0x50] sm:$0x1]
        %v3215 = vld [vmem:[%s2583 + $0x54] sm:$0xe]
        %v3216 = vld [vmem:[%s2583 + $0x58] sm:$0xf]
        %v3217 = vld [vmem:[%s2583 + $0x5c] sm:$0x1]
        %v3218 = vld [vmem:[%s2583 + $0x60] sm:$0xe]
        %v3219 = vld [vmem:[%s2583 + $0x64] sm:$0xf]
        %v3220 = vld [vmem:[%s2583 + $0x68] sm:$0x1]
        %v3221 = vld [vmem:[%s2583 + $0x6c] sm:$0xe]
        %v3222 = vld [vmem:[%s2583 + $0x70] sm:$0xf]
        %v3223 = vld [vmem:[%s2583 + $0x74] sm:$0x1]
        %v3224 = vld [vmem:[%s2583 + $0x78] sm:$0xe]
        %v3225 = vld [vmem:[%s2583 + $0x7c] sm:$0xf]
        %v3226 = vld [vmem:[%s2583 + $0x80] sm:$0x1]
        %v3227 = vld [vmem:[%s2583 + $0x84] sm:$0xe]
        %v3228 = vld [vmem:[%s2583 + $0x88] sm:$0xf]
        %v3229 = vld [vmem:[%s2583 + $0x8c] sm:$0x1]
        %v3230 = vld [vmem:[%s2583 + $0x90] sm:$0xe]
        %v3231 = vld [vmem:[%s2583 + $0x94] sm:$0xf]
        %v3232 = vld [vmem:[%s2583 + $0x98] sm:$0x1]
        %v3233 = vld [vmem:[%s2583 + $0x9c] sm:$0xe]
        %v3234 = vld [vmem:[%s2583 + $0xa0] sm:$0xf]
        %v3235 = vld [vmem:[%s2583 + $0xa4] sm:$0x1]
        %v3236 = vld [vmem:[%s2583 + $0xa8] sm:$0xe]
        %v3237 = vld [vmem:[%s2583 + $0xac] sm:$0xf]
        %v3238 = vld [vmem:[%s2583 + $0xb0] sm:$0x1]
        %v3239 = vld [vmem:[%s2583 + $0xb4] sm:$0xe]
        %v3240 = vld [vmem:[%s2583 + $0xb8] sm:$0xf]
        %v3241 = vld [vmem:[%s2583 + $0xbc] sm:$0x1]
        %v3290 = vunpack.c.l.b16 %v3194
        %v3291 = vunpack.c.l.b16 %v3195
        %v3292 = vunpack.c.l.b16 %v3196
        %v3293 = vunpack.c.l.b16 %v3197
        %v3294 = vunpack.c.l.b16 %v3198
        %v3295 = vunpack.c.l.b16 %v3199
        %v3296 = vunpack.c.l.b16 %v3200
        %v3297 = vunpack.c.l.b16 %v3201
        %v3298 = vunpack.c.l.b16 %v3202
        %v3299 = vunpack.c.l.b16 %v3203
        %v3300 = vunpack.c.l.b16 %v3204
        %v3301 = vunpack.c.l.b16 %v3205
        %v3302 = vunpack.c.l.b16 %v3206
        %v3303 = vunpack.c.l.b16 %v3207
        %v3304 = vunpack.c.l.b16 %v3208
        %v3305 = vunpack.c.l.b16 %v3209
        %v3306 = vunpack.c.l.b16 %v3210
        %v3307 = vunpack.c.l.b16 %v3211
        %v3308 = vunpack.c.l.b16 %v3212
        %v3309 = vunpack.c.l.b16 %v3213
        %v3310 = vunpack.c.l.b16 %v3214
        %v3311 = vunpack.c.l.b16 %v3215
        %v3312 = vunpack.c.l.b16 %v3216
        %v3313 = vunpack.c.l.b16 %v3217
        %v3314 = vunpack.c.l.b16 %v3218
        %v3315 = vunpack.c.l.b16 %v3219
        %v3316 = vunpack.c.l.b16 %v3220
        %v3317 = vunpack.c.l.b16 %v3221
        %v3318 = vunpack.c.l.b16 %v3222
        %v3319 = vunpack.c.l.b16 %v3223
        %v3320 = vunpack.c.l.b16 %v3224
        %v3321 = vunpack.c.l.b16 %v3225
        %v3322 = vunpack.c.l.b16 %v3226
        %v3323 = vunpack.c.l.b16 %v3227
        %v3324 = vunpack.c.l.b16 %v3228
        %v3325 = vunpack.c.l.b16 %v3229
        %v3326 = vunpack.c.l.b16 %v3230
        %v3327 = vunpack.c.l.b16 %v3231
        %v3328 = vunpack.c.l.b16 %v3232
        %v3329 = vunpack.c.l.b16 %v3233
        %v3330 = vunpack.c.l.b16 %v3234
        %v3331 = vunpack.c.l.b16 %v3235
        %v3332 = vunpack.c.l.b16 %v3236
        %v3333 = vunpack.c.l.b16 %v3237
        %v3334 = vunpack.c.l.b16 %v3238
        %v3335 = vunpack.c.l.b16 %v3239
        %v3336 = vunpack.c.l.b16 %v3240
        %v3337 = vunpack.c.l.b16 %v3241
        %v3338 = vpack.c.b16 %v3291, %v3290
        %v3339 = vpack.c.b16 %v3292, %v3292
        %v3340 = vpack.c.b16 %v3294, %v3293
        %v3341 = vpack.c.b16 %v3295, %v3295
        %v3342 = vpack.c.b16 %v3297, %v3296
        %v3343 = vpack.c.b16 %v3298, %v3298
        %v3344 = vpack.c.b16 %v3300, %v3299
        %v3345 = vpack.c.b16 %v3301, %v3301
        %v3346 = vpack.c.b16 %v3303, %v3302
        %v3347 = vpack.c.b16 %v3304, %v3304
        %v3348 = vpack.c.b16 %v3306, %v3305
        %v3349 = vpack.c.b16 %v3307, %v3307
        %v3350 = vpack.c.b16 %v3309, %v3308
        %v3351 = vpack.c.b16 %v3310, %v3310
        %v3352 = vpack.c.b16 %v3312, %v3311
        %v3353 = vpack.c.b16 %v3313, %v3313
        %v3354 = vpack.c.b16 %v3315, %v3314
        %v3355 = vpack.c.b16 %v3316, %v3316
        %v3356 = vpack.c.b16 %v3318, %v3317
        %v3357 = vpack.c.b16 %v3319, %v3319
        %v3358 = vpack.c.b16 %v3321, %v3320
        %v3359 = vpack.c.b16 %v3322, %v3322
        %v3360 = vpack.c.b16 %v3324, %v3323
        %v3361 = vpack.c.b16 %v3325, %v3325
        %v3362 = vpack.c.b16 %v3327, %v3326
        %v3363 = vpack.c.b16 %v3328, %v3328
        %v3364 = vpack.c.b16 %v3330, %v3329
        %v3365 = vpack.c.b16 %v3331, %v3331
        %v3366 = vpack.c.b16 %v3333, %v3332
        %v3367 = vpack.c.b16 %v3334, %v3334
        %v3368 = vpack.c.b16 %v3336, %v3335
        %v3369 = vpack.c.b16 %v3337, %v3337
        %v3370 = vrot.slane %v3338, 1
        %v3371 = vrot.slane %v3339, 1
        %v3372 = vsel %vm1570, %v3370, %v3371
        %v3373 = vrot.slane %v3340, 1
        %v3374 = vrot.slane %v3341, 1
        %v3375 = vsel %vm1570, %v3373, %v3374
        %v3376 = vrot.slane %v3342, 1
        %v3377 = vrot.slane %v3343, 1
        %v3378 = vsel %vm1570, %v3376, %v3377
        %v3379 = vrot.slane %v3344, 1
        %v3380 = vrot.slane %v3345, 1
        %v3381 = vsel %vm1570, %v3379, %v3380
        %v3382 = vrot.slane %v3346, 1
        %v3383 = vrot.slane %v3347, 1
        %v3384 = vsel %vm1570, %v3382, %v3383
        %v3385 = vrot.slane %v3348, 1
        %v3386 = vrot.slane %v3349, 1
        %v3387 = vsel %vm1570, %v3385, %v3386
        %v3388 = vrot.slane %v3350, 1
        %v3389 = vrot.slane %v3351, 1
        %v3390 = vsel %vm1570, %v3388, %v3389
        %v3391 = vrot.slane %v3352, 1
        %v3392 = vrot.slane %v3353, 1
        %v3393 = vsel %vm1570, %v3391, %v3392
        %v3394 = vrot.slane %v3354, 1
        %v3395 = vrot.slane %v3355, 1
        %v3396 = vsel %vm1570, %v3394, %v3395
        %v3397 = vrot.slane %v3356, 1
        %v3398 = vrot.slane %v3357, 1
        %v3399 = vsel %vm1570, %v3397, %v3398
        %v3400 = vrot.slane %v3358, 1
        %v3401 = vrot.slane %v3359, 1
        %v3402 = vsel %vm1570, %v3400, %v3401
        %v3403 = vrot.slane %v3360, 1
        %v3404 = vrot.slane %v3361, 1
        %v3405 = vsel %vm1570, %v3403, %v3404
        %v3406 = vrot.slane %v3362, 1
        %v3407 = vrot.slane %v3363, 1
        %v3408 = vsel %vm1570, %v3406, %v3407
        %v3409 = vrot.slane %v3364, 1
        %v3410 = vrot.slane %v3365, 1
        %v3411 = vsel %vm1570, %v3409, %v3410
        %v3412 = vrot.slane %v3366, 1
        %v3413 = vrot.slane %v3367, 1
        %v3414 = vsel %vm1570, %v3412, %v3413
        %v3415 = vrot.slane %v3368, 1
        %v3416 = vrot.slane %v3369, 1
        %v3417 = vsel %vm1570, %v3415, %v3416
        %3434 = vst.msk [vmem:[#allocation3 + $0x8] sm:$0xff] %vm943, %v3372
        %3435 = vst.msk [vmem:[#allocation3 + $0x18] sm:$0xff] %vm943, %v3375
        %3436 = vst.msk [vmem:[#allocation3 + $0x28] sm:$0xff] %vm943, %v3378
        %3437 = vst.msk [vmem:[#allocation3 + $0x38] sm:$0xff] %vm943, %v3381
        %3438 = vst.msk [vmem:[#allocation3 + $0x48] sm:$0xff] %vm943, %v3384
        %3439 = vst.msk [vmem:[#allocation3 + $0x58] sm:$0xff] %vm943, %v3387
        %3440 = vst.msk [vmem:[#allocation3 + $0x68] sm:$0xff] %vm943, %v3390
        %3441 = vst.msk [vmem:[#allocation3 + $0x78] sm:$0xff] %vm943, %v3393
        %3442 = vst.msk [vmem:[#allocation3 + $0x88] sm:$0xff] %vm943, %v3396
        %3443 = vst.msk [vmem:[#allocation3 + $0x98] sm:$0xff] %vm943, %v3399
        %3444 = vst.msk [vmem:[#allocation3 + $0xa8] sm:$0xff] %vm943, %v3402
        %3445 = vst.msk [vmem:[#allocation3 + $0xb8] sm:$0xff] %vm943, %v3405
        %3446 = vst.msk [vmem:[#allocation3 + $0xc8] sm:$0xff] %vm943, %v3408
        %3447 = vst.msk [vmem:[#allocation3 + $0xd8] sm:$0xff] %vm943, %v3411
        %3448 = vst.msk [vmem:[#allocation3 + $0xe8] sm:$0xff] %vm943, %v3414
        %3449 = vst.msk [vmem:[#allocation3 + $0xf8] sm:$0xff] %vm943, %v3417
        %v3450 = vld [vmem:[#allocation3] sm:$0xff]
        %v3451 = vld [vmem:[#allocation3 + $0x8] sm:$0xff]
        %v3452 = vld [vmem:[#allocation3 + $0x10] sm:$0xff]
        %v3453 = vld [vmem:[#allocation3 + $0x18] sm:$0xff]
        %v3454 = vld [vmem:[#allocation3 + $0x20] sm:$0xff]
        %v3455 = vld [vmem:[#allocation3 + $0x28] sm:$0xff]
        %v3456 = vld [vmem:[#allocation3 + $0x30] sm:$0xff]
        %v3457 = vld [vmem:[#allocation3 + $0x38] sm:$0xff]
        %v3458 = vld [vmem:[#allocation3 + $0x40] sm:$0xff]
        %v3459 = vld [vmem:[#allocation3 + $0x48] sm:$0xff]
        %v3460 = vld [vmem:[#allocation3 + $0x50] sm:$0xff]
        %v3461 = vld [vmem:[#allocation3 + $0x58] sm:$0xff]
        %v3462 = vld [vmem:[#allocation3 + $0x60] sm:$0xff]
        %v3463 = vld [vmem:[#allocation3 + $0x68] sm:$0xff]
        %v3464 = vld [vmem:[#allocation3 + $0x70] sm:$0xff]
        %v3465 = vld [vmem:[#allocation3 + $0x78] sm:$0xff]
        %v3466 = vld [vmem:[#allocation3 + $0x80] sm:$0xff]
        %v3467 = vld [vmem:[#allocation3 + $0x88] sm:$0xff]
        %v3468 = vld [vmem:[#allocation3 + $0x90] sm:$0xff]
        %v3469 = vld [vmem:[#allocation3 + $0x98] sm:$0xff]
        %v3470 = vld [vmem:[#allocation3 + $0xa0] sm:$0xff]
        %v3471 = vld [vmem:[#allocation3 + $0xa8] sm:$0xff]
        %v3472 = vld [vmem:[#allocation3 + $0xb0] sm:$0xff]
        %v3473 = vld [vmem:[#allocation3 + $0xb8] sm:$0xff]
        %v3474 = vld [vmem:[#allocation3 + $0xc0] sm:$0xff]
        %v3475 = vld [vmem:[#allocation3 + $0xc8] sm:$0xff]
        %v3476 = vld [vmem:[#allocation3 + $0xd0] sm:$0xff]
        %v3477 = vld [vmem:[#allocation3 + $0xd8] sm:$0xff]
        %v3478 = vld [vmem:[#allocation3 + $0xe0] sm:$0xff]
        %v3479 = vld [vmem:[#allocation3 + $0xe8] sm:$0xff]
        %v3480 = vld [vmem:[#allocation3 + $0xf0] sm:$0xff]
        %v3481 = vld [vmem:[#allocation3 + $0xf8] sm:$0xff]
        %v3482 = vld [vmem:[%s1] sm:$0xf]
        %v3483 = vld [vmem:[%s1 + $0x4] sm:$0xf]
        %v3484 = vld [vmem:[%s1 + $0x8] sm:$0xf]
        %v3485 = vld [vmem:[%s1 + $0xc] sm:$0xf]
        %v3486 = vld [vmem:[%s1 + $0x10] sm:$0xf]
        %v3487 = vld [vmem:[%s1 + $0x14] sm:$0xf]
        %v3488 = vld [vmem:[%s1 + $0x18] sm:$0xf]
        %v3489 = vld [vmem:[%s1 + $0x1c] sm:$0xf]
        %v3490 = vld [vmem:[%s1 + $0x20] sm:$0xf]
        %v3491 = vld [vmem:[%s1 + $0x24] sm:$0xf]
        %v3492 = vld [vmem:[%s1 + $0x28] sm:$0xf]
        %v3493 = vld [vmem:[%s1 + $0x2c] sm:$0xf]
        %v3494 = vld [vmem:[%s1 + $0x30] sm:$0xf]
        %v3495 = vld [vmem:[%s1 + $0x34] sm:$0xf]
        %v3496 = vld [vmem:[%s1 + $0x38] sm:$0xf]
        %v3497 = vld [vmem:[%s1 + $0x3c] sm:$0xf]
        %v3498 = vld [vmem:[%s1 + $0x40] sm:$0xf]
        %v3499 = vld [vmem:[%s1 + $0x44] sm:$0xf]
        %v3500 = vld [vmem:[%s2] sm:$0x1]
        %v3502 = vlaneseq
        %v3503 = vshrl.u32 %v3502, 7
        %v3504 = vsub.s32 0, %v3503
        %v3505 = vrot.slane %v3500, %v3504
        %v3525 = vunpack.c.l.b16 %v3482
        %v3526 = vunpack.c.l.b16 %v3483
        %v3527 = vunpack.c.l.b16 %v3484
        %v3528 = vunpack.c.l.b16 %v3485
        %v3529 = vunpack.c.l.b16 %v3486
        %v3530 = vunpack.c.l.b16 %v3487
        %v3531 = vunpack.c.l.b16 %v3488
        %v3532 = vunpack.c.l.b16 %v3489
        %v3533 = vunpack.c.l.b16 %v3490
        %v3534 = vunpack.c.l.b16 %v3491
        %v3535 = vunpack.c.l.b16 %v3492
        %v3536 = vunpack.c.l.b16 %v3493
        %v3537 = vunpack.c.l.b16 %v3494
        %v3538 = vunpack.c.l.b16 %v3495
        %v3539 = vunpack.c.l.b16 %v3496
        %v3540 = vunpack.c.l.b16 %v3497
        %v3541 = vunpack.c.l.b16 %v3498
        %v3542 = vunpack.c.l.b16 %v3499
        %v3543 = vpack.c.b16 %v3526, %v3525
        %v3544 = vpack.c.b16 %v3528, %v3527
        %v3545 = vpack.c.b16 %v3530, %v3529
        %v3546 = vpack.c.b16 %v3532, %v3531
        %v3547 = vpack.c.b16 %v3534, %v3533
        %v3548 = vpack.c.b16 %v3536, %v3535
        %v3549 = vpack.c.b16 %v3538, %v3537
        %v3550 = vpack.c.b16 %v3540, %v3539
        %v3551 = vpack.c.b16 %v3542, %v3541
        %v3562 = vsel %vm943, %v3451, 0
        %v3565 = vsel %vm943, %v3453, 0
        %v3568 = vsel %vm943, %v3455, 0
        %v3571 = vsel %vm943, %v3457, 0
        %v3574 = vsel %vm943, %v3459, 0
        %v3577 = vsel %vm943, %v3461, 0
        %v3580 = vsel %vm943, %v3463, 0
        %v3583 = vsel %vm943, %v3465, 0
        %v3586 = vsel %vm943, %v3467, 0
        %v3589 = vsel %vm943, %v3469, 0
        %v3592 = vsel %vm943, %v3471, 0
        %v3595 = vsel %vm943, %v3473, 0
        %v3598 = vsel %vm943, %v3475, 0
        %v3601 = vsel %vm943, %v3477, 0
        %v3604 = vsel %vm943, %v3479, 0
        %v3607 = vsel %vm943, %v3481, 0
        %3609 = vmatprep.subr.bf16.mxu0 0
        %3610 = vmatpush1.bf16.msra.mxu0 %v3543
        %3611 = vmatprep.subr.bf16.mxu0 0
        %3612 = vmatpush1.bf16.msra.mxu0 %v3544
        %3613 = vmatprep.subr.bf16.mxu0 0
        %3614 = vmatpush1.bf16.msra.mxu0 %v3545
        %3615 = vmatprep.subr.bf16.mxu0 0
        %3616 = vmatpush1.bf16.msra.mxu0 %v3546
        %3617 = vmatprep.subr.bf16.mxu0 0
        %3618 = vmatpush1.bf16.msra.mxu0 %v3547
        %3619 = vmatprep.subr.bf16.mxu0 0
        %3620 = vmatpush1.bf16.msra.mxu0 %v3548
        %3621 = vmatprep.subr.bf16.mxu0 0
        %3622 = vmatpush1.bf16.msra.mxu0 %v3549
        %3623 = vmatprep.subr.bf16.mxu0 0
        %3624 = vmatpush1.bf16.msra.mxu0 %v3550
        %3625 = vmatprep.subr.bf16.mxu0 0
        %3626 = vmatpush1.bf16.msra.mxu0 %v3551
        %3627 = vmatprep.subr.bf16.mxu0 0
        %3628 = vmatpush1.bf16.msra.mxu0 0
        %3629 = vmatprep.subr.bf16.mxu0 0
        %3630 = vmatpush1.bf16.msra.mxu0 0
        %3631 = vmatprep.subr.bf16.mxu0 0
        %3632 = vmatpush1.bf16.msra.mxu0 0
        %3633 = vmatprep.subr.bf16.mxu0 0
        %3634 = vmatpush1.bf16.msra.mxu0 0
        %3635 = vmatprep.subr.bf16.mxu0 0
        %3636 = vmatpush1.bf16.msra.mxu0 0
        %3637 = vmatprep.subr.bf16.mxu0 0
        %3638 = vmatpush1.bf16.msra.mxu0 0
        %3639 = vmatprep.subr.bf16.mxu0 0
        %3640 = vmatpush1.bf16.msra.mxu0 0
        %3641 = vmatprep.mubr.bf16.mxu0 %v3562
        %3642 = vmatmul.mubr.bf16.gmra.mrb[0].mxu0 %v3450
        %v3643 = vpop.f32.mrb[0].mxu0
        %v3644 = vadd.f32 %v3505, %v3643
        %v3645 = vpop.f32.mrb[0].mxu0
        %v3646 = vpop.f32.mrb[0].mxu0
        %v3647 = vadd.f32 %v3505, %v3646
        %v3648 = vpop.f32.mrb[0].mxu0
        %3649 = vmatprep.mubr.bf16.mxu0 %v3565
        %3650 = vmatmul.mubr.bf16.gmra.mrb[0].mxu0 %v3452
        %v3651 = vpop.f32.mrb[0].mxu0
        %v3652 = vadd.f32 %v3505, %v3651
        %v3653 = vpop.f32.mrb[0].mxu0
        %v3654 = vpop.f32.mrb[0].mxu0
        %v3655 = vadd.f32 %v3505, %v3654
        %v3656 = vpop.f32.mrb[0].mxu0
        %3657 = vmatprep.mubr.bf16.mxu0 %v3568
        %3658 = vmatmul.mubr.bf16.gmra.mrb[0].mxu0 %v3454
        %v3659 = vpop.f32.mrb[0].mxu0
        %v3660 = vadd.f32 %v3505, %v3659
        %v3661 = vpop.f32.mrb[0].mxu0
        %v3662 = vpop.f32.mrb[0].mxu0
        %v3663 = vadd.f32 %v3505, %v3662
        %v3664 = vpop.f32.mrb[0].mxu0
        %3665 = vmatprep.mubr.bf16.mxu0 %v3571
        %3666 = vmatmul.mubr.bf16.gmra.mrb[0].mxu0 %v3456
        %v3667 = vpop.f32.mrb[0].mxu0
        %v3668 = vadd.f32 %v3505, %v3667
        %v3669 = vpop.f32.mrb[0].mxu0
        %v3670 = vpop.f32.mrb[0].mxu0
        %v3671 = vadd.f32 %v3505, %v3670
        %v3672 = vpop.f32.mrb[0].mxu0
        %3673 = vmatprep.mubr.bf16.mxu0 %v3574
        %3674 = vmatmul.mubr.bf16.gmra.mrb[0].mxu0 %v3458
        %v3675 = vpop.f32.mrb[0].mxu0
        %v3676 = vadd.f32 %v3505, %v3675
        %v3677 = vpop.f32.mrb[0].mxu0
        %v3678 = vpop.f32.mrb[0].mxu0
        %v3679 = vadd.f32 %v3505, %v3678
        %v3680 = vpop.f32.mrb[0].mxu0
        %3681 = vmatprep.mubr.bf16.mxu0 %v3577
        %3682 = vmatmul.mubr.bf16.gmra.mrb[0].mxu0 %v3460
        %v3683 = vpop.f32.mrb[0].mxu0
        %v3684 = vadd.f32 %v3505, %v3683
        %v3685 = vpop.f32.mrb[0].mxu0
        %v3686 = vpop.f32.mrb[0].mxu0
        %v3687 = vadd.f32 %v3505, %v3686
        %v3688 = vpop.f32.mrb[0].mxu0
        %3689 = vmatprep.mubr.bf16.mxu0 %v3580
        %3690 = vmatmul.mubr.bf16.gmra.mrb[0].mxu0 %v3462
        %v3691 = vpop.f32.mrb[0].mxu0
        %v3692 = vadd.f32 %v3505, %v3691
        %v3693 = vpop.f32.mrb[0].mxu0
        %v3694 = vpop.f32.mrb[0].mxu0
        %v3695 = vadd.f32 %v3505, %v3694
        %v3696 = vpop.f32.mrb[0].mxu0
        %3697 = vmatprep.mubr.bf16.mxu0 %v3583
        %3698 = vmatmul.mubr.bf16.gmra.mrb[0].mxu0 %v3464
        %v3699 = vpop.f32.mrb[0].mxu0
        %v3700 = vadd.f32 %v3505, %v3699
        %v3701 = vpop.f32.mrb[0].mxu0
        %v3702 = vpop.f32.mrb[0].mxu0
        %v3703 = vadd.f32 %v3505, %v3702
        %v3704 = vpop.f32.mrb[0].mxu0
        %3705 = vmatprep.mubr.bf16.mxu0 %v3586
        %3706 = vmatmul.mubr.bf16.gmra.mrb[0].mxu0 %v3466
        %v3707 = vpop.f32.mrb[0].mxu0
        %v3708 = vadd.f32 %v3505, %v3707
        %v3709 = vpop.f32.mrb[0].mxu0
        %v3710 = vpop.f32.mrb[0].mxu0
        %v3711 = vadd.f32 %v3505, %v3710
        %v3712 = vpop.f32.mrb[0].mxu0
        %3713 = vmatprep.mubr.bf16.mxu0 %v3589
        %3714 = vmatmul.mubr.bf16.gmra.mrb[0].mxu0 %v3468
        %v3715 = vpop.f32.mrb[0].mxu0
        %v3716 = vadd.f32 %v3505, %v3715
        %v3717 = vpop.f32.mrb[0].mxu0
        %v3718 = vpop.f32.mrb[0].mxu0
        %v3719 = vadd.f32 %v3505, %v3718
        %v3720 = vpop.f32.mrb[0].mxu0
        %3721 = vmatprep.mubr.bf16.mxu0 %v3592
        %3722 = vmatmul.mubr.bf16.gmra.mrb[0].mxu0 %v3470
        %v3723 = vpop.f32.mrb[0].mxu0
        %v3724 = vadd.f32 %v3505, %v3723
        %v3725 = vpop.f32.mrb[0].mxu0
        %v3726 = vpop.f32.mrb[0].mxu0
        %v3727 = vadd.f32 %v3505, %v3726
        %v3728 = vpop.f32.mrb[0].mxu0
        %3729 = vmatprep.mubr.bf16.mxu0 %v3595
        %3730 = vmatmul.mubr.bf16.gmra.mrb[0].mxu0 %v3472
        %v3731 = vpop.f32.mrb[0].mxu0
        %v3732 = vadd.f32 %v3505, %v3731
        %v3733 = vpop.f32.mrb[0].mxu0
        %v3734 = vpop.f32.mrb[0].mxu0
        %v3735 = vadd.f32 %v3505, %v3734
        %v3736 = vpop.f32.mrb[0].mxu0
        %3737 = vmatprep.mubr.bf16.mxu0 %v3598
        %3738 = vmatmul.mubr.bf16.gmra.mrb[0].mxu0 %v3474
        %v3739 = vpop.f32.mrb[0].mxu0
        %v3740 = vadd.f32 %v3505, %v3739
        %v3741 = vpop.f32.mrb[0].mxu0
        %v3742 = vpop.f32.mrb[0].mxu0
        %v3743 = vadd.f32 %v3505, %v3742
        %v3744 = vpop.f32.mrb[0].mxu0
        %3745 = vmatprep.mubr.bf16.mxu0 %v3601
        %3746 = vmatmul.mubr.bf16.gmra.mrb[0].mxu0 %v3476
        %v3747 = vpop.f32.mrb[0].mxu0
        %v3748 = vadd.f32 %v3505, %v3747
        %v3749 = vpop.f32.mrb[0].mxu0
        %v3750 = vpop.f32.mrb[0].mxu0
        %v3751 = vadd.f32 %v3505, %v3750
        %v3752 = vpop.f32.mrb[0].mxu0
        %3753 = vmatprep.mubr.bf16.mxu0 %v3604
        %3754 = vmatmul.mubr.bf16.gmra.mrb[0].mxu0 %v3478
        %v3755 = vpop.f32.mrb[0].mxu0
        %v3756 = vadd.f32 %v3505, %v3755
        %v3757 = vpop.f32.mrb[0].mxu0
        %v3758 = vpop.f32.mrb[0].mxu0
        %v3759 = vadd.f32 %v3505, %v3758
        %v3760 = vpop.f32.mrb[0].mxu0
        %3761 = vmatprep.mubr.bf16.mxu0 %v3607
        %3762 = vmatmul.mubr.bf16.gmra.mrb[0].mxu0 %v3480
        %v3763 = vpop.f32.mrb[0].mxu0
        %v3764 = vadd.f32 %v3505, %v3763
        %v3765 = vpop.f32.mrb[0].mxu0
        %v3766 = vpop.f32.mrb[0].mxu0
        %v3767 = vadd.f32 %v3505, %v3766
        %v3768 = vpop.f32.mrb[0].mxu0
        %3769 = vdwg.mxu0
        %v3770 = vmax.f32 %v3644, 0.0
        %v3771 = vmax.f32 %v3647, 0.0
        %v3772 = vmax.f32 %v3652, 0.0
        %v3773 = vmax.f32 %v3655, 0.0
        %v3774 = vmax.f32 %v3660, 0.0
        %v3775 = vmax.f32 %v3663, 0.0
        %v3776 = vmax.f32 %v3668, 0.0
        %v3777 = vmax.f32 %v3671, 0.0
        %v3778 = vmax.f32 %v3676, 0.0
        %v3779 = vmax.f32 %v3679, 0.0
        %v3780 = vmax.f32 %v3684, 0.0
        %v3781 = vmax.f32 %v3687, 0.0
        %v3782 = vmax.f32 %v3692, 0.0
        %v3783 = vmax.f32 %v3695, 0.0
        %v3784 = vmax.f32 %v3700, 0.0
        %v3785 = vmax.f32 %v3703, 0.0
        %v3786 = vmax.f32 %v3708, 0.0
        %v3787 = vmax.f32 %v3711, 0.0
        %v3788 = vmax.f32 %v3716, 0.0
        %v3789 = vmax.f32 %v3719, 0.0
        %v3790 = vmax.f32 %v3724, 0.0
        %v3791 = vmax.f32 %v3727, 0.0
        %v3792 = vmax.f32 %v3732, 0.0
        %v3793 = vmax.f32 %v3735, 0.0
        %v3794 = vmax.f32 %v3740, 0.0
        %v3795 = vmax.f32 %v3743, 0.0
        %v3796 = vmax.f32 %v3748, 0.0
        %v3797 = vmax.f32 %v3751, 0.0
        %v3798 = vmax.f32 %v3756, 0.0
        %v3799 = vmax.f32 %v3759, 0.0
        %v3800 = vmax.f32 %v3764, 0.0
        %v3801 = vmax.f32 %v3767, 0.0
        %vm3802 = vcmask 257024
        %3803 = vst.msk [vmem:[#allocation4] sm:$0xf] %vm3802, 0
        %3804 = vst.msk [vmem:[#allocation4 + $0x4] sm:$0xf] %vm3802, 0
        %vm3805 = vcmask 253952
        %3806 = vst.msk [vmem:[#allocation4 + $0x8] sm:$0x1] %vm3805, 0
        %s3807 = scalar_lea.vmem [#allocation4], 204
        %3808 = vst.msk [vmem:[%s3807] sm:$0xf] %vm3802, 0
        %3809 = vst.msk [vmem:[%s3807 + $0x4] sm:$0xf] %vm3802, 0
        %3810 = vst.msk [vmem:[%s3807 + $0x8] sm:$0x1] %vm3805, 0
        %vm3811 = vcmask 253952
        %vm3812 = vmand %vm3811, %vm234
        %v3813 = vld [vmem:[#allocation4] sm:$0x1]
        %v3814 = vsel %vm3812, 0, %v3813
        %3815 = vst [vmem:[#allocation4] sm:$0x1] %v3814
        %v3816 = vld [vmem:[#allocation4 + $0xc] sm:$0x1]
        %v3817 = vsel %vm3812, 0, %v3816
        %3818 = vst [vmem:[#allocation4 + $0xc] sm:$0x1] %v3817
        %v3819 = vld [vmem:[#allocation4 + $0x18] sm:$0x1]
        %v3820 = vsel %vm3812, 0, %v3819
        %3821 = vst [vmem:[#allocation4 + $0x18] sm:$0x1] %v3820
        %v3822 = vld [vmem:[#allocation4 + $0x24] sm:$0x1]
        %v3823 = vsel %vm3812, 0, %v3822
        %3824 = vst [vmem:[#allocation4 + $0x24] sm:$0x1] %v3823
        %v3825 = vld [vmem:[#allocation4 + $0x30] sm:$0x1]
        %v3826 = vsel %vm3812, 0, %v3825
        %3827 = vst [vmem:[#allocation4 + $0x30] sm:$0x1] %v3826
        %v3828 = vld [vmem:[#allocation4 + $0x3c] sm:$0x1]
        %v3829 = vsel %vm3812, 0, %v3828
        %3830 = vst [vmem:[#allocation4 + $0x3c] sm:$0x1] %v3829
        %v3831 = vld [vmem:[#allocation4 + $0x48] sm:$0x1]
        %v3832 = vsel %vm3812, 0, %v3831
        %3833 = vst [vmem:[#allocation4 + $0x48] sm:$0x1] %v3832
        %v3834 = vld [vmem:[#allocation4 + $0x54] sm:$0x1]
        %v3835 = vsel %vm3812, 0, %v3834
        %3836 = vst [vmem:[#allocation4 + $0x54] sm:$0x1] %v3835
        %v3837 = vld [vmem:[#allocation4 + $0x60] sm:$0x1]
        %v3838 = vsel %vm3812, 0, %v3837
        %3839 = vst [vmem:[#allocation4 + $0x60] sm:$0x1] %v3838
        %v3840 = vld [vmem:[#allocation4 + $0x6c] sm:$0x1]
        %v3841 = vsel %vm3812, 0, %v3840
        %3842 = vst [vmem:[#allocation4 + $0x6c] sm:$0x1] %v3841
        %v3843 = vld [vmem:[#allocation4 + $0x78] sm:$0x1]
        %v3844 = vsel %vm3812, 0, %v3843
        %3845 = vst [vmem:[#allocation4 + $0x78] sm:$0x1] %v3844
        %v3846 = vld [vmem:[#allocation4 + $0x84] sm:$0x1]
        %v3847 = vsel %vm3812, 0, %v3846
        %3848 = vst [vmem:[#allocation4 + $0x84] sm:$0x1] %v3847
        %v3849 = vld [vmem:[#allocation4 + $0x90] sm:$0x1]
        %v3850 = vsel %vm3812, 0, %v3849
        %3851 = vst [vmem:[#allocation4 + $0x90] sm:$0x1] %v3850
        %v3852 = vld [vmem:[#allocation4 + $0x9c] sm:$0x1]
        %v3853 = vsel %vm3812, 0, %v3852
        %3854 = vst [vmem:[#allocation4 + $0x9c] sm:$0x1] %v3853
        %v3855 = vld [vmem:[#allocation4 + $0xa8] sm:$0x1]
        %v3856 = vsel %vm3812, 0, %v3855
        %3857 = vst [vmem:[#allocation4 + $0xa8] sm:$0x1] %v3856
        %v3858 = vld [vmem:[#allocation4 + $0xb4] sm:$0x1]
        %v3859 = vsel %vm3812, 0, %v3858
        %3860 = vst [vmem:[#allocation4 + $0xb4] sm:$0x1] %v3859
        %v3861 = vld [vmem:[#allocation4 + $0xc0] sm:$0x1]
        %v3862 = vsel %vm3812, 0, %v3861
        %3863 = vst [vmem:[#allocation4 + $0xc0] sm:$0x1] %v3862
        %v3864 = vld [vmem:[#allocation4 + $0xcc] sm:$0x1]
        %v3865 = vsel %vm3812, 0, %v3864
        %3866 = vst [vmem:[#allocation4 + $0xcc] sm:$0x1] %v3865
        %vm3867 = vmand %vm3811, %vm290
        %v3868 = vld [vmem:[#allocation4 + $0x8] sm:$0x1]
        %v3869 = vsel %vm3867, 0, %v3868
        %3870 = vst [vmem:[#allocation4 + $0x8] sm:$0x1] %v3869
        %v3871 = vld [vmem:[#allocation4 + $0x14] sm:$0x1]
        %v3872 = vsel %vm3867, 0, %v3871
        %3873 = vst [vmem:[#allocation4 + $0x14] sm:$0x1] %v3872
        %v3874 = vld [vmem:[#allocation4 + $0x20] sm:$0x1]
        %v3875 = vsel %vm3867, 0, %v3874
        %3876 = vst [vmem:[#allocation4 + $0x20] sm:$0x1] %v3875
        %v3877 = vld [vmem:[#allocation4 + $0x2c] sm:$0x1]
        %v3878 = vsel %vm3867, 0, %v3877
        %3879 = vst [vmem:[#allocation4 + $0x2c] sm:$0x1] %v3878
        %v3880 = vld [vmem:[#allocation4 + $0x38] sm:$0x1]
        %v3881 = vsel %vm3867, 0, %v3880
        %3882 = vst [vmem:[#allocation4 + $0x38] sm:$0x1] %v3881
        %v3883 = vld [vmem:[#allocation4 + $0x44] sm:$0x1]
        %v3884 = vsel %vm3867, 0, %v3883
        %3885 = vst [vmem:[#allocation4 + $0x44] sm:$0x1] %v3884
        %v3886 = vld [vmem:[#allocation4 + $0x50] sm:$0x1]
        %v3887 = vsel %vm3867, 0, %v3886
        %3888 = vst [vmem:[#allocation4 + $0x50] sm:$0x1] %v3887
        %v3889 = vld [vmem:[#allocation4 + $0x5c] sm:$0x1]
        %v3890 = vsel %vm3867, 0, %v3889
        %3891 = vst [vmem:[#allocation4 + $0x5c] sm:$0x1] %v3890
        %v3892 = vld [vmem:[#allocation4 + $0x68] sm:$0x1]
        %v3893 = vsel %vm3867, 0, %v3892
        %3894 = vst [vmem:[#allocation4 + $0x68] sm:$0x1] %v3893
        %v3895 = vld [vmem:[#allocation4 + $0x74] sm:$0x1]
        %v3896 = vsel %vm3867, 0, %v3895
        %3897 = vst [vmem:[#allocation4 + $0x74] sm:$0x1] %v3896
        %v3898 = vld [vmem:[#allocation4 + $0x80] sm:$0x1]
        %v3899 = vsel %vm3867, 0, %v3898
        %3900 = vst [vmem:[#allocation4 + $0x80] sm:$0x1] %v3899
        %v3901 = vld [vmem:[#allocation4 + $0x8c] sm:$0x1]
        %v3902 = vsel %vm3867, 0, %v3901
        %3903 = vst [vmem:[#allocation4 + $0x8c] sm:$0x1] %v3902
        %v3904 = vld [vmem:[#allocation4 + $0x98] sm:$0x1]
        %v3905 = vsel %vm3867, 0, %v3904
        %3906 = vst [vmem:[#allocation4 + $0x98] sm:$0x1] %v3905
        %v3907 = vld [vmem:[#allocation4 + $0xa4] sm:$0x1]
        %v3908 = vsel %vm3867, 0, %v3907
        %3909 = vst [vmem:[#allocation4 + $0xa4] sm:$0x1] %v3908
        %v3910 = vld [vmem:[#allocation4 + $0xb0] sm:$0x1]
        %v3911 = vsel %vm3867, 0, %v3910
        %3912 = vst [vmem:[#allocation4 + $0xb0] sm:$0x1] %v3911
        %v3913 = vld [vmem:[#allocation4 + $0xbc] sm:$0x1]
        %v3914 = vsel %vm3867, 0, %v3913
        %3915 = vst [vmem:[#allocation4 + $0xbc] sm:$0x1] %v3914
        %v3916 = vld [vmem:[#allocation4 + $0xc8] sm:$0x1]
        %v3917 = vsel %vm3867, 0, %v3916
        %3918 = vst [vmem:[#allocation4 + $0xc8] sm:$0x1] %v3917
        %v3919 = vld [vmem:[#allocation4 + $0xd4] sm:$0x1]
        %v3920 = vsel %vm3867, 0, %v3919
        %3921 = vst [vmem:[#allocation4 + $0xd4] sm:$0x1] %v3920
        %v3922 = vpack.c.bf16 %v3771, %v3770
        %v3923 = vpack.c.bf16 %v3773, %v3772
        %v3924 = vpack.c.bf16 %v3775, %v3774
        %v3925 = vpack.c.bf16 %v3777, %v3776
        %v3926 = vpack.c.bf16 %v3779, %v3778
        %v3927 = vpack.c.bf16 %v3781, %v3780
        %v3928 = vpack.c.bf16 %v3783, %v3782
        %v3929 = vpack.c.bf16 %v3785, %v3784
        %v3930 = vpack.c.bf16 %v3787, %v3786
        %v3931 = vpack.c.bf16 %v3789, %v3788
        %v3932 = vpack.c.bf16 %v3791, %v3790
        %v3933 = vpack.c.bf16 %v3793, %v3792
        %v3934 = vpack.c.bf16 %v3795, %v3794
        %v3935 = vpack.c.bf16 %v3797, %v3796
        %v3936 = vpack.c.bf16 %v3799, %v3798
        %v3937 = vpack.c.bf16 %v3801, %v3800
        %v3954 = vunpack.c.l.b16 %v3922
        %v3955 = vunpack.c.h.b16 %v3922
        %v3956 = vunpack.c.l.b16 %v3923
        %v3957 = vunpack.c.h.b16 %v3923
        %v3958 = vunpack.c.l.b16 %v3924
        %v3959 = vunpack.c.h.b16 %v3924
        %v3960 = vunpack.c.l.b16 %v3925
        %v3961 = vunpack.c.h.b16 %v3925
        %v3962 = vunpack.c.l.b16 %v3926
        %v3963 = vunpack.c.h.b16 %v3926
        %v3964 = vunpack.c.l.b16 %v3927
        %v3965 = vunpack.c.h.b16 %v3927
        %v3966 = vunpack.c.l.b16 %v3928
        %v3967 = vunpack.c.h.b16 %v3928
        %v3968 = vunpack.c.l.b16 %v3929
        %v3969 = vunpack.c.h.b16 %v3929
        %v3970 = vunpack.c.l.b16 %v3930
        %v3971 = vunpack.c.h.b16 %v3930
        %v3972 = vunpack.c.l.b16 %v3931
        %v3973 = vunpack.c.h.b16 %v3931
        %v3974 = vunpack.c.l.b16 %v3932
        %v3975 = vunpack.c.h.b16 %v3932
        %v3976 = vunpack.c.l.b16 %v3933
        %v3977 = vunpack.c.h.b16 %v3933
        %v3978 = vunpack.c.l.b16 %v3934
        %v3979 = vunpack.c.h.b16 %v3934
        %v3980 = vunpack.c.l.b16 %v3935
        %v3981 = vunpack.c.h.b16 %v3935
        %v3982 = vunpack.c.l.b16 %v3936
        %v3983 = vunpack.c.h.b16 %v3936
        %v3984 = vunpack.c.l.b16 %v3937
        %v3985 = vunpack.c.h.b16 %v3937
        %v3986 = vpack.c.b16 %v3954, %v3954
        %v3987 = vpack.c.b16 %v3955, %v3955
        %v3988 = vpack.c.b16 %v3956, %v3956
        %v3989 = vpack.c.b16 %v3957, %v3957
        %v3990 = vpack.c.b16 %v3958, %v3958
        %v3991 = vpack.c.b16 %v3959, %v3959
        %v3992 = vpack.c.b16 %v3960, %v3960
        %v3993 = vpack.c.b16 %v3961, %v3961
        %v3994 = vpack.c.b16 %v3962, %v3962
        %v3995 = vpack.c.b16 %v3963, %v3963
        %v3996 = vpack.c.b16 %v3964, %v3964
        %v3997 = vpack.c.b16 %v3965, %v3965
        %v3998 = vpack.c.b16 %v3966, %v3966
        %v3999 = vpack.c.b16 %v3967, %v3967
        %v4000 = vpack.c.b16 %v3968, %v3968
        %v4001 = vpack.c.b16 %v3969, %v3969
        %v4002 = vpack.c.b16 %v3970, %v3970
        %v4003 = vpack.c.b16 %v3971, %v3971
        %v4004 = vpack.c.b16 %v3972, %v3972
        %v4005 = vpack.c.b16 %v3973, %v3973
        %v4006 = vpack.c.b16 %v3974, %v3974
        %v4007 = vpack.c.b16 %v3975, %v3975
        %v4008 = vpack.c.b16 %v3976, %v3976
        %v4009 = vpack.c.b16 %v3977, %v3977
        %v4010 = vpack.c.b16 %v3978, %v3978
        %v4011 = vpack.c.b16 %v3979, %v3979
        %v4012 = vpack.c.b16 %v3980, %v3980
        %v4013 = vpack.c.b16 %v3981, %v3981
        %v4014 = vpack.c.b16 %v3982, %v3982
        %v4015 = vpack.c.b16 %v3983, %v3983
        %v4016 = vpack.c.b16 %v3984, %v3984
        %v4017 = vpack.c.b16 %v3985, %v3985
        %v4019 = vshrl.u32 %v3986, 16
        %v4021 = vrot.slane %v4019, 7
        %v4022 = vshll.u32 %v3986, 16
        %v4024 = vor.u32 %v4021, %v4022
        %v4025 = vrot.slane %v4021, 4
        %v4027 = vshrl.u32 %v3987, 16
        %v4029 = vrot.slane %v4027, 7
        %v4030 = vshll.u32 %v3987, 16
        %v4032 = vor.u32 %v4029, %v4030
        %v4033 = vsel %vm379, %v4025, %v4032
        %v4034 = vrot.slane %v4029, 4
        %v4036 = vshrl.u32 %v3988, 16
        %v4038 = vrot.slane %v4036, 7
        %v4039 = vshll.u32 %v3988, 16
        %v4041 = vor.u32 %v4038, %v4039
        %v4042 = vrot.slane %v4038, 4
        %v4044 = vshrl.u32 %v3989, 16
        %v4046 = vrot.slane %v4044, 7
        %v4047 = vshll.u32 %v3989, 16
        %v4049 = vor.u32 %v4046, %v4047
        %v4050 = vsel %vm379, %v4042, %v4049
        %v4051 = vrot.slane %v4046, 4
        %v4053 = vshrl.u32 %v3990, 16
        %v4055 = vrot.slane %v4053, 7
        %v4056 = vshll.u32 %v3990, 16
        %v4058 = vor.u32 %v4055, %v4056
        %v4059 = vrot.slane %v4055, 4
        %v4061 = vshrl.u32 %v3991, 16
        %v4063 = vrot.slane %v4061, 7
        %v4064 = vshll.u32 %v3991, 16
        %v4066 = vor.u32 %v4063, %v4064
        %v4067 = vsel %vm379, %v4059, %v4066
        %v4068 = vrot.slane %v4063, 4
        %v4070 = vshrl.u32 %v3992, 16
        %v4072 = vrot.slane %v4070, 7
        %v4073 = vshll.u32 %v3992, 16
        %v4075 = vor.u32 %v4072, %v4073
        %v4076 = vrot.slane %v4072, 4
        %v4078 = vshrl.u32 %v3993, 16
        %v4080 = vrot.slane %v4078, 7
        %v4081 = vshll.u32 %v3993, 16
        %v4083 = vor.u32 %v4080, %v4081
        %v4084 = vsel %vm379, %v4076, %v4083
        %v4085 = vrot.slane %v4080, 4
        %v4087 = vshrl.u32 %v3994, 16
        %v4089 = vrot.slane %v4087, 7
        %v4090 = vshll.u32 %v3994, 16
        %v4092 = vor.u32 %v4089, %v4090
        %v4093 = vrot.slane %v4089, 4
        %v4095 = vshrl.u32 %v3995, 16
        %v4097 = vrot.slane %v4095, 7
        %v4098 = vshll.u32 %v3995, 16
        %v4100 = vor.u32 %v4097, %v4098
        %v4101 = vsel %vm379, %v4093, %v4100
        %v4102 = vrot.slane %v4097, 4
        %v4104 = vshrl.u32 %v3996, 16
        %v4106 = vrot.slane %v4104, 7
        %v4107 = vshll.u32 %v3996, 16
        %v4109 = vor.u32 %v4106, %v4107
        %v4110 = vrot.slane %v4106, 4
        %v4112 = vshrl.u32 %v3997, 16
        %v4114 = vrot.slane %v4112, 7
        %v4115 = vshll.u32 %v3997, 16
        %v4117 = vor.u32 %v4114, %v4115
        %v4118 = vsel %vm379, %v4110, %v4117
        %v4119 = vrot.slane %v4114, 4
        %v4121 = vshrl.u32 %v3998, 16
        %v4123 = vrot.slane %v4121, 7
        %v4124 = vshll.u32 %v3998, 16
        %v4126 = vor.u32 %v4123, %v4124
        %v4127 = vrot.slane %v4123, 4
        %v4129 = vshrl.u32 %v3999, 16
        %v4131 = vrot.slane %v4129, 7
        %v4132 = vshll.u32 %v3999, 16
        %v4134 = vor.u32 %v4131, %v4132
        %v4135 = vsel %vm379, %v4127, %v4134
        %v4136 = vrot.slane %v4131, 4
        %v4138 = vshrl.u32 %v4000, 16
        %v4140 = vrot.slane %v4138, 7
        %v4141 = vshll.u32 %v4000, 16
        %v4143 = vor.u32 %v4140, %v4141
        %v4144 = vrot.slane %v4140, 4
        %v4146 = vshrl.u32 %v4001, 16
        %v4148 = vrot.slane %v4146, 7
        %v4149 = vshll.u32 %v4001, 16
        %v4151 = vor.u32 %v4148, %v4149
        %v4152 = vsel %vm379, %v4144, %v4151
        %v4153 = vrot.slane %v4148, 4
        %v4155 = vshrl.u32 %v4002, 16
        %v4157 = vrot.slane %v4155, 7
        %v4158 = vshll.u32 %v4002, 16
        %v4160 = vor.u32 %v4157, %v4158
        %v4161 = vrot.slane %v4157, 4
        %v4163 = vshrl.u32 %v4003, 16
        %v4165 = vrot.slane %v4163, 7
        %v4166 = vshll.u32 %v4003, 16
        %v4168 = vor.u32 %v4165, %v4166
        %v4169 = vsel %vm379, %v4161, %v4168
        %v4170 = vrot.slane %v4165, 4
        %v4172 = vshrl.u32 %v4004, 16
        %v4174 = vrot.slane %v4172, 7
        %v4175 = vshll.u32 %v4004, 16
        %v4177 = vor.u32 %v4174, %v4175
        %v4178 = vrot.slane %v4174, 4
        %v4180 = vshrl.u32 %v4005, 16
        %v4182 = vrot.slane %v4180, 7
        %v4183 = vshll.u32 %v4005, 16
        %v4185 = vor.u32 %v4182, %v4183
        %v4186 = vsel %vm379, %v4178, %v4185
        %v4187 = vrot.slane %v4182, 4
        %v4189 = vshrl.u32 %v4006, 16
        %v4191 = vrot.slane %v4189, 7
        %v4192 = vshll.u32 %v4006, 16
        %v4194 = vor.u32 %v4191, %v4192
        %v4195 = vrot.slane %v4191, 4
        %v4197 = vshrl.u32 %v4007, 16
        %v4199 = vrot.slane %v4197, 7
        %v4200 = vshll.u32 %v4007, 16
        %v4202 = vor.u32 %v4199, %v4200
        %v4203 = vsel %vm379, %v4195, %v4202
        %v4204 = vrot.slane %v4199, 4
        %v4206 = vshrl.u32 %v4008, 16
        %v4208 = vrot.slane %v4206, 7
        %v4209 = vshll.u32 %v4008, 16
        %v4211 = vor.u32 %v4208, %v4209
        %v4212 = vrot.slane %v4208, 4
        %v4214 = vshrl.u32 %v4009, 16
        %v4216 = vrot.slane %v4214, 7
        %v4217 = vshll.u32 %v4009, 16
        %v4219 = vor.u32 %v4216, %v4217
        %v4220 = vsel %vm379, %v4212, %v4219
        %v4221 = vrot.slane %v4216, 4
        %v4223 = vshrl.u32 %v4010, 16
        %v4225 = vrot.slane %v4223, 7
        %v4226 = vshll.u32 %v4010, 16
        %v4228 = vor.u32 %v4225, %v4226
        %v4229 = vrot.slane %v4225, 4
        %v4231 = vshrl.u32 %v4011, 16
        %v4233 = vrot.slane %v4231, 7
        %v4234 = vshll.u32 %v4011, 16
        %v4236 = vor.u32 %v4233, %v4234
        %v4237 = vsel %vm379, %v4229, %v4236
        %v4238 = vrot.slane %v4233, 4
        %v4240 = vshrl.u32 %v4012, 16
        %v4242 = vrot.slane %v4240, 7
        %v4243 = vshll.u32 %v4012, 16
        %v4245 = vor.u32 %v4242, %v4243
        %v4246 = vrot.slane %v4242, 4
        %v4248 = vshrl.u32 %v4013, 16
        %v4250 = vrot.slane %v4248, 7
        %v4251 = vshll.u32 %v4013, 16
        %v4253 = vor.u32 %v4250, %v4251
        %v4254 = vsel %vm379, %v4246, %v4253
        %v4255 = vrot.slane %v4250, 4
        %v4257 = vshrl.u32 %v4014, 16
        %v4259 = vrot.slane %v4257, 7
        %v4260 = vshll.u32 %v4014, 16
        %v4262 = vor.u32 %v4259, %v4260
        %v4263 = vrot.slane %v4259, 4
        %v4265 = vshrl.u32 %v4015, 16
        %v4267 = vrot.slane %v4265, 7
        %v4268 = vshll.u32 %v4015, 16
        %v4270 = vor.u32 %v4267, %v4268
        %v4271 = vsel %vm379, %v4263, %v4270
        %v4272 = vrot.slane %v4267, 4
        %v4274 = vshrl.u32 %v4016, 16
        %v4276 = vrot.slane %v4274, 7
        %v4277 = vshll.u32 %v4016, 16
        %v4279 = vor.u32 %v4276, %v4277
        %v4280 = vrot.slane %v4276, 4
        %v4282 = vshrl.u32 %v4017, 16
        %v4284 = vrot.slane %v4282, 7
        %v4285 = vshll.u32 %v4017, 16
        %v4287 = vor.u32 %v4284, %v4285
        %v4288 = vsel %vm379, %v4280, %v4287
        %v4289 = vrot.slane %v4284, 4
        %s4338 = scalar_lea.vmem [#allocation4], 12
        %vm4339 = vcmask 257024
        %vm4340 = vmand %vm4339, %vm290
        %v4341 = vld [vmem:[%s4338] sm:$0xf]
        %v4342 = vsel %vm4340, %v4024, %v4341
        %4343 = vst [vmem:[%s4338] sm:$0xf] %v4342
        %4344 = vst.msk [vmem:[%s4338 + $0x4] sm:$0xf] %vm3802, %v4033
        %v4345 = vld [vmem:[%s4338 + $0x8] sm:$0x1]
        %v4346 = vsel %vm3812, %v4034, %v4345
        %4347 = vst [vmem:[%s4338 + $0x8] sm:$0x1] %v4346
        %v4348 = vld [vmem:[%s4338 + $0xc] sm:$0xf]
        %v4349 = vsel %vm4340, %v4041, %v4348
        %4350 = vst [vmem:[%s4338 + $0xc] sm:$0xf] %v4349
        %4351 = vst.msk [vmem:[%s4338 + $0x10] sm:$0xf] %vm3802, %v4050
        %v4352 = vld [vmem:[%s4338 + $0x14] sm:$0x1]
        %v4353 = vsel %vm3812, %v4051, %v4352
        %4354 = vst [vmem:[%s4338 + $0x14] sm:$0x1] %v4353
        %v4355 = vld [vmem:[%s4338 + $0x18] sm:$0xf]
        %v4356 = vsel %vm4340, %v4058, %v4355
        %4357 = vst [vmem:[%s4338 + $0x18] sm:$0xf] %v4356
        %4358 = vst.msk [vmem:[%s4338 + $0x1c] sm:$0xf] %vm3802, %v4067
        %v4359 = vld [vmem:[%s4338 + $0x20] sm:$0x1]
        %v4360 = vsel %vm3812, %v4068, %v4359
        %4361 = vst [vmem:[%s4338 + $0x20] sm:$0x1] %v4360
        %v4362 = vld [vmem:[%s4338 + $0x24] sm:$0xf]
        %v4363 = vsel %vm4340, %v4075, %v4362
        %4364 = vst [vmem:[%s4338 + $0x24] sm:$0xf] %v4363
        %4365 = vst.msk [vmem:[%s4338 + $0x28] sm:$0xf] %vm3802, %v4084
        %v4366 = vld [vmem:[%s4338 + $0x2c] sm:$0x1]
        %v4367 = vsel %vm3812, %v4085, %v4366
        %4368 = vst [vmem:[%s4338 + $0x2c] sm:$0x1] %v4367
        %v4369 = vld [vmem:[%s4338 + $0x30] sm:$0xf]
        %v4370 = vsel %vm4340, %v4092, %v4369
        %4371 = vst [vmem:[%s4338 + $0x30] sm:$0xf] %v4370
        %4372 = vst.msk [vmem:[%s4338 + $0x34] sm:$0xf] %vm3802, %v4101
        %v4373 = vld [vmem:[%s4338 + $0x38] sm:$0x1]
        %v4374 = vsel %vm3812, %v4102, %v4373
        %4375 = vst [vmem:[%s4338 + $0x38] sm:$0x1] %v4374
        %v4376 = vld [vmem:[%s4338 + $0x3c] sm:$0xf]
        %v4377 = vsel %vm4340, %v4109, %v4376
        %4378 = vst [vmem:[%s4338 + $0x3c] sm:$0xf] %v4377
        %4379 = vst.msk [vmem:[%s4338 + $0x40] sm:$0xf] %vm3802, %v4118
        %v4380 = vld [vmem:[%s4338 + $0x44] sm:$0x1]
        %v4381 = vsel %vm3812, %v4119, %v4380
        %4382 = vst [vmem:[%s4338 + $0x44] sm:$0x1] %v4381
        %v4383 = vld [vmem:[%s4338 + $0x48] sm:$0xf]
        %v4384 = vsel %vm4340, %v4126, %v4383
        %4385 = vst [vmem:[%s4338 + $0x48] sm:$0xf] %v4384
        %4386 = vst.msk [vmem:[%s4338 + $0x4c] sm:$0xf] %vm3802, %v4135
        %v4387 = vld [vmem:[%s4338 + $0x50] sm:$0x1]
        %v4388 = vsel %vm3812, %v4136, %v4387
        %4389 = vst [vmem:[%s4338 + $0x50] sm:$0x1] %v4388
        %v4390 = vld [vmem:[%s4338 + $0x54] sm:$0xf]
        %v4391 = vsel %vm4340, %v4143, %v4390
        %4392 = vst [vmem:[%s4338 + $0x54] sm:$0xf] %v4391
        %4393 = vst.msk [vmem:[%s4338 + $0x58] sm:$0xf] %vm3802, %v4152
        %v4394 = vld [vmem:[%s4338 + $0x5c] sm:$0x1]
        %v4395 = vsel %vm3812, %v4153, %v4394
        %4396 = vst [vmem:[%s4338 + $0x5c] sm:$0x1] %v4395
        %v4397 = vld [vmem:[%s4338 + $0x60] sm:$0xf]
        %v4398 = vsel %vm4340, %v4160, %v4397
        %4399 = vst [vmem:[%s4338 + $0x60] sm:$0xf] %v4398
        %4400 = vst.msk [vmem:[%s4338 + $0x64] sm:$0xf] %vm3802, %v4169
        %v4401 = vld [vmem:[%s4338 + $0x68] sm:$0x1]
        %v4402 = vsel %vm3812, %v4170, %v4401
        %4403 = vst [vmem:[%s4338 + $0x68] sm:$0x1] %v4402
        %v4404 = vld [vmem:[%s4338 + $0x6c] sm:$0xf]
        %v4405 = vsel %vm4340, %v4177, %v4404
        %4406 = vst [vmem:[%s4338 + $0x6c] sm:$0xf] %v4405
        %4407 = vst.msk [vmem:[%s4338 + $0x70] sm:$0xf] %vm3802, %v4186
        %v4408 = vld [vmem:[%s4338 + $0x74] sm:$0x1]
        %v4409 = vsel %vm3812, %v4187, %v4408
        %4410 = vst [vmem:[%s4338 + $0x74] sm:$0x1] %v4409
        %v4411 = vld [vmem:[%s4338 + $0x78] sm:$0xf]
        %v4412 = vsel %vm4340, %v4194, %v4411
        %4413 = vst [vmem:[%s4338 + $0x78] sm:$0xf] %v4412
        %4414 = vst.msk [vmem:[%s4338 + $0x7c] sm:$0xf] %vm3802, %v4203
        %v4415 = vld [vmem:[%s4338 + $0x80] sm:$0x1]
        %v4416 = vsel %vm3812, %v4204, %v4415
        %4417 = vst [vmem:[%s4338 + $0x80] sm:$0x1] %v4416
        %v4418 = vld [vmem:[%s4338 + $0x84] sm:$0xf]
        %v4419 = vsel %vm4340, %v4211, %v4418
        %4420 = vst [vmem:[%s4338 + $0x84] sm:$0xf] %v4419
        %4421 = vst.msk [vmem:[%s4338 + $0x88] sm:$0xf] %vm3802, %v4220
        %v4422 = vld [vmem:[%s4338 + $0x8c] sm:$0x1]
        %v4423 = vsel %vm3812, %v4221, %v4422
        %4424 = vst [vmem:[%s4338 + $0x8c] sm:$0x1] %v4423
        %v4425 = vld [vmem:[%s4338 + $0x90] sm:$0xf]
        %v4426 = vsel %vm4340, %v4228, %v4425
        %4427 = vst [vmem:[%s4338 + $0x90] sm:$0xf] %v4426
        %4428 = vst.msk [vmem:[%s4338 + $0x94] sm:$0xf] %vm3802, %v4237
        %v4429 = vld [vmem:[%s4338 + $0x98] sm:$0x1]
        %v4430 = vsel %vm3812, %v4238, %v4429
        %4431 = vst [vmem:[%s4338 + $0x98] sm:$0x1] %v4430
        %v4432 = vld [vmem:[%s4338 + $0x9c] sm:$0xf]
        %v4433 = vsel %vm4340, %v4245, %v4432
        %4434 = vst [vmem:[%s4338 + $0x9c] sm:$0xf] %v4433
        %4435 = vst.msk [vmem:[%s4338 + $0xa0] sm:$0xf] %vm3802, %v4254
        %v4436 = vld [vmem:[%s4338 + $0xa4] sm:$0x1]
        %v4437 = vsel %vm3812, %v4255, %v4436
        %4438 = vst [vmem:[%s4338 + $0xa4] sm:$0x1] %v4437
        %v4439 = vld [vmem:[%s4338 + $0xa8] sm:$0xf]
        %v4440 = vsel %vm4340, %v4262, %v4439
        %4441 = vst [vmem:[%s4338 + $0xa8] sm:$0xf] %v4440
        %4442 = vst.msk [vmem:[%s4338 + $0xac] sm:$0xf] %vm3802, %v4271
        %v4443 = vld [vmem:[%s4338 + $0xb0] sm:$0x1]
        %v4444 = vsel %vm3812, %v4272, %v4443
        %4445 = vst [vmem:[%s4338 + $0xb0] sm:$0x1] %v4444
        %v4446 = vld [vmem:[%s4338 + $0xb4] sm:$0xf]
        %v4447 = vsel %vm4340, %v4279, %v4446
        %4448 = vst [vmem:[%s4338 + $0xb4] sm:$0xf] %v4447
        %4449 = vst.msk [vmem:[%s4338 + $0xb8] sm:$0xf] %vm3802, %v4288
        %v4450 = vld [vmem:[%s4338 + $0xbc] sm:$0x1]
        %v4451 = vsel %vm3812, %v4289, %v4450
        %4452 = vst [vmem:[%s4338 + $0xbc] sm:$0x1] %v4451
        %v4453 = vld [vmem:[#allocation4] sm:$0xf]
        %v4454 = vld [vmem:[#allocation4 + $0x4] sm:$0xf]
        %v4455 = vld [vmem:[#allocation4 + $0xc] sm:$0xf]
        %v4456 = vld [vmem:[#allocation4 + $0x10] sm:$0xf]
        %v4457 = vld [vmem:[#allocation4 + $0x18] sm:$0xf]
        %v4458 = vld [vmem:[#allocation4 + $0x1c] sm:$0xf]
        %v4459 = vld [vmem:[#allocation4 + $0x24] sm:$0xf]
        %v4460 = vld [vmem:[#allocation4 + $0x28] sm:$0xf]
        %v4461 = vld [vmem:[#allocation4 + $0x30] sm:$0xf]
        %v4462 = vld [vmem:[#allocation4 + $0x34] sm:$0xf]
        %v4463 = vld [vmem:[#allocation4 + $0x3c] sm:$0xf]
        %v4464 = vld [vmem:[#allocation4 + $0x40] sm:$0xf]
        %v4465 = vld [vmem:[#allocation4 + $0x48] sm:$0xf]
        %v4466 = vld [vmem:[#allocation4 + $0x4c] sm:$0xf]
        %v4467 = vld [vmem:[#allocation4 + $0x54] sm:$0xf]
        %v4468 = vld [vmem:[#allocation4 + $0x58] sm:$0xf]
        %v4469 = vld [vmem:[#allocation4 + $0x60] sm:$0xf]
        %v4470 = vld [vmem:[#allocation4 + $0x64] sm:$0xf]
        %v4471 = vld [vmem:[#allocation4 + $0x6c] sm:$0xf]
        %v4472 = vld [vmem:[#allocation4 + $0x70] sm:$0xf]
        %v4473 = vld [vmem:[#allocation4 + $0x78] sm:$0xf]
        %v4474 = vld [vmem:[#allocation4 + $0x7c] sm:$0xf]
        %v4475 = vld [vmem:[#allocation4 + $0x84] sm:$0xf]
        %v4476 = vld [vmem:[#allocation4 + $0x88] sm:$0xf]
        %v4477 = vld [vmem:[#allocation4 + $0x90] sm:$0xf]
        %v4478 = vld [vmem:[#allocation4 + $0x94] sm:$0xf]
        %v4479 = vld [vmem:[#allocation4 + $0x9c] sm:$0xf]
        %v4480 = vld [vmem:[#allocation4 + $0xa0] sm:$0xf]
        %v4481 = vld [vmem:[#allocation4 + $0xa8] sm:$0xf]
        %v4482 = vld [vmem:[#allocation4 + $0xac] sm:$0xf]
        %v4483 = vld [vmem:[#allocation4 + $0xb4] sm:$0xf]
        %v4484 = vld [vmem:[#allocation4 + $0xb8] sm:$0xf]
        %v4517 = vunpack.c.l.b16 %v4453
        %v4518 = vunpack.c.l.b16 %v4454
        %v4519 = vunpack.c.l.b16 %v4455
        %v4520 = vunpack.c.l.b16 %v4456
        %v4521 = vunpack.c.l.b16 %v4457
        %v4522 = vunpack.c.l.b16 %v4458
        %v4523 = vunpack.c.l.b16 %v4459
        %v4524 = vunpack.c.l.b16 %v4460
        %v4525 = vunpack.c.l.b16 %v4461
        %v4526 = vunpack.c.l.b16 %v4462
        %v4527 = vunpack.c.l.b16 %v4463
        %v4528 = vunpack.c.l.b16 %v4464
        %v4529 = vunpack.c.l.b16 %v4465
        %v4530 = vunpack.c.l.b16 %v4466
        %v4531 = vunpack.c.l.b16 %v4467
        %v4532 = vunpack.c.l.b16 %v4468
        %v4533 = vunpack.c.l.b16 %v4469
        %v4534 = vunpack.c.l.b16 %v4470
        %v4535 = vunpack.c.l.b16 %v4471
        %v4536 = vunpack.c.l.b16 %v4472
        %v4537 = vunpack.c.l.b16 %v4473
        %v4538 = vunpack.c.l.b16 %v4474
        %v4539 = vunpack.c.l.b16 %v4475
        %v4540 = vunpack.c.l.b16 %v4476
        %v4541 = vunpack.c.l.b16 %v4477
        %v4542 = vunpack.c.l.b16 %v4478
        %v4543 = vunpack.c.l.b16 %v4479
        %v4544 = vunpack.c.l.b16 %v4480
        %v4545 = vunpack.c.l.b16 %v4481
        %v4546 = vunpack.c.l.b16 %v4482
        %v4547 = vunpack.c.l.b16 %v4483
        %v4548 = vunpack.c.l.b16 %v4484
        %v4549 = vpack.c.b16 %v4518, %v4517
        %v4550 = vpack.c.b16 %v4520, %v4519
        %v4551 = vpack.c.b16 %v4522, %v4521
        %v4552 = vpack.c.b16 %v4524, %v4523
        %v4553 = vpack.c.b16 %v4526, %v4525
        %v4554 = vpack.c.b16 %v4528, %v4527
        %v4555 = vpack.c.b16 %v4530, %v4529
        %v4556 = vpack.c.b16 %v4532, %v4531
        %v4557 = vpack.c.b16 %v4534, %v4533
        %v4558 = vpack.c.b16 %v4536, %v4535
        %v4559 = vpack.c.b16 %v4538, %v4537
        %v4560 = vpack.c.b16 %v4540, %v4539
        %v4561 = vpack.c.b16 %v4542, %v4541
        %v4562 = vpack.c.b16 %v4544, %v4543
        %v4563 = vpack.c.b16 %v4546, %v4545
        %v4564 = vpack.c.b16 %v4548, %v4547
        %vm4581 = vcmask 261120
        %4582 = vst.msk [vmem:[#allocation5] sm:$0xff] %vm4581, %v4549
        %4583 = vst.msk [vmem:[#allocation5 + $0x18] sm:$0xff] %vm4581, %v4550
        %4584 = vst.msk [vmem:[#allocation5 + $0x30] sm:$0xff] %vm4581, %v4551
        %4585 = vst.msk [vmem:[#allocation5 + $0x48] sm:$0xff] %vm4581, %v4552
        %4586 = vst.msk [vmem:[#allocation5 + $0x60] sm:$0xff] %vm4581, %v4553
        %4587 = vst.msk [vmem:[#allocation5 + $0x78] sm:$0xff] %vm4581, %v4554
        %4588 = vst.msk [vmem:[#allocation5 + $0x90] sm:$0xff] %vm4581, %v4555
        %4589 = vst.msk [vmem:[#allocation5 + $0xa8] sm:$0xff] %vm4581, %v4556
        %4590 = vst.msk [vmem:[#allocation5 + $0xc0] sm:$0xff] %vm4581, %v4557
        %4591 = vst.msk [vmem:[#allocation5 + $0xd8] sm:$0xff] %vm4581, %v4558
        %4592 = vst.msk [vmem:[#allocation5 + $0xf0] sm:$0xff] %vm4581, %v4559
        %4593 = vst.msk [vmem:[#allocation5 + $0x108] sm:$0xff] %vm4581, %v4560
        %4594 = vst.msk [vmem:[#allocation5 + $0x120] sm:$0xff] %vm4581, %v4561
        %4595 = vst.msk [vmem:[#allocation5 + $0x138] sm:$0xff] %vm4581, %v4562
        %4596 = vst.msk [vmem:[#allocation5 + $0x150] sm:$0xff] %vm4581, %v4563
        %4597 = vst.msk [vmem:[#allocation5 + $0x168] sm:$0xff] %vm4581, %v4564
        %v4598 = vld [vmem:[#allocation4] sm:$0xf]
        %v4599 = vld [vmem:[#allocation4 + $0x4] sm:$0xf]
        %v4600 = vld [vmem:[#allocation4 + $0x8] sm:$0x1]
        %v4601 = vld [vmem:[#allocation4 + $0xc] sm:$0xf]
        %v4602 = vld [vmem:[#allocation4 + $0x10] sm:$0xf]
        %v4603 = vld [vmem:[#allocation4 + $0x14] sm:$0x1]
        %v4604 = vld [vmem:[#allocation4 + $0x18] sm:$0xf]
        %v4605 = vld [vmem:[#allocation4 + $0x1c] sm:$0xf]
        %v4606 = vld [vmem:[#allocation4 + $0x20] sm:$0x1]
        %v4607 = vld [vmem:[#allocation4 + $0x24] sm:$0xf]
        %v4608 = vld [vmem:[#allocation4 + $0x28] sm:$0xf]
        %v4609 = vld [vmem:[#allocation4 + $0x2c] sm:$0x1]
        %v4610 = vld [vmem:[#allocation4 + $0x30] sm:$0xf]
        %v4611 = vld [vmem:[#allocation4 + $0x34] sm:$0xf]
        %v4612 = vld [vmem:[#allocation4 + $0x38] sm:$0x1]
        %v4613 = vld [vmem:[#allocation4 + $0x3c] sm:$0xf]
        %v4614 = vld [vmem:[#allocation4 + $0x40] sm:$0xf]
        %v4615 = vld [vmem:[#allocation4 + $0x44] sm:$0x1]
        %v4616 = vld [vmem:[#allocation4 + $0x48] sm:$0xf]
        %v4617 = vld [vmem:[#allocation4 + $0x4c] sm:$0xf]
        %v4618 = vld [vmem:[#allocation4 + $0x50] sm:$0x1]
        %v4619 = vld [vmem:[#allocation4 + $0x54] sm:$0xf]
        %v4620 = vld [vmem:[#allocation4 + $0x58] sm:$0xf]
        %v4621 = vld [vmem:[#allocation4 + $0x5c] sm:$0x1]
        %v4622 = vld [vmem:[#allocation4 + $0x60] sm:$0xf]
        %v4623 = vld [vmem:[#allocation4 + $0x64] sm:$0xf]
        %v4624 = vld [vmem:[#allocation4 + $0x68] sm:$0x1]
        %v4625 = vld [vmem:[#allocation4 + $0x6c] sm:$0xf]
        %v4626 = vld [vmem:[#allocation4 + $0x70] sm:$0xf]
        %v4627 = vld [vmem:[#allocation4 + $0x74] sm:$0x1]
        %v4628 = vld [vmem:[#allocation4 + $0x78] sm:$0xf]
        %v4629 = vld [vmem:[#allocation4 + $0x7c] sm:$0xf]
        %v4630 = vld [vmem:[#allocation4 + $0x80] sm:$0x1]
        %v4631 = vld [vmem:[#allocation4 + $0x84] sm:$0xf]
        %v4632 = vld [vmem:[#allocation4 + $0x88] sm:$0xf]
        %v4633 = vld [vmem:[#allocation4 + $0x8c] sm:$0x1]
        %v4634 = vld [vmem:[#allocation4 + $0x90] sm:$0xf]
        %v4635 = vld [vmem:[#allocation4 + $0x94] sm:$0xf]
        %v4636 = vld [vmem:[#allocation4 + $0x98] sm:$0x1]
        %v4637 = vld [vmem:[#allocation4 + $0x9c] sm:$0xf]
        %v4638 = vld [vmem:[#allocation4 + $0xa0] sm:$0xf]
        %v4639 = vld [vmem:[#allocation4 + $0xa4] sm:$0x1]
        %v4640 = vld [vmem:[#allocation4 + $0xa8] sm:$0xf]
        %v4641 = vld [vmem:[#allocation4 + $0xac] sm:$0xf]
        %v4642 = vld [vmem:[#allocation4 + $0xb0] sm:$0x1]
        %v4643 = vld [vmem:[#allocation4 + $0xb4] sm:$0xf]
        %v4644 = vld [vmem:[#allocation4 + $0xb8] sm:$0xf]
        %v4645 = vld [vmem:[#allocation4 + $0xbc] sm:$0x1]
        %v4694 = vunpack.c.l.b16 %v4598
        %v4695 = vunpack.c.l.b16 %v4599
        %v4696 = vunpack.c.l.b16 %v4600
        %v4697 = vunpack.c.l.b16 %v4601
        %v4698 = vunpack.c.l.b16 %v4602
        %v4699 = vunpack.c.l.b16 %v4603
        %v4700 = vunpack.c.l.b16 %v4604
        %v4701 = vunpack.c.l.b16 %v4605
        %v4702 = vunpack.c.l.b16 %v4606
        %v4703 = vunpack.c.l.b16 %v4607
        %v4704 = vunpack.c.l.b16 %v4608
        %v4705 = vunpack.c.l.b16 %v4609
        %v4706 = vunpack.c.l.b16 %v4610
        %v4707 = vunpack.c.l.b16 %v4611
        %v4708 = vunpack.c.l.b16 %v4612
        %v4709 = vunpack.c.l.b16 %v4613
        %v4710 = vunpack.c.l.b16 %v4614
        %v4711 = vunpack.c.l.b16 %v4615
        %v4712 = vunpack.c.l.b16 %v4616
        %v4713 = vunpack.c.l.b16 %v4617
        %v4714 = vunpack.c.l.b16 %v4618
        %v4715 = vunpack.c.l.b16 %v4619
        %v4716 = vunpack.c.l.b16 %v4620
        %v4717 = vunpack.c.l.b16 %v4621
        %v4718 = vunpack.c.l.b16 %v4622
        %v4719 = vunpack.c.l.b16 %v4623
        %v4720 = vunpack.c.l.b16 %v4624
        %v4721 = vunpack.c.l.b16 %v4625
        %v4722 = vunpack.c.l.b16 %v4626
        %v4723 = vunpack.c.l.b16 %v4627
        %v4724 = vunpack.c.l.b16 %v4628
        %v4725 = vunpack.c.l.b16 %v4629
        %v4726 = vunpack.c.l.b16 %v4630
        %v4727 = vunpack.c.l.b16 %v4631
        %v4728 = vunpack.c.l.b16 %v4632
        %v4729 = vunpack.c.l.b16 %v4633
        %v4730 = vunpack.c.l.b16 %v4634
        %v4731 = vunpack.c.l.b16 %v4635
        %v4732 = vunpack.c.l.b16 %v4636
        %v4733 = vunpack.c.l.b16 %v4637
        %v4734 = vunpack.c.l.b16 %v4638
        %v4735 = vunpack.c.l.b16 %v4639
        %v4736 = vunpack.c.l.b16 %v4640
        %v4737 = vunpack.c.l.b16 %v4641
        %v4738 = vunpack.c.l.b16 %v4642
        %v4739 = vunpack.c.l.b16 %v4643
        %v4740 = vunpack.c.l.b16 %v4644
        %v4741 = vunpack.c.l.b16 %v4645
        %v4742 = vpack.c.b16 %v4695, %v4694
        %v4743 = vpack.c.b16 %v4696, %v4696
        %v4744 = vpack.c.b16 %v4698, %v4697
        %v4745 = vpack.c.b16 %v4699, %v4699
        %v4746 = vpack.c.b16 %v4701, %v4700
        %v4747 = vpack.c.b16 %v4702, %v4702
        %v4748 = vpack.c.b16 %v4704, %v4703
        %v4749 = vpack.c.b16 %v4705, %v4705
        %v4750 = vpack.c.b16 %v4707, %v4706
        %v4751 = vpack.c.b16 %v4708, %v4708
        %v4752 = vpack.c.b16 %v4710, %v4709
        %v4753 = vpack.c.b16 %v4711, %v4711
        %v4754 = vpack.c.b16 %v4713, %v4712
        %v4755 = vpack.c.b16 %v4714, %v4714
        %v4756 = vpack.c.b16 %v4716, %v4715
        %v4757 = vpack.c.b16 %v4717, %v4717
        %v4758 = vpack.c.b16 %v4719, %v4718
        %v4759 = vpack.c.b16 %v4720, %v4720
        %v4760 = vpack.c.b16 %v4722, %v4721
        %v4761 = vpack.c.b16 %v4723, %v4723
        %v4762 = vpack.c.b16 %v4725, %v4724
        %v4763 = vpack.c.b16 %v4726, %v4726
        %v4764 = vpack.c.b16 %v4728, %v4727
        %v4765 = vpack.c.b16 %v4729, %v4729
        %v4766 = vpack.c.b16 %v4731, %v4730
        %v4767 = vpack.c.b16 %v4732, %v4732
        %v4768 = vpack.c.b16 %v4734, %v4733
        %v4769 = vpack.c.b16 %v4735, %v4735
        %v4770 = vpack.c.b16 %v4737, %v4736
        %v4771 = vpack.c.b16 %v4738, %v4738
        %v4772 = vpack.c.b16 %v4740, %v4739
        %v4773 = vpack.c.b16 %v4741, %v4741
        %v4775 = vshrl.u32 %v4742, 16
        %v4777 = vshll.u32 %v4742, 16
        %v4779 = vrot.slane %v4777, 1
        %v4780 = vor.u32 %v4775, %v4779
        %v4782 = vshll.u32 %v4743, 16
        %v4784 = vrot.slane %v4782, 1
        %v4785 = vsel %vm1136, %v4780, %v4784
        %v4787 = vshrl.u32 %v4744, 16
        %v4789 = vshll.u32 %v4744, 16
        %v4791 = vrot.slane %v4789, 1
        %v4792 = vor.u32 %v4787, %v4791
        %v4794 = vshll.u32 %v4745, 16
        %v4796 = vrot.slane %v4794, 1
        %v4797 = vsel %vm1136, %v4792, %v4796
        %v4799 = vshrl.u32 %v4746, 16
        %v4801 = vshll.u32 %v4746, 16
        %v4803 = vrot.slane %v4801, 1
        %v4804 = vor.u32 %v4799, %v4803
        %v4806 = vshll.u32 %v4747, 16
        %v4808 = vrot.slane %v4806, 1
        %v4809 = vsel %vm1136, %v4804, %v4808
        %v4811 = vshrl.u32 %v4748, 16
        %v4813 = vshll.u32 %v4748, 16
        %v4815 = vrot.slane %v4813, 1
        %v4816 = vor.u32 %v4811, %v4815
        %v4818 = vshll.u32 %v4749, 16
        %v4820 = vrot.slane %v4818, 1
        %v4821 = vsel %vm1136, %v4816, %v4820
        %v4823 = vshrl.u32 %v4750, 16
        %v4825 = vshll.u32 %v4750, 16
        %v4827 = vrot.slane %v4825, 1
        %v4828 = vor.u32 %v4823, %v4827
        %v4830 = vshll.u32 %v4751, 16
        %v4832 = vrot.slane %v4830, 1
        %v4833 = vsel %vm1136, %v4828, %v4832
        %v4835 = vshrl.u32 %v4752, 16
        %v4837 = vshll.u32 %v4752, 16
        %v4839 = vrot.slane %v4837, 1
        %v4840 = vor.u32 %v4835, %v4839
        %v4842 = vshll.u32 %v4753, 16
        %v4844 = vrot.slane %v4842, 1
        %v4845 = vsel %vm1136, %v4840, %v4844
        %v4847 = vshrl.u32 %v4754, 16
        %v4849 = vshll.u32 %v4754, 16
        %v4851 = vrot.slane %v4849, 1
        %v4852 = vor.u32 %v4847, %v4851
        %v4854 = vshll.u32 %v4755, 16
        %v4856 = vrot.slane %v4854, 1
        %v4857 = vsel %vm1136, %v4852, %v4856
        %v4859 = vshrl.u32 %v4756, 16
        %v4861 = vshll.u32 %v4756, 16
        %v4863 = vrot.slane %v4861, 1
        %v4864 = vor.u32 %v4859, %v4863
        %v4866 = vshll.u32 %v4757, 16
        %v4868 = vrot.slane %v4866, 1
        %v4869 = vsel %vm1136, %v4864, %v4868
        %v4871 = vshrl.u32 %v4758, 16
        %v4873 = vshll.u32 %v4758, 16
        %v4875 = vrot.slane %v4873, 1
        %v4876 = vor.u32 %v4871, %v4875
        %v4878 = vshll.u32 %v4759, 16
        %v4880 = vrot.slane %v4878, 1
        %v4881 = vsel %vm1136, %v4876, %v4880
        %v4883 = vshrl.u32 %v4760, 16
        %v4885 = vshll.u32 %v4760, 16
        %v4887 = vrot.slane %v4885, 1
        %v4888 = vor.u32 %v4883, %v4887
        %v4890 = vshll.u32 %v4761, 16
        %v4892 = vrot.slane %v4890, 1
        %v4893 = vsel %vm1136, %v4888, %v4892
        %v4895 = vshrl.u32 %v4762, 16
        %v4897 = vshll.u32 %v4762, 16
        %v4899 = vrot.slane %v4897, 1
        %v4900 = vor.u32 %v4895, %v4899
        %v4902 = vshll.u32 %v4763, 16
        %v4904 = vrot.slane %v4902, 1
        %v4905 = vsel %vm1136, %v4900, %v4904
        %v4907 = vshrl.u32 %v4764, 16
        %v4909 = vshll.u32 %v4764, 16
        %v4911 = vrot.slane %v4909, 1
        %v4912 = vor.u32 %v4907, %v4911
        %v4914 = vshll.u32 %v4765, 16
        %v4916 = vrot.slane %v4914, 1
        %v4917 = vsel %vm1136, %v4912, %v4916
        %v4919 = vshrl.u32 %v4766, 16
        %v4921 = vshll.u32 %v4766, 16
        %v4923 = vrot.slane %v4921, 1
        %v4924 = vor.u32 %v4919, %v4923
        %v4926 = vshll.u32 %v4767, 16
        %v4928 = vrot.slane %v4926, 1
        %v4929 = vsel %vm1136, %v4924, %v4928
        %v4931 = vshrl.u32 %v4768, 16
        %v4933 = vshll.u32 %v4768, 16
        %v4935 = vrot.slane %v4933, 1
        %v4936 = vor.u32 %v4931, %v4935
        %v4938 = vshll.u32 %v4769, 16
        %v4940 = vrot.slane %v4938, 1
        %v4941 = vsel %vm1136, %v4936, %v4940
        %v4943 = vshrl.u32 %v4770, 16
        %v4945 = vshll.u32 %v4770, 16
        %v4947 = vrot.slane %v4945, 1
        %v4948 = vor.u32 %v4943, %v4947
        %v4950 = vshll.u32 %v4771, 16
        %v4952 = vrot.slane %v4950, 1
        %v4953 = vsel %vm1136, %v4948, %v4952
        %v4955 = vshrl.u32 %v4772, 16
        %v4957 = vshll.u32 %v4772, 16
        %v4959 = vrot.slane %v4957, 1
        %v4960 = vor.u32 %v4955, %v4959
        %v4962 = vshll.u32 %v4773, 16
        %v4964 = vrot.slane %v4962, 1
        %v4965 = vsel %vm1136, %v4960, %v4964
        %4966 = vrot.lane.b32.xlu0 %v4785, 32
        %v4967 = vpop.permute.xlu0 %4966
        %4968 = vrot.lane.b32.xlu0 %v4797, 32
        %v4969 = vpop.permute.xlu0 %4968
        %4970 = vrot.lane.b32.xlu0 %v4809, 32
        %v4971 = vpop.permute.xlu0 %4970
        %4972 = vrot.lane.b32.xlu0 %v4821, 32
        %v4973 = vpop.permute.xlu0 %4972
        %4974 = vrot.lane.b32.xlu0 %v4833, 32
        %v4975 = vpop.permute.xlu0 %4974
        %4976 = vrot.lane.b32.xlu0 %v4845, 32
        %v4977 = vpop.permute.xlu0 %4976
        %4978 = vrot.lane.b32.xlu0 %v4857, 32
        %v4979 = vpop.permute.xlu0 %4978
        %4980 = vrot.lane.b32.xlu0 %v4869, 32
        %v4981 = vpop.permute.xlu0 %4980
        %4982 = vrot.lane.b32.xlu0 %v4881, 32
        %v4983 = vpop.permute.xlu0 %4982
        %4984 = vrot.lane.b32.xlu0 %v4893, 32
        %v4985 = vpop.permute.xlu0 %4984
        %4986 = vrot.lane.b32.xlu0 %v4905, 32
        %v4987 = vpop.permute.xlu0 %4986
        %4988 = vrot.lane.b32.xlu0 %v4917, 32
        %v4989 = vpop.permute.xlu0 %4988
        %4990 = vrot.lane.b32.xlu0 %v4929, 32
        %v4991 = vpop.permute.xlu0 %4990
        %4992 = vrot.lane.b32.xlu0 %v4941, 32
        %v4993 = vpop.permute.xlu0 %4992
        %4994 = vrot.lane.b32.xlu0 %v4953, 32
        %v4995 = vpop.permute.xlu0 %4994
        %4996 = vrot.lane.b32.xlu0 %v4965, 32
        %v4997 = vpop.permute.xlu0 %4996
        %vm5014 = vcmask 523520
        %5015 = vst.msk [vmem:[#allocation5] sm:$0xff] %vm5014, %v4967
        %5016 = vst.msk [vmem:[#allocation5 + $0x18] sm:$0xff] %vm5014, %v4969
        %5017 = vst.msk [vmem:[#allocation5 + $0x30] sm:$0xff] %vm5014, %v4971
        %5018 = vst.msk [vmem:[#allocation5 + $0x48] sm:$0xff] %vm5014, %v4973
        %5019 = vst.msk [vmem:[#allocation5 + $0x60] sm:$0xff] %vm5014, %v4975
        %5020 = vst.msk [vmem:[#allocation5 + $0x78] sm:$0xff] %vm5014, %v4977
        %5021 = vst.msk [vmem:[#allocation5 + $0x90] sm:$0xff] %vm5014, %v4979
        %5022 = vst.msk [vmem:[#allocation5 + $0xa8] sm:$0xff] %vm5014, %v4981
        %5023 = vst.msk [vmem:[#allocation5 + $0xc0] sm:$0xff] %vm5014, %v4983
        %5024 = vst.msk [vmem:[#allocation5 + $0xd8] sm:$0xff] %vm5014, %v4985
        %5025 = vst.msk [vmem:[#allocation5 + $0xf0] sm:$0xff] %vm5014, %v4987
        %5026 = vst.msk [vmem:[#allocation5 + $0x108] sm:$0xff] %vm5014, %v4989
        %5027 = vst.msk [vmem:[#allocation5 + $0x120] sm:$0xff] %vm5014, %v4991
        %5028 = vst.msk [vmem:[#allocation5 + $0x138] sm:$0xff] %vm5014, %v4993
        %5029 = vst.msk [vmem:[#allocation5 + $0x150] sm:$0xff] %vm5014, %v4995
        %5030 = vst.msk [vmem:[#allocation5 + $0x168] sm:$0xff] %vm5014, %v4997
        %v5031 = vld [vmem:[#allocation4] sm:$0xe]
        %v5032 = vld [vmem:[#allocation4 + $0x4] sm:$0xf]
        %v5033 = vld [vmem:[#allocation4 + $0x8] sm:$0x1]
        %v5034 = vld [vmem:[#allocation4 + $0xc] sm:$0xe]
        %v5035 = vld [vmem:[#allocation4 + $0x10] sm:$0xf]
        %v5036 = vld [vmem:[#allocation4 + $0x14] sm:$0x1]
        %v5037 = vld [vmem:[#allocation4 + $0x18] sm:$0xe]
        %v5038 = vld [vmem:[#allocation4 + $0x1c] sm:$0xf]
        %v5039 = vld [vmem:[#allocation4 + $0x20] sm:$0x1]
        %v5040 = vld [vmem:[#allocation4 + $0x24] sm:$0xe]
        %v5041 = vld [vmem:[#allocation4 + $0x28] sm:$0xf]
        %v5042 = vld [vmem:[#allocation4 + $0x2c] sm:$0x1]
        %v5043 = vld [vmem:[#allocation4 + $0x30] sm:$0xe]
        %v5044 = vld [vmem:[#allocation4 + $0x34] sm:$0xf]
        %v5045 = vld [vmem:[#allocation4 + $0x38] sm:$0x1]
        %v5046 = vld [vmem:[#allocation4 + $0x3c] sm:$0xe]
        %v5047 = vld [vmem:[#allocation4 + $0x40] sm:$0xf]
        %v5048 = vld [vmem:[#allocation4 + $0x44] sm:$0x1]
        %v5049 = vld [vmem:[#allocation4 + $0x48] sm:$0xe]
        %v5050 = vld [vmem:[#allocation4 + $0x4c] sm:$0xf]
        %v5051 = vld [vmem:[#allocation4 + $0x50] sm:$0x1]
        %v5052 = vld [vmem:[#allocation4 + $0x54] sm:$0xe]
        %v5053 = vld [vmem:[#allocation4 + $0x58] sm:$0xf]
        %v5054 = vld [vmem:[#allocation4 + $0x5c] sm:$0x1]
        %v5055 = vld [vmem:[#allocation4 + $0x60] sm:$0xe]
        %v5056 = vld [vmem:[#allocation4 + $0x64] sm:$0xf]
        %v5057 = vld [vmem:[#allocation4 + $0x68] sm:$0x1]
        %v5058 = vld [vmem:[#allocation4 + $0x6c] sm:$0xe]
        %v5059 = vld [vmem:[#allocation4 + $0x70] sm:$0xf]
        %v5060 = vld [vmem:[#allocation4 + $0x74] sm:$0x1]
        %v5061 = vld [vmem:[#allocation4 + $0x78] sm:$0xe]
        %v5062 = vld [vmem:[#allocation4 + $0x7c] sm:$0xf]
        %v5063 = vld [vmem:[#allocation4 + $0x80] sm:$0x1]
        %v5064 = vld [vmem:[#allocation4 + $0x84] sm:$0xe]
        %v5065 = vld [vmem:[#allocation4 + $0x88] sm:$0xf]
        %v5066 = vld [vmem:[#allocation4 + $0x8c] sm:$0x1]
        %v5067 = vld [vmem:[#allocation4 + $0x90] sm:$0xe]
        %v5068 = vld [vmem:[#allocation4 + $0x94] sm:$0xf]
        %v5069 = vld [vmem:[#allocation4 + $0x98] sm:$0x1]
        %v5070 = vld [vmem:[#allocation4 + $0x9c] sm:$0xe]
        %v5071 = vld [vmem:[#allocation4 + $0xa0] sm:$0xf]
        %v5072 = vld [vmem:[#allocation4 + $0xa4] sm:$0x1]
        %v5073 = vld [vmem:[#allocation4 + $0xa8] sm:$0xe]
        %v5074 = vld [vmem:[#allocation4 + $0xac] sm:$0xf]
        %v5075 = vld [vmem:[#allocation4 + $0xb0] sm:$0x1]
        %v5076 = vld [vmem:[#allocation4 + $0xb4] sm:$0xe]
        %v5077 = vld [vmem:[#allocation4 + $0xb8] sm:$0xf]
        %v5078 = vld [vmem:[#allocation4 + $0xbc] sm:$0x1]
        %v5127 = vunpack.c.l.b16 %v5031
        %v5128 = vunpack.c.l.b16 %v5032
        %v5129 = vunpack.c.l.b16 %v5033
        %v5130 = vunpack.c.l.b16 %v5034
        %v5131 = vunpack.c.l.b16 %v5035
        %v5132 = vunpack.c.l.b16 %v5036
        %v5133 = vunpack.c.l.b16 %v5037
        %v5134 = vunpack.c.l.b16 %v5038
        %v5135 = vunpack.c.l.b16 %v5039
        %v5136 = vunpack.c.l.b16 %v5040
        %v5137 = vunpack.c.l.b16 %v5041
        %v5138 = vunpack.c.l.b16 %v5042
        %v5139 = vunpack.c.l.b16 %v5043
        %v5140 = vunpack.c.l.b16 %v5044
        %v5141 = vunpack.c.l.b16 %v5045
        %v5142 = vunpack.c.l.b16 %v5046
        %v5143 = vunpack.c.l.b16 %v5047
        %v5144 = vunpack.c.l.b16 %v5048
        %v5145 = vunpack.c.l.b16 %v5049
        %v5146 = vunpack.c.l.b16 %v5050
        %v5147 = vunpack.c.l.b16 %v5051
        %v5148 = vunpack.c.l.b16 %v5052
        %v5149 = vunpack.c.l.b16 %v5053
        %v5150 = vunpack.c.l.b16 %v5054
        %v5151 = vunpack.c.l.b16 %v5055
        %v5152 = vunpack.c.l.b16 %v5056
        %v5153 = vunpack.c.l.b16 %v5057
        %v5154 = vunpack.c.l.b16 %v5058
        %v5155 = vunpack.c.l.b16 %v5059
        %v5156 = vunpack.c.l.b16 %v5060
        %v5157 = vunpack.c.l.b16 %v5061
        %v5158 = vunpack.c.l.b16 %v5062
        %v5159 = vunpack.c.l.b16 %v5063
        %v5160 = vunpack.c.l.b16 %v5064
        %v5161 = vunpack.c.l.b16 %v5065
        %v5162 = vunpack.c.l.b16 %v5066
        %v5163 = vunpack.c.l.b16 %v5067
        %v5164 = vunpack.c.l.b16 %v5068
        %v5165 = vunpack.c.l.b16 %v5069
        %v5166 = vunpack.c.l.b16 %v5070
        %v5167 = vunpack.c.l.b16 %v5071
        %v5168 = vunpack.c.l.b16 %v5072
        %v5169 = vunpack.c.l.b16 %v5073
        %v5170 = vunpack.c.l.b16 %v5074
        %v5171 = vunpack.c.l.b16 %v5075
        %v5172 = vunpack.c.l.b16 %v5076
        %v5173 = vunpack.c.l.b16 %v5077
        %v5174 = vunpack.c.l.b16 %v5078
        %v5175 = vpack.c.b16 %v5128, %v5127
        %v5176 = vpack.c.b16 %v5129, %v5129
        %v5177 = vpack.c.b16 %v5131, %v5130
        %v5178 = vpack.c.b16 %v5132, %v5132
        %v5179 = vpack.c.b16 %v5134, %v5133
        %v5180 = vpack.c.b16 %v5135, %v5135
        %v5181 = vpack.c.b16 %v5137, %v5136
        %v5182 = vpack.c.b16 %v5138, %v5138
        %v5183 = vpack.c.b16 %v5140, %v5139
        %v5184 = vpack.c.b16 %v5141, %v5141
        %v5185 = vpack.c.b16 %v5143, %v5142
        %v5186 = vpack.c.b16 %v5144, %v5144
        %v5187 = vpack.c.b16 %v5146, %v5145
        %v5188 = vpack.c.b16 %v5147, %v5147
        %v5189 = vpack.c.b16 %v5149, %v5148
        %v5190 = vpack.c.b16 %v5150, %v5150
        %v5191 = vpack.c.b16 %v5152, %v5151
        %v5192 = vpack.c.b16 %v5153, %v5153
        %v5193 = vpack.c.b16 %v5155, %v5154
        %v5194 = vpack.c.b16 %v5156, %v5156
        %v5195 = vpack.c.b16 %v5158, %v5157
        %v5196 = vpack.c.b16 %v5159, %v5159
        %v5197 = vpack.c.b16 %v5161, %v5160
        %v5198 = vpack.c.b16 %v5162, %v5162
        %v5199 = vpack.c.b16 %v5164, %v5163
        %v5200 = vpack.c.b16 %v5165, %v5165
        %v5201 = vpack.c.b16 %v5167, %v5166
        %v5202 = vpack.c.b16 %v5168, %v5168
        %v5203 = vpack.c.b16 %v5170, %v5169
        %v5204 = vpack.c.b16 %v5171, %v5171
        %v5205 = vpack.c.b16 %v5173, %v5172
        %v5206 = vpack.c.b16 %v5174, %v5174
        %v5207 = vrot.slane %v5175, 1
        %v5208 = vrot.slane %v5176, 1
        %v5209 = vsel %vm1570, %v5207, %v5208
        %v5210 = vrot.slane %v5177, 1
        %v5211 = vrot.slane %v5178, 1
        %v5212 = vsel %vm1570, %v5210, %v5211
        %v5213 = vrot.slane %v5179, 1
        %v5214 = vrot.slane %v5180, 1
        %v5215 = vsel %vm1570, %v5213, %v5214
        %v5216 = vrot.slane %v5181, 1
        %v5217 = vrot.slane %v5182, 1
        %v5218 = vsel %vm1570, %v5216, %v5217
        %v5219 = vrot.slane %v5183, 1
        %v5220 = vrot.slane %v5184, 1
        %v5221 = vsel %vm1570, %v5219, %v5220
        %v5222 = vrot.slane %v5185, 1
        %v5223 = vrot.slane %v5186, 1
        %v5224 = vsel %vm1570, %v5222, %v5223
        %v5225 = vrot.slane %v5187, 1
        %v5226 = vrot.slane %v5188, 1
        %v5227 = vsel %vm1570, %v5225, %v5226
        %v5228 = vrot.slane %v5189, 1
        %v5229 = vrot.slane %v5190, 1
        %v5230 = vsel %vm1570, %v5228, %v5229
        %v5231 = vrot.slane %v5191, 1
        %v5232 = vrot.slane %v5192, 1
        %v5233 = vsel %vm1570, %v5231, %v5232
        %v5234 = vrot.slane %v5193, 1
        %v5235 = vrot.slane %v5194, 1
        %v5236 = vsel %vm1570, %v5234, %v5235
        %v5237 = vrot.slane %v5195, 1
        %v5238 = vrot.slane %v5196, 1
        %v5239 = vsel %vm1570, %v5237, %v5238
        %v5240 = vrot.slane %v5197, 1
        %v5241 = vrot.slane %v5198, 1
        %v5242 = vsel %vm1570, %v5240, %v5241
        %v5243 = vrot.slane %v5199, 1
        %v5244 = vrot.slane %v5200, 1
        %v5245 = vsel %vm1570, %v5243, %v5244
        %v5246 = vrot.slane %v5201, 1
        %v5247 = vrot.slane %v5202, 1
        %v5248 = vsel %vm1570, %v5246, %v5247
        %v5249 = vrot.slane %v5203, 1
        %v5250 = vrot.slane %v5204, 1
        %v5251 = vsel %vm1570, %v5249, %v5250
        %v5252 = vrot.slane %v5205, 1
        %v5253 = vrot.slane %v5206, 1
        %v5254 = vsel %vm1570, %v5252, %v5253
        %5255 = vrot.lane.b32.xlu0 %v5209, 64
        %v5256 = vpop.permute.xlu0 %5255
        %5257 = vrot.lane.b32.xlu0 %v5212, 64
        %v5258 = vpop.permute.xlu0 %5257
        %5259 = vrot.lane.b32.xlu0 %v5215, 64
        %v5260 = vpop.permute.xlu0 %5259
        %5261 = vrot.lane.b32.xlu0 %v5218, 64
        %v5262 = vpop.permute.xlu0 %5261
        %5263 = vrot.lane.b32.xlu0 %v5221, 64
        %v5264 = vpop.permute.xlu0 %5263
        %5265 = vrot.lane.b32.xlu0 %v5224, 64
        %v5266 = vpop.permute.xlu0 %5265
        %5267 = vrot.lane.b32.xlu0 %v5227, 64
        %v5268 = vpop.permute.xlu0 %5267
        %5269 = vrot.lane.b32.xlu0 %v5230, 64
        %v5270 = vpop.permute.xlu0 %5269
        %5271 = vrot.lane.b32.xlu0 %v5233, 64
        %v5272 = vpop.permute.xlu0 %5271
        %5273 = vrot.lane.b32.xlu0 %v5236, 64
        %v5274 = vpop.permute.xlu0 %5273
        %5275 = vrot.lane.b32.xlu0 %v5239, 64
        %v5276 = vpop.permute.xlu0 %5275
        %5277 = vrot.lane.b32.xlu0 %v5242, 64
        %v5278 = vpop.permute.xlu0 %5277
        %5279 = vrot.lane.b32.xlu0 %v5245, 64
        %v5280 = vpop.permute.xlu0 %5279
        %5281 = vrot.lane.b32.xlu0 %v5248, 64
        %v5282 = vpop.permute.xlu0 %5281
        %5283 = vrot.lane.b32.xlu0 %v5251, 64
        %v5284 = vpop.permute.xlu0 %5283
        %5285 = vrot.lane.b32.xlu0 %v5254, 64
        %v5286 = vpop.permute.xlu0 %5285
        %vm5303 = vcmask 785920
        %5304 = vst.msk [vmem:[#allocation5] sm:$0xff] %vm5303, %v5256
        %5305 = vst.msk [vmem:[#allocation5 + $0x18] sm:$0xff] %vm5303, %v5258
        %5306 = vst.msk [vmem:[#allocation5 + $0x30] sm:$0xff] %vm5303, %v5260
        %5307 = vst.msk [vmem:[#allocation5 + $0x48] sm:$0xff] %vm5303, %v5262
        %5308 = vst.msk [vmem:[#allocation5 + $0x60] sm:$0xff] %vm5303, %v5264
        %5309 = vst.msk [vmem:[#allocation5 + $0x78] sm:$0xff] %vm5303, %v5266
        %5310 = vst.msk [vmem:[#allocation5 + $0x90] sm:$0xff] %vm5303, %v5268
        %5311 = vst.msk [vmem:[#allocation5 + $0xa8] sm:$0xff] %vm5303, %v5270
        %5312 = vst.msk [vmem:[#allocation5 + $0xc0] sm:$0xff] %vm5303, %v5272
        %5313 = vst.msk [vmem:[#allocation5 + $0xd8] sm:$0xff] %vm5303, %v5274
        %5314 = vst.msk [vmem:[#allocation5 + $0xf0] sm:$0xff] %vm5303, %v5276
        %5315 = vst.msk [vmem:[#allocation5 + $0x108] sm:$0xff] %vm5303, %v5278
        %5316 = vst.msk [vmem:[#allocation5 + $0x120] sm:$0xff] %vm5303, %v5280
        %5317 = vst.msk [vmem:[#allocation5 + $0x138] sm:$0xff] %vm5303, %v5282
        %5318 = vst.msk [vmem:[#allocation5 + $0x150] sm:$0xff] %vm5303, %v5284
        %5319 = vst.msk [vmem:[#allocation5 + $0x168] sm:$0xff] %vm5303, %v5286
        %v5320 = vld [vmem:[%s4338] sm:$0xf]
        %v5321 = vld [vmem:[%s4338 + $0x4] sm:$0xf]
        %v5322 = vld [vmem:[%s4338 + $0xc] sm:$0xf]
        %v5323 = vld [vmem:[%s4338 + $0x10] sm:$0xf]
        %v5324 = vld [vmem:[%s4338 + $0x18] sm:$0xf]
        %v5325 = vld [vmem:[%s4338 + $0x1c] sm:$0xf]
        %v5326 = vld [vmem:[%s4338 + $0x24] sm:$0xf]
        %v5327 = vld [vmem:[%s4338 + $0x28] sm:$0xf]
        %v5328 = vld [vmem:[%s4338 + $0x30] sm:$0xf]
        %v5329 = vld [vmem:[%s4338 + $0x34] sm:$0xf]
        %v5330 = vld [vmem:[%s4338 + $0x3c] sm:$0xf]
        %v5331 = vld [vmem:[%s4338 + $0x40] sm:$0xf]
        %v5332 = vld [vmem:[%s4338 + $0x48] sm:$0xf]
        %v5333 = vld [vmem:[%s4338 + $0x4c] sm:$0xf]
        %v5334 = vld [vmem:[%s4338 + $0x54] sm:$0xf]
        %v5335 = vld [vmem:[%s4338 + $0x58] sm:$0xf]
        %v5336 = vld [vmem:[%s4338 + $0x60] sm:$0xf]
        %v5337 = vld [vmem:[%s4338 + $0x64] sm:$0xf]
        %v5338 = vld [vmem:[%s4338 + $0x6c] sm:$0xf]
        %v5339 = vld [vmem:[%s4338 + $0x70] sm:$0xf]
        %v5340 = vld [vmem:[%s4338 + $0x78] sm:$0xf]
        %v5341 = vld [vmem:[%s4338 + $0x7c] sm:$0xf]
        %v5342 = vld [vmem:[%s4338 + $0x84] sm:$0xf]
        %v5343 = vld [vmem:[%s4338 + $0x88] sm:$0xf]
        %v5344 = vld [vmem:[%s4338 + $0x90] sm:$0xf]
        %v5345 = vld [vmem:[%s4338 + $0x94] sm:$0xf]
        %v5346 = vld [vmem:[%s4338 + $0x9c] sm:$0xf]
        %v5347 = vld [vmem:[%s4338 + $0xa0] sm:$0xf]
        %v5348 = vld [vmem:[%s4338 + $0xa8] sm:$0xf]
        %v5349 = vld [vmem:[%s4338 + $0xac] sm:$0xf]
        %v5350 = vld [vmem:[%s4338 + $0xb4] sm:$0xf]
        %v5351 = vld [vmem:[%s4338 + $0xb8] sm:$0xf]
        %v5384 = vunpack.c.l.b16 %v5320
        %v5385 = vunpack.c.l.b16 %v5321
        %v5386 = vunpack.c.l.b16 %v5322
        %v5387 = vunpack.c.l.b16 %v5323
        %v5388 = vunpack.c.l.b16 %v5324
        %v5389 = vunpack.c.l.b16 %v5325
        %v5390 = vunpack.c.l.b16 %v5326
        %v5391 = vunpack.c.l.b16 %v5327
        %v5392 = vunpack.c.l.b16 %v5328
        %v5393 = vunpack.c.l.b16 %v5329
        %v5394 = vunpack.c.l.b16 %v5330
        %v5395 = vunpack.c.l.b16 %v5331
        %v5396 = vunpack.c.l.b16 %v5332
        %v5397 = vunpack.c.l.b16 %v5333
        %v5398 = vunpack.c.l.b16 %v5334
        %v5399 = vunpack.c.l.b16 %v5335
        %v5400 = vunpack.c.l.b16 %v5336
        %v5401 = vunpack.c.l.b16 %v5337
        %v5402 = vunpack.c.l.b16 %v5338
        %v5403 = vunpack.c.l.b16 %v5339
        %v5404 = vunpack.c.l.b16 %v5340
        %v5405 = vunpack.c.l.b16 %v5341
        %v5406 = vunpack.c.l.b16 %v5342
        %v5407 = vunpack.c.l.b16 %v5343
        %v5408 = vunpack.c.l.b16 %v5344
        %v5409 = vunpack.c.l.b16 %v5345
        %v5410 = vunpack.c.l.b16 %v5346
        %v5411 = vunpack.c.l.b16 %v5347
        %v5412 = vunpack.c.l.b16 %v5348
        %v5413 = vunpack.c.l.b16 %v5349
        %v5414 = vunpack.c.l.b16 %v5350
        %v5415 = vunpack.c.l.b16 %v5351
        %v5416 = vpack.c.b16 %v5385, %v5384
        %v5417 = vpack.c.b16 %v5387, %v5386
        %v5418 = vpack.c.b16 %v5389, %v5388
        %v5419 = vpack.c.b16 %v5391, %v5390
        %v5420 = vpack.c.b16 %v5393, %v5392
        %v5421 = vpack.c.b16 %v5395, %v5394
        %v5422 = vpack.c.b16 %v5397, %v5396
        %v5423 = vpack.c.b16 %v5399, %v5398
        %v5424 = vpack.c.b16 %v5401, %v5400
        %v5425 = vpack.c.b16 %v5403, %v5402
        %v5426 = vpack.c.b16 %v5405, %v5404
        %v5427 = vpack.c.b16 %v5407, %v5406
        %v5428 = vpack.c.b16 %v5409, %v5408
        %v5429 = vpack.c.b16 %v5411, %v5410
        %v5430 = vpack.c.b16 %v5413, %v5412
        %v5431 = vpack.c.b16 %v5415, %v5414
        %5432 = vrot.lane.b32.xlu0 %v5416, 96
        %v5433 = vpop.permute.xlu0 %5432
        %5434 = vrot.lane.b32.xlu0 %v5417, 96
        %v5435 = vpop.permute.xlu0 %5434
        %5436 = vrot.lane.b32.xlu0 %v5418, 96
        %v5437 = vpop.permute.xlu0 %5436
        %5438 = vrot.lane.b32.xlu0 %v5419, 96
        %v5439 = vpop.permute.xlu0 %5438
        %5440 = vrot.lane.b32.xlu0 %v5420, 96
        %v5441 = vpop.permute.xlu0 %5440
        %5442 = vrot.lane.b32.xlu0 %v5421, 96
        %v5443 = vpop.permute.xlu0 %5442
        %5444 = vrot.lane.b32.xlu0 %v5422, 96
        %v5445 = vpop.permute.xlu0 %5444
        %5446 = vrot.lane.b32.xlu0 %v5423, 96
        %v5447 = vpop.permute.xlu0 %5446
        %5448 = vrot.lane.b32.xlu0 %v5424, 96
        %v5449 = vpop.permute.xlu0 %5448
        %5450 = vrot.lane.b32.xlu0 %v5425, 96
        %v5451 = vpop.permute.xlu0 %5450
        %5452 = vrot.lane.b32.xlu0 %v5426, 96
        %v5453 = vpop.permute.xlu0 %5452
        %5454 = vrot.lane.b32.xlu0 %v5427, 96
        %v5455 = vpop.permute.xlu0 %5454
        %5456 = vrot.lane.b32.xlu0 %v5428, 96
        %v5457 = vpop.permute.xlu0 %5456
        %5458 = vrot.lane.b32.xlu0 %v5429, 96
        %v5459 = vpop.permute.xlu0 %5458
        %5460 = vrot.lane.b32.xlu0 %v5430, 96
        %v5461 = vpop.permute.xlu0 %5460
        %5462 = vrot.lane.b32.xlu0 %v5431, 96
        %v5463 = vpop.permute.xlu0 %5462
        %vm5480 = vcmask 1048320
        %5481 = vst.msk [vmem:[#allocation5] sm:$0xff] %vm5480, %v5433
        %5482 = vst.msk [vmem:[#allocation5 + $0x18] sm:$0xff] %vm5480, %v5435
        %5483 = vst.msk [vmem:[#allocation5 + $0x30] sm:$0xff] %vm5480, %v5437
        %5484 = vst.msk [vmem:[#allocation5 + $0x48] sm:$0xff] %vm5480, %v5439
        %5485 = vst.msk [vmem:[#allocation5 + $0x60] sm:$0xff] %vm5480, %v5441
        %5486 = vst.msk [vmem:[#allocation5 + $0x78] sm:$0xff] %vm5480, %v5443
        %5487 = vst.msk [vmem:[#allocation5 + $0x90] sm:$0xff] %vm5480, %v5445
        %5488 = vst.msk [vmem:[#allocation5 + $0xa8] sm:$0xff] %vm5480, %v5447
        %5489 = vst.msk [vmem:[#allocation5 + $0xc0] sm:$0xff] %vm5480, %v5449
        %5490 = vst.msk [vmem:[#allocation5 + $0xd8] sm:$0xff] %vm5480, %v5451
        %5491 = vst.msk [vmem:[#allocation5 + $0xf0] sm:$0xff] %vm5480, %v5453
        %5492 = vst.msk [vmem:[#allocation5 + $0x108] sm:$0xff] %vm5480, %v5455
        %5493 = vst.msk [vmem:[#allocation5 + $0x120] sm:$0xff] %vm5480, %v5457
        %5494 = vst.msk [vmem:[#allocation5 + $0x138] sm:$0xff] %vm5480, %v5459
        %5495 = vst.msk [vmem:[#allocation5 + $0x150] sm:$0xff] %vm5480, %v5461
        %5496 = vst.msk [vmem:[#allocation5 + $0x168] sm:$0xff] %vm5480, %v5463
        %v5497 = vld [vmem:[%s4338] sm:$0xf]
        %v5498 = vld [vmem:[%s4338 + $0x4] sm:$0xf]
        %v5499 = vld [vmem:[%s4338 + $0x8] sm:$0x1]
        %v5500 = vld [vmem:[%s4338 + $0xc] sm:$0xf]
        %v5501 = vld [vmem:[%s4338 + $0x10] sm:$0xf]
        %v5502 = vld [vmem:[%s4338 + $0x14] sm:$0x1]
        %v5503 = vld [vmem:[%s4338 + $0x18] sm:$0xf]
        %v5504 = vld [vmem:[%s4338 + $0x1c] sm:$0xf]
        %v5505 = vld [vmem:[%s4338 + $0x20] sm:$0x1]
        %v5506 = vld [vmem:[%s4338 + $0x24] sm:$0xf]
        %v5507 = vld [vmem:[%s4338 + $0x28] sm:$0xf]
        %v5508 = vld [vmem:[%s4338 + $0x2c] sm:$0x1]
        %v5509 = vld [vmem:[%s4338 + $0x30] sm:$0xf]
        %v5510 = vld [vmem:[%s4338 + $0x34] sm:$0xf]
        %v5511 = vld [vmem:[%s4338 + $0x38] sm:$0x1]
        %v5512 = vld [vmem:[%s4338 + $0x3c] sm:$0xf]
        %v5513 = vld [vmem:[%s4338 + $0x40] sm:$0xf]
        %v5514 = vld [vmem:[%s4338 + $0x44] sm:$0x1]
        %v5515 = vld [vmem:[%s4338 + $0x48] sm:$0xf]
        %v5516 = vld [vmem:[%s4338 + $0x4c] sm:$0xf]
        %v5517 = vld [vmem:[%s4338 + $0x50] sm:$0x1]
        %v5518 = vld [vmem:[%s4338 + $0x54] sm:$0xf]
        %v5519 = vld [vmem:[%s4338 + $0x58] sm:$0xf]
        %v5520 = vld [vmem:[%s4338 + $0x5c] sm:$0x1]
        %v5521 = vld [vmem:[%s4338 + $0x60] sm:$0xf]
        %v5522 = vld [vmem:[%s4338 + $0x64] sm:$0xf]
        %v5523 = vld [vmem:[%s4338 + $0x68] sm:$0x1]
        %v5524 = vld [vmem:[%s4338 + $0x6c] sm:$0xf]
        %v5525 = vld [vmem:[%s4338 + $0x70] sm:$0xf]
        %v5526 = vld [vmem:[%s4338 + $0x74] sm:$0x1]
        %v5527 = vld [vmem:[%s4338 + $0x78] sm:$0xf]
        %v5528 = vld [vmem:[%s4338 + $0x7c] sm:$0xf]
        %v5529 = vld [vmem:[%s4338 + $0x80] sm:$0x1]
        %v5530 = vld [vmem:[%s4338 + $0x84] sm:$0xf]
        %v5531 = vld [vmem:[%s4338 + $0x88] sm:$0xf]
        %v5532 = vld [vmem:[%s4338 + $0x8c] sm:$0x1]
        %v5533 = vld [vmem:[%s4338 + $0x90] sm:$0xf]
        %v5534 = vld [vmem:[%s4338 + $0x94] sm:$0xf]
        %v5535 = vld [vmem:[%s4338 + $0x98] sm:$0x1]
        %v5536 = vld [vmem:[%s4338 + $0x9c] sm:$0xf]
        %v5537 = vld [vmem:[%s4338 + $0xa0] sm:$0xf]
        %v5538 = vld [vmem:[%s4338 + $0xa4] sm:$0x1]
        %v5539 = vld [vmem:[%s4338 + $0xa8] sm:$0xf]
        %v5540 = vld [vmem:[%s4338 + $0xac] sm:$0xf]
        %v5541 = vld [vmem:[%s4338 + $0xb0] sm:$0x1]
        %v5542 = vld [vmem:[%s4338 + $0xb4] sm:$0xf]
        %v5543 = vld [vmem:[%s4338 + $0xb8] sm:$0xf]
        %v5544 = vld [vmem:[%s4338 + $0xbc] sm:$0x1]
        %v5593 = vunpack.c.l.b16 %v5497
        %v5594 = vunpack.c.l.b16 %v5498
        %v5595 = vunpack.c.l.b16 %v5499
        %v5596 = vunpack.c.l.b16 %v5500
        %v5597 = vunpack.c.l.b16 %v5501
        %v5598 = vunpack.c.l.b16 %v5502
        %v5599 = vunpack.c.l.b16 %v5503
        %v5600 = vunpack.c.l.b16 %v5504
        %v5601 = vunpack.c.l.b16 %v5505
        %v5602 = vunpack.c.l.b16 %v5506
        %v5603 = vunpack.c.l.b16 %v5507
        %v5604 = vunpack.c.l.b16 %v5508
        %v5605 = vunpack.c.l.b16 %v5509
        %v5606 = vunpack.c.l.b16 %v5510
        %v5607 = vunpack.c.l.b16 %v5511
        %v5608 = vunpack.c.l.b16 %v5512
        %v5609 = vunpack.c.l.b16 %v5513
        %v5610 = vunpack.c.l.b16 %v5514
        %v5611 = vunpack.c.l.b16 %v5515
        %v5612 = vunpack.c.l.b16 %v5516
        %v5613 = vunpack.c.l.b16 %v5517
        %v5614 = vunpack.c.l.b16 %v5518
        %v5615 = vunpack.c.l.b16 %v5519
        %v5616 = vunpack.c.l.b16 %v5520
        %v5617 = vunpack.c.l.b16 %v5521
        %v5618 = vunpack.c.l.b16 %v5522
        %v5619 = vunpack.c.l.b16 %v5523
        %v5620 = vunpack.c.l.b16 %v5524
        %v5621 = vunpack.c.l.b16 %v5525
        %v5622 = vunpack.c.l.b16 %v5526
        %v5623 = vunpack.c.l.b16 %v5527
        %v5624 = vunpack.c.l.b16 %v5528
        %v5625 = vunpack.c.l.b16 %v5529
        %v5626 = vunpack.c.l.b16 %v5530
        %v5627 = vunpack.c.l.b16 %v5531
        %v5628 = vunpack.c.l.b16 %v5532
        %v5629 = vunpack.c.l.b16 %v5533
        %v5630 = vunpack.c.l.b16 %v5534
        %v5631 = vunpack.c.l.b16 %v5535
        %v5632 = vunpack.c.l.b16 %v5536
        %v5633 = vunpack.c.l.b16 %v5537
        %v5634 = vunpack.c.l.b16 %v5538
        %v5635 = vunpack.c.l.b16 %v5539
        %v5636 = vunpack.c.l.b16 %v5540
        %v5637 = vunpack.c.l.b16 %v5541
        %v5638 = vunpack.c.l.b16 %v5542
        %v5639 = vunpack.c.l.b16 %v5543
        %v5640 = vunpack.c.l.b16 %v5544
        %v5641 = vpack.c.b16 %v5594, %v5593
        %v5642 = vpack.c.b16 %v5595, %v5595
        %v5643 = vpack.c.b16 %v5597, %v5596
        %v5644 = vpack.c.b16 %v5598, %v5598
        %v5645 = vpack.c.b16 %v5600, %v5599
        %v5646 = vpack.c.b16 %v5601, %v5601
        %v5647 = vpack.c.b16 %v5603, %v5602
        %v5648 = vpack.c.b16 %v5604, %v5604
        %v5649 = vpack.c.b16 %v5606, %v5605
        %v5650 = vpack.c.b16 %v5607, %v5607
        %v5651 = vpack.c.b16 %v5609, %v5608
        %v5652 = vpack.c.b16 %v5610, %v5610
        %v5653 = vpack.c.b16 %v5612, %v5611
        %v5654 = vpack.c.b16 %v5613, %v5613
        %v5655 = vpack.c.b16 %v5615, %v5614
        %v5656 = vpack.c.b16 %v5616, %v5616
        %v5657 = vpack.c.b16 %v5618, %v5617
        %v5658 = vpack.c.b16 %v5619, %v5619
        %v5659 = vpack.c.b16 %v5621, %v5620
        %v5660 = vpack.c.b16 %v5622, %v5622
        %v5661 = vpack.c.b16 %v5624, %v5623
        %v5662 = vpack.c.b16 %v5625, %v5625
        %v5663 = vpack.c.b16 %v5627, %v5626
        %v5664 = vpack.c.b16 %v5628, %v5628
        %v5665 = vpack.c.b16 %v5630, %v5629
        %v5666 = vpack.c.b16 %v5631, %v5631
        %v5667 = vpack.c.b16 %v5633, %v5632
        %v5668 = vpack.c.b16 %v5634, %v5634
        %v5669 = vpack.c.b16 %v5636, %v5635
        %v5670 = vpack.c.b16 %v5637, %v5637
        %v5671 = vpack.c.b16 %v5639, %v5638
        %v5672 = vpack.c.b16 %v5640, %v5640
        %v5674 = vshrl.u32 %v5641, 16
        %v5676 = vshll.u32 %v5641, 16
        %v5678 = vrot.slane %v5676, 1
        %v5679 = vor.u32 %v5674, %v5678
        %v5681 = vshll.u32 %v5642, 16
        %v5683 = vrot.slane %v5681, 1
        %v5684 = vsel %vm1136, %v5679, %v5683
        %v5686 = vshrl.u32 %v5643, 16
        %v5688 = vshll.u32 %v5643, 16
        %v5690 = vrot.slane %v5688, 1
        %v5691 = vor.u32 %v5686, %v5690
        %v5693 = vshll.u32 %v5644, 16
        %v5695 = vrot.slane %v5693, 1
        %v5696 = vsel %vm1136, %v5691, %v5695
        %v5698 = vshrl.u32 %v5645, 16
        %v5700 = vshll.u32 %v5645, 16
        %v5702 = vrot.slane %v5700, 1
        %v5703 = vor.u32 %v5698, %v5702
        %v5705 = vshll.u32 %v5646, 16
        %v5707 = vrot.slane %v5705, 1
        %v5708 = vsel %vm1136, %v5703, %v5707
        %v5710 = vshrl.u32 %v5647, 16
        %v5712 = vshll.u32 %v5647, 16
        %v5714 = vrot.slane %v5712, 1
        %v5715 = vor.u32 %v5710, %v5714
        %v5717 = vshll.u32 %v5648, 16
        %v5719 = vrot.slane %v5717, 1
        %v5720 = vsel %vm1136, %v5715, %v5719
        %v5722 = vshrl.u32 %v5649, 16
        %v5724 = vshll.u32 %v5649, 16
        %v5726 = vrot.slane %v5724, 1
        %v5727 = vor.u32 %v5722, %v5726
        %v5729 = vshll.u32 %v5650, 16
        %v5731 = vrot.slane %v5729, 1
        %v5732 = vsel %vm1136, %v5727, %v5731
        %v5734 = vshrl.u32 %v5651, 16
        %v5736 = vshll.u32 %v5651, 16
        %v5738 = vrot.slane %v5736, 1
        %v5739 = vor.u32 %v5734, %v5738
        %v5741 = vshll.u32 %v5652, 16
        %v5743 = vrot.slane %v5741, 1
        %v5744 = vsel %vm1136, %v5739, %v5743
        %v5746 = vshrl.u32 %v5653, 16
        %v5748 = vshll.u32 %v5653, 16
        %v5750 = vrot.slane %v5748, 1
        %v5751 = vor.u32 %v5746, %v5750
        %v5753 = vshll.u32 %v5654, 16
        %v5755 = vrot.slane %v5753, 1
        %v5756 = vsel %vm1136, %v5751, %v5755
        %v5758 = vshrl.u32 %v5655, 16
        %v5760 = vshll.u32 %v5655, 16
        %v5762 = vrot.slane %v5760, 1
        %v5763 = vor.u32 %v5758, %v5762
        %v5765 = vshll.u32 %v5656, 16
        %v5767 = vrot.slane %v5765, 1
        %v5768 = vsel %vm1136, %v5763, %v5767
        %v5770 = vshrl.u32 %v5657, 16
        %v5772 = vshll.u32 %v5657, 16
        %v5774 = vrot.slane %v5772, 1
        %v5775 = vor.u32 %v5770, %v5774
        %v5777 = vshll.u32 %v5658, 16
        %v5779 = vrot.slane %v5777, 1
        %v5780 = vsel %vm1136, %v5775, %v5779
        %v5782 = vshrl.u32 %v5659, 16
        %v5784 = vshll.u32 %v5659, 16
        %v5786 = vrot.slane %v5784, 1
        %v5787 = vor.u32 %v5782, %v5786
        %v5789 = vshll.u32 %v5660, 16
        %v5791 = vrot.slane %v5789, 1
        %v5792 = vsel %vm1136, %v5787, %v5791
        %v5794 = vshrl.u32 %v5661, 16
        %v5796 = vshll.u32 %v5661, 16
        %v5798 = vrot.slane %v5796, 1
        %v5799 = vor.u32 %v5794, %v5798
        %v5801 = vshll.u32 %v5662, 16
        %v5803 = vrot.slane %v5801, 1
        %v5804 = vsel %vm1136, %v5799, %v5803
        %v5806 = vshrl.u32 %v5663, 16
        %v5808 = vshll.u32 %v5663, 16
        %v5810 = vrot.slane %v5808, 1
        %v5811 = vor.u32 %v5806, %v5810
        %v5813 = vshll.u32 %v5664, 16
        %v5815 = vrot.slane %v5813, 1
        %v5816 = vsel %vm1136, %v5811, %v5815
        %v5818 = vshrl.u32 %v5665, 16
        %v5820 = vshll.u32 %v5665, 16
        %v5822 = vrot.slane %v5820, 1
        %v5823 = vor.u32 %v5818, %v5822
        %v5825 = vshll.u32 %v5666, 16
        %v5827 = vrot.slane %v5825, 1
        %v5828 = vsel %vm1136, %v5823, %v5827
        %v5830 = vshrl.u32 %v5667, 16
        %v5832 = vshll.u32 %v5667, 16
        %v5834 = vrot.slane %v5832, 1
        %v5835 = vor.u32 %v5830, %v5834
        %v5837 = vshll.u32 %v5668, 16
        %v5839 = vrot.slane %v5837, 1
        %v5840 = vsel %vm1136, %v5835, %v5839
        %v5842 = vshrl.u32 %v5669, 16
        %v5844 = vshll.u32 %v5669, 16
        %v5846 = vrot.slane %v5844, 1
        %v5847 = vor.u32 %v5842, %v5846
        %v5849 = vshll.u32 %v5670, 16
        %v5851 = vrot.slane %v5849, 1
        %v5852 = vsel %vm1136, %v5847, %v5851
        %v5854 = vshrl.u32 %v5671, 16
        %v5856 = vshll.u32 %v5671, 16
        %v5858 = vrot.slane %v5856, 1
        %v5859 = vor.u32 %v5854, %v5858
        %v5861 = vshll.u32 %v5672, 16
        %v5863 = vrot.slane %v5861, 1
        %v5864 = vsel %vm1136, %v5859, %v5863
        %5881 = vst.msk [vmem:[#allocation5 + $0x8] sm:$0xff] %vm4581, %v5684
        %5882 = vst.msk [vmem:[#allocation5 + $0x20] sm:$0xff] %vm4581, %v5696
        %5883 = vst.msk [vmem:[#allocation5 + $0x38] sm:$0xff] %vm4581, %v5708
        %5884 = vst.msk [vmem:[#allocation5 + $0x50] sm:$0xff] %vm4581, %v5720
        %5885 = vst.msk [vmem:[#allocation5 + $0x68] sm:$0xff] %vm4581, %v5732
        %5886 = vst.msk [vmem:[#allocation5 + $0x80] sm:$0xff] %vm4581, %v5744
        %5887 = vst.msk [vmem:[#allocation5 + $0x98] sm:$0xff] %vm4581, %v5756
        %5888 = vst.msk [vmem:[#allocation5 + $0xb0] sm:$0xff] %vm4581, %v5768
        %5889 = vst.msk [vmem:[#allocation5 + $0xc8] sm:$0xff] %vm4581, %v5780
        %5890 = vst.msk [vmem:[#allocation5 + $0xe0] sm:$0xff] %vm4581, %v5792
        %5891 = vst.msk [vmem:[#allocation5 + $0xf8] sm:$0xff] %vm4581, %v5804
        %5892 = vst.msk [vmem:[#allocation5 + $0x110] sm:$0xff] %vm4581, %v5816
        %5893 = vst.msk [vmem:[#allocation5 + $0x128] sm:$0xff] %vm4581, %v5828
        %5894 = vst.msk [vmem:[#allocation5 + $0x140] sm:$0xff] %vm4581, %v5840
        %5895 = vst.msk [vmem:[#allocation5 + $0x158] sm:$0xff] %vm4581, %v5852
        %5896 = vst.msk [vmem:[#allocation5 + $0x170] sm:$0xff] %vm4581, %v5864
        %v5897 = vld [vmem:[%s4338] sm:$0xe]
        %v5898 = vld [vmem:[%s4338 + $0x4] sm:$0xf]
        %v5899 = vld [vmem:[%s4338 + $0x8] sm:$0x1]
        %v5900 = vld [vmem:[%s4338 + $0xc] sm:$0xe]
        %v5901 = vld [vmem:[%s4338 + $0x10] sm:$0xf]
        %v5902 = vld [vmem:[%s4338 + $0x14] sm:$0x1]
        %v5903 = vld [vmem:[%s4338 + $0x18] sm:$0xe]
        %v5904 = vld [vmem:[%s4338 + $0x1c] sm:$0xf]
        %v5905 = vld [vmem:[%s4338 + $0x20] sm:$0x1]
        %v5906 = vld [vmem:[%s4338 + $0x24] sm:$0xe]
        %v5907 = vld [vmem:[%s4338 + $0x28] sm:$0xf]
        %v5908 = vld [vmem:[%s4338 + $0x2c] sm:$0x1]
        %v5909 = vld [vmem:[%s4338 + $0x30] sm:$0xe]
        %v5910 = vld [vmem:[%s4338 + $0x34] sm:$0xf]
        %v5911 = vld [vmem:[%s4338 + $0x38] sm:$0x1]
        %v5912 = vld [vmem:[%s4338 + $0x3c] sm:$0xe]
        %v5913 = vld [vmem:[%s4338 + $0x40] sm:$0xf]
        %v5914 = vld [vmem:[%s4338 + $0x44] sm:$0x1]
        %v5915 = vld [vmem:[%s4338 + $0x48] sm:$0xe]
        %v5916 = vld [vmem:[%s4338 + $0x4c] sm:$0xf]
        %v5917 = vld [vmem:[%s4338 + $0x50] sm:$0x1]
        %v5918 = vld [vmem:[%s4338 + $0x54] sm:$0xe]
        %v5919 = vld [vmem:[%s4338 + $0x58] sm:$0xf]
        %v5920 = vld [vmem:[%s4338 + $0x5c] sm:$0x1]
        %v5921 = vld [vmem:[%s4338 + $0x60] sm:$0xe]
        %v5922 = vld [vmem:[%s4338 + $0x64] sm:$0xf]
        %v5923 = vld [vmem:[%s4338 + $0x68] sm:$0x1]
        %v5924 = vld [vmem:[%s4338 + $0x6c] sm:$0xe]
        %v5925 = vld [vmem:[%s4338 + $0x70] sm:$0xf]
        %v5926 = vld [vmem:[%s4338 + $0x74] sm:$0x1]
        %v5927 = vld [vmem:[%s4338 + $0x78] sm:$0xe]
        %v5928 = vld [vmem:[%s4338 + $0x7c] sm:$0xf]
        %v5929 = vld [vmem:[%s4338 + $0x80] sm:$0x1]
        %v5930 = vld [vmem:[%s4338 + $0x84] sm:$0xe]
        %v5931 = vld [vmem:[%s4338 + $0x88] sm:$0xf]
        %v5932 = vld [vmem:[%s4338 + $0x8c] sm:$0x1]
        %v5933 = vld [vmem:[%s4338 + $0x90] sm:$0xe]
        %v5934 = vld [vmem:[%s4338 + $0x94] sm:$0xf]
        %v5935 = vld [vmem:[%s4338 + $0x98] sm:$0x1]
        %v5936 = vld [vmem:[%s4338 + $0x9c] sm:$0xe]
        %v5937 = vld [vmem:[%s4338 + $0xa0] sm:$0xf]
        %v5938 = vld [vmem:[%s4338 + $0xa4] sm:$0x1]
        %v5939 = vld [vmem:[%s4338 + $0xa8] sm:$0xe]
        %v5940 = vld [vmem:[%s4338 + $0xac] sm:$0xf]
        %v5941 = vld [vmem:[%s4338 + $0xb0] sm:$0x1]
        %v5942 = vld [vmem:[%s4338 + $0xb4] sm:$0xe]
        %v5943 = vld [vmem:[%s4338 + $0xb8] sm:$0xf]
        %v5944 = vld [vmem:[%s4338 + $0xbc] sm:$0x1]
        %v5993 = vunpack.c.l.b16 %v5897
        %v5994 = vunpack.c.l.b16 %v5898
        %v5995 = vunpack.c.l.b16 %v5899
        %v5996 = vunpack.c.l.b16 %v5900
        %v5997 = vunpack.c.l.b16 %v5901
        %v5998 = vunpack.c.l.b16 %v5902
        %v5999 = vunpack.c.l.b16 %v5903
        %v6000 = vunpack.c.l.b16 %v5904
        %v6001 = vunpack.c.l.b16 %v5905
        %v6002 = vunpack.c.l.b16 %v5906
        %v6003 = vunpack.c.l.b16 %v5907
        %v6004 = vunpack.c.l.b16 %v5908
        %v6005 = vunpack.c.l.b16 %v5909
        %v6006 = vunpack.c.l.b16 %v5910
        %v6007 = vunpack.c.l.b16 %v5911
        %v6008 = vunpack.c.l.b16 %v5912
        %v6009 = vunpack.c.l.b16 %v5913
        %v6010 = vunpack.c.l.b16 %v5914
        %v6011 = vunpack.c.l.b16 %v5915
        %v6012 = vunpack.c.l.b16 %v5916
        %v6013 = vunpack.c.l.b16 %v5917
        %v6014 = vunpack.c.l.b16 %v5918
        %v6015 = vunpack.c.l.b16 %v5919
        %v6016 = vunpack.c.l.b16 %v5920
        %v6017 = vunpack.c.l.b16 %v5921
        %v6018 = vunpack.c.l.b16 %v5922
        %v6019 = vunpack.c.l.b16 %v5923
        %v6020 = vunpack.c.l.b16 %v5924
        %v6021 = vunpack.c.l.b16 %v5925
        %v6022 = vunpack.c.l.b16 %v5926
        %v6023 = vunpack.c.l.b16 %v5927
        %v6024 = vunpack.c.l.b16 %v5928
        %v6025 = vunpack.c.l.b16 %v5929
        %v6026 = vunpack.c.l.b16 %v5930
        %v6027 = vunpack.c.l.b16 %v5931
        %v6028 = vunpack.c.l.b16 %v5932
        %v6029 = vunpack.c.l.b16 %v5933
        %v6030 = vunpack.c.l.b16 %v5934
        %v6031 = vunpack.c.l.b16 %v5935
        %v6032 = vunpack.c.l.b16 %v5936
        %v6033 = vunpack.c.l.b16 %v5937
        %v6034 = vunpack.c.l.b16 %v5938
        %v6035 = vunpack.c.l.b16 %v5939
        %v6036 = vunpack.c.l.b16 %v5940
        %v6037 = vunpack.c.l.b16 %v5941
        %v6038 = vunpack.c.l.b16 %v5942
        %v6039 = vunpack.c.l.b16 %v5943
        %v6040 = vunpack.c.l.b16 %v5944
        %v6041 = vpack.c.b16 %v5994, %v5993
        %v6042 = vpack.c.b16 %v5995, %v5995
        %v6043 = vpack.c.b16 %v5997, %v5996
        %v6044 = vpack.c.b16 %v5998, %v5998
        %v6045 = vpack.c.b16 %v6000, %v5999
        %v6046 = vpack.c.b16 %v6001, %v6001
        %v6047 = vpack.c.b16 %v6003, %v6002
        %v6048 = vpack.c.b16 %v6004, %v6004
        %v6049 = vpack.c.b16 %v6006, %v6005
        %v6050 = vpack.c.b16 %v6007, %v6007
        %v6051 = vpack.c.b16 %v6009, %v6008
        %v6052 = vpack.c.b16 %v6010, %v6010
        %v6053 = vpack.c.b16 %v6012, %v6011
        %v6054 = vpack.c.b16 %v6013, %v6013
        %v6055 = vpack.c.b16 %v6015, %v6014
        %v6056 = vpack.c.b16 %v6016, %v6016
        %v6057 = vpack.c.b16 %v6018, %v6017
        %v6058 = vpack.c.b16 %v6019, %v6019
        %v6059 = vpack.c.b16 %v6021, %v6020
        %v6060 = vpack.c.b16 %v6022, %v6022
        %v6061 = vpack.c.b16 %v6024, %v6023
        %v6062 = vpack.c.b16 %v6025, %v6025
        %v6063 = vpack.c.b16 %v6027, %v6026
        %v6064 = vpack.c.b16 %v6028, %v6028
        %v6065 = vpack.c.b16 %v6030, %v6029
        %v6066 = vpack.c.b16 %v6031, %v6031
        %v6067 = vpack.c.b16 %v6033, %v6032
        %v6068 = vpack.c.b16 %v6034, %v6034
        %v6069 = vpack.c.b16 %v6036, %v6035
        %v6070 = vpack.c.b16 %v6037, %v6037
        %v6071 = vpack.c.b16 %v6039, %v6038
        %v6072 = vpack.c.b16 %v6040, %v6040
        %v6073 = vrot.slane %v6041, 1
        %v6074 = vrot.slane %v6042, 1
        %v6075 = vsel %vm1570, %v6073, %v6074
        %v6076 = vrot.slane %v6043, 1
        %v6077 = vrot.slane %v6044, 1
        %v6078 = vsel %vm1570, %v6076, %v6077
        %v6079 = vrot.slane %v6045, 1
        %v6080 = vrot.slane %v6046, 1
        %v6081 = vsel %vm1570, %v6079, %v6080
        %v6082 = vrot.slane %v6047, 1
        %v6083 = vrot.slane %v6048, 1
        %v6084 = vsel %vm1570, %v6082, %v6083
        %v6085 = vrot.slane %v6049, 1
        %v6086 = vrot.slane %v6050, 1
        %v6087 = vsel %vm1570, %v6085, %v6086
        %v6088 = vrot.slane %v6051, 1
        %v6089 = vrot.slane %v6052, 1
        %v6090 = vsel %vm1570, %v6088, %v6089
        %v6091 = vrot.slane %v6053, 1
        %v6092 = vrot.slane %v6054, 1
        %v6093 = vsel %vm1570, %v6091, %v6092
        %v6094 = vrot.slane %v6055, 1
        %v6095 = vrot.slane %v6056, 1
        %v6096 = vsel %vm1570, %v6094, %v6095
        %v6097 = vrot.slane %v6057, 1
        %v6098 = vrot.slane %v6058, 1
        %v6099 = vsel %vm1570, %v6097, %v6098
        %v6100 = vrot.slane %v6059, 1
        %v6101 = vrot.slane %v6060, 1
        %v6102 = vsel %vm1570, %v6100, %v6101
        %v6103 = vrot.slane %v6061, 1
        %v6104 = vrot.slane %v6062, 1
        %v6105 = vsel %vm1570, %v6103, %v6104
        %v6106 = vrot.slane %v6063, 1
        %v6107 = vrot.slane %v6064, 1
        %v6108 = vsel %vm1570, %v6106, %v6107
        %v6109 = vrot.slane %v6065, 1
        %v6110 = vrot.slane %v6066, 1
        %v6111 = vsel %vm1570, %v6109, %v6110
        %v6112 = vrot.slane %v6067, 1
        %v6113 = vrot.slane %v6068, 1
        %v6114 = vsel %vm1570, %v6112, %v6113
        %v6115 = vrot.slane %v6069, 1
        %v6116 = vrot.slane %v6070, 1
        %v6117 = vsel %vm1570, %v6115, %v6116
        %v6118 = vrot.slane %v6071, 1
        %v6119 = vrot.slane %v6072, 1
        %v6120 = vsel %vm1570, %v6118, %v6119
        %6121 = vrot.lane.b32.xlu0 %v6075, 32
        %v6122 = vpop.permute.xlu0 %6121
        %6123 = vrot.lane.b32.xlu0 %v6078, 32
        %v6124 = vpop.permute.xlu0 %6123
        %6125 = vrot.lane.b32.xlu0 %v6081, 32
        %v6126 = vpop.permute.xlu0 %6125
        %6127 = vrot.lane.b32.xlu0 %v6084, 32
        %v6128 = vpop.permute.xlu0 %6127
        %6129 = vrot.lane.b32.xlu0 %v6087, 32
        %v6130 = vpop.permute.xlu0 %6129
        %6131 = vrot.lane.b32.xlu0 %v6090, 32
        %v6132 = vpop.permute.xlu0 %6131
        %6133 = vrot.lane.b32.xlu0 %v6093, 32
        %v6134 = vpop.permute.xlu0 %6133
        %6135 = vrot.lane.b32.xlu0 %v6096, 32
        %v6136 = vpop.permute.xlu0 %6135
        %6137 = vrot.lane.b32.xlu0 %v6099, 32
        %v6138 = vpop.permute.xlu0 %6137
        %6139 = vrot.lane.b32.xlu0 %v6102, 32
        %v6140 = vpop.permute.xlu0 %6139
        %6141 = vrot.lane.b32.xlu0 %v6105, 32
        %v6142 = vpop.permute.xlu0 %6141
        %6143 = vrot.lane.b32.xlu0 %v6108, 32
        %v6144 = vpop.permute.xlu0 %6143
        %6145 = vrot.lane.b32.xlu0 %v6111, 32
        %v6146 = vpop.permute.xlu0 %6145
        %6147 = vrot.lane.b32.xlu0 %v6114, 32
        %v6148 = vpop.permute.xlu0 %6147
        %6149 = vrot.lane.b32.xlu0 %v6117, 32
        %v6150 = vpop.permute.xlu0 %6149
        %6151 = vrot.lane.b32.xlu0 %v6120, 32
        %v6152 = vpop.permute.xlu0 %6151
        %6169 = vst.msk [vmem:[#allocation5 + $0x8] sm:$0xff] %vm5014, %v6122
        %6170 = vst.msk [vmem:[#allocation5 + $0x20] sm:$0xff] %vm5014, %v6124
        %6171 = vst.msk [vmem:[#allocation5 + $0x38] sm:$0xff] %vm5014, %v6126
        %6172 = vst.msk [vmem:[#allocation5 + $0x50] sm:$0xff] %vm5014, %v6128
        %6173 = vst.msk [vmem:[#allocation5 + $0x68] sm:$0xff] %vm5014, %v6130
        %6174 = vst.msk [vmem:[#allocation5 + $0x80] sm:$0xff] %vm5014, %v6132
        %6175 = vst.msk [vmem:[#allocation5 + $0x98] sm:$0xff] %vm5014, %v6134
        %6176 = vst.msk [vmem:[#allocation5 + $0xb0] sm:$0xff] %vm5014, %v6136
        %6177 = vst.msk [vmem:[#allocation5 + $0xc8] sm:$0xff] %vm5014, %v6138
        %6178 = vst.msk [vmem:[#allocation5 + $0xe0] sm:$0xff] %vm5014, %v6140
        %6179 = vst.msk [vmem:[#allocation5 + $0xf8] sm:$0xff] %vm5014, %v6142
        %6180 = vst.msk [vmem:[#allocation5 + $0x110] sm:$0xff] %vm5014, %v6144
        %6181 = vst.msk [vmem:[#allocation5 + $0x128] sm:$0xff] %vm5014, %v6146
        %6182 = vst.msk [vmem:[#allocation5 + $0x140] sm:$0xff] %vm5014, %v6148
        %6183 = vst.msk [vmem:[#allocation5 + $0x158] sm:$0xff] %vm5014, %v6150
        %6184 = vst.msk [vmem:[#allocation5 + $0x170] sm:$0xff] %vm5014, %v6152
        %s6185 = scalar_lea.vmem [#allocation4], 24
        %v6186 = vld [vmem:[%s6185] sm:$0xf]
        %v6187 = vld [vmem:[%s6185 + $0x4] sm:$0xf]
        %v6188 = vld [vmem:[%s6185 + $0xc] sm:$0xf]
        %v6189 = vld [vmem:[%s6185 + $0x10] sm:$0xf]
        %v6190 = vld [vmem:[%s6185 + $0x18] sm:$0xf]
        %v6191 = vld [vmem:[%s6185 + $0x1c] sm:$0xf]
        %v6192 = vld [vmem:[%s6185 + $0x24] sm:$0xf]
        %v6193 = vld [vmem:[%s6185 + $0x28] sm:$0xf]
        %v6194 = vld [vmem:[%s6185 + $0x30] sm:$0xf]
        %v6195 = vld [vmem:[%s6185 + $0x34] sm:$0xf]
        %v6196 = vld [vmem:[%s6185 + $0x3c] sm:$0xf]
        %v6197 = vld [vmem:[%s6185 + $0x40] sm:$0xf]
        %v6198 = vld [vmem:[%s6185 + $0x48] sm:$0xf]
        %v6199 = vld [vmem:[%s6185 + $0x4c] sm:$0xf]
        %v6200 = vld [vmem:[%s6185 + $0x54] sm:$0xf]
        %v6201 = vld [vmem:[%s6185 + $0x58] sm:$0xf]
        %v6202 = vld [vmem:[%s6185 + $0x60] sm:$0xf]
        %v6203 = vld [vmem:[%s6185 + $0x64] sm:$0xf]
        %v6204 = vld [vmem:[%s6185 + $0x6c] sm:$0xf]
        %v6205 = vld [vmem:[%s6185 + $0x70] sm:$0xf]
        %v6206 = vld [vmem:[%s6185 + $0x78] sm:$0xf]
        %v6207 = vld [vmem:[%s6185 + $0x7c] sm:$0xf]
        %v6208 = vld [vmem:[%s6185 + $0x84] sm:$0xf]
        %v6209 = vld [vmem:[%s6185 + $0x88] sm:$0xf]
        %v6210 = vld [vmem:[%s6185 + $0x90] sm:$0xf]
        %v6211 = vld [vmem:[%s6185 + $0x94] sm:$0xf]
        %v6212 = vld [vmem:[%s6185 + $0x9c] sm:$0xf]
        %v6213 = vld [vmem:[%s6185 + $0xa0] sm:$0xf]
        %v6214 = vld [vmem:[%s6185 + $0xa8] sm:$0xf]
        %v6215 = vld [vmem:[%s6185 + $0xac] sm:$0xf]
        %v6216 = vld [vmem:[%s6185 + $0xb4] sm:$0xf]
        %v6217 = vld [vmem:[%s6185 + $0xb8] sm:$0xf]
        %v6250 = vunpack.c.l.b16 %v6186
        %v6251 = vunpack.c.l.b16 %v6187
        %v6252 = vunpack.c.l.b16 %v6188
        %v6253 = vunpack.c.l.b16 %v6189
        %v6254 = vunpack.c.l.b16 %v6190
        %v6255 = vunpack.c.l.b16 %v6191
        %v6256 = vunpack.c.l.b16 %v6192
        %v6257 = vunpack.c.l.b16 %v6193
        %v6258 = vunpack.c.l.b16 %v6194
        %v6259 = vunpack.c.l.b16 %v6195
        %v6260 = vunpack.c.l.b16 %v6196
        %v6261 = vunpack.c.l.b16 %v6197
        %v6262 = vunpack.c.l.b16 %v6198
        %v6263 = vunpack.c.l.b16 %v6199
        %v6264 = vunpack.c.l.b16 %v6200
        %v6265 = vunpack.c.l.b16 %v6201
        %v6266 = vunpack.c.l.b16 %v6202
        %v6267 = vunpack.c.l.b16 %v6203
        %v6268 = vunpack.c.l.b16 %v6204
        %v6269 = vunpack.c.l.b16 %v6205
        %v6270 = vunpack.c.l.b16 %v6206
        %v6271 = vunpack.c.l.b16 %v6207
        %v6272 = vunpack.c.l.b16 %v6208
        %v6273 = vunpack.c.l.b16 %v6209
        %v6274 = vunpack.c.l.b16 %v6210
        %v6275 = vunpack.c.l.b16 %v6211
        %v6276 = vunpack.c.l.b16 %v6212
        %v6277 = vunpack.c.l.b16 %v6213
        %v6278 = vunpack.c.l.b16 %v6214
        %v6279 = vunpack.c.l.b16 %v6215
        %v6280 = vunpack.c.l.b16 %v6216
        %v6281 = vunpack.c.l.b16 %v6217
        %v6282 = vpack.c.b16 %v6251, %v6250
        %v6283 = vpack.c.b16 %v6253, %v6252
        %v6284 = vpack.c.b16 %v6255, %v6254
        %v6285 = vpack.c.b16 %v6257, %v6256
        %v6286 = vpack.c.b16 %v6259, %v6258
        %v6287 = vpack.c.b16 %v6261, %v6260
        %v6288 = vpack.c.b16 %v6263, %v6262
        %v6289 = vpack.c.b16 %v6265, %v6264
        %v6290 = vpack.c.b16 %v6267, %v6266
        %v6291 = vpack.c.b16 %v6269, %v6268
        %v6292 = vpack.c.b16 %v6271, %v6270
        %v6293 = vpack.c.b16 %v6273, %v6272
        %v6294 = vpack.c.b16 %v6275, %v6274
        %v6295 = vpack.c.b16 %v6277, %v6276
        %v6296 = vpack.c.b16 %v6279, %v6278
        %v6297 = vpack.c.b16 %v6281, %v6280
        %6298 = vrot.lane.b32.xlu0 %v6282, 64
        %v6299 = vpop.permute.xlu0 %6298
        %6300 = vrot.lane.b32.xlu0 %v6283, 64
        %v6301 = vpop.permute.xlu0 %6300
        %6302 = vrot.lane.b32.xlu0 %v6284, 64
        %v6303 = vpop.permute.xlu0 %6302
        %6304 = vrot.lane.b32.xlu0 %v6285, 64
        %v6305 = vpop.permute.xlu0 %6304
        %6306 = vrot.lane.b32.xlu0 %v6286, 64
        %v6307 = vpop.permute.xlu0 %6306
        %6308 = vrot.lane.b32.xlu0 %v6287, 64
        %v6309 = vpop.permute.xlu0 %6308
        %6310 = vrot.lane.b32.xlu0 %v6288, 64
        %v6311 = vpop.permute.xlu0 %6310
        %6312 = vrot.lane.b32.xlu0 %v6289, 64
        %v6313 = vpop.permute.xlu0 %6312
        %6314 = vrot.lane.b32.xlu0 %v6290, 64
        %v6315 = vpop.permute.xlu0 %6314
        %6316 = vrot.lane.b32.xlu0 %v6291, 64
        %v6317 = vpop.permute.xlu0 %6316
        %6318 = vrot.lane.b32.xlu0 %v6292, 64
        %v6319 = vpop.permute.xlu0 %6318
        %6320 = vrot.lane.b32.xlu0 %v6293, 64
        %v6321 = vpop.permute.xlu0 %6320
        %6322 = vrot.lane.b32.xlu0 %v6294, 64
        %v6323 = vpop.permute.xlu0 %6322
        %6324 = vrot.lane.b32.xlu0 %v6295, 64
        %v6325 = vpop.permute.xlu0 %6324
        %6326 = vrot.lane.b32.xlu0 %v6296, 64
        %v6327 = vpop.permute.xlu0 %6326
        %6328 = vrot.lane.b32.xlu0 %v6297, 64
        %v6329 = vpop.permute.xlu0 %6328
        %6346 = vst.msk [vmem:[#allocation5 + $0x8] sm:$0xff] %vm5303, %v6299
        %6347 = vst.msk [vmem:[#allocation5 + $0x20] sm:$0xff] %vm5303, %v6301
        %6348 = vst.msk [vmem:[#allocation5 + $0x38] sm:$0xff] %vm5303, %v6303
        %6349 = vst.msk [vmem:[#allocation5 + $0x50] sm:$0xff] %vm5303, %v6305
        %6350 = vst.msk [vmem:[#allocation5 + $0x68] sm:$0xff] %vm5303, %v6307
        %6351 = vst.msk [vmem:[#allocation5 + $0x80] sm:$0xff] %vm5303, %v6309
        %6352 = vst.msk [vmem:[#allocation5 + $0x98] sm:$0xff] %vm5303, %v6311
        %6353 = vst.msk [vmem:[#allocation5 + $0xb0] sm:$0xff] %vm5303, %v6313
        %6354 = vst.msk [vmem:[#allocation5 + $0xc8] sm:$0xff] %vm5303, %v6315
        %6355 = vst.msk [vmem:[#allocation5 + $0xe0] sm:$0xff] %vm5303, %v6317
        %6356 = vst.msk [vmem:[#allocation5 + $0xf8] sm:$0xff] %vm5303, %v6319
        %6357 = vst.msk [vmem:[#allocation5 + $0x110] sm:$0xff] %vm5303, %v6321
        %6358 = vst.msk [vmem:[#allocation5 + $0x128] sm:$0xff] %vm5303, %v6323
        %6359 = vst.msk [vmem:[#allocation5 + $0x140] sm:$0xff] %vm5303, %v6325
        %6360 = vst.msk [vmem:[#allocation5 + $0x158] sm:$0xff] %vm5303, %v6327
        %6361 = vst.msk [vmem:[#allocation5 + $0x170] sm:$0xff] %vm5303, %v6329
        %v6362 = vld [vmem:[%s6185] sm:$0xf]
        %v6363 = vld [vmem:[%s6185 + $0x4] sm:$0xf]
        %v6364 = vld [vmem:[%s6185 + $0x8] sm:$0x1]
        %v6365 = vld [vmem:[%s6185 + $0xc] sm:$0xf]
        %v6366 = vld [vmem:[%s6185 + $0x10] sm:$0xf]
        %v6367 = vld [vmem:[%s6185 + $0x14] sm:$0x1]
        %v6368 = vld [vmem:[%s6185 + $0x18] sm:$0xf]
        %v6369 = vld [vmem:[%s6185 + $0x1c] sm:$0xf]
        %v6370 = vld [vmem:[%s6185 + $0x20] sm:$0x1]
        %v6371 = vld [vmem:[%s6185 + $0x24] sm:$0xf]
        %v6372 = vld [vmem:[%s6185 + $0x28] sm:$0xf]
        %v6373 = vld [vmem:[%s6185 + $0x2c] sm:$0x1]
        %v6374 = vld [vmem:[%s6185 + $0x30] sm:$0xf]
        %v6375 = vld [vmem:[%s6185 + $0x34] sm:$0xf]
        %v6376 = vld [vmem:[%s6185 + $0x38] sm:$0x1]
        %v6377 = vld [vmem:[%s6185 + $0x3c] sm:$0xf]
        %v6378 = vld [vmem:[%s6185 + $0x40] sm:$0xf]
        %v6379 = vld [vmem:[%s6185 + $0x44] sm:$0x1]
        %v6380 = vld [vmem:[%s6185 + $0x48] sm:$0xf]
        %v6381 = vld [vmem:[%s6185 + $0x4c] sm:$0xf]
        %v6382 = vld [vmem:[%s6185 + $0x50] sm:$0x1]
        %v6383 = vld [vmem:[%s6185 + $0x54] sm:$0xf]
        %v6384 = vld [vmem:[%s6185 + $0x58] sm:$0xf]
        %v6385 = vld [vmem:[%s6185 + $0x5c] sm:$0x1]
        %v6386 = vld [vmem:[%s6185 + $0x60] sm:$0xf]
        %v6387 = vld [vmem:[%s6185 + $0x64] sm:$0xf]
        %v6388 = vld [vmem:[%s6185 + $0x68] sm:$0x1]
        %v6389 = vld [vmem:[%s6185 + $0x6c] sm:$0xf]
        %v6390 = vld [vmem:[%s6185 + $0x70] sm:$0xf]
        %v6391 = vld [vmem:[%s6185 + $0x74] sm:$0x1]
        %v6392 = vld [vmem:[%s6185 + $0x78] sm:$0xf]
        %v6393 = vld [vmem:[%s6185 + $0x7c] sm:$0xf]
        %v6394 = vld [vmem:[%s6185 + $0x80] sm:$0x1]
        %v6395 = vld [vmem:[%s6185 + $0x84] sm:$0xf]
        %v6396 = vld [vmem:[%s6185 + $0x88] sm:$0xf]
        %v6397 = vld [vmem:[%s6185 + $0x8c] sm:$0x1]
        %v6398 = vld [vmem:[%s6185 + $0x90] sm:$0xf]
        %v6399 = vld [vmem:[%s6185 + $0x94] sm:$0xf]
        %v6400 = vld [vmem:[%s6185 + $0x98] sm:$0x1]
        %v6401 = vld [vmem:[%s6185 + $0x9c] sm:$0xf]
        %v6402 = vld [vmem:[%s6185 + $0xa0] sm:$0xf]
        %v6403 = vld [vmem:[%s6185 + $0xa4] sm:$0x1]
        %v6404 = vld [vmem:[%s6185 + $0xa8] sm:$0xf]
        %v6405 = vld [vmem:[%s6185 + $0xac] sm:$0xf]
        %v6406 = vld [vmem:[%s6185 + $0xb0] sm:$0x1]
        %v6407 = vld [vmem:[%s6185 + $0xb4] sm:$0xf]
        %v6408 = vld [vmem:[%s6185 + $0xb8] sm:$0xf]
        %v6409 = vld [vmem:[%s6185 + $0xbc] sm:$0x1]
        %v6458 = vunpack.c.l.b16 %v6362
        %v6459 = vunpack.c.l.b16 %v6363
        %v6460 = vunpack.c.l.b16 %v6364
        %v6461 = vunpack.c.l.b16 %v6365
        %v6462 = vunpack.c.l.b16 %v6366
        %v6463 = vunpack.c.l.b16 %v6367
        %v6464 = vunpack.c.l.b16 %v6368
        %v6465 = vunpack.c.l.b16 %v6369
        %v6466 = vunpack.c.l.b16 %v6370
        %v6467 = vunpack.c.l.b16 %v6371
        %v6468 = vunpack.c.l.b16 %v6372
        %v6469 = vunpack.c.l.b16 %v6373
        %v6470 = vunpack.c.l.b16 %v6374
        %v6471 = vunpack.c.l.b16 %v6375
        %v6472 = vunpack.c.l.b16 %v6376
        %v6473 = vunpack.c.l.b16 %v6377
        %v6474 = vunpack.c.l.b16 %v6378
        %v6475 = vunpack.c.l.b16 %v6379
        %v6476 = vunpack.c.l.b16 %v6380
        %v6477 = vunpack.c.l.b16 %v6381
        %v6478 = vunpack.c.l.b16 %v6382
        %v6479 = vunpack.c.l.b16 %v6383
        %v6480 = vunpack.c.l.b16 %v6384
        %v6481 = vunpack.c.l.b16 %v6385
        %v6482 = vunpack.c.l.b16 %v6386
        %v6483 = vunpack.c.l.b16 %v6387
        %v6484 = vunpack.c.l.b16 %v6388
        %v6485 = vunpack.c.l.b16 %v6389
        %v6486 = vunpack.c.l.b16 %v6390
        %v6487 = vunpack.c.l.b16 %v6391
        %v6488 = vunpack.c.l.b16 %v6392
        %v6489 = vunpack.c.l.b16 %v6393
        %v6490 = vunpack.c.l.b16 %v6394
        %v6491 = vunpack.c.l.b16 %v6395
        %v6492 = vunpack.c.l.b16 %v6396
        %v6493 = vunpack.c.l.b16 %v6397
        %v6494 = vunpack.c.l.b16 %v6398
        %v6495 = vunpack.c.l.b16 %v6399
        %v6496 = vunpack.c.l.b16 %v6400
        %v6497 = vunpack.c.l.b16 %v6401
        %v6498 = vunpack.c.l.b16 %v6402
        %v6499 = vunpack.c.l.b16 %v6403
        %v6500 = vunpack.c.l.b16 %v6404
        %v6501 = vunpack.c.l.b16 %v6405
        %v6502 = vunpack.c.l.b16 %v6406
        %v6503 = vunpack.c.l.b16 %v6407
        %v6504 = vunpack.c.l.b16 %v6408
        %v6505 = vunpack.c.l.b16 %v6409
        %v6506 = vpack.c.b16 %v6459, %v6458
        %v6507 = vpack.c.b16 %v6460, %v6460
        %v6508 = vpack.c.b16 %v6462, %v6461
        %v6509 = vpack.c.b16 %v6463, %v6463
        %v6510 = vpack.c.b16 %v6465, %v6464
        %v6511 = vpack.c.b16 %v6466, %v6466
        %v6512 = vpack.c.b16 %v6468, %v6467
        %v6513 = vpack.c.b16 %v6469, %v6469
        %v6514 = vpack.c.b16 %v6471, %v6470
        %v6515 = vpack.c.b16 %v6472, %v6472
        %v6516 = vpack.c.b16 %v6474, %v6473
        %v6517 = vpack.c.b16 %v6475, %v6475
        %v6518 = vpack.c.b16 %v6477, %v6476
        %v6519 = vpack.c.b16 %v6478, %v6478
        %v6520 = vpack.c.b16 %v6480, %v6479
        %v6521 = vpack.c.b16 %v6481, %v6481
        %v6522 = vpack.c.b16 %v6483, %v6482
        %v6523 = vpack.c.b16 %v6484, %v6484
        %v6524 = vpack.c.b16 %v6486, %v6485
        %v6525 = vpack.c.b16 %v6487, %v6487
        %v6526 = vpack.c.b16 %v6489, %v6488
        %v6527 = vpack.c.b16 %v6490, %v6490
        %v6528 = vpack.c.b16 %v6492, %v6491
        %v6529 = vpack.c.b16 %v6493, %v6493
        %v6530 = vpack.c.b16 %v6495, %v6494
        %v6531 = vpack.c.b16 %v6496, %v6496
        %v6532 = vpack.c.b16 %v6498, %v6497
        %v6533 = vpack.c.b16 %v6499, %v6499
        %v6534 = vpack.c.b16 %v6501, %v6500
        %v6535 = vpack.c.b16 %v6502, %v6502
        %v6536 = vpack.c.b16 %v6504, %v6503
        %v6537 = vpack.c.b16 %v6505, %v6505
        %v6539 = vshrl.u32 %v6506, 16
        %v6541 = vshll.u32 %v6506, 16
        %v6543 = vrot.slane %v6541, 1
        %v6544 = vor.u32 %v6539, %v6543
        %v6546 = vshll.u32 %v6507, 16
        %v6548 = vrot.slane %v6546, 1
        %v6549 = vsel %vm1136, %v6544, %v6548
        %v6551 = vshrl.u32 %v6508, 16
        %v6553 = vshll.u32 %v6508, 16
        %v6555 = vrot.slane %v6553, 1
        %v6556 = vor.u32 %v6551, %v6555
        %v6558 = vshll.u32 %v6509, 16
        %v6560 = vrot.slane %v6558, 1
        %v6561 = vsel %vm1136, %v6556, %v6560
        %v6563 = vshrl.u32 %v6510, 16
        %v6565 = vshll.u32 %v6510, 16
        %v6567 = vrot.slane %v6565, 1
        %v6568 = vor.u32 %v6563, %v6567
        %v6570 = vshll.u32 %v6511, 16
        %v6572 = vrot.slane %v6570, 1
        %v6573 = vsel %vm1136, %v6568, %v6572
        %v6575 = vshrl.u32 %v6512, 16
        %v6577 = vshll.u32 %v6512, 16
        %v6579 = vrot.slane %v6577, 1
        %v6580 = vor.u32 %v6575, %v6579
        %v6582 = vshll.u32 %v6513, 16
        %v6584 = vrot.slane %v6582, 1
        %v6585 = vsel %vm1136, %v6580, %v6584
        %v6587 = vshrl.u32 %v6514, 16
        %v6589 = vshll.u32 %v6514, 16
        %v6591 = vrot.slane %v6589, 1
        %v6592 = vor.u32 %v6587, %v6591
        %v6594 = vshll.u32 %v6515, 16
        %v6596 = vrot.slane %v6594, 1
        %v6597 = vsel %vm1136, %v6592, %v6596
        %v6599 = vshrl.u32 %v6516, 16
        %v6601 = vshll.u32 %v6516, 16
        %v6603 = vrot.slane %v6601, 1
        %v6604 = vor.u32 %v6599, %v6603
        %v6606 = vshll.u32 %v6517, 16
        %v6608 = vrot.slane %v6606, 1
        %v6609 = vsel %vm1136, %v6604, %v6608
        %v6611 = vshrl.u32 %v6518, 16
        %v6613 = vshll.u32 %v6518, 16
        %v6615 = vrot.slane %v6613, 1
        %v6616 = vor.u32 %v6611, %v6615
        %v6618 = vshll.u32 %v6519, 16
        %v6620 = vrot.slane %v6618, 1
        %v6621 = vsel %vm1136, %v6616, %v6620
        %v6623 = vshrl.u32 %v6520, 16
        %v6625 = vshll.u32 %v6520, 16
        %v6627 = vrot.slane %v6625, 1
        %v6628 = vor.u32 %v6623, %v6627
        %v6630 = vshll.u32 %v6521, 16
        %v6632 = vrot.slane %v6630, 1
        %v6633 = vsel %vm1136, %v6628, %v6632
        %v6635 = vshrl.u32 %v6522, 16
        %v6637 = vshll.u32 %v6522, 16
        %v6639 = vrot.slane %v6637, 1
        %v6640 = vor.u32 %v6635, %v6639
        %v6642 = vshll.u32 %v6523, 16
        %v6644 = vrot.slane %v6642, 1
        %v6645 = vsel %vm1136, %v6640, %v6644
        %v6647 = vshrl.u32 %v6524, 16
        %v6649 = vshll.u32 %v6524, 16
        %v6651 = vrot.slane %v6649, 1
        %v6652 = vor.u32 %v6647, %v6651
        %v6654 = vshll.u32 %v6525, 16
        %v6656 = vrot.slane %v6654, 1
        %v6657 = vsel %vm1136, %v6652, %v6656
        %v6659 = vshrl.u32 %v6526, 16
        %v6661 = vshll.u32 %v6526, 16
        %v6663 = vrot.slane %v6661, 1
        %v6664 = vor.u32 %v6659, %v6663
        %v6666 = vshll.u32 %v6527, 16
        %v6668 = vrot.slane %v6666, 1
        %v6669 = vsel %vm1136, %v6664, %v6668
        %v6671 = vshrl.u32 %v6528, 16
        %v6673 = vshll.u32 %v6528, 16
        %v6675 = vrot.slane %v6673, 1
        %v6676 = vor.u32 %v6671, %v6675
        %v6678 = vshll.u32 %v6529, 16
        %v6680 = vrot.slane %v6678, 1
        %v6681 = vsel %vm1136, %v6676, %v6680
        %v6683 = vshrl.u32 %v6530, 16
        %v6685 = vshll.u32 %v6530, 16
        %v6687 = vrot.slane %v6685, 1
        %v6688 = vor.u32 %v6683, %v6687
        %v6690 = vshll.u32 %v6531, 16
        %v6692 = vrot.slane %v6690, 1
        %v6693 = vsel %vm1136, %v6688, %v6692
        %v6695 = vshrl.u32 %v6532, 16
        %v6697 = vshll.u32 %v6532, 16
        %v6699 = vrot.slane %v6697, 1
        %v6700 = vor.u32 %v6695, %v6699
        %v6702 = vshll.u32 %v6533, 16
        %v6704 = vrot.slane %v6702, 1
        %v6705 = vsel %vm1136, %v6700, %v6704
        %v6707 = vshrl.u32 %v6534, 16
        %v6709 = vshll.u32 %v6534, 16
        %v6711 = vrot.slane %v6709, 1
        %v6712 = vor.u32 %v6707, %v6711
        %v6714 = vshll.u32 %v6535, 16
        %v6716 = vrot.slane %v6714, 1
        %v6717 = vsel %vm1136, %v6712, %v6716
        %v6719 = vshrl.u32 %v6536, 16
        %v6721 = vshll.u32 %v6536, 16
        %v6723 = vrot.slane %v6721, 1
        %v6724 = vor.u32 %v6719, %v6723
        %v6726 = vshll.u32 %v6537, 16
        %v6728 = vrot.slane %v6726, 1
        %v6729 = vsel %vm1136, %v6724, %v6728
        %6730 = vrot.lane.b32.xlu0 %v6549, 96
        %v6731 = vpop.permute.xlu0 %6730
        %6732 = vrot.lane.b32.xlu0 %v6561, 96
        %v6733 = vpop.permute.xlu0 %6732
        %6734 = vrot.lane.b32.xlu0 %v6573, 96
        %v6735 = vpop.permute.xlu0 %6734
        %6736 = vrot.lane.b32.xlu0 %v6585, 96
        %v6737 = vpop.permute.xlu0 %6736
        %6738 = vrot.lane.b32.xlu0 %v6597, 96
        %v6739 = vpop.permute.xlu0 %6738
        %6740 = vrot.lane.b32.xlu0 %v6609, 96
        %v6741 = vpop.permute.xlu0 %6740
        %6742 = vrot.lane.b32.xlu0 %v6621, 96
        %v6743 = vpop.permute.xlu0 %6742
        %6744 = vrot.lane.b32.xlu0 %v6633, 96
        %v6745 = vpop.permute.xlu0 %6744
        %6746 = vrot.lane.b32.xlu0 %v6645, 96
        %v6747 = vpop.permute.xlu0 %6746
        %6748 = vrot.lane.b32.xlu0 %v6657, 96
        %v6749 = vpop.permute.xlu0 %6748
        %6750 = vrot.lane.b32.xlu0 %v6669, 96
        %v6751 = vpop.permute.xlu0 %6750
        %6752 = vrot.lane.b32.xlu0 %v6681, 96
        %v6753 = vpop.permute.xlu0 %6752
        %6754 = vrot.lane.b32.xlu0 %v6693, 96
        %v6755 = vpop.permute.xlu0 %6754
        %6756 = vrot.lane.b32.xlu0 %v6705, 96
        %v6757 = vpop.permute.xlu0 %6756
        %6758 = vrot.lane.b32.xlu0 %v6717, 96
        %v6759 = vpop.permute.xlu0 %6758
        %6760 = vrot.lane.b32.xlu0 %v6729, 96
        %v6761 = vpop.permute.xlu0 %6760
        %6778 = vst.msk [vmem:[#allocation5 + $0x8] sm:$0xff] %vm5480, %v6731
        %6779 = vst.msk [vmem:[#allocation5 + $0x20] sm:$0xff] %vm5480, %v6733
        %6780 = vst.msk [vmem:[#allocation5 + $0x38] sm:$0xff] %vm5480, %v6735
        %6781 = vst.msk [vmem:[#allocation5 + $0x50] sm:$0xff] %vm5480, %v6737
        %6782 = vst.msk [vmem:[#allocation5 + $0x68] sm:$0xff] %vm5480, %v6739
        %6783 = vst.msk [vmem:[#allocation5 + $0x80] sm:$0xff] %vm5480, %v6741
        %6784 = vst.msk [vmem:[#allocation5 + $0x98] sm:$0xff] %vm5480, %v6743
        %6785 = vst.msk [vmem:[#allocation5 + $0xb0] sm:$0xff] %vm5480, %v6745
        %6786 = vst.msk [vmem:[#allocation5 + $0xc8] sm:$0xff] %vm5480, %v6747
        %6787 = vst.msk [vmem:[#allocation5 + $0xe0] sm:$0xff] %vm5480, %v6749
        %6788 = vst.msk [vmem:[#allocation5 + $0xf8] sm:$0xff] %vm5480, %v6751
        %6789 = vst.msk [vmem:[#allocation5 + $0x110] sm:$0xff] %vm5480, %v6753
        %6790 = vst.msk [vmem:[#allocation5 + $0x128] sm:$0xff] %vm5480, %v6755
        %6791 = vst.msk [vmem:[#allocation5 + $0x140] sm:$0xff] %vm5480, %v6757
        %6792 = vst.msk [vmem:[#allocation5 + $0x158] sm:$0xff] %vm5480, %v6759
        %6793 = vst.msk [vmem:[#allocation5 + $0x170] sm:$0xff] %vm5480, %v6761
        %v6794 = vld [vmem:[%s6185] sm:$0xe]
        %v6795 = vld [vmem:[%s6185 + $0x4] sm:$0xf]
        %v6796 = vld [vmem:[%s6185 + $0x8] sm:$0x1]
        %v6797 = vld [vmem:[%s6185 + $0xc] sm:$0xe]
        %v6798 = vld [vmem:[%s6185 + $0x10] sm:$0xf]
        %v6799 = vld [vmem:[%s6185 + $0x14] sm:$0x1]
        %v6800 = vld [vmem:[%s6185 + $0x18] sm:$0xe]
        %v6801 = vld [vmem:[%s6185 + $0x1c] sm:$0xf]
        %v6802 = vld [vmem:[%s6185 + $0x20] sm:$0x1]
        %v6803 = vld [vmem:[%s6185 + $0x24] sm:$0xe]
        %v6804 = vld [vmem:[%s6185 + $0x28] sm:$0xf]
        %v6805 = vld [vmem:[%s6185 + $0x2c] sm:$0x1]
        %v6806 = vld [vmem:[%s6185 + $0x30] sm:$0xe]
        %v6807 = vld [vmem:[%s6185 + $0x34] sm:$0xf]
        %v6808 = vld [vmem:[%s6185 + $0x38] sm:$0x1]
        %v6809 = vld [vmem:[%s6185 + $0x3c] sm:$0xe]
        %v6810 = vld [vmem:[%s6185 + $0x40] sm:$0xf]
        %v6811 = vld [vmem:[%s6185 + $0x44] sm:$0x1]
        %v6812 = vld [vmem:[%s6185 + $0x48] sm:$0xe]
        %v6813 = vld [vmem:[%s6185 + $0x4c] sm:$0xf]
        %v6814 = vld [vmem:[%s6185 + $0x50] sm:$0x1]
        %v6815 = vld [vmem:[%s6185 + $0x54] sm:$0xe]
        %v6816 = vld [vmem:[%s6185 + $0x58] sm:$0xf]
        %v6817 = vld [vmem:[%s6185 + $0x5c] sm:$0x1]
        %v6818 = vld [vmem:[%s6185 + $0x60] sm:$0xe]
        %v6819 = vld [vmem:[%s6185 + $0x64] sm:$0xf]
        %v6820 = vld [vmem:[%s6185 + $0x68] sm:$0x1]
        %v6821 = vld [vmem:[%s6185 + $0x6c] sm:$0xe]
        %v6822 = vld [vmem:[%s6185 + $0x70] sm:$0xf]
        %v6823 = vld [vmem:[%s6185 + $0x74] sm:$0x1]
        %v6824 = vld [vmem:[%s6185 + $0x78] sm:$0xe]
        %v6825 = vld [vmem:[%s6185 + $0x7c] sm:$0xf]
        %v6826 = vld [vmem:[%s6185 + $0x80] sm:$0x1]
        %v6827 = vld [vmem:[%s6185 + $0x84] sm:$0xe]
        %v6828 = vld [vmem:[%s6185 + $0x88] sm:$0xf]
        %v6829 = vld [vmem:[%s6185 + $0x8c] sm:$0x1]
        %v6830 = vld [vmem:[%s6185 + $0x90] sm:$0xe]
        %v6831 = vld [vmem:[%s6185 + $0x94] sm:$0xf]
        %v6832 = vld [vmem:[%s6185 + $0x98] sm:$0x1]
        %v6833 = vld [vmem:[%s6185 + $0x9c] sm:$0xe]
        %v6834 = vld [vmem:[%s6185 + $0xa0] sm:$0xf]
        %v6835 = vld [vmem:[%s6185 + $0xa4] sm:$0x1]
        %v6836 = vld [vmem:[%s6185 + $0xa8] sm:$0xe]
        %v6837 = vld [vmem:[%s6185 + $0xac] sm:$0xf]
        %v6838 = vld [vmem:[%s6185 + $0xb0] sm:$0x1]
        %v6839 = vld [vmem:[%s6185 + $0xb4] sm:$0xe]
        %v6840 = vld [vmem:[%s6185 + $0xb8] sm:$0xf]
        %v6841 = vld [vmem:[%s6185 + $0xbc] sm:$0x1]
        %v6890 = vunpack.c.l.b16 %v6794
        %v6891 = vunpack.c.l.b16 %v6795
        %v6892 = vunpack.c.l.b16 %v6796
        %v6893 = vunpack.c.l.b16 %v6797
        %v6894 = vunpack.c.l.b16 %v6798
        %v6895 = vunpack.c.l.b16 %v6799
        %v6896 = vunpack.c.l.b16 %v6800
        %v6897 = vunpack.c.l.b16 %v6801
        %v6898 = vunpack.c.l.b16 %v6802
        %v6899 = vunpack.c.l.b16 %v6803
        %v6900 = vunpack.c.l.b16 %v6804
        %v6901 = vunpack.c.l.b16 %v6805
        %v6902 = vunpack.c.l.b16 %v6806
        %v6903 = vunpack.c.l.b16 %v6807
        %v6904 = vunpack.c.l.b16 %v6808
        %v6905 = vunpack.c.l.b16 %v6809
        %v6906 = vunpack.c.l.b16 %v6810
        %v6907 = vunpack.c.l.b16 %v6811
        %v6908 = vunpack.c.l.b16 %v6812
        %v6909 = vunpack.c.l.b16 %v6813
        %v6910 = vunpack.c.l.b16 %v6814
        %v6911 = vunpack.c.l.b16 %v6815
        %v6912 = vunpack.c.l.b16 %v6816
        %v6913 = vunpack.c.l.b16 %v6817
        %v6914 = vunpack.c.l.b16 %v6818
        %v6915 = vunpack.c.l.b16 %v6819
        %v6916 = vunpack.c.l.b16 %v6820
        %v6917 = vunpack.c.l.b16 %v6821
        %v6918 = vunpack.c.l.b16 %v6822
        %v6919 = vunpack.c.l.b16 %v6823
        %v6920 = vunpack.c.l.b16 %v6824
        %v6921 = vunpack.c.l.b16 %v6825
        %v6922 = vunpack.c.l.b16 %v6826
        %v6923 = vunpack.c.l.b16 %v6827
        %v6924 = vunpack.c.l.b16 %v6828
        %v6925 = vunpack.c.l.b16 %v6829
        %v6926 = vunpack.c.l.b16 %v6830
        %v6927 = vunpack.c.l.b16 %v6831
        %v6928 = vunpack.c.l.b16 %v6832
        %v6929 = vunpack.c.l.b16 %v6833
        %v6930 = vunpack.c.l.b16 %v6834
        %v6931 = vunpack.c.l.b16 %v6835
        %v6932 = vunpack.c.l.b16 %v6836
        %v6933 = vunpack.c.l.b16 %v6837
        %v6934 = vunpack.c.l.b16 %v6838
        %v6935 = vunpack.c.l.b16 %v6839
        %v6936 = vunpack.c.l.b16 %v6840
        %v6937 = vunpack.c.l.b16 %v6841
        %v6938 = vpack.c.b16 %v6891, %v6890
        %v6939 = vpack.c.b16 %v6892, %v6892
        %v6940 = vpack.c.b16 %v6894, %v6893
        %v6941 = vpack.c.b16 %v6895, %v6895
        %v6942 = vpack.c.b16 %v6897, %v6896
        %v6943 = vpack.c.b16 %v6898, %v6898
        %v6944 = vpack.c.b16 %v6900, %v6899
        %v6945 = vpack.c.b16 %v6901, %v6901
        %v6946 = vpack.c.b16 %v6903, %v6902
        %v6947 = vpack.c.b16 %v6904, %v6904
        %v6948 = vpack.c.b16 %v6906, %v6905
        %v6949 = vpack.c.b16 %v6907, %v6907
        %v6950 = vpack.c.b16 %v6909, %v6908
        %v6951 = vpack.c.b16 %v6910, %v6910
        %v6952 = vpack.c.b16 %v6912, %v6911
        %v6953 = vpack.c.b16 %v6913, %v6913
        %v6954 = vpack.c.b16 %v6915, %v6914
        %v6955 = vpack.c.b16 %v6916, %v6916
        %v6956 = vpack.c.b16 %v6918, %v6917
        %v6957 = vpack.c.b16 %v6919, %v6919
        %v6958 = vpack.c.b16 %v6921, %v6920
        %v6959 = vpack.c.b16 %v6922, %v6922
        %v6960 = vpack.c.b16 %v6924, %v6923
        %v6961 = vpack.c.b16 %v6925, %v6925
        %v6962 = vpack.c.b16 %v6927, %v6926
        %v6963 = vpack.c.b16 %v6928, %v6928
        %v6964 = vpack.c.b16 %v6930, %v6929
        %v6965 = vpack.c.b16 %v6931, %v6931
        %v6966 = vpack.c.b16 %v6933, %v6932
        %v6967 = vpack.c.b16 %v6934, %v6934
        %v6968 = vpack.c.b16 %v6936, %v6935
        %v6969 = vpack.c.b16 %v6937, %v6937
        %v6970 = vrot.slane %v6938, 1
        %v6971 = vrot.slane %v6939, 1
        %v6972 = vsel %vm1570, %v6970, %v6971
        %v6973 = vrot.slane %v6940, 1
        %v6974 = vrot.slane %v6941, 1
        %v6975 = vsel %vm1570, %v6973, %v6974
        %v6976 = vrot.slane %v6942, 1
        %v6977 = vrot.slane %v6943, 1
        %v6978 = vsel %vm1570, %v6976, %v6977
        %v6979 = vrot.slane %v6944, 1
        %v6980 = vrot.slane %v6945, 1
        %v6981 = vsel %vm1570, %v6979, %v6980
        %v6982 = vrot.slane %v6946, 1
        %v6983 = vrot.slane %v6947, 1
        %v6984 = vsel %vm1570, %v6982, %v6983
        %v6985 = vrot.slane %v6948, 1
        %v6986 = vrot.slane %v6949, 1
        %v6987 = vsel %vm1570, %v6985, %v6986
        %v6988 = vrot.slane %v6950, 1
        %v6989 = vrot.slane %v6951, 1
        %v6990 = vsel %vm1570, %v6988, %v6989
        %v6991 = vrot.slane %v6952, 1
        %v6992 = vrot.slane %v6953, 1
        %v6993 = vsel %vm1570, %v6991, %v6992
        %v6994 = vrot.slane %v6954, 1
        %v6995 = vrot.slane %v6955, 1
        %v6996 = vsel %vm1570, %v6994, %v6995
        %v6997 = vrot.slane %v6956, 1
        %v6998 = vrot.slane %v6957, 1
        %v6999 = vsel %vm1570, %v6997, %v6998
        %v7000 = vrot.slane %v6958, 1
        %v7001 = vrot.slane %v6959, 1
        %v7002 = vsel %vm1570, %v7000, %v7001
        %v7003 = vrot.slane %v6960, 1
        %v7004 = vrot.slane %v6961, 1
        %v7005 = vsel %vm1570, %v7003, %v7004
        %v7006 = vrot.slane %v6962, 1
        %v7007 = vrot.slane %v6963, 1
        %v7008 = vsel %vm1570, %v7006, %v7007
        %v7009 = vrot.slane %v6964, 1
        %v7010 = vrot.slane %v6965, 1
        %v7011 = vsel %vm1570, %v7009, %v7010
        %v7012 = vrot.slane %v6966, 1
        %v7013 = vrot.slane %v6967, 1
        %v7014 = vsel %vm1570, %v7012, %v7013
        %v7015 = vrot.slane %v6968, 1
        %v7016 = vrot.slane %v6969, 1
        %v7017 = vsel %vm1570, %v7015, %v7016
        %7034 = vst.msk [vmem:[#allocation5 + $0x10] sm:$0xff] %vm4581, %v6972
        %7035 = vst.msk [vmem:[#allocation5 + $0x28] sm:$0xff] %vm4581, %v6975
        %7036 = vst.msk [vmem:[#allocation5 + $0x40] sm:$0xff] %vm4581, %v6978
        %7037 = vst.msk [vmem:[#allocation5 + $0x58] sm:$0xff] %vm4581, %v6981
        %7038 = vst.msk [vmem:[#allocation5 + $0x70] sm:$0xff] %vm4581, %v6984
        %7039 = vst.msk [vmem:[#allocation5 + $0x88] sm:$0xff] %vm4581, %v6987
        %7040 = vst.msk [vmem:[#allocation5 + $0xa0] sm:$0xff] %vm4581, %v6990
        %7041 = vst.msk [vmem:[#allocation5 + $0xb8] sm:$0xff] %vm4581, %v6993
        %7042 = vst.msk [vmem:[#allocation5 + $0xd0] sm:$0xff] %vm4581, %v6996
        %7043 = vst.msk [vmem:[#allocation5 + $0xe8] sm:$0xff] %vm4581, %v6999
        %7044 = vst.msk [vmem:[#allocation5 + $0x100] sm:$0xff] %vm4581, %v7002
        %7045 = vst.msk [vmem:[#allocation5 + $0x118] sm:$0xff] %vm4581, %v7005
        %7046 = vst.msk [vmem:[#allocation5 + $0x130] sm:$0xff] %vm4581, %v7008
        %7047 = vst.msk [vmem:[#allocation5 + $0x148] sm:$0xff] %vm4581, %v7011
        %7048 = vst.msk [vmem:[#allocation5 + $0x160] sm:$0xff] %vm4581, %v7014
        %7049 = vst.msk [vmem:[#allocation5 + $0x178] sm:$0xff] %vm4581, %v7017
        %v7050 = vld [vmem:[#allocation5] sm:$0xff]
        %v7051 = vld [vmem:[#allocation5 + $0x8] sm:$0xff]
        %v7052 = vld [vmem:[#allocation5 + $0x10] sm:$0xff]
        %v7053 = vld [vmem:[#allocation5 + $0x18] sm:$0xff]
        %v7054 = vld [vmem:[#allocation5 + $0x20] sm:$0xff]
        %v7055 = vld [vmem:[#allocation5 + $0x28] sm:$0xff]
        %v7056 = vld [vmem:[#allocation5 + $0x30] sm:$0xff]
        %v7057 = vld [vmem:[#allocation5 + $0x38] sm:$0xff]
        %v7058 = vld [vmem:[#allocation5 + $0x40] sm:$0xff]
        %v7059 = vld [vmem:[#allocation5 + $0x48] sm:$0xff]
        %v7060 = vld [vmem:[#allocation5 + $0x50] sm:$0xff]
        %v7061 = vld [vmem:[#allocation5 + $0x58] sm:$0xff]
        %v7062 = vld [vmem:[#allocation5 + $0x60] sm:$0xff]
        %v7063 = vld [vmem:[#allocation5 + $0x68] sm:$0xff]
        %v7064 = vld [vmem:[#allocation5 + $0x70] sm:$0xff]
        %v7065 = vld [vmem:[#allocation5 + $0x78] sm:$0xff]
        %v7066 = vld [vmem:[#allocation5 + $0x80] sm:$0xff]
        %v7067 = vld [vmem:[#allocation5 + $0x88] sm:$0xff]
        %v7068 = vld [vmem:[#allocation5 + $0x90] sm:$0xff]
        %v7069 = vld [vmem:[#allocation5 + $0x98] sm:$0xff]
        %v7070 = vld [vmem:[#allocation5 + $0xa0] sm:$0xff]
        %v7071 = vld [vmem:[#allocation5 + $0xa8] sm:$0xff]
        %v7072 = vld [vmem:[#allocation5 + $0xb0] sm:$0xff]
        %v7073 = vld [vmem:[#allocation5 + $0xb8] sm:$0xff]
        %v7074 = vld [vmem:[#allocation5 + $0xc0] sm:$0xff]
        %v7075 = vld [vmem:[#allocation5 + $0xc8] sm:$0xff]
        %v7076 = vld [vmem:[#allocation5 + $0xd0] sm:$0xff]
        %v7077 = vld [vmem:[#allocation5 + $0xd8] sm:$0xff]
        %v7078 = vld [vmem:[#allocation5 + $0xe0] sm:$0xff]
        %v7079 = vld [vmem:[#allocation5 + $0xe8] sm:$0xff]
        %v7080 = vld [vmem:[#allocation5 + $0xf0] sm:$0xff]
        %v7081 = vld [vmem:[#allocation5 + $0xf8] sm:$0xff]
        %v7082 = vld [vmem:[#allocation5 + $0x100] sm:$0xff]
        %v7083 = vld [vmem:[#allocation5 + $0x108] sm:$0xff]
        %v7084 = vld [vmem:[#allocation5 + $0x110] sm:$0xff]
        %v7085 = vld [vmem:[#allocation5 + $0x118] sm:$0xff]
        %v7086 = vld [vmem:[#allocation5 + $0x120] sm:$0xff]
        %v7087 = vld [vmem:[#allocation5 + $0x128] sm:$0xff]
        %v7088 = vld [vmem:[#allocation5 + $0x130] sm:$0xff]
        %v7089 = vld [vmem:[#allocation5 + $0x138] sm:$0xff]
        %v7090 = vld [vmem:[#allocation5 + $0x140] sm:$0xff]
        %v7091 = vld [vmem:[#allocation5 + $0x148] sm:$0xff]
        %v7092 = vld [vmem:[#allocation5 + $0x150] sm:$0xff]
        %v7093 = vld [vmem:[#allocation5 + $0x158] sm:$0xff]
        %v7094 = vld [vmem:[#allocation5 + $0x160] sm:$0xff]
        %v7095 = vld [vmem:[#allocation5 + $0x168] sm:$0xff]
        %v7096 = vld [vmem:[#allocation5 + $0x170] sm:$0xff]
        %v7097 = vld [vmem:[#allocation5 + $0x178] sm:$0xff]
        %v7098 = vld [vmem:[%s3] sm:$0xf]
        %v7099 = vld [vmem:[%s3 + $0x4] sm:$0xf]
        %v7100 = vld [vmem:[%s3 + $0x8] sm:$0xf]
        %v7101 = vld [vmem:[%s3 + $0xc] sm:$0xf]
        %v7102 = vld [vmem:[%s3 + $0x10] sm:$0xf]
        %v7103 = vld [vmem:[%s3 + $0x14] sm:$0xf]
        %v7104 = vld [vmem:[%s3 + $0x18] sm:$0xf]
        %v7105 = vld [vmem:[%s3 + $0x1c] sm:$0xf]
        %v7106 = vld [vmem:[%s3 + $0x20] sm:$0xf]
        %v7107 = vld [vmem:[%s3 + $0x24] sm:$0xf]
        %v7108 = vld [vmem:[%s3 + $0x28] sm:$0xf]
        %v7109 = vld [vmem:[%s3 + $0x2c] sm:$0xf]
        %v7110 = vld [vmem:[%s3 + $0x30] sm:$0xf]
        %v7111 = vld [vmem:[%s3 + $0x34] sm:$0xf]
        %v7112 = vld [vmem:[%s3 + $0x38] sm:$0xf]
        %v7113 = vld [vmem:[%s3 + $0x3c] sm:$0xf]
        %v7114 = vld [vmem:[%s3 + $0x40] sm:$0xf]
        %v7115 = vld [vmem:[%s3 + $0x44] sm:$0xf]
        %v7116 = vld [vmem:[%s3 + $0x48] sm:$0xf]
        %v7117 = vld [vmem:[%s3 + $0x4c] sm:$0xf]
        %v7118 = vld [vmem:[%s3 + $0x50] sm:$0xf]
        %v7119 = vld [vmem:[%s3 + $0x54] sm:$0xf]
        %v7120 = vld [vmem:[%s3 + $0x58] sm:$0xf]
        %v7121 = vld [vmem:[%s3 + $0x5c] sm:$0xf]
        %v7122 = vld [vmem:[%s3 + $0x60] sm:$0xf]
        %v7123 = vld [vmem:[%s3 + $0x64] sm:$0xf]
        %v7124 = vld [vmem:[%s3 + $0x68] sm:$0xf]
        %v7125 = vld [vmem:[%s3 + $0x6c] sm:$0xf]
        %v7126 = vld [vmem:[%s3 + $0x70] sm:$0xf]
        %v7127 = vld [vmem:[%s3 + $0x74] sm:$0xf]
        %v7128 = vld [vmem:[%s3 + $0x78] sm:$0xf]
        %v7129 = vld [vmem:[%s3 + $0x7c] sm:$0xf]
        %v7130 = vld [vmem:[%s3 + $0x80] sm:$0xf]
        %v7131 = vld [vmem:[%s3 + $0x84] sm:$0xf]
        %v7132 = vld [vmem:[%s3 + $0x88] sm:$0xf]
        %v7133 = vld [vmem:[%s3 + $0x8c] sm:$0xf]
        %v7134 = vld [vmem:[%s4] sm:$0x1]
        %v7136 = vlaneseq
        %v7137 = vshrl.u32 %v7136, 7
        %v7138 = vsub.s32 0, %v7137
        %v7139 = vrot.slane %v7134, %v7138
        %v7177 = vunpack.c.l.b16 %v7098
        %v7178 = vunpack.c.l.b16 %v7099
        %v7179 = vunpack.c.l.b16 %v7100
        %v7180 = vunpack.c.l.b16 %v7101
        %v7181 = vunpack.c.l.b16 %v7102
        %v7182 = vunpack.c.l.b16 %v7103
        %v7183 = vunpack.c.l.b16 %v7104
        %v7184 = vunpack.c.l.b16 %v7105
        %v7185 = vunpack.c.l.b16 %v7106
        %v7186 = vunpack.c.l.b16 %v7107
        %v7187 = vunpack.c.l.b16 %v7108
        %v7188 = vunpack.c.l.b16 %v7109
        %v7189 = vunpack.c.l.b16 %v7110
        %v7190 = vunpack.c.l.b16 %v7111
        %v7191 = vunpack.c.l.b16 %v7112
        %v7192 = vunpack.c.l.b16 %v7113
        %v7193 = vunpack.c.l.b16 %v7114
        %v7194 = vunpack.c.l.b16 %v7115
        %v7195 = vunpack.c.l.b16 %v7116
        %v7196 = vunpack.c.l.b16 %v7117
        %v7197 = vunpack.c.l.b16 %v7118
        %v7198 = vunpack.c.l.b16 %v7119
        %v7199 = vunpack.c.l.b16 %v7120
        %v7200 = vunpack.c.l.b16 %v7121
        %v7201 = vunpack.c.l.b16 %v7122
        %v7202 = vunpack.c.l.b16 %v7123
        %v7203 = vunpack.c.l.b16 %v7124
        %v7204 = vunpack.c.l.b16 %v7125
        %v7205 = vunpack.c.l.b16 %v7126
        %v7206 = vunpack.c.l.b16 %v7127
        %v7207 = vunpack.c.l.b16 %v7128
        %v7208 = vunpack.c.l.b16 %v7129
        %v7209 = vunpack.c.l.b16 %v7130
        %v7210 = vunpack.c.l.b16 %v7131
        %v7211 = vunpack.c.l.b16 %v7132
        %v7212 = vunpack.c.l.b16 %v7133
        %v7213 = vpack.c.b16 %v7178, %v7177
        %v7214 = vpack.c.b16 %v7180, %v7179
        %v7215 = vpack.c.b16 %v7182, %v7181
        %v7216 = vpack.c.b16 %v7184, %v7183
        %v7217 = vpack.c.b16 %v7186, %v7185
        %v7218 = vpack.c.b16 %v7188, %v7187
        %v7219 = vpack.c.b16 %v7190, %v7189
        %v7220 = vpack.c.b16 %v7192, %v7191
        %v7221 = vpack.c.b16 %v7194, %v7193
        %v7222 = vpack.c.b16 %v7196, %v7195
        %v7223 = vpack.c.b16 %v7198, %v7197
        %v7224 = vpack.c.b16 %v7200, %v7199
        %v7225 = vpack.c.b16 %v7202, %v7201
        %v7226 = vpack.c.b16 %v7204, %v7203
        %v7227 = vpack.c.b16 %v7206, %v7205
        %v7228 = vpack.c.b16 %v7208, %v7207
        %v7229 = vpack.c.b16 %v7210, %v7209
        %v7230 = vpack.c.b16 %v7212, %v7211
        %v7250 = vsel %vm4581, %v7052, 0
        %v7253 = vsel %vm4581, %v7055, 0
        %v7256 = vsel %vm4581, %v7058, 0
        %v7259 = vsel %vm4581, %v7061, 0
        %v7262 = vsel %vm4581, %v7064, 0
        %v7265 = vsel %vm4581, %v7067, 0
        %v7268 = vsel %vm4581, %v7070, 0
        %v7271 = vsel %vm4581, %v7073, 0
        %v7274 = vsel %vm4581, %v7076, 0
        %v7277 = vsel %vm4581, %v7079, 0
        %v7280 = vsel %vm4581, %v7082, 0
        %v7283 = vsel %vm4581, %v7085, 0
        %v7286 = vsel %vm4581, %v7088, 0
        %v7289 = vsel %vm4581, %v7091, 0
        %v7292 = vsel %vm4581, %v7094, 0
        %v7295 = vsel %vm4581, %v7097, 0
        %7297 = vmatprep.subr.bf16.mxu0 0
        %7298 = vmatpush1.bf16.msra.mxu0 %v7213
        %7299 = vmatprep.subr.bf16.mxu0 0
        %7300 = vmatpush1.bf16.msra.mxu0 %v7214
        %7301 = vmatprep.subr.bf16.mxu0 0
        %7302 = vmatpush1.bf16.msra.mxu0 %v7215
        %7303 = vmatprep.subr.bf16.mxu0 0
        %7304 = vmatpush1.bf16.msra.mxu0 %v7216
        %7305 = vmatprep.subr.bf16.mxu0 0
        %7306 = vmatpush1.bf16.msra.mxu0 %v7217
        %7307 = vmatprep.subr.bf16.mxu0 0
        %7308 = vmatpush1.bf16.msra.mxu0 %v7218
        %7309 = vmatprep.subr.bf16.mxu0 0
        %7310 = vmatpush1.bf16.msra.mxu0 %v7219
        %7311 = vmatprep.subr.bf16.mxu0 0
        %7312 = vmatpush1.bf16.msra.mxu0 %v7220
        %7313 = vmatprep.subr.bf16.mxu0 0
        %7314 = vmatpush1.bf16.msra.mxu0 %v7221
        %7315 = vmatprep.subr.bf16.mxu0 0
        %7316 = vmatpush1.bf16.msra.mxu0 %v7222
        %7317 = vmatprep.subr.bf16.mxu0 0
        %7318 = vmatpush1.bf16.msra.mxu0 %v7223
        %7319 = vmatprep.subr.bf16.mxu0 0
        %7320 = vmatpush1.bf16.msra.mxu0 %v7224
        %7321 = vmatprep.subr.bf16.mxu0 0
        %7322 = vmatpush1.bf16.msra.mxu0 %v7225
        %7323 = vmatprep.subr.bf16.mxu0 0
        %7324 = vmatpush1.bf16.msra.mxu0 %v7226
        %7325 = vmatprep.subr.bf16.mxu0 0
        %7326 = vmatpush1.bf16.msra.mxu0 %v7227
        %7327 = vmatprep.subr.bf16.mxu0 0
        %7328 = vmatpush1.bf16.msra.mxu0 %v7228
        %7329 = vmatprep.mubr.bf16.mxu0 %v7051
        %7330 = vmatmul.mubr.bf16.gmra.mrb[0].mxu0 %v7050
        %v7331 = vpop.f32.mrb[0].mxu0
        %v7332 = vadd.f32 %v7139, %v7331
        %v7333 = vpop.f32.mrb[0].mxu0
        %v7334 = vpop.f32.mrb[0].mxu0
        %v7335 = vadd.f32 %v7139, %v7334
        %v7336 = vpop.f32.mrb[0].mxu0
        %7337 = vmatprep.mubr.bf16.mxu0 %v7054
        %7338 = vmatmul.mubr.bf16.gmra.mrb[0].mxu0 %v7053
        %v7339 = vpop.f32.mrb[0].mxu0
        %v7340 = vadd.f32 %v7139, %v7339
        %v7341 = vpop.f32.mrb[0].mxu0
        %v7342 = vpop.f32.mrb[0].mxu0
        %v7343 = vadd.f32 %v7139, %v7342
        %v7344 = vpop.f32.mrb[0].mxu0
        %7345 = vmatprep.mubr.bf16.mxu0 %v7057
        %7346 = vmatmul.mubr.bf16.gmra.mrb[0].mxu0 %v7056
        %v7347 = vpop.f32.mrb[0].mxu0
        %v7348 = vadd.f32 %v7139, %v7347
        %v7349 = vpop.f32.mrb[0].mxu0
        %v7350 = vpop.f32.mrb[0].mxu0
        %v7351 = vadd.f32 %v7139, %v7350
        %v7352 = vpop.f32.mrb[0].mxu0
        %7353 = vmatprep.mubr.bf16.mxu0 %v7060
        %7354 = vmatmul.mubr.bf16.gmra.mrb[0].mxu0 %v7059
        %v7355 = vpop.f32.mrb[0].mxu0
        %v7356 = vadd.f32 %v7139, %v7355
        %v7357 = vpop.f32.mrb[0].mxu0
        %v7358 = vpop.f32.mrb[0].mxu0
        %v7359 = vadd.f32 %v7139, %v7358
        %v7360 = vpop.f32.mrb[0].mxu0
        %7361 = vmatprep.mubr.bf16.mxu0 %v7063
        %7362 = vmatmul.mubr.bf16.gmra.mrb[0].mxu0 %v7062
        %v7363 = vpop.f32.mrb[0].mxu0
        %v7364 = vadd.f32 %v7139, %v7363
        %v7365 = vpop.f32.mrb[0].mxu0
        %v7366 = vpop.f32.mrb[0].mxu0
        %v7367 = vadd.f32 %v7139, %v7366
        %v7368 = vpop.f32.mrb[0].mxu0
        %7369 = vmatprep.mubr.bf16.mxu0 %v7066
        %7370 = vmatmul.mubr.bf16.gmra.mrb[0].mxu0 %v7065
        %v7371 = vpop.f32.mrb[0].mxu0
        %v7372 = vadd.f32 %v7139, %v7371
        %v7373 = vpop.f32.mrb[0].mxu0
        %v7374 = vpop.f32.mrb[0].mxu0
        %v7375 = vadd.f32 %v7139, %v7374
        %v7376 = vpop.f32.mrb[0].mxu0
        %7377 = vmatprep.mubr.bf16.mxu0 %v7069
        %7378 = vmatmul.mubr.bf16.gmra.mrb[0].mxu0 %v7068
        %v7379 = vpop.f32.mrb[0].mxu0
        %v7380 = vadd.f32 %v7139, %v7379
        %v7381 = vpop.f32.mrb[0].mxu0
        %v7382 = vpop.f32.mrb[0].mxu0
        %v7383 = vadd.f32 %v7139, %v7382
        %v7384 = vpop.f32.mrb[0].mxu0
        %7385 = vmatprep.mubr.bf16.mxu0 %v7072
        %7386 = vmatmul.mubr.bf16.gmra.mrb[0].mxu0 %v7071
        %v7387 = vpop.f32.mrb[0].mxu0
        %v7388 = vadd.f32 %v7139, %v7387
        %v7389 = vpop.f32.mrb[0].mxu0
        %v7390 = vpop.f32.mrb[0].mxu0
        %v7391 = vadd.f32 %v7139, %v7390
        %v7392 = vpop.f32.mrb[0].mxu0
        %7393 = vmatprep.mubr.bf16.mxu0 %v7075
        %7394 = vmatmul.mubr.bf16.gmra.mrb[0].mxu0 %v7074
        %v7395 = vpop.f32.mrb[0].mxu0
        %v7396 = vadd.f32 %v7139, %v7395
        %v7397 = vpop.f32.mrb[0].mxu0
        %v7398 = vpop.f32.mrb[0].mxu0
        %v7399 = vadd.f32 %v7139, %v7398
        %v7400 = vpop.f32.mrb[0].mxu0
        %7401 = vmatprep.mubr.bf16.mxu0 %v7078
        %7402 = vmatmul.mubr.bf16.gmra.mrb[0].mxu0 %v7077
        %v7403 = vpop.f32.mrb[0].mxu0
        %v7404 = vadd.f32 %v7139, %v7403
        %v7405 = vpop.f32.mrb[0].mxu0
        %v7406 = vpop.f32.mrb[0].mxu0
        %v7407 = vadd.f32 %v7139, %v7406
        %v7408 = vpop.f32.mrb[0].mxu0
        %7409 = vmatprep.mubr.bf16.mxu0 %v7081
        %7410 = vmatmul.mubr.bf16.gmra.mrb[0].mxu0 %v7080
        %v7411 = vpop.f32.mrb[0].mxu0
        %v7412 = vadd.f32 %v7139, %v7411
        %v7413 = vpop.f32.mrb[0].mxu0
        %v7414 = vpop.f32.mrb[0].mxu0
        %v7415 = vadd.f32 %v7139, %v7414
        %v7416 = vpop.f32.mrb[0].mxu0
        %7417 = vmatprep.mubr.bf16.mxu0 %v7084
        %7418 = vmatmul.mubr.bf16.gmra.mrb[0].mxu0 %v7083
        %v7419 = vpop.f32.mrb[0].mxu0
        %v7420 = vadd.f32 %v7139, %v7419
        %v7421 = vpop.f32.mrb[0].mxu0
        %v7422 = vpop.f32.mrb[0].mxu0
        %v7423 = vadd.f32 %v7139, %v7422
        %v7424 = vpop.f32.mrb[0].mxu0
        %7425 = vmatprep.mubr.bf16.mxu0 %v7087
        %7426 = vmatmul.mubr.bf16.gmra.mrb[0].mxu0 %v7086
        %v7427 = vpop.f32.mrb[0].mxu0
        %v7428 = vadd.f32 %v7139, %v7427
        %v7429 = vpop.f32.mrb[0].mxu0
        %v7430 = vpop.f32.mrb[0].mxu0
        %v7431 = vadd.f32 %v7139, %v7430
        %v7432 = vpop.f32.mrb[0].mxu0
        %7433 = vmatprep.mubr.bf16.mxu0 %v7090
        %7434 = vmatmul.mubr.bf16.gmra.mrb[0].mxu0 %v7089
        %v7435 = vpop.f32.mrb[0].mxu0
        %v7436 = vadd.f32 %v7139, %v7435
        %v7437 = vpop.f32.mrb[0].mxu0
        %v7438 = vpop.f32.mrb[0].mxu0
        %v7439 = vadd.f32 %v7139, %v7438
        %v7440 = vpop.f32.mrb[0].mxu0
        %7441 = vmatprep.mubr.bf16.mxu0 %v7093
        %7442 = vmatmul.mubr.bf16.gmra.mrb[0].mxu0 %v7092
        %v7443 = vpop.f32.mrb[0].mxu0
        %v7444 = vadd.f32 %v7139, %v7443
        %v7445 = vpop.f32.mrb[0].mxu0
        %v7446 = vpop.f32.mrb[0].mxu0
        %v7447 = vadd.f32 %v7139, %v7446
        %v7448 = vpop.f32.mrb[0].mxu0
        %7449 = vmatprep.mubr.bf16.mxu0 %v7096
        %7450 = vmatmul.mubr.bf16.gmra.mrb[0].mxu0 %v7095
        %v7451 = vpop.f32.mrb[0].mxu0
        %v7452 = vadd.f32 %v7139, %v7451
        %v7453 = vpop.f32.mrb[0].mxu0
        %v7454 = vpop.f32.mrb[0].mxu0
        %v7455 = vadd.f32 %v7139, %v7454
        %v7456 = vpop.f32.mrb[0].mxu0
        %7457 = vdwg.mxu0
        %7458 = vmatprep.subr.bf16.mxu0 0
        %7459 = vmatpush1.bf16.msra.mxu0 %v7229
        %7460 = vmatprep.subr.bf16.mxu0 0
        %7461 = vmatpush1.bf16.msra.mxu0 %v7230
        %7462 = vmatprep.subr.bf16.mxu0 0
        %7463 = vmatpush1.bf16.msra.mxu0 0
        %7464 = vmatprep.subr.bf16.mxu0 0
        %7465 = vmatpush1.bf16.msra.mxu0 0
        %7466 = vmatprep.subr.bf16.mxu0 0
        %7467 = vmatpush1.bf16.msra.mxu0 0
        %7468 = vmatprep.subr.bf16.mxu0 0
        %7469 = vmatpush1.bf16.msra.mxu0 0
        %7470 = vmatprep.subr.bf16.mxu0 0
        %7471 = vmatpush1.bf16.msra.mxu0 0
        %7472 = vmatprep.subr.bf16.mxu0 0
        %7473 = vmatpush1.bf16.msra.mxu0 0
        %7474 = vmatprep.subr.bf16.mxu0 0
        %7475 = vmatpush1.bf16.msra.mxu0 0
        %7476 = vmatprep.subr.bf16.mxu0 0
        %7477 = vmatpush1.bf16.msra.mxu0 0
        %7478 = vmatprep.subr.bf16.mxu0 0
        %7479 = vmatpush1.bf16.msra.mxu0 0
        %7480 = vmatprep.subr.bf16.mxu0 0
        %7481 = vmatpush1.bf16.msra.mxu0 0
        %7482 = vmatprep.subr.bf16.mxu0 0
        %7483 = vmatpush1.bf16.msra.mxu0 0
        %7484 = vmatprep.subr.bf16.mxu0 0
        %7485 = vmatpush1.bf16.msra.mxu0 0
        %7486 = vmatprep.subr.bf16.mxu0 0
        %7487 = vmatpush1.bf16.msra.mxu0 0
        %7488 = vmatprep.subr.bf16.mxu0 0
        %7489 = vmatpush1.bf16.msra.mxu0 0
        %7490 = vmatprep.mubr.bf16.mxu0 0
        %7491 = vmatmul.mubr.bf16.gmra.mrb[0].mxu0 %v7250
        %v7492 = vpop.f32.mrb[0].mxu0
        %v7493 = vadd.f32 %v7332, %v7492
        %v7494 = vpop.f32.mrb[0].mxu0
        %v7495 = vpop.f32.mrb[0].mxu0
        %v7496 = vadd.f32 %v7335, %v7495
        %v7497 = vpop.f32.mrb[0].mxu0
        %7498 = vmatprep.mubr.bf16.mxu0 0
        %7499 = vmatmul.mubr.bf16.gmra.mrb[0].mxu0 %v7253
        %v7500 = vpop.f32.mrb[0].mxu0
        %v7501 = vadd.f32 %v7340, %v7500
        %v7502 = vpop.f32.mrb[0].mxu0
        %v7503 = vpop.f32.mrb[0].mxu0
        %v7504 = vadd.f32 %v7343, %v7503
        %v7505 = vpop.f32.mrb[0].mxu0
        %7506 = vmatprep.mubr.bf16.mxu0 0
        %7507 = vmatmul.mubr.bf16.gmra.mrb[0].mxu0 %v7256
        %v7508 = vpop.f32.mrb[0].mxu0
        %v7509 = vadd.f32 %v7348, %v7508
        %v7510 = vpop.f32.mrb[0].mxu0
        %v7511 = vpop.f32.mrb[0].mxu0
        %v7512 = vadd.f32 %v7351, %v7511
        %v7513 = vpop.f32.mrb[0].mxu0
        %7514 = vmatprep.mubr.bf16.mxu0 0
        %7515 = vmatmul.mubr.bf16.gmra.mrb[0].mxu0 %v7259
        %v7516 = vpop.f32.mrb[0].mxu0
        %v7517 = vadd.f32 %v7356, %v7516
        %v7518 = vpop.f32.mrb[0].mxu0
        %v7519 = vpop.f32.mrb[0].mxu0
        %v7520 = vadd.f32 %v7359, %v7519
        %v7521 = vpop.f32.mrb[0].mxu0
        %7522 = vmatprep.mubr.bf16.mxu0 0
        %7523 = vmatmul.mubr.bf16.gmra.mrb[0].mxu0 %v7262
        %v7524 = vpop.f32.mrb[0].mxu0
        %v7525 = vadd.f32 %v7364, %v7524
        %v7526 = vpop.f32.mrb[0].mxu0
        %v7527 = vpop.f32.mrb[0].mxu0
        %v7528 = vadd.f32 %v7367, %v7527
        %v7529 = vpop.f32.mrb[0].mxu0
        %7530 = vmatprep.mubr.bf16.mxu0 0
        %7531 = vmatmul.mubr.bf16.gmra.mrb[0].mxu0 %v7265
        %v7532 = vpop.f32.mrb[0].mxu0
        %v7533 = vadd.f32 %v7372, %v7532
        %v7534 = vpop.f32.mrb[0].mxu0
        %v7535 = vpop.f32.mrb[0].mxu0
        %v7536 = vadd.f32 %v7375, %v7535
        %v7537 = vpop.f32.mrb[0].mxu0
        %7538 = vmatprep.mubr.bf16.mxu0 0
        %7539 = vmatmul.mubr.bf16.gmra.mrb[0].mxu0 %v7268
        %v7540 = vpop.f32.mrb[0].mxu0
        %v7541 = vadd.f32 %v7380, %v7540
        %v7542 = vpop.f32.mrb[0].mxu0
        %v7543 = vpop.f32.mrb[0].mxu0
        %v7544 = vadd.f32 %v7383, %v7543
        %v7545 = vpop.f32.mrb[0].mxu0
        %7546 = vmatprep.mubr.bf16.mxu0 0
        %7547 = vmatmul.mubr.bf16.gmra.mrb[0].mxu0 %v7271
        %v7548 = vpop.f32.mrb[0].mxu0
        %v7549 = vadd.f32 %v7388, %v7548
        %v7550 = vpop.f32.mrb[0].mxu0
        %v7551 = vpop.f32.mrb[0].mxu0
        %v7552 = vadd.f32 %v7391, %v7551
        %v7553 = vpop.f32.mrb[0].mxu0
        %7554 = vmatprep.mubr.bf16.mxu0 0
        %7555 = vmatmul.mubr.bf16.gmra.mrb[0].mxu0 %v7274
        %v7556 = vpop.f32.mrb[0].mxu0
        %v7557 = vadd.f32 %v7396, %v7556
        %v7558 = vpop.f32.mrb[0].mxu0
        %v7559 = vpop.f32.mrb[0].mxu0
        %v7560 = vadd.f32 %v7399, %v7559
        %v7561 = vpop.f32.mrb[0].mxu0
        %7562 = vmatprep.mubr.bf16.mxu0 0
        %7563 = vmatmul.mubr.bf16.gmra.mrb[0].mxu0 %v7277
        %v7564 = vpop.f32.mrb[0].mxu0
        %v7565 = vadd.f32 %v7404, %v7564
        %v7566 = vpop.f32.mrb[0].mxu0
        %v7567 = vpop.f32.mrb[0].mxu0
        %v7568 = vadd.f32 %v7407, %v7567
        %v7569 = vpop.f32.mrb[0].mxu0
        %7570 = vmatprep.mubr.bf16.mxu0 0
        %7571 = vmatmul.mubr.bf16.gmra.mrb[0].mxu0 %v7280
        %v7572 = vpop.f32.mrb[0].mxu0
        %v7573 = vadd.f32 %v7412, %v7572
        %v7574 = vpop.f32.mrb[0].mxu0
        %v7575 = vpop.f32.mrb[0].mxu0
        %v7576 = vadd.f32 %v7415, %v7575
        %v7577 = vpop.f32.mrb[0].mxu0
        %7578 = vmatprep.mubr.bf16.mxu0 0
        %7579 = vmatmul.mubr.bf16.gmra.mrb[0].mxu0 %v7283
        %v7580 = vpop.f32.mrb[0].mxu0
        %v7581 = vadd.f32 %v7420, %v7580
        %v7582 = vpop.f32.mrb[0].mxu0
        %v7583 = vpop.f32.mrb[0].mxu0
        %v7584 = vadd.f32 %v7423, %v7583
        %v7585 = vpop.f32.mrb[0].mxu0
        %7586 = vmatprep.mubr.bf16.mxu0 0
        %7587 = vmatmul.mubr.bf16.gmra.mrb[0].mxu0 %v7286
        %v7588 = vpop.f32.mrb[0].mxu0
        %v7589 = vadd.f32 %v7428, %v7588
        %v7590 = vpop.f32.mrb[0].mxu0
        %v7591 = vpop.f32.mrb[0].mxu0
        %v7592 = vadd.f32 %v7431, %v7591
        %v7593 = vpop.f32.mrb[0].mxu0
        %7594 = vmatprep.mubr.bf16.mxu0 0
        %7595 = vmatmul.mubr.bf16.gmra.mrb[0].mxu0 %v7289
        %v7596 = vpop.f32.mrb[0].mxu0
        %v7597 = vadd.f32 %v7436, %v7596
        %v7598 = vpop.f32.mrb[0].mxu0
        %v7599 = vpop.f32.mrb[0].mxu0
        %v7600 = vadd.f32 %v7439, %v7599
        %v7601 = vpop.f32.mrb[0].mxu0
        %7602 = vmatprep.mubr.bf16.mxu0 0
        %7603 = vmatmul.mubr.bf16.gmra.mrb[0].mxu0 %v7292
        %v7604 = vpop.f32.mrb[0].mxu0
        %v7605 = vadd.f32 %v7444, %v7604
        %v7606 = vpop.f32.mrb[0].mxu0
        %v7607 = vpop.f32.mrb[0].mxu0
        %v7608 = vadd.f32 %v7447, %v7607
        %v7609 = vpop.f32.mrb[0].mxu0
        %7610 = vmatprep.mubr.bf16.mxu0 0
        %7611 = vmatmul.mubr.bf16.gmra.mrb[0].mxu0 %v7295
        %v7612 = vpop.f32.mrb[0].mxu0
        %v7613 = vadd.f32 %v7452, %v7612
        %v7614 = vpop.f32.mrb[0].mxu0
        %v7615 = vpop.f32.mrb[0].mxu0
        %v7616 = vadd.f32 %v7455, %v7615
        %v7617 = vpop.f32.mrb[0].mxu0
        %7618 = vdwg.mxu0
        %v7619 = vmax.f32 %v7493, 0.0
        %v7620 = vmax.f32 %v7496, 0.0
        %v7621 = vmax.f32 %v7501, 0.0
        %v7622 = vmax.f32 %v7504, 0.0
        %v7623 = vmax.f32 %v7509, 0.0
        %v7624 = vmax.f32 %v7512, 0.0
        %v7625 = vmax.f32 %v7517, 0.0
        %v7626 = vmax.f32 %v7520, 0.0
        %v7627 = vmax.f32 %v7525, 0.0
        %v7628 = vmax.f32 %v7528, 0.0
        %v7629 = vmax.f32 %v7533, 0.0
        %v7630 = vmax.f32 %v7536, 0.0
        %v7631 = vmax.f32 %v7541, 0.0
        %v7632 = vmax.f32 %v7544, 0.0
        %v7633 = vmax.f32 %v7549, 0.0
        %v7634 = vmax.f32 %v7552, 0.0
        %v7635 = vmax.f32 %v7557, 0.0
        %v7636 = vmax.f32 %v7560, 0.0
        %v7637 = vmax.f32 %v7565, 0.0
        %v7638 = vmax.f32 %v7568, 0.0
        %v7639 = vmax.f32 %v7573, 0.0
        %v7640 = vmax.f32 %v7576, 0.0
        %v7641 = vmax.f32 %v7581, 0.0
        %v7642 = vmax.f32 %v7584, 0.0
        %v7643 = vmax.f32 %v7589, 0.0
        %v7644 = vmax.f32 %v7592, 0.0
        %v7645 = vmax.f32 %v7597, 0.0
        %v7646 = vmax.f32 %v7600, 0.0
        %v7647 = vmax.f32 %v7605, 0.0
        %v7648 = vmax.f32 %v7608, 0.0
        %v7649 = vmax.f32 %v7613, 0.0
        %v7650 = vmax.f32 %v7616, 0.0
        %7651 = vst.msk [vmem:[%s217] sm:$0xff] %vm4581, %v7619
        %7652 = vst.msk [vmem:[%s217 + $0x8] sm:$0xff] %vm4581, %v7620
        %7653 = vst.msk [vmem:[%s217 + $0x10] sm:$0xff] %vm4581, %v7621
        %7654 = vst.msk [vmem:[%s217 + $0x18] sm:$0xff] %vm4581, %v7622
        %7655 = vst.msk [vmem:[%s217 + $0x20] sm:$0xff] %vm4581, %v7623
        %7656 = vst.msk [vmem:[%s217 + $0x28] sm:$0xff] %vm4581, %v7624
        %7657 = vst.msk [vmem:[%s217 + $0x30] sm:$0xff] %vm4581, %v7625
        %7658 = vst.msk [vmem:[%s217 + $0x38] sm:$0xff] %vm4581, %v7626
        %7659 = vst.msk [vmem:[%s217 + $0x40] sm:$0xff] %vm4581, %v7627
        %7660 = vst.msk [vmem:[%s217 + $0x48] sm:$0xff] %vm4581, %v7628
        %7661 = vst.msk [vmem:[%s217 + $0x50] sm:$0xff] %vm4581, %v7629
        %7662 = vst.msk [vmem:[%s217 + $0x58] sm:$0xff] %vm4581, %v7630
        %7663 = vst.msk [vmem:[%s217 + $0x60] sm:$0xff] %vm4581, %v7631
        %7664 = vst.msk [vmem:[%s217 + $0x68] sm:$0xff] %vm4581, %v7632
        %7665 = vst.msk [vmem:[%s217 + $0x70] sm:$0xff] %vm4581, %v7633
        %7666 = vst.msk [vmem:[%s217 + $0x78] sm:$0xff] %vm4581, %v7634
        %7667 = vst.msk [vmem:[%s217 + $0x80] sm:$0xff] %vm4581, %v7635
        %7668 = vst.msk [vmem:[%s217 + $0x88] sm:$0xff] %vm4581, %v7636
        %7669 = vst.msk [vmem:[%s217 + $0x90] sm:$0xff] %vm4581, %v7637
        %7670 = vst.msk [vmem:[%s217 + $0x98] sm:$0xff] %vm4581, %v7638
        %7671 = vst.msk [vmem:[%s217 + $0xa0] sm:$0xff] %vm4581, %v7639
        %7672 = vst.msk [vmem:[%s217 + $0xa8] sm:$0xff] %vm4581, %v7640
        %7673 = vst.msk [vmem:[%s217 + $0xb0] sm:$0xff] %vm4581, %v7641
        %7674 = vst.msk [vmem:[%s217 + $0xb8] sm:$0xff] %vm4581, %v7642
        %7675 = vst.msk [vmem:[%s217 + $0xc0] sm:$0xff] %vm4581, %v7643
        %7676 = vst.msk [vmem:[%s217 + $0xc8] sm:$0xff] %vm4581, %v7644
        %7677 = vst.msk [vmem:[%s217 + $0xd0] sm:$0xff] %vm4581, %v7645
        %7678 = vst.msk [vmem:[%s217 + $0xd8] sm:$0xff] %vm4581, %v7646
        %7679 = vst.msk [vmem:[%s217 + $0xe0] sm:$0xff] %vm4581, %v7647
        %7680 = vst.msk [vmem:[%s217 + $0xe8] sm:$0xff] %vm4581, %v7648
        %7681 = vst.msk [vmem:[%s217 + $0xf0] sm:$0xff] %vm4581, %v7649
        %7682 = vst.msk [vmem:[%s217 + $0xf8] sm:$0xff] %vm4581, %v7650
        %s7683 = sand.u32 %s137, 1
        %s7684 = scalar_lea.sflag [#allocation7], %s7683
        %s7685 = sand.u32 %s137, 1
        %s7686 = smul.addr %s7685, 256
        %s7687 = scalar_lea.vmem [#allocation6], %s7686
        // Predicated region
        $region41: #{decoder_forward.1} parent=39 // pred_check
          %p7688 = pneg %p147
        $region42: #{decoder_forward.1} parent=39 // pred_check_branch
          %7690 = sbr.rel (%p7688) target = $region44
        $region43: #{decoder_forward.1} parent=39 // pred_region
          %s7692 = ssub.s32 4096, 4096
          %7693 = vsyncadd %s7684, %s7692
          %s7694 = smul.addr %s19, 32
          %s7695 = smul.addr %s7694, 128
          %s7696 = scalar_lea.hbm %s5, %s7695
          %s7697 = sshll.u32 %s7687, 4
          %s7698 = int_to_ptr.vmem [resolvable:$true] %s7697
          %7703 = dma.vmem_to_hbm [thread:$0]  %s7698, 4096, %s7696, %s7684, 128, 128, 8
        $region44: #{decoder_forward.1} parent=39 // pred_fallthru
          _
      $region40: #{decoder_forward.1} parent=5 // pred_fallthru
        _
      %p7704 = scmp.le.s32.totalorder 2, %s14
      // Predicated region
      $region45: #{decoder_forward.1} parent=5 // pred_check
        %p7705 = pneg %p7704
      $region46: #{decoder_forward.1} parent=5 // pred_check_branch
        %7707 = sbr.rel (%p7705) target = $region48
      $region47: #{decoder_forward.1} parent=5 // pred_region
        %s7708 = ssub.s32 %s14, 2
        // Predicated region
        $region49: #{decoder_forward.1} parent=47 // pred_check
          %p7709 = pneg %p153
        $region50: #{decoder_forward.1} parent=47 // pred_check_branch
          %7711 = sbr.rel (%p7709) target = $region52
        $region51: #{decoder_forward.1} parent=47 // pred_region
          %s7712 = sand.u32 %s138, 1
          %s7713 = scalar_lea.sflag [#allocation7], %s7712
          %s7714 = sand.u32 %s138, 1
          %s7715 = smul.addr %s7714, 256
          %s7716 = scalar_lea.vmem [#allocation6], %s7715
          %7717 = dma.done %s7713, 4096
        $region52: #{decoder_forward.1} parent=47 // pred_fallthru
          _
      $region48: #{decoder_forward.1} parent=5 // pred_fallthru
        _
    $region6: #{decoder_forward.1} parent=1 // loop_footer
      %s18 = sadd.s32 1, %s14
    $region7: #{decoder_forward.1} parent=1 // loop_footer_branch
      %13 = sbr.rel target = $region3
    $region8: #{decoder_forward.1} parent=1 // loop_exit
      _
    %7718 = vsyncpa [#allocation7], 1
    %s7719 = scalar_lea.sflag [#allocation7], 1
    %7720 = vsyncpa %s7719, 1

</llo_original>
